<compile_context>
chip_gen: v5e
topology: v5e:2x2
jax: 0.10.0
libtpu: 0.0.40
codegen_flags: <defaults>
</compile_context>

<pallas_src>
import math
import functools

import jax
import jax.numpy as jnp
from jax.experimental import pallas as pl
from jax.experimental.pallas import tpu as pltpu


def _lstm_stack_kernel(head_ref, mod_ref, hc_ref, wx_ref, wh_ref, b_ref,
                       hc_out_ref):
    """All L LSTM layers for one batch tile of single-timestep inputs.

    head_ref, mod_ref : (TM, E)        f32 activations
    hc_ref, hc_out_ref: (TM, 2*L*E)    f32 packed [h_0 .. h_{L-1} | c_0 .. c_{L-1}]
    wx_ref            : ((L+1)*4, E, E) bf16 per-(source, gate) input weights
                        sources: 0=head, 1=modifier, 1+k = layer-k input (k>=1)
    wh_ref            : (L*4, E, E)    bf16 per-(layer, gate) recurrent weights
    b_ref             : (L*4, 1, E)    f32 pre-summed bias (b_ih + b_hh)
    Gate order follows PyTorch: [i, f, g, o].
    """
    E = head_ref.shape[-1]
    L = wh_ref.shape[0] // 4

    head_b = head_ref[...].astype(jnp.bfloat16)
    mod_b = mod_ref[...].astype(jnp.bfloat16)
    hc = hc_ref[...]                                    # (TM, 2*L*E) f32

    x_b = None                                          # carried layer input (bf16)
    for k in range(L):                                  # static unroll; L is small
        h = hc[:, k * E:(k + 1) * E]                    # (TM, E) f32
        c = hc[:, (L + k) * E:(L + k + 1) * E]          # (TM, E) f32
        h_b = h.astype(jnp.bfloat16)

        if k == 0:
            sources = ((0, head_b), (1, mod_b))
        else:
            sources = ((k + 1, x_b),)

        zs = []
        for gate in range(4):                           # per-gate dots -> lane 0
            z = b_ref[4 * k + gate]                     # (1, E) f32, broadcasts
            for src, act in sources:
                z = z + jnp.dot(act, wx_ref[4 * src + gate],
                                preferred_element_type=jnp.float32)
            z = z + jnp.dot(h_b, wh_ref[4 * k + gate],
                            preferred_element_type=jnp.float32)
            zs.append(z)

        i_g = jax.nn.sigmoid(zs[0])
        f_g = jax.nn.sigmoid(zs[1])
        g_g = jnp.tanh(zs[2])
        o_g = jax.nn.sigmoid(zs[3])

        c_new = f_g * c + i_g * g_g
        h_new = o_g * jnp.tanh(c_new)

        hc_out_ref[:, k * E:(k + 1) * E] = h_new
        hc_out_ref[:, (L + k) * E:(L + k + 1) * E] = c_new

        x_b = h_new.astype(jnp.bfloat16)                # next layer's input


@functools.partial(jax.jit, static_argnames=("tile_m",))
def lstm_combiner_forward(head_embed, modifier_embed, hc, wx, wh, b, *,
                          tile_m=256):
    """Batched combiner forward.

    head_embed, modifier_embed : (B, E) f32
    hc                         : (B, 2*L*E) f32 packed hidden/cell state
    Returns (y, hc_new): y = lstm_out[0] per element, shape (B, E);
    hc_new is the updated packed state (feed back on the next call).
    """
    head = head_embed.astype(jnp.float32)
    mod = modifier_embed.astype(jnp.float32)
    hc = hc.astype(jnp.float32)

    B, E = head.shape
    two_le = hc.shape[-1]
    L = two_le // (2 * E)

    n_tiles = pl.cdiv(B, tile_m)
    Bp = n_tiles * tile_m
    if Bp != B:
        pad = ((0, Bp - B), (0, 0))
        head = jnp.pad(head, pad)
        mod = jnp.pad(mod, pad)
        hc = jnp.pad(hc, pad)

    hc_new = pl.pallas_call(
        _lstm_stack_kernel,
        out_shape=jax.ShapeDtypeStruct((Bp, two_le), jnp.float32),
        grid=(n_tiles,),
        in_specs=[
            pl.BlockSpec((tile_m, E), lambda i: (i, 0)),        # head
            pl.BlockSpec((tile_m, E), lambda i: (i, 0)),        # modifier
            pl.BlockSpec((tile_m, two_le), lambda i: (i, 0)),   # packed h|c state
            pl.BlockSpec(wx.shape, lambda i: (0, 0, 0)),        # weights: resident
            pl.BlockSpec(wh.shape, lambda i: (0, 0, 0)),
            pl.BlockSpec(b.shape, lambda i: (0, 0, 0)),
        ],
        out_specs=pl.BlockSpec((tile_m, two_le), lambda i: (i, 0)),
        input_output_aliases={2: 0},        # update state in place (P8)
        compiler_params=pltpu.CompilerParams(
            dimension_semantics=("parallel",)),
    )(head, mod, hc, wx, wh, b)

    hc_new = hc_new[:B]
    y = hc_new[:, (L - 1) * E:L * E]        # top layer's new hidden == lstm_out[0]
    return y, hc_new


def init_lstm_params(key, embedding_dim, num_layers):
    """Per-layer raw params in PyTorch nn.LSTM layout: (w_ih, w_hh, b_ih, b_hh)."""
    E = embedding_dim
    stdv = 1.0 / math.sqrt(E)
    params = []
    for layer in range(num_layers):
        in_dim = 2 * E if layer == 0 else E
        key, k1, k2, k3, k4 = jax.random.split(key, 5)
        w_ih = jax.random.uniform(k1, (4 * E, in_dim), jnp.float32, -stdv, stdv)
        w_hh = jax.random.uniform(k2, (4 * E, E), jnp.float32, -stdv, stdv)
        b_ih = jax.random.uniform(k3, (4 * E,), jnp.float32, -stdv, stdv)
        b_hh = jax.random.uniform(k4, (4 * E,), jnp.float32, -stdv, stdv)
        params.append((w_ih, w_hh, b_ih, b_hh))
    return params


def prepare_fused_params(params, embedding_dim, weight_dtype=jnp.bfloat16):
    """Build per-(source, gate) weight slabs and pre-summed biases for the kernel."""
    E = embedding_dim
    L = len(params)
    wx_slabs = []   # sources: 0=head, 1=modifier, then layers 1..L-1; 4 gates each
    wh_slabs = []
    b_slabs = []

    w_ih0 = params[0][0]                                   # (4E, 2E)
    for half in range(2):                                  # 0: head cols, 1: modifier cols
        cols = slice(half * E, (half + 1) * E)
        for gate in range(4):
            rows = slice(gate * E, (gate + 1) * E)
            wx_slabs.append(w_ih0[rows, cols].T)           # (E, E)
    for k in range(1, L):
        w_ih = params[k][0]                                # (4E, E)
        for gate in range(4):
            wx_slabs.append(w_ih[gate * E:(gate + 1) * E, :].T)

    for k in range(L):
        w_hh = params[k][1]                                # (4E, E)
        b_sum = params[k][2] + params[k][3]                # (4E,)
        for gate in range(4):
            wh_slabs.append(w_hh[gate * E:(gate + 1) * E, :].T)
            b_slabs.append(b_sum[gate * E:(gate + 1) * E].reshape(1, E))

    wx = jnp.stack(wx_slabs).astype(weight_dtype)          # ((L+1)*4, E, E)
    wh = jnp.stack(wh_slabs).astype(weight_dtype)          # (L*4, E, E)
    b = jnp.stack(b_slabs).astype(jnp.float32)             # (L*4, 1, E)
    return wx, wh, b


def pack_state(h, c):
    """(L, B, E), (L, B, E) -> (B, 2*L*E) packed [h_0..h_{L-1} | c_0..c_{L-1}]."""
    L, B, E = h.shape
    h_flat = jnp.transpose(h, (1, 0, 2)).reshape(B, L * E)
    c_flat = jnp.transpose(c, (1, 0, 2)).reshape(B, L * E)
    return jnp.concatenate([h_flat, c_flat], axis=-1)


def unpack_state(hc, num_layers, embedding_dim):
    """(B, 2*L*E) -> ((L, B, E), (L, B, E))."""
    L, E = num_layers, embedding_dim
    B = hc.shape[0]
    h = jnp.transpose(hc[:, :L * E].reshape(B, L, E), (1, 0, 2))
    c = jnp.transpose(hc[:, L * E:].reshape(B, L, E), (1, 0, 2))
    return h, c


def _reference_forward(head, mod, h0, c0, params, dot_dtype):
    """Pure-JAX reference of the same one-timestep multi-layer LSTM.

    dot_dtype=f32 reproduces the original module exactly; dot_dtype=bf16
    mirrors the kernel's matmul numerics (bf16 operands, f32 accumulation).
    """
    E = head.shape[-1]
    x = jnp.concatenate([head, mod], axis=-1).astype(jnp.float32)
    hs, cs = [], []
    for k, (w_ih, w_hh, b_ih, b_hh) in enumerate(params):
        z = (jnp.dot(x.astype(dot_dtype), w_ih.T.astype(dot_dtype),
                     preferred_element_type=jnp.float32)
             + jnp.dot(h0[k].astype(dot_dtype), w_hh.T.astype(dot_dtype),
                       preferred_element_type=jnp.float32)
             + b_ih + b_hh)
        i_g = jax.nn.sigmoid(z[:, 0 * E:1 * E])
        f_g = jax.nn.sigmoid(z[:, 1 * E:2 * E])
        g_g = jnp.tanh(z[:, 2 * E:3 * E])
        o_g = jax.nn.sigmoid(z[:, 3 * E:4 * E])
        c_new = f_g * c0[k] + i_g * g_g
        h_new = o_g * jnp.tanh(c_new)
        hs.append(h_new)
        cs.append(c_new)
        x = h_new
    return hs[-1], jnp.stack(hs), jnp.stack(cs)


if __name__ == "__main__":
    embedding_dim = 32
    num_layers = 2
    batch = 512          # many independent combiner invocations per pallas_call
    tile_m = 256         # >=256 rows fills the MXU on v6e/v7x (128 suffices on v5e)

    key = jax.random.PRNGKey(0)
    kp, kh, km = jax.random.split(key, 3)

    params = init_lstm_params(kp, embedding_dim, num_layers)
    wx, wh, b = prepare_fused_params(params, embedding_dim)

    head_embed = jax.random.normal(kh, (batch, embedding_dim), jnp.float32)
    modifier_embed = jax.random.normal(km, (batch, embedding_dim), jnp.float32)

    # init_hidden(): zeros, one private state per batch element.
    h0 = jnp.zeros((num_layers, batch, embedding_dim), jnp.float32)
    c0 = jnp.zeros((num_layers, batch, embedding_dim), jnp.float32)
    hc0 = pack_state(h0, c0)

    y, hc_new = lstm_combiner_forward(head_embed, modifier_embed, hc0,
                                      wx, wh, b, tile_m=tile_m)
    jax.block_until_ready((y, hc_new))

    h_new, c_new = unpack_state(hc_new, num_layers, embedding_dim)

    # Numerics-matched reference (bf16 matmul operands, f32 accumulation).
    y_m, h_m, c_m = _reference_forward(head_embed, modifier_embed, h0, c0,
                                       params, jnp.bfloat16)
    # Full-f32 reference (original PyTorch-module semantics).
    y_f, h_f, c_f = _reference_forward(head_embed, modifier_embed, h0, c0,
                                       params, jnp.float32)

    assert y.shape == (batch, embedding_dim)
    assert jnp.allclose(y, y_m, rtol=2e-3, atol=2e-3)
    assert jnp.allclose(h_new, h_m, rtol=2e-3, atol=2e-3)
    assert jnp.allclose(c_new, c_m, rtol=2e-3, atol=2e-3)
    assert jnp.allclose(y, y_f, rtol=5e-2, atol=5e-2)
    assert jnp.allclose(h_new, h_f, rtol=5e-2, atol=5e-2)

    print("KERNEL_OK")
</pallas_src>

<mosaic_0001>
module attributes {stable_mosaic.version = 11 : i64} {
  func.func @_lstm_stack_kernel(%arg0: i32, %arg1: memref<256x32xf32, #tpu.memory_space<vmem>>, %arg2: memref<256x32xf32, #tpu.memory_space<vmem>>, %arg3: memref<256x128xf32, #tpu.memory_space<vmem>>, %arg4: memref<12x32x32xbf16, #tpu.memory_space<vmem>>, %arg5: memref<8x32x32xbf16, #tpu.memory_space<vmem>>, %arg6: memref<8x1x32xf32, #tpu.memory_space<vmem>>, %arg7: memref<256x128xf32, #tpu.memory_space<vmem>>) attributes {dimension_semantics = [#tpu.dimension_semantics<parallel>], iteration_bounds = array<i64: 2>, scalar_prefetch = 0 : i64, scratch_operands = 0 : i64, tpu.core_type = #tpu.core_type<tc>, window_params = [{transform_indices = @transform_0, window_bounds = array<i64: 256, 32>}, {transform_indices = @transform_1, window_bounds = array<i64: 256, 32>}, {transform_indices = @transform_2, window_bounds = array<i64: 256, 128>}, {pipeline_mode = #tpu.pipeline_mode<synchronous>, transform_indices = @transform_3, window_bounds = array<i64: 12, 32, 32>}, {pipeline_mode = #tpu.pipeline_mode<synchronous>, transform_indices = @transform_4, window_bounds = array<i64: 8, 32, 32>}, {pipeline_mode = #tpu.pipeline_mode<synchronous>, transform_indices = @transform_5, window_bounds = array<i64: 8, 1, 32>}, {transform_indices = @transform_6, window_bounds = array<i64: 256, 128>}]} {
    %c0 = arith.constant 0 : index
    %c0_0 = arith.constant 0 : index
    %0 = vector.load %arg1[%c0, %c0_0] : memref<256x32xf32, #tpu.memory_space<vmem>>, vector<256x32xf32>
    %1 = arith.truncf %0 : vector<256x32xf32> to vector<256x32xbf16>
    %c0_1 = arith.constant 0 : index
    %c0_2 = arith.constant 0 : index
    %2 = vector.load %arg2[%c0_1, %c0_2] : memref<256x32xf32, #tpu.memory_space<vmem>>, vector<256x32xf32>
    %3 = arith.truncf %2 : vector<256x32xf32> to vector<256x32xbf16>
    %c0_3 = arith.constant 0 : index
    %c0_4 = arith.constant 0 : index
    %4 = vector.load %arg3[%c0_3, %c0_4] : memref<256x128xf32, #tpu.memory_space<vmem>>, vector<256x128xf32>
    %5 = vector.extract_strided_slice %4 {offsets = [0, 0], sizes = [256, 32], strides = [1, 1]} : vector<256x128xf32> to vector<256x32xf32>
    %6 = vector.extract_strided_slice %4 {offsets = [0, 64], sizes = [256, 32], strides = [1, 1]} : vector<256x128xf32> to vector<256x32xf32>
    %7 = arith.truncf %5 : vector<256x32xf32> to vector<256x32xbf16>
    %c0_5 = arith.constant 0 : index
    %c0_6 = arith.constant 0 : index
    %c0_7 = arith.constant 0 : index
    %8 = vector.load %arg6[%c0_5, %c0_6, %c0_7] : memref<8x1x32xf32, #tpu.memory_space<vmem>>, vector<1x1x32xf32>
    %9 = vector.shape_cast %8 : vector<1x1x32xf32> to vector<1x32xf32>
    %c0_8 = arith.constant 0 : index
    %c0_9 = arith.constant 0 : index
    %c0_10 = arith.constant 0 : index
    %10 = vector.load %arg4[%c0_8, %c0_9, %c0_10] : memref<12x32x32xbf16, #tpu.memory_space<vmem>>, vector<1x32x32xbf16>
    %11 = vector.shape_cast %10 : vector<1x32x32xbf16> to vector<32x32xbf16>
    %cst = arith.constant dense<0.000000e+00> : vector<256x32xf32>
    %12 = tpu.matmul %1, %11, %cst {dimension_numbers = #tpu.dot_dimension_numbers<[1], [0], [0], [1], [0, 0, 1, 1], [], []>} : vector<256x32xbf16>, vector<32x32xbf16>, vector<256x32xf32> -> vector<256x32xf32>
    %13 = vector.broadcast %9 : vector<1x32xf32> to vector<256x32xf32>
    %14 = arith.addf %13, %12 : vector<256x32xf32>
    %c4 = arith.constant 4 : index
    %c0_11 = arith.constant 0 : index
    %c0_12 = arith.constant 0 : index
    %15 = vector.load %arg4[%c4, %c0_11, %c0_12] : memref<12x32x32xbf16, #tpu.memory_space<vmem>>, vector<1x32x32xbf16>
    %16 = vector.shape_cast %15 : vector<1x32x32xbf16> to vector<32x32xbf16>
    %cst_13 = arith.constant dense<0.000000e+00> : vector<256x32xf32>
    %17 = tpu.matmul %3, %16, %cst_13 {dimension_numbers = #tpu.dot_dimension_numbers<[1], [0], [0], [1], [0, 0, 1, 1], [], []>} : vector<256x32xbf16>, vector<32x32xbf16>, vector<256x32xf32> -> vector<256x32xf32>
    %18 = arith.addf %14, %17 : vector<256x32xf32>
    %c0_14 = arith.constant 0 : index
    %c0_15 = arith.constant 0 : index
    %c0_16 = arith.constant 0 : index
    %19 = vector.load %arg5[%c0_14, %c0_15, %c0_16] : memref<8x32x32xbf16, #tpu.memory_space<vmem>>, vector<1x32x32xbf16>
    %20 = vector.shape_cast %19 : vector<1x32x32xbf16> to vector<32x32xbf16>
    %cst_17 = arith.constant dense<0.000000e+00> : vector<256x32xf32>
    %21 = tpu.matmul %7, %20, %cst_17 {dimension_numbers = #tpu.dot_dimension_numbers<[1], [0], [0], [1], [0, 0, 1, 1], [], []>} : vector<256x32xbf16>, vector<32x32xbf16>, vector<256x32xf32> -> vector<256x32xf32>
    %22 = arith.addf %18, %21 : vector<256x32xf32>
    %c1 = arith.constant 1 : index
    %c0_18 = arith.constant 0 : index
    %c0_19 = arith.constant 0 : index
    %23 = vector.load %arg6[%c1, %c0_18, %c0_19] : memref<8x1x32xf32, #tpu.memory_space<vmem>>, vector<1x1x32xf32>
    %24 = vector.shape_cast %23 : vector<1x1x32xf32> to vector<1x32xf32>
    %c1_20 = arith.constant 1 : index
    %c0_21 = arith.constant 0 : index
    %c0_22 = arith.constant 0 : index
    %25 = vector.load %arg4[%c1_20, %c0_21, %c0_22] : memref<12x32x32xbf16, #tpu.memory_space<vmem>>, vector<1x32x32xbf16>
    %26 = vector.shape_cast %25 : vector<1x32x32xbf16> to vector<32x32xbf16>
    %cst_23 = arith.constant dense<0.000000e+00> : vector<256x32xf32>
    %27 = tpu.matmul %1, %26, %cst_23 {dimension_numbers = #tpu.dot_dimension_numbers<[1], [0], [0], [1], [0, 0, 1, 1], [], []>} : vector<256x32xbf16>, vector<32x32xbf16>, vector<256x32xf32> -> vector<256x32xf32>
    %28 = vector.broadcast %24 : vector<1x32xf32> to vector<256x32xf32>
    %29 = arith.addf %28, %27 : vector<256x32xf32>
    %c5 = arith.constant 5 : index
    %c0_24 = arith.constant 0 : index
    %c0_25 = arith.constant 0 : index
    %30 = vector.load %arg4[%c5, %c0_24, %c0_25] : memref<12x32x32xbf16, #tpu.memory_space<vmem>>, vector<1x32x32xbf16>
    %31 = vector.shape_cast %30 : vector<1x32x32xbf16> to vector<32x32xbf16>
    %cst_26 = arith.constant dense<0.000000e+00> : vector<256x32xf32>
    %32 = tpu.matmul %3, %31, %cst_26 {dimension_numbers = #tpu.dot_dimension_numbers<[1], [0], [0], [1], [0, 0, 1, 1], [], []>} : vector<256x32xbf16>, vector<32x32xbf16>, vector<256x32xf32> -> vector<256x32xf32>
    %33 = arith.addf %29, %32 : vector<256x32xf32>
    %c1_27 = arith.constant 1 : index
    %c0_28 = arith.constant 0 : index
    %c0_29 = arith.constant 0 : index
    %34 = vector.load %arg5[%c1_27, %c0_28, %c0_29] : memref<8x32x32xbf16, #tpu.memory_space<vmem>>, vector<1x32x32xbf16>
    %35 = vector.shape_cast %34 : vector<1x32x32xbf16> to vector<32x32xbf16>
    %cst_30 = arith.constant dense<0.000000e+00> : vector<256x32xf32>
    %36 = tpu.matmul %7, %35, %cst_30 {dimension_numbers = #tpu.dot_dimension_numbers<[1], [0], [0], [1], [0, 0, 1, 1], [], []>} : vector<256x32xbf16>, vector<32x32xbf16>, vector<256x32xf32> -> vector<256x32xf32>
    %37 = arith.addf %33, %36 : vector<256x32xf32>
    %c2 = arith.constant 2 : index
    %c0_31 = arith.constant 0 : index
    %c0_32 = arith.constant 0 : index
    %38 = vector.load %arg6[%c2, %c0_31, %c0_32] : memref<8x1x32xf32, #tpu.memory_space<vmem>>, vector<1x1x32xf32>
    %39 = vector.shape_cast %38 : vector<1x1x32xf32> to vector<1x32xf32>
    %c2_33 = arith.constant 2 : index
    %c0_34 = arith.constant 0 : index
    %c0_35 = arith.constant 0 : index
    %40 = vector.load %arg4[%c2_33, %c0_34, %c0_35] : memref<12x32x32xbf16, #tpu.memory_space<vmem>>, vector<1x32x32xbf16>
    %41 = vector.shape_cast %40 : vector<1x32x32xbf16> to vector<32x32xbf16>
    %cst_36 = arith.constant dense<0.000000e+00> : vector<256x32xf32>
    %42 = tpu.matmul %1, %41, %cst_36 {dimension_numbers = #tpu.dot_dimension_numbers<[1], [0], [0], [1], [0, 0, 1, 1], [], []>} : vector<256x32xbf16>, vector<32x32xbf16>, vector<256x32xf32> -> vector<256x32xf32>
    %43 = vector.broadcast %39 : vector<1x32xf32> to vector<256x32xf32>
    %44 = arith.addf %43, %42 : vector<256x32xf32>
    %c6 = arith.constant 6 : index
    %c0_37 = arith.constant 0 : index
    %c0_38 = arith.constant 0 : index
    %45 = vector.load %arg4[%c6, %c0_37, %c0_38] : memref<12x32x32xbf16, #tpu.memory_space<vmem>>, vector<1x32x32xbf16>
    %46 = vector.shape_cast %45 : vector<1x32x32xbf16> to vector<32x32xbf16>
    %cst_39 = arith.constant dense<0.000000e+00> : vector<256x32xf32>
    %47 = tpu.matmul %3, %46, %cst_39 {dimension_numbers = #tpu.dot_dimension_numbers<[1], [0], [0], [1], [0, 0, 1, 1], [], []>} : vector<256x32xbf16>, vector<32x32xbf16>, vector<256x32xf32> -> vector<256x32xf32>
    %48 = arith.addf %44, %47 : vector<256x32xf32>
    %c2_40 = arith.constant 2 : index
    %c0_41 = arith.constant 0 : index
    %c0_42 = arith.constant 0 : index
    %49 = vector.load %arg5[%c2_40, %c0_41, %c0_42] : memref<8x32x32xbf16, #tpu.memory_space<vmem>>, vector<1x32x32xbf16>
    %50 = vector.shape_cast %49 : vector<1x32x32xbf16> to vector<32x32xbf16>
    %cst_43 = arith.constant dense<0.000000e+00> : vector<256x32xf32>
    %51 = tpu.matmul %7, %50, %cst_43 {dimension_numbers = #tpu.dot_dimension_numbers<[1], [0], [0], [1], [0, 0, 1, 1], [], []>} : vector<256x32xbf16>, vector<32x32xbf16>, vector<256x32xf32> -> vector<256x32xf32>
    %52 = arith.addf %48, %51 : vector<256x32xf32>
    %c3 = arith.constant 3 : index
    %c0_44 = arith.constant 0 : index
    %c0_45 = arith.constant 0 : index
    %53 = vector.load %arg6[%c3, %c0_44, %c0_45] : memref<8x1x32xf32, #tpu.memory_space<vmem>>, vector<1x1x32xf32>
    %54 = vector.shape_cast %53 : vector<1x1x32xf32> to vector<1x32xf32>
    %c3_46 = arith.constant 3 : index
    %c0_47 = arith.constant 0 : index
    %c0_48 = arith.constant 0 : index
    %55 = vector.load %arg4[%c3_46, %c0_47, %c0_48] : memref<12x32x32xbf16, #tpu.memory_space<vmem>>, vector<1x32x32xbf16>
    %56 = vector.shape_cast %55 : vector<1x32x32xbf16> to vector<32x32xbf16>
    %cst_49 = arith.constant dense<0.000000e+00> : vector<256x32xf32>
    %57 = tpu.matmul %1, %56, %cst_49 {dimension_numbers = #tpu.dot_dimension_numbers<[1], [0], [0], [1], [0, 0, 1, 1], [], []>} : vector<256x32xbf16>, vector<32x32xbf16>, vector<256x32xf32> -> vector<256x32xf32>
    %58 = vector.broadcast %54 : vector<1x32xf32> to vector<256x32xf32>
    %59 = arith.addf %58, %57 : vector<256x32xf32>
    %c7 = arith.constant 7 : index
    %c0_50 = arith.constant 0 : index
    %c0_51 = arith.constant 0 : index
    %60 = vector.load %arg4[%c7, %c0_50, %c0_51] : memref<12x32x32xbf16, #tpu.memory_space<vmem>>, vector<1x32x32xbf16>
    %61 = vector.shape_cast %60 : vector<1x32x32xbf16> to vector<32x32xbf16>
    %cst_52 = arith.constant dense<0.000000e+00> : vector<256x32xf32>
    %62 = tpu.matmul %3, %61, %cst_52 {dimension_numbers = #tpu.dot_dimension_numbers<[1], [0], [0], [1], [0, 0, 1, 1], [], []>} : vector<256x32xbf16>, vector<32x32xbf16>, vector<256x32xf32> -> vector<256x32xf32>
    %63 = arith.addf %59, %62 : vector<256x32xf32>
    %c3_53 = arith.constant 3 : index
    %c0_54 = arith.constant 0 : index
    %c0_55 = arith.constant 0 : index
    %64 = vector.load %arg5[%c3_53, %c0_54, %c0_55] : memref<8x32x32xbf16, #tpu.memory_space<vmem>>, vector<1x32x32xbf16>
    %65 = vector.shape_cast %64 : vector<1x32x32xbf16> to vector<32x32xbf16>
    %cst_56 = arith.constant dense<0.000000e+00> : vector<256x32xf32>
    %66 = tpu.matmul %7, %65, %cst_56 {dimension_numbers = #tpu.dot_dimension_numbers<[1], [0], [0], [1], [0, 0, 1, 1], [], []>} : vector<256x32xbf16>, vector<32x32xbf16>, vector<256x32xf32> -> vector<256x32xf32>
    %67 = arith.addf %63, %66 : vector<256x32xf32>
    %68 = arith.negf %22 : vector<256x32xf32>
    %69 = math.exp %68 : vector<256x32xf32>
    %cst_57 = arith.constant 1.000000e+00 : f32
    %70 = vector.broadcast %cst_57 : f32 to vector<256x32xf32>
    %71 = arith.addf %70, %69 : vector<256x32xf32>
    %72 = arith.divf %70, %71 : vector<256x32xf32>
    %73 = arith.negf %37 : vector<256x32xf32>
    %74 = math.exp %73 : vector<256x32xf32>
    %cst_58 = arith.constant 1.000000e+00 : f32
    %75 = vector.broadcast %cst_58 : f32 to vector<256x32xf32>
    %76 = arith.addf %75, %74 : vector<256x32xf32>
    %77 = arith.divf %75, %76 : vector<256x32xf32>
    %78 = math.tanh %52 : vector<256x32xf32>
    %79 = arith.negf %67 : vector<256x32xf32>
    %80 = math.exp %79 : vector<256x32xf32>
    %cst_59 = arith.constant 1.000000e+00 : f32
    %81 = vector.broadcast %cst_59 : f32 to vector<256x32xf32>
    %82 = arith.addf %81, %80 : vector<256x32xf32>
    %83 = arith.divf %81, %82 : vector<256x32xf32>
    %84 = arith.mulf %77, %6 : vector<256x32xf32>
    %85 = arith.mulf %72, %78 : vector<256x32xf32>
    %86 = arith.addf %84, %85 : vector<256x32xf32>
    %87 = math.tanh %86 : vector<256x32xf32>
    %88 = arith.mulf %83, %87 : vector<256x32xf32>
    %c0_60 = arith.constant 0 : index
    %c0_61 = arith.constant 0 : index
    %89 = vector.load %arg7[%c0_60, %c0_61] : memref<256x128xf32, #tpu.memory_space<vmem>>, vector<256x32xf32>
    tpu.vector_store %arg7[%c0_60, %c0_61], %88 {strides = array<i32>} : memref<256x128xf32, #tpu.memory_space<vmem>>, vector<256x32xf32>,
    %c0_62 = arith.constant 0 : index
    %c64 = arith.constant 64 : index
    %90 = vector.load %arg7[%c0_62, %c64] : memref<256x128xf32, #tpu.memory_space<vmem>>, vector<256x32xf32>
    tpu.vector_store %arg7[%c0_62, %c64], %86 {strides = array<i32>} : memref<256x128xf32, #tpu.memory_space<vmem>>, vector<256x32xf32>,
    %91 = arith.truncf %88 : vector<256x32xf32> to vector<256x32xbf16>
    %92 = vector.extract_strided_slice %4 {offsets = [0, 32], sizes = [256, 32], strides = [1, 1]} : vector<256x128xf32> to vector<256x32xf32>
    %93 = vector.extract_strided_slice %4 {offsets = [0, 96], sizes = [256, 32], strides = [1, 1]} : vector<256x128xf32> to vector<256x32xf32>
    %94 = arith.truncf %92 : vector<256x32xf32> to vector<256x32xbf16>
    %c4_63 = arith.constant 4 : index
    %c0_64 = arith.constant 0 : index
    %c0_65 = arith.constant 0 : index
    %95 = vector.load %arg6[%c4_63, %c0_64, %c0_65] : memref<8x1x32xf32, #tpu.memory_space<vmem>>, vector<1x1x32xf32>
    %96 = vector.shape_cast %95 : vector<1x1x32xf32> to vector<1x32xf32>
    %c8 = arith.constant 8 : index
    %c0_66 = arith.constant 0 : index
    %c0_67 = arith.constant 0 : index
    %97 = vector.load %arg4[%c8, %c0_66, %c0_67] : memref<12x32x32xbf16, #tpu.memory_space<vmem>>, vector<1x32x32xbf16>
    %98 = vector.shape_cast %97 : vector<1x32x32xbf16> to vector<32x32xbf16>
    %cst_68 = arith.constant dense<0.000000e+00> : vector<256x32xf32>
    %99 = tpu.matmul %91, %98, %cst_68 {dimension_numbers = #tpu.dot_dimension_numbers<[1], [0], [0], [1], [0, 0, 1, 1], [], []>} : vector<256x32xbf16>, vector<32x32xbf16>, vector<256x32xf32> -> vector<256x32xf32>
    %100 = vector.broadcast %96 : vector<1x32xf32> to vector<256x32xf32>
    %101 = arith.addf %100, %99 : vector<256x32xf32>
    %c4_69 = arith.constant 4 : index
    %c0_70 = arith.constant 0 : index
    %c0_71 = arith.constant 0 : index
    %102 = vector.load %arg5[%c4_69, %c0_70, %c0_71] : memref<8x32x32xbf16, #tpu.memory_space<vmem>>, vector<1x32x32xbf16>
    %103 = vector.shape_cast %102 : vector<1x32x32xbf16> to vector<32x32xbf16>
    %cst_72 = arith.constant dense<0.000000e+00> : vector<256x32xf32>
    %104 = tpu.matmul %94, %103, %cst_72 {dimension_numbers = #tpu.dot_dimension_numbers<[1], [0], [0], [1], [0, 0, 1, 1], [], []>} : vector<256x32xbf16>, vector<32x32xbf16>, vector<256x32xf32> -> vector<256x32xf32>
    %105 = arith.addf %101, %104 : vector<256x32xf32>
    %c5_73 = arith.constant 5 : index
    %c0_74 = arith.constant 0 : index
    %c0_75 = arith.constant 0 : index
    %106 = vector.load %arg6[%c5_73, %c0_74, %c0_75] : memref<8x1x32xf32, #tpu.memory_space<vmem>>, vector<1x1x32xf32>
    %107 = vector.shape_cast %106 : vector<1x1x32xf32> to vector<1x32xf32>
    %c9 = arith.constant 9 : index
    %c0_76 = arith.constant 0 : index
    %c0_77 = arith.constant 0 : index
    %108 = vector.load %arg4[%c9, %c0_76, %c0_77] : memref<12x32x32xbf16, #tpu.memory_space<vmem>>, vector<1x32x32xbf16>
    %109 = vector.shape_cast %108 : vector<1x32x32xbf16> to vector<32x32xbf16>
    %cst_78 = arith.constant dense<0.000000e+00> : vector<256x32xf32>
    %110 = tpu.matmul %91, %109, %cst_78 {dimension_numbers = #tpu.dot_dimension_numbers<[1], [0], [0], [1], [0, 0, 1, 1], [], []>} : vector<256x32xbf16>, vector<32x32xbf16>, vector<256x32xf32> -> vector<256x32xf32>
    %111 = vector.broadcast %107 : vector<1x32xf32> to vector<256x32xf32>
    %112 = arith.addf %111, %110 : vector<256x32xf32>
    %c5_79 = arith.constant 5 : index
    %c0_80 = arith.constant 0 : index
    %c0_81 = arith.constant 0 : index
    %113 = vector.load %arg5[%c5_79, %c0_80, %c0_81] : memref<8x32x32xbf16, #tpu.memory_space<vmem>>, vector<1x32x32xbf16>
    %114 = vector.shape_cast %113 : vector<1x32x32xbf16> to vector<32x32xbf16>
    %cst_82 = arith.constant dense<0.000000e+00> : vector<256x32xf32>
    %115 = tpu.matmul %94, %114, %cst_82 {dimension_numbers = #tpu.dot_dimension_numbers<[1], [0], [0], [1], [0, 0, 1, 1], [], []>} : vector<256x32xbf16>, vector<32x32xbf16>, vector<256x32xf32> -> vector<256x32xf32>
    %116 = arith.addf %112, %115 : vector<256x32xf32>
    %c6_83 = arith.constant 6 : index
    %c0_84 = arith.constant 0 : index
    %c0_85 = arith.constant 0 : index
    %117 = vector.load %arg6[%c6_83, %c0_84, %c0_85] : memref<8x1x32xf32, #tpu.memory_space<vmem>>, vector<1x1x32xf32>
    %118 = vector.shape_cast %117 : vector<1x1x32xf32> to vector<1x32xf32>
    %c10 = arith.constant 10 : index
    %c0_86 = arith.constant 0 : index
    %c0_87 = arith.constant 0 : index
    %119 = vector.load %arg4[%c10, %c0_86, %c0_87] : memref<12x32x32xbf16, #tpu.memory_space<vmem>>, vector<1x32x32xbf16>
    %120 = vector.shape_cast %119 : vector<1x32x32xbf16> to vector<32x32xbf16>
    %cst_88 = arith.constant dense<0.000000e+00> : vector<256x32xf32>
    %121 = tpu.matmul %91, %120, %cst_88 {dimension_numbers = #tpu.dot_dimension_numbers<[1], [0], [0], [1], [0, 0, 1, 1], [], []>} : vector<256x32xbf16>, vector<32x32xbf16>, vector<256x32xf32> -> vector<256x32xf32>
    %122 = vector.broadcast %118 : vector<1x32xf32> to vector<256x32xf32>
    %123 = arith.addf %122, %121 : vector<256x32xf32>
    %c6_89 = arith.constant 6 : index
    %c0_90 = arith.constant 0 : index
    %c0_91 = arith.constant 0 : index
    %124 = vector.load %arg5[%c6_89, %c0_90, %c0_91] : memref<8x32x32xbf16, #tpu.memory_space<vmem>>, vector<1x32x32xbf16>
    %125 = vector.shape_cast %124 : vector<1x32x32xbf16> to vector<32x32xbf16>
    %cst_92 = arith.constant dense<0.000000e+00> : vector<256x32xf32>
    %126 = tpu.matmul %94, %125, %cst_92 {dimension_numbers = #tpu.dot_dimension_numbers<[1], [0], [0], [1], [0, 0, 1, 1], [], []>} : vector<256x32xbf16>, vector<32x32xbf16>, vector<256x32xf32> -> vector<256x32xf32>
    %127 = arith.addf %123, %126 : vector<256x32xf32>
    %c7_93 = arith.constant 7 : index
    %c0_94 = arith.constant 0 : index
    %c0_95 = arith.constant 0 : index
    %128 = vector.load %arg6[%c7_93, %c0_94, %c0_95] : memref<8x1x32xf32, #tpu.memory_space<vmem>>, vector<1x1x32xf32>
    %129 = vector.shape_cast %128 : vector<1x1x32xf32> to vector<1x32xf32>
    %c11 = arith.constant 11 : index
    %c0_96 = arith.constant 0 : index
    %c0_97 = arith.constant 0 : index
    %130 = vector.load %arg4[%c11, %c0_96, %c0_97] : memref<12x32x32xbf16, #tpu.memory_space<vmem>>, vector<1x32x32xbf16>
    %131 = vector.shape_cast %130 : vector<1x32x32xbf16> to vector<32x32xbf16>
    %cst_98 = arith.constant dense<0.000000e+00> : vector<256x32xf32>
    %132 = tpu.matmul %91, %131, %cst_98 {dimension_numbers = #tpu.dot_dimension_numbers<[1], [0], [0], [1], [0, 0, 1, 1], [], []>} : vector<256x32xbf16>, vector<32x32xbf16>, vector<256x32xf32> -> vector<256x32xf32>
    %133 = vector.broadcast %129 : vector<1x32xf32> to vector<256x32xf32>
    %134 = arith.addf %133, %132 : vector<256x32xf32>
    %c7_99 = arith.constant 7 : index
    %c0_100 = arith.constant 0 : index
    %c0_101 = arith.constant 0 : index
    %135 = vector.load %arg5[%c7_99, %c0_100, %c0_101] : memref<8x32x32xbf16, #tpu.memory_space<vmem>>, vector<1x32x32xbf16>
    %136 = vector.shape_cast %135 : vector<1x32x32xbf16> to vector<32x32xbf16>
    %cst_102 = arith.constant dense<0.000000e+00> : vector<256x32xf32>
    %137 = tpu.matmul %94, %136, %cst_102 {dimension_numbers = #tpu.dot_dimension_numbers<[1], [0], [0], [1], [0, 0, 1, 1], [], []>} : vector<256x32xbf16>, vector<32x32xbf16>, vector<256x32xf32> -> vector<256x32xf32>
    %138 = arith.addf %134, %137 : vector<256x32xf32>
    %139 = arith.negf %105 : vector<256x32xf32>
    %140 = math.exp %139 : vector<256x32xf32>
    %cst_103 = arith.constant 1.000000e+00 : f32
    %141 = vector.broadcast %cst_103 : f32 to vector<256x32xf32>
    %142 = arith.addf %141, %140 : vector<256x32xf32>
    %143 = arith.divf %141, %142 : vector<256x32xf32>
    %144 = arith.negf %116 : vector<256x32xf32>
    %145 = math.exp %144 : vector<256x32xf32>
    %cst_104 = arith.constant 1.000000e+00 : f32
    %146 = vector.broadcast %cst_104 : f32 to vector<256x32xf32>
    %147 = arith.addf %146, %145 : vector<256x32xf32>
    %148 = arith.divf %146, %147 : vector<256x32xf32>
    %149 = math.tanh %127 : vector<256x32xf32>
    %150 = arith.negf %138 : vector<256x32xf32>
    %151 = math.exp %150 : vector<256x32xf32>
    %cst_105 = arith.constant 1.000000e+00 : f32
    %152 = vector.broadcast %cst_105 : f32 to vector<256x32xf32>
    %153 = arith.addf %152, %151 : vector<256x32xf32>
    %154 = arith.divf %152, %153 : vector<256x32xf32>
    %155 = arith.mulf %148, %93 : vector<256x32xf32>
    %156 = arith.mulf %143, %149 : vector<256x32xf32>
    %157 = arith.addf %155, %156 : vector<256x32xf32>
    %158 = math.tanh %157 : vector<256x32xf32>
    %159 = arith.mulf %154, %158 : vector<256x32xf32>
    %c0_106 = arith.constant 0 : index
    %c32 = arith.constant 32 : index
    %160 = vector.load %arg7[%c0_106, %c32] : memref<256x128xf32, #tpu.memory_space<vmem>>, vector<256x32xf32>
    tpu.vector_store %arg7[%c0_106, %c32], %159 {strides = array<i32>} : memref<256x128xf32, #tpu.memory_space<vmem>>, vector<256x32xf32>,
    %c0_107 = arith.constant 0 : index
    %c96 = arith.constant 96 : index
    %161 = vector.load %arg7[%c0_107, %c96] : memref<256x128xf32, #tpu.memory_space<vmem>>, vector<256x32xf32>
    tpu.vector_store %arg7[%c0_107, %c96], %157 {strides = array<i32>} : memref<256x128xf32, #tpu.memory_space<vmem>>, vector<256x32xf32>,
    return
  }
  func.func @transform_0(%arg0: i32) -> (i32, i32) {
    %c0_i32 = arith.constant 0 : i32
    %c0_i32_0 = arith.constant 0 : i32
    return %arg0, %c0_i32 : i32, i32
  }
  func.func @transform_1(%arg0: i32) -> (i32, i32) {
    %c0_i32 = arith.constant 0 : i32
    %c0_i32_0 = arith.constant 0 : i32
    return %arg0, %c0_i32 : i32, i32
  }
  func.func @transform_2(%arg0: i32) -> (i32, i32) {
    %c0_i32 = arith.constant 0 : i32
    %c0_i32_0 = arith.constant 0 : i32
    return %arg0, %c0_i32 : i32, i32
  }
  func.func @transform_3(%arg0: i32) -> (i32, i32, i32) {
    %c0_i32 = arith.constant 0 : i32
    %c0_i32_0 = arith.constant 0 : i32
    %c0_i32_1 = arith.constant 0 : i32
    %c0_i32_2 = arith.constant 0 : i32
    return %c0_i32, %c0_i32_0, %c0_i32_1 : i32, i32, i32
  }
  func.func @transform_4(%arg0: i32) -> (i32, i32, i32) {
    %c0_i32 = arith.constant 0 : i32
    %c0_i32_0 = arith.constant 0 : i32
    %c0_i32_1 = arith.constant 0 : i32
    %c0_i32_2 = arith.constant 0 : i32
    return %c0_i32, %c0_i32_0, %c0_i32_1 : i32, i32, i32
  }
  func.func @transform_5(%arg0: i32) -> (i32, i32, i32) {
    %c0_i32 = arith.constant 0 : i32
    %c0_i32_0 = arith.constant 0 : i32
    %c0_i32_1 = arith.constant 0 : i32
    %c0_i32_2 = arith.constant 0 : i32
    return %c0_i32, %c0_i32_0, %c0_i32_1 : i32, i32, i32
  }
  func.func @transform_6(%arg0: i32) -> (i32, i32) {
    %c0_i32 = arith.constant 0 : i32
    %c0_i32_0 = arith.constant 0 : i32
    return %arg0, %c0_i32 : i32, i32
  }
}

</mosaic_0001>

<llo_original>
// kernel: lstm_combiner_forward.1
$region0: #{lstm_combiner_forward.1}
  #allocation0 [shape = 'u32[]', space=smem, size = 0x4, offset = 0x4, fixed_abs, tag = 'smem constant byte address 0x4 - core index']
  #allocation1 [shape = 'u32[72,128]{1,0:T(1,128)}', space=vmem, size = 0x9000, scoped, tag = 'internal scratch']
  %s0 = inlined_call_operand.vmem [shape: f32[512,32], index: 0, kind: input, shape index: {}]
  %s1 = inlined_call_operand.vmem [shape: f32[512,32], index: 1, kind: input, shape index: {}]
  %s2 = inlined_call_operand.vmem [shape: f32[512,128], index: 2, kind: input, shape index: {}, may-alias: {2,6}]
  %s3 = inlined_call_operand.vmem [shape: bf16[12,32,32], index: 3, kind: input, shape index: {}]
  %s4 = inlined_call_operand.vmem [shape: bf16[8,32,32], index: 4, kind: input, shape index: {}]
  %s5 = inlined_call_operand.vmem [shape: f32[8,1,32], index: 5, kind: input, shape index: {}]
  %s6 = inlined_call_operand.vmem [shape: f32[512,128], index: 6, kind: output, shape index: {}, may-alias: {2,6}]
  %s7 = sld [smem:[#allocation0]]
  $region57: #{lstm_combiner_forward.1} parent=0
    _
  %s9 = ssub.s32 1, %s7
  %s10 = scalar_select 0, %s9, %s7
  loop: start=0, step=1, limit=4
  $region2: #{lstm_combiner_forward.1} parent=0 // loop_pre_header
    _
  $region3: #{lstm_combiner_forward.1} parent=0 // loop_header
    %s12 = sphi 0, %s16
    %p13 = scmp.ge.s32.totalorder %s12, 4
    %s22 = sphi 0, %s24
    %s25 = sphi 0, %s22
    %s26 = sphi 0, %s25
    %s42 = sphi 0, %s26
    %s48 = sphi 0, %s50
    %s51 = sphi 0, %s48
    %s52 = sphi 0, %s51
    %s68 = sphi 0, %s52
    %s74 = sphi 0, %s76
    %s77 = sphi 0, %s74
    %s78 = sphi 0, %s77
    %s94 = sphi 0, %s78
    %s98 = sphi 0, %s98
    %s100 = sphi 0, %s98
    %s101 = sphi 0, %s100
    %s115 = sphi 0, %s101
    %s119 = sphi 0, %s119
    %s121 = sphi 0, %s119
    %s122 = sphi 0, %s121
    %s136 = sphi 0, %s122
    %s140 = sphi 0, %s140
    %s142 = sphi 0, %s140
    %s143 = sphi 0, %s142
    %s157 = sphi 0, %s143
    %s163 = sphi 0, %s165
    %s166 = sphi 0, %s163
    %s167 = sphi 0, %s166
    %s183 = sphi 0, %s167
  $region4: #{lstm_combiner_forward.1} parent=0 // loop_header_branch
    %15 = sbr.rel (%p13) target = $region8
  $region5: #{lstm_combiner_forward.1} parent=0 // loop_body
    %s17 = ssub.s32 %s12, 1
    %s18 = ssub.s32 %s12, 2
    %s19 = sadd.s32 %s12, 1
    %s20 = ssub.s32 %s12, %s19
    %p21 = scmp.eq.s32.totalorder %s20, 0
    %s23 = sadd.s32 %s22, 1
    %s24 = scalar_select %p21, %s22, %s23
    %p27 = pneg %p21
    %p28 = scmp.eq.s32.totalorder %s12, 1
    %p29 = por %p27, %p28
    %p30 = scmp.ne.s32.totalorder %s22, %s25
    %p31 = scmp.eq.s32.totalorder %s12, 0
    %p32 = por %p30, %p31
    %p33 = scmp.ne.s32.totalorder %s22, %s25
    %p34 = scmp.eq.s32.totalorder %s17, 1
    %p35 = por %p33, %p34
    %p36 = scmp.ne.s32.totalorder %s25, %s26
    %p37 = scmp.eq.s32.totalorder %s17, 0
    %p38 = por %p36, %p37
    %p39 = scmp.ne.s32.totalorder %s25, %s26
    %p40 = scmp.eq.s32.totalorder %s18, 1
    %p41 = por %p39, %p40
    %p43 = scmp.ne.s32.totalorder %s26, %s42
    %p44 = scmp.eq.s32.totalorder %s18, 0
    %p45 = por %p43, %p44
    %s46 = ssub.s32 %s12, %s19
    %p47 = scmp.eq.s32.totalorder %s46, 0
    %s49 = sadd.s32 %s48, 1
    %s50 = scalar_select %p47, %s48, %s49
    %p53 = pneg %p47
    %p54 = scmp.eq.s32.totalorder %s12, 1
    %p55 = por %p53, %p54
    %p56 = scmp.ne.s32.totalorder %s48, %s51
    %p57 = scmp.eq.s32.totalorder %s12, 0
    %p58 = por %p56, %p57
    %p59 = scmp.ne.s32.totalorder %s48, %s51
    %p60 = scmp.eq.s32.totalorder %s17, 1
    %p61 = por %p59, %p60
    %p62 = scmp.ne.s32.totalorder %s51, %s52
    %p63 = scmp.eq.s32.totalorder %s17, 0
    %p64 = por %p62, %p63
    %p65 = scmp.ne.s32.totalorder %s51, %s52
    %p66 = scmp.eq.s32.totalorder %s18, 1
    %p67 = por %p65, %p66
    %p69 = scmp.ne.s32.totalorder %s52, %s68
    %p70 = scmp.eq.s32.totalorder %s18, 0
    %p71 = por %p69, %p70
    %s72 = ssub.s32 %s12, %s19
    %p73 = scmp.eq.s32.totalorder %s72, 0
    %s75 = sadd.s32 %s74, 1
    %s76 = scalar_select %p73, %s74, %s75
    %p79 = pneg %p73
    %p80 = scmp.eq.s32.totalorder %s12, 1
    %p81 = por %p79, %p80
    %p82 = scmp.ne.s32.totalorder %s74, %s77
    %p83 = scmp.eq.s32.totalorder %s12, 0
    %p84 = por %p82, %p83
    %p85 = scmp.ne.s32.totalorder %s74, %s77
    %p86 = scmp.eq.s32.totalorder %s17, 1
    %p87 = por %p85, %p86
    %p88 = scmp.ne.s32.totalorder %s77, %s78
    %p89 = scmp.eq.s32.totalorder %s17, 0
    %p90 = por %p88, %p89
    %p91 = scmp.ne.s32.totalorder %s77, %s78
    %p92 = scmp.eq.s32.totalorder %s18, 1
    %p93 = por %p91, %p92
    %p95 = scmp.ne.s32.totalorder %s78, %s94
    %p96 = scmp.eq.s32.totalorder %s18, 0
    %p97 = por %p95, %p96
    %s99 = sadd.s32 %s98, 1
    %p102 = scmp.eq.s32.totalorder %s12, 1
    %p103 = scmp.ne.s32.totalorder %s98, %s100
    %p104 = scmp.eq.s32.totalorder %s12, 0
    %p105 = por %p103, %p104
    %p106 = scmp.ne.s32.totalorder %s98, %s100
    %p107 = scmp.eq.s32.totalorder %s17, 1
    %p108 = por %p106, %p107
    %p109 = scmp.ne.s32.totalorder %s100, %s101
    %p110 = scmp.eq.s32.totalorder %s17, 0
    %p111 = por %p109, %p110
    %p112 = scmp.ne.s32.totalorder %s100, %s101
    %p113 = scmp.eq.s32.totalorder %s18, 1
    %p114 = por %p112, %p113
    %p116 = scmp.ne.s32.totalorder %s101, %s115
    %p117 = scmp.eq.s32.totalorder %s18, 0
    %p118 = por %p116, %p117
    %s120 = sadd.s32 %s119, 1
    %p123 = scmp.eq.s32.totalorder %s12, 1
    %p124 = scmp.ne.s32.totalorder %s119, %s121
    %p125 = scmp.eq.s32.totalorder %s12, 0
    %p126 = por %p124, %p125
    %p127 = scmp.ne.s32.totalorder %s119, %s121
    %p128 = scmp.eq.s32.totalorder %s17, 1
    %p129 = por %p127, %p128
    %p130 = scmp.ne.s32.totalorder %s121, %s122
    %p131 = scmp.eq.s32.totalorder %s17, 0
    %p132 = por %p130, %p131
    %p133 = scmp.ne.s32.totalorder %s121, %s122
    %p134 = scmp.eq.s32.totalorder %s18, 1
    %p135 = por %p133, %p134
    %p137 = scmp.ne.s32.totalorder %s122, %s136
    %p138 = scmp.eq.s32.totalorder %s18, 0
    %p139 = por %p137, %p138
    %s141 = sadd.s32 %s140, 1
    %p144 = scmp.eq.s32.totalorder %s12, 1
    %p145 = scmp.ne.s32.totalorder %s140, %s142
    %p146 = scmp.eq.s32.totalorder %s12, 0
    %p147 = por %p145, %p146
    %p148 = scmp.ne.s32.totalorder %s140, %s142
    %p149 = scmp.eq.s32.totalorder %s17, 1
    %p150 = por %p148, %p149
    %p151 = scmp.ne.s32.totalorder %s142, %s143
    %p152 = scmp.eq.s32.totalorder %s17, 0
    %p153 = por %p151, %p152
    %p154 = scmp.ne.s32.totalorder %s142, %s143
    %p155 = scmp.eq.s32.totalorder %s18, 1
    %p156 = por %p154, %p155
    %p158 = scmp.ne.s32.totalorder %s143, %s157
    %p159 = scmp.eq.s32.totalorder %s18, 0
    %p160 = por %p158, %p159
    %s161 = ssub.s32 %s12, %s19
    %p162 = scmp.eq.s32.totalorder %s161, 0
    %s164 = sadd.s32 %s163, 1
    %s165 = scalar_select %p162, %s163, %s164
    %p168 = pneg %p162
    %p169 = scmp.eq.s32.totalorder %s12, 1
    %p170 = por %p168, %p169
    %p171 = scmp.ne.s32.totalorder %s163, %s166
    %p172 = scmp.eq.s32.totalorder %s12, 0
    %p173 = por %p171, %p172
    %p174 = scmp.ne.s32.totalorder %s163, %s166
    %p175 = scmp.eq.s32.totalorder %s17, 1
    %p176 = por %p174, %p175
    %p177 = scmp.ne.s32.totalorder %s166, %s167
    %p178 = scmp.eq.s32.totalorder %s17, 0
    %p179 = por %p177, %p178
    %p180 = scmp.ne.s32.totalorder %s166, %s167
    %p181 = scmp.eq.s32.totalorder %s18, 1
    %p182 = por %p180, %p181
    %p184 = scmp.ne.s32.totalorder %s167, %s183
    %p185 = scmp.eq.s32.totalorder %s18, 0
    %p186 = por %p184, %p185
    %p187 = scmp.le.s32.totalorder 1, %s12
    %p188 = scmp.lt.s32.totalorder %s12, 3
    %p189 = pnand %p187, %p188
    %p190 = pneg %p189
    // Predicated region
    $region9: #{lstm_combiner_forward.1} parent=5 // pred_check
      _
    $region10: #{lstm_combiner_forward.1} parent=5 // pred_check_branch
      %192 = sbr.rel (%p189) target = $region12
    $region11: #{lstm_combiner_forward.1} parent=5 // pred_region
      %s193 = ssub.s32 %s12, 1
      // Predicated region
      $region13: #{lstm_combiner_forward.1} parent=11 // pred_check
        %p194 = pneg %p111
      $region14: #{lstm_combiner_forward.1} parent=11 // pred_check_branch
        %196 = sbr.rel (%p194) target = $region16
      $region15: #{lstm_combiner_forward.1} parent=11 // pred_region
        _
      $region16: #{lstm_combiner_forward.1} parent=11 // pred_fallthru
        _
      // Predicated region
      $region17: #{lstm_combiner_forward.1} parent=11 // pred_check
        %p197 = pneg %p132
      $region18: #{lstm_combiner_forward.1} parent=11 // pred_check_branch
        %199 = sbr.rel (%p197) target = $region20
      $region19: #{lstm_combiner_forward.1} parent=11 // pred_region
        _
      $region20: #{lstm_combiner_forward.1} parent=11 // pred_fallthru
        _
      // Predicated region
      $region21: #{lstm_combiner_forward.1} parent=11 // pred_check
        %p200 = pneg %p153
      $region22: #{lstm_combiner_forward.1} parent=11 // pred_check_branch
        %202 = sbr.rel (%p200) target = $region24
      $region23: #{lstm_combiner_forward.1} parent=11 // pred_region
        _
      $region24: #{lstm_combiner_forward.1} parent=11 // pred_fallthru
        _
    $region12: #{lstm_combiner_forward.1} parent=5 // pred_fallthru
      _
    %p203 = scmp.lt.s32.totalorder %s12, 2
    // Predicated region
    $region25: #{lstm_combiner_forward.1} parent=5 // pred_check
      %p204 = pneg %p203
    $region26: #{lstm_combiner_forward.1} parent=5 // pred_check_branch
      %206 = sbr.rel (%p204) target = $region28
    $region27: #{lstm_combiner_forward.1} parent=5 // pred_region
      // Predicated region
      $region29: #{lstm_combiner_forward.1} parent=27 // pred_check
        %p207 = pneg %p32
      $region30: #{lstm_combiner_forward.1} parent=27 // pred_check_branch
        %209 = sbr.rel (%p207) target = $region32
      $region31: #{lstm_combiner_forward.1} parent=27 // pred_region
        %s210 = smul.u32 32, %s12
        %p211 = scmp.lt.s32.totalorder %s210, 63
        %s212 = scalar_select %p211, %s210, 63
        %s213 = smul.addr %s212, 8
        %s214 = scalar_lea.vmem %s0, %s213
        %s215 = smul.u32 32, %s12
      $region32: #{lstm_combiner_forward.1} parent=27 // pred_fallthru
        _
      // Predicated region
      $region33: #{lstm_combiner_forward.1} parent=27 // pred_check
        %p216 = pneg %p58
      $region34: #{lstm_combiner_forward.1} parent=27 // pred_check_branch
        %218 = sbr.rel (%p216) target = $region36
      $region35: #{lstm_combiner_forward.1} parent=27 // pred_region
        %s219 = smul.u32 32, %s12
        %p220 = scmp.lt.s32.totalorder %s219, 63
        %s221 = scalar_select %p220, %s219, 63
        %s222 = smul.addr %s221, 8
        %s223 = scalar_lea.vmem %s1, %s222
        %s224 = smul.u32 32, %s12
      $region36: #{lstm_combiner_forward.1} parent=27 // pred_fallthru
        _
      // Predicated region
      $region37: #{lstm_combiner_forward.1} parent=27 // pred_check
        %p225 = pneg %p84
      $region38: #{lstm_combiner_forward.1} parent=27 // pred_check_branch
        %227 = sbr.rel (%p225) target = $region40
      $region39: #{lstm_combiner_forward.1} parent=27 // pred_region
        %s228 = smul.u32 32, %s12
        %p229 = scmp.lt.s32.totalorder %s228, 63
        %s230 = scalar_select %p229, %s228, 63
        %s231 = smul.addr %s230, 8
        %s232 = scalar_lea.vmem %s2, %s231
        %s233 = smul.u32 32, %s12
      $region40: #{lstm_combiner_forward.1} parent=27 // pred_fallthru
        _
    $region28: #{lstm_combiner_forward.1} parent=5 // pred_fallthru
      _
    %p234 = scmp.le.s32.totalorder 1, %s12
    %p235 = scmp.lt.s32.totalorder %s12, 3
    %p236 = pnand %p234, %p235
    %p237 = pneg %p236
    // Predicated region
    $region41: #{lstm_combiner_forward.1} parent=5 // pred_check
      _
    $region42: #{lstm_combiner_forward.1} parent=5 // pred_check_branch
      %239 = sbr.rel (%p236) target = $region44
    $region43: #{lstm_combiner_forward.1} parent=5 // pred_region
      %s240 = ssub.s32 %s12, 1
      %s241 = smul.u32 32, %s17
      %p242 = scmp.lt.s32.totalorder %s241, 63
      %s243 = scalar_select %p242, %s241, 63
      %s244 = smul.addr %s243, 8
      %s245 = scalar_lea.vmem %s0, %s244
      %p246 = pneg %p38
      %p247 = pneg %p35
      %s248 = smul.u32 32, %s17
      %p249 = scmp.lt.s32.totalorder %s248, 63
      %s250 = scalar_select %p249, %s248, 63
      %s251 = smul.addr %s250, 8
      %s252 = scalar_lea.vmem %s1, %s251
      %p253 = pneg %p64
      %p254 = pneg %p61
      %s255 = smul.u32 32, %s17
      %p256 = scmp.lt.s32.totalorder %s255, 63
      %s257 = scalar_select %p256, %s255, 63
      %s258 = smul.addr %s257, 8
      %s259 = scalar_lea.vmem %s2, %s258
      %p260 = pneg %p90
      %p261 = pneg %p87
      %p262 = pneg %p111
      %p263 = pneg %p108
      %p264 = pneg %p132
      %p265 = pneg %p129
      %p266 = pneg %p153
      %p267 = pneg %p150
      %p268 = pneg %p179
      %p269 = pneg %p176
      %s270 = smul.u32 32, %s17
      %p271 = scmp.lt.s32.totalorder %s270, 63
      %s272 = scalar_select %p271, %s270, 63
      %s273 = smul.addr %s272, 8
      %s274 = scalar_lea.vmem %s6, %s273
      %s275 = smul.u32 32, %s17
      %p276 = scmp.lt.s32.totalorder %s275, 63
      %s277 = scalar_select %p276, %s275, 63
      %s278 = smul.addr %s277, 8
      %s279 = scalar_lea.vmem %s0, %s278
      %s280 = smul.u32 32, %s17
      %s281 = smul.u32 32, %s17
      %p282 = scmp.lt.s32.totalorder %s281, 63
      %s283 = scalar_select %p282, %s281, 63
      %s284 = smul.addr %s283, 8
      %s285 = scalar_lea.vmem %s1, %s284
      %s286 = smul.u32 32, %s17
      %s287 = smul.u32 32, %s17
      %p288 = scmp.lt.s32.totalorder %s287, 63
      %s289 = scalar_select %p288, %s287, 63
      %s290 = smul.addr %s289, 8
      %s291 = scalar_lea.vmem %s2, %s290
      %s292 = smul.u32 32, %s17
      %s293 = smul.u32 32, %s17
      %p294 = scmp.lt.s32.totalorder %s293, 63
      %s295 = scalar_select %p294, %s293, 63
      %s296 = smul.addr %s295, 8
      %s297 = scalar_lea.vmem %s6, %s296
      %s298 = smul.u32 32, %s17
      %v300 = vld [vmem:[%s279] sm:$0xff]
      %v301 = vld [vmem:[%s279 + $0x8] sm:$0xff]
      %v302 = vld [vmem:[%s279 + $0x10] sm:$0xff]
      %v303 = vld [vmem:[%s279 + $0x18] sm:$0xff]
      %v304 = vld [vmem:[%s279 + $0x20] sm:$0xff]
      %v305 = vld [vmem:[%s279 + $0x28] sm:$0xff]
      %v306 = vld [vmem:[%s279 + $0x30] sm:$0xff]
      %v307 = vld [vmem:[%s279 + $0x38] sm:$0xff]
      %v308 = vld [vmem:[%s279 + $0x40] sm:$0xff]
      %v309 = vld [vmem:[%s279 + $0x48] sm:$0xff]
      %v310 = vld [vmem:[%s279 + $0x50] sm:$0xff]
      %v311 = vld [vmem:[%s279 + $0x58] sm:$0xff]
      %v312 = vld [vmem:[%s279 + $0x60] sm:$0xff]
      %v313 = vld [vmem:[%s279 + $0x68] sm:$0xff]
      %v314 = vld [vmem:[%s279 + $0x70] sm:$0xff]
      %v315 = vld [vmem:[%s279 + $0x78] sm:$0xff]
      %v316 = vld [vmem:[%s279 + $0x80] sm:$0xff]
      %v317 = vld [vmem:[%s279 + $0x88] sm:$0xff]
      %v318 = vld [vmem:[%s279 + $0x90] sm:$0xff]
      %v319 = vld [vmem:[%s279 + $0x98] sm:$0xff]
      %v320 = vld [vmem:[%s279 + $0xa0] sm:$0xff]
      %v321 = vld [vmem:[%s279 + $0xa8] sm:$0xff]
      %v322 = vld [vmem:[%s279 + $0xb0] sm:$0xff]
      %v323 = vld [vmem:[%s279 + $0xb8] sm:$0xff]
      %v324 = vld [vmem:[%s279 + $0xc0] sm:$0xff]
      %v325 = vld [vmem:[%s279 + $0xc8] sm:$0xff]
      %v326 = vld [vmem:[%s279 + $0xd0] sm:$0xff]
      %v327 = vld [vmem:[%s279 + $0xd8] sm:$0xff]
      %v328 = vld [vmem:[%s279 + $0xe0] sm:$0xff]
      %v329 = vld [vmem:[%s279 + $0xe8] sm:$0xff]
      %v330 = vld [vmem:[%s279 + $0xf0] sm:$0xff]
      %v331 = vld [vmem:[%s279 + $0xf8] sm:$0xff]
      %v332 = vpack.c.bf16 %v301, %v300
      %v333 = vpack.c.bf16 %v303, %v302
      %v334 = vpack.c.bf16 %v305, %v304
      %v335 = vpack.c.bf16 %v307, %v306
      %v336 = vpack.c.bf16 %v309, %v308
      %v337 = vpack.c.bf16 %v311, %v310
      %v338 = vpack.c.bf16 %v313, %v312
      %v339 = vpack.c.bf16 %v315, %v314
      %v340 = vpack.c.bf16 %v317, %v316
      %v341 = vpack.c.bf16 %v319, %v318
      %v342 = vpack.c.bf16 %v321, %v320
      %v343 = vpack.c.bf16 %v323, %v322
      %v344 = vpack.c.bf16 %v325, %v324
      %v345 = vpack.c.bf16 %v327, %v326
      %v346 = vpack.c.bf16 %v329, %v328
      %v347 = vpack.c.bf16 %v331, %v330
      %v348 = vld [vmem:[%s285] sm:$0xff]
      %v349 = vld [vmem:[%s285 + $0x8] sm:$0xff]
      %v350 = vld [vmem:[%s285 + $0x10] sm:$0xff]
      %v351 = vld [vmem:[%s285 + $0x18] sm:$0xff]
      %v352 = vld [vmem:[%s285 + $0x20] sm:$0xff]
      %v353 = vld [vmem:[%s285 + $0x28] sm:$0xff]
      %v354 = vld [vmem:[%s285 + $0x30] sm:$0xff]
      %v355 = vld [vmem:[%s285 + $0x38] sm:$0xff]
      %v356 = vld [vmem:[%s285 + $0x40] sm:$0xff]
      %v357 = vld [vmem:[%s285 + $0x48] sm:$0xff]
      %v358 = vld [vmem:[%s285 + $0x50] sm:$0xff]
      %v359 = vld [vmem:[%s285 + $0x58] sm:$0xff]
      %v360 = vld [vmem:[%s285 + $0x60] sm:$0xff]
      %v361 = vld [vmem:[%s285 + $0x68] sm:$0xff]
      %v362 = vld [vmem:[%s285 + $0x70] sm:$0xff]
      %v363 = vld [vmem:[%s285 + $0x78] sm:$0xff]
      %v364 = vld [vmem:[%s285 + $0x80] sm:$0xff]
      %v365 = vld [vmem:[%s285 + $0x88] sm:$0xff]
      %v366 = vld [vmem:[%s285 + $0x90] sm:$0xff]
      %v367 = vld [vmem:[%s285 + $0x98] sm:$0xff]
      %v368 = vld [vmem:[%s285 + $0xa0] sm:$0xff]
      %v369 = vld [vmem:[%s285 + $0xa8] sm:$0xff]
      %v370 = vld [vmem:[%s285 + $0xb0] sm:$0xff]
      %v371 = vld [vmem:[%s285 + $0xb8] sm:$0xff]
      %v372 = vld [vmem:[%s285 + $0xc0] sm:$0xff]
      %v373 = vld [vmem:[%s285 + $0xc8] sm:$0xff]
      %v374 = vld [vmem:[%s285 + $0xd0] sm:$0xff]
      %v375 = vld [vmem:[%s285 + $0xd8] sm:$0xff]
      %v376 = vld [vmem:[%s285 + $0xe0] sm:$0xff]
      %v377 = vld [vmem:[%s285 + $0xe8] sm:$0xff]
      %v378 = vld [vmem:[%s285 + $0xf0] sm:$0xff]
      %v379 = vld [vmem:[%s285 + $0xf8] sm:$0xff]
      %v380 = vpack.c.bf16 %v349, %v348
      %v381 = vpack.c.bf16 %v351, %v350
      %v382 = vpack.c.bf16 %v353, %v352
      %v383 = vpack.c.bf16 %v355, %v354
      %v384 = vpack.c.bf16 %v357, %v356
      %v385 = vpack.c.bf16 %v359, %v358
      %v386 = vpack.c.bf16 %v361, %v360
      %v387 = vpack.c.bf16 %v363, %v362
      %v388 = vpack.c.bf16 %v365, %v364
      %v389 = vpack.c.bf16 %v367, %v366
      %v390 = vpack.c.bf16 %v369, %v368
      %v391 = vpack.c.bf16 %v371, %v370
      %v392 = vpack.c.bf16 %v373, %v372
      %v393 = vpack.c.bf16 %v375, %v374
      %v394 = vpack.c.bf16 %v377, %v376
      %v395 = vpack.c.bf16 %v379, %v378
      %v396 = vld [vmem:[%s291] sm:$0xff]
      %v397 = vld [vmem:[%s291 + $0x8] sm:$0xff]
      %v398 = vld [vmem:[%s291 + $0x10] sm:$0xff]
      %v399 = vld [vmem:[%s291 + $0x18] sm:$0xff]
      %v400 = vld [vmem:[%s291 + $0x20] sm:$0xff]
      %v401 = vld [vmem:[%s291 + $0x28] sm:$0xff]
      %v402 = vld [vmem:[%s291 + $0x30] sm:$0xff]
      %v403 = vld [vmem:[%s291 + $0x38] sm:$0xff]
      %v404 = vld [vmem:[%s291 + $0x40] sm:$0xff]
      %v405 = vld [vmem:[%s291 + $0x48] sm:$0xff]
      %v406 = vld [vmem:[%s291 + $0x50] sm:$0xff]
      %v407 = vld [vmem:[%s291 + $0x58] sm:$0xff]
      %v408 = vld [vmem:[%s291 + $0x60] sm:$0xff]
      %v409 = vld [vmem:[%s291 + $0x68] sm:$0xff]
      %v410 = vld [vmem:[%s291 + $0x70] sm:$0xff]
      %v411 = vld [vmem:[%s291 + $0x78] sm:$0xff]
      %v412 = vld [vmem:[%s291 + $0x80] sm:$0xff]
      %v413 = vld [vmem:[%s291 + $0x88] sm:$0xff]
      %v414 = vld [vmem:[%s291 + $0x90] sm:$0xff]
      %v415 = vld [vmem:[%s291 + $0x98] sm:$0xff]
      %v416 = vld [vmem:[%s291 + $0xa0] sm:$0xff]
      %v417 = vld [vmem:[%s291 + $0xa8] sm:$0xff]
      %v418 = vld [vmem:[%s291 + $0xb0] sm:$0xff]
      %v419 = vld [vmem:[%s291 + $0xb8] sm:$0xff]
      %v420 = vld [vmem:[%s291 + $0xc0] sm:$0xff]
      %v421 = vld [vmem:[%s291 + $0xc8] sm:$0xff]
      %v422 = vld [vmem:[%s291 + $0xd0] sm:$0xff]
      %v423 = vld [vmem:[%s291 + $0xd8] sm:$0xff]
      %v424 = vld [vmem:[%s291 + $0xe0] sm:$0xff]
      %v425 = vld [vmem:[%s291 + $0xe8] sm:$0xff]
      %v426 = vld [vmem:[%s291 + $0xf0] sm:$0xff]
      %v427 = vld [vmem:[%s291 + $0xf8] sm:$0xff]
      %v428 = vpack.c.bf16 %v397, %v396
      %v429 = vpack.c.bf16 %v399, %v398
      %v430 = vpack.c.bf16 %v401, %v400
      %v431 = vpack.c.bf16 %v403, %v402
      %v432 = vpack.c.bf16 %v405, %v404
      %v433 = vpack.c.bf16 %v407, %v406
      %v434 = vpack.c.bf16 %v409, %v408
      %v435 = vpack.c.bf16 %v411, %v410
      %v436 = vpack.c.bf16 %v413, %v412
      %v437 = vpack.c.bf16 %v415, %v414
      %v438 = vpack.c.bf16 %v417, %v416
      %v439 = vpack.c.bf16 %v419, %v418
      %v440 = vpack.c.bf16 %v421, %v420
      %v441 = vpack.c.bf16 %v423, %v422
      %v442 = vpack.c.bf16 %v425, %v424
      %v443 = vpack.c.bf16 %v427, %v426
      %v444 = vld [vmem:[%s5] sm:$0x1]
      %v445 = vld [vmem:[%s3] sm:$0xf]
      %v446 = vld [vmem:[%s3 + $0x4] sm:$0xf]
      %v447 = vld [vmem:[%s3 + $0x8] sm:$0xf]
      %v448 = vld [vmem:[%s3 + $0xc] sm:$0xf]
      %v453 = vunpack.c.l.b16 %v445
      %v454 = vunpack.c.l.b16 %v446
      %v455 = vunpack.c.l.b16 %v447
      %v456 = vunpack.c.l.b16 %v448
      %v457 = vpack.c.b16 %v454, %v453
      %v458 = vpack.c.b16 %v456, %v455
      %vm461 = vcmask 261120
      %v463 = vsel %vm461, %v332, 0
      %v466 = vsel %vm461, %v333, 0
      %v469 = vsel %vm461, %v334, 0
      %v472 = vsel %vm461, %v335, 0
      %v475 = vsel %vm461, %v336, 0
      %v478 = vsel %vm461, %v337, 0
      %v481 = vsel %vm461, %v338, 0
      %v484 = vsel %vm461, %v339, 0
      %v487 = vsel %vm461, %v340, 0
      %v490 = vsel %vm461, %v341, 0
      %v493 = vsel %vm461, %v342, 0
      %v496 = vsel %vm461, %v343, 0
      %v499 = vsel %vm461, %v344, 0
      %v502 = vsel %vm461, %v345, 0
      %v505 = vsel %vm461, %v346, 0
      %v508 = vsel %vm461, %v347, 0
      %510 = vmatpush.bf16.msra.mxu0 0
      %511 = vmatpush.bf16.msra.mxu0 0
      %512 = vmatpush.bf16.msra.mxu0 0
      %513 = vmatpush.bf16.msra.mxu0 0
      %514 = vmatpush.bf16.msra.mxu0 0
      %515 = vmatpush.bf16.msra.mxu0 0
      %516 = vmatpush.bf16.msra.mxu0 %v458
      %517 = vmatpush.bf16.msra.mxu0 %v457
      %518 = vmatmul.bf16.gmra.mxu0 %v463
      %v519 = vpop.f32.mrf.mxu0
      %v520 = vadd.f32 0.0, %v519
      %v521 = vpop.f32.mrf.mxu0
      %v522 = vadd.f32 0.0, %v521
      %523 = vmatmul.bf16.gmra.mxu0 %v466
      %v524 = vpop.f32.mrf.mxu0
      %v525 = vadd.f32 0.0, %v524
      %v526 = vpop.f32.mrf.mxu0
      %v527 = vadd.f32 0.0, %v526
      %528 = vmatmul.bf16.gmra.mxu0 %v469
      %v529 = vpop.f32.mrf.mxu0
      %v530 = vadd.f32 0.0, %v529
      %v531 = vpop.f32.mrf.mxu0
      %v532 = vadd.f32 0.0, %v531
      %533 = vmatmul.bf16.gmra.mxu0 %v472
      %v534 = vpop.f32.mrf.mxu0
      %v535 = vadd.f32 0.0, %v534
      %v536 = vpop.f32.mrf.mxu0
      %v537 = vadd.f32 0.0, %v536
      %538 = vmatmul.bf16.gmra.mxu0 %v475
      %v539 = vpop.f32.mrf.mxu0
      %v540 = vadd.f32 0.0, %v539
      %v541 = vpop.f32.mrf.mxu0
      %v542 = vadd.f32 0.0, %v541
      %543 = vmatmul.bf16.gmra.mxu0 %v478
      %v544 = vpop.f32.mrf.mxu0
      %v545 = vadd.f32 0.0, %v544
      %v546 = vpop.f32.mrf.mxu0
      %v547 = vadd.f32 0.0, %v546
      %548 = vmatmul.bf16.gmra.mxu0 %v481
      %v549 = vpop.f32.mrf.mxu0
      %v550 = vadd.f32 0.0, %v549
      %v551 = vpop.f32.mrf.mxu0
      %v552 = vadd.f32 0.0, %v551
      %553 = vmatmul.bf16.gmra.mxu0 %v484
      %v554 = vpop.f32.mrf.mxu0
      %v555 = vadd.f32 0.0, %v554
      %v556 = vpop.f32.mrf.mxu0
      %v557 = vadd.f32 0.0, %v556
      %558 = vmatmul.bf16.gmra.mxu0 %v487
      %v559 = vpop.f32.mrf.mxu0
      %v560 = vadd.f32 0.0, %v559
      %v561 = vpop.f32.mrf.mxu0
      %v562 = vadd.f32 0.0, %v561
      %563 = vmatmul.bf16.gmra.mxu0 %v490
      %v564 = vpop.f32.mrf.mxu0
      %v565 = vadd.f32 0.0, %v564
      %v566 = vpop.f32.mrf.mxu0
      %v567 = vadd.f32 0.0, %v566
      %568 = vmatmul.bf16.gmra.mxu0 %v493
      %v569 = vpop.f32.mrf.mxu0
      %v570 = vadd.f32 0.0, %v569
      %v571 = vpop.f32.mrf.mxu0
      %v572 = vadd.f32 0.0, %v571
      %573 = vmatmul.bf16.gmra.mxu0 %v496
      %v574 = vpop.f32.mrf.mxu0
      %v575 = vadd.f32 0.0, %v574
      %v576 = vpop.f32.mrf.mxu0
      %v577 = vadd.f32 0.0, %v576
      %578 = vmatmul.bf16.gmra.mxu0 %v499
      %v579 = vpop.f32.mrf.mxu0
      %v580 = vadd.f32 0.0, %v579
      %v581 = vpop.f32.mrf.mxu0
      %v582 = vadd.f32 0.0, %v581
      %583 = vmatmul.bf16.gmra.mxu0 %v502
      %v584 = vpop.f32.mrf.mxu0
      %v585 = vadd.f32 0.0, %v584
      %v586 = vpop.f32.mrf.mxu0
      %v587 = vadd.f32 0.0, %v586
      %588 = vmatmul.bf16.gmra.mxu0 %v505
      %v589 = vpop.f32.mrf.mxu0
      %v590 = vadd.f32 0.0, %v589
      %v591 = vpop.f32.mrf.mxu0
      %v592 = vadd.f32 0.0, %v591
      %593 = vmatmul.bf16.gmra.mxu0 %v508
      %v594 = vpop.f32.mrf.mxu0
      %v595 = vadd.f32 0.0, %v594
      %v596 = vpop.f32.mrf.mxu0
      %v597 = vadd.f32 0.0, %v596
      %598 = vdwg.mxu0
      %v600 = vperm.slane %v444, 0
      %v602 = vadd.f32 %v600, %v520
      %v603 = vadd.f32 %v600, %v522
      %v604 = vadd.f32 %v600, %v525
      %v605 = vadd.f32 %v600, %v527
      %v606 = vadd.f32 %v600, %v530
      %v607 = vadd.f32 %v600, %v532
      %v608 = vadd.f32 %v600, %v535
      %v609 = vadd.f32 %v600, %v537
      %v610 = vadd.f32 %v600, %v540
      %v611 = vadd.f32 %v600, %v542
      %v612 = vadd.f32 %v600, %v545
      %v613 = vadd.f32 %v600, %v547
      %v614 = vadd.f32 %v600, %v550
      %v615 = vadd.f32 %v600, %v552
      %v616 = vadd.f32 %v600, %v555
      %v617 = vadd.f32 %v600, %v557
      %v618 = vadd.f32 %v600, %v560
      %v619 = vadd.f32 %v600, %v562
      %v620 = vadd.f32 %v600, %v565
      %v621 = vadd.f32 %v600, %v567
      %v622 = vadd.f32 %v600, %v570
      %v623 = vadd.f32 %v600, %v572
      %v624 = vadd.f32 %v600, %v575
      %v625 = vadd.f32 %v600, %v577
      %v626 = vadd.f32 %v600, %v580
      %v627 = vadd.f32 %v600, %v582
      %v628 = vadd.f32 %v600, %v585
      %v629 = vadd.f32 %v600, %v587
      %v630 = vadd.f32 %v600, %v590
      %v631 = vadd.f32 %v600, %v592
      %v632 = vadd.f32 %v600, %v595
      %v633 = vadd.f32 %v600, %v597
      %s634 = scalar_lea.vmem %s3, 64
      %v635 = vld [vmem:[%s634] sm:$0xf]
      %v636 = vld [vmem:[%s634 + $0x4] sm:$0xf]
      %v637 = vld [vmem:[%s634 + $0x8] sm:$0xf]
      %v638 = vld [vmem:[%s634 + $0xc] sm:$0xf]
      %v643 = vunpack.c.l.b16 %v635
      %v644 = vunpack.c.l.b16 %v636
      %v645 = vunpack.c.l.b16 %v637
      %v646 = vunpack.c.l.b16 %v638
      %v647 = vpack.c.b16 %v644, %v643
      %v648 = vpack.c.b16 %v646, %v645
      %v652 = vsel %vm461, %v380, 0
      %v655 = vsel %vm461, %v381, 0
      %v658 = vsel %vm461, %v382, 0
      %v661 = vsel %vm461, %v383, 0
      %v664 = vsel %vm461, %v384, 0
      %v667 = vsel %vm461, %v385, 0
      %v670 = vsel %vm461, %v386, 0
      %v673 = vsel %vm461, %v387, 0
      %v676 = vsel %vm461, %v388, 0
      %v679 = vsel %vm461, %v389, 0
      %v682 = vsel %vm461, %v390, 0
      %v685 = vsel %vm461, %v391, 0
      %v688 = vsel %vm461, %v392, 0
      %v691 = vsel %vm461, %v393, 0
      %v694 = vsel %vm461, %v394, 0
      %v697 = vsel %vm461, %v395, 0
      %699 = vmatpush.bf16.msra.mxu0 0
      %700 = vmatpush.bf16.msra.mxu0 0
      %701 = vmatpush.bf16.msra.mxu0 0
      %702 = vmatpush.bf16.msra.mxu0 0
      %703 = vmatpush.bf16.msra.mxu0 0
      %704 = vmatpush.bf16.msra.mxu0 0
      %705 = vmatpush.bf16.msra.mxu0 %v648
      %706 = vmatpush.bf16.msra.mxu0 %v647
      %707 = vmatmul.bf16.gmra.mxu0 %v652
      %v708 = vpop.f32.mrf.mxu0
      %v709 = vadd.f32 0.0, %v708
      %v710 = vpop.f32.mrf.mxu0
      %v711 = vadd.f32 0.0, %v710
      %712 = vmatmul.bf16.gmra.mxu0 %v655
      %v713 = vpop.f32.mrf.mxu0
      %v714 = vadd.f32 0.0, %v713
      %v715 = vpop.f32.mrf.mxu0
      %v716 = vadd.f32 0.0, %v715
      %717 = vmatmul.bf16.gmra.mxu0 %v658
      %v718 = vpop.f32.mrf.mxu0
      %v719 = vadd.f32 0.0, %v718
      %v720 = vpop.f32.mrf.mxu0
      %v721 = vadd.f32 0.0, %v720
      %722 = vmatmul.bf16.gmra.mxu0 %v661
      %v723 = vpop.f32.mrf.mxu0
      %v724 = vadd.f32 0.0, %v723
      %v725 = vpop.f32.mrf.mxu0
      %v726 = vadd.f32 0.0, %v725
      %727 = vmatmul.bf16.gmra.mxu0 %v664
      %v728 = vpop.f32.mrf.mxu0
      %v729 = vadd.f32 0.0, %v728
      %v730 = vpop.f32.mrf.mxu0
      %v731 = vadd.f32 0.0, %v730
      %732 = vmatmul.bf16.gmra.mxu0 %v667
      %v733 = vpop.f32.mrf.mxu0
      %v734 = vadd.f32 0.0, %v733
      %v735 = vpop.f32.mrf.mxu0
      %v736 = vadd.f32 0.0, %v735
      %737 = vmatmul.bf16.gmra.mxu0 %v670
      %v738 = vpop.f32.mrf.mxu0
      %v739 = vadd.f32 0.0, %v738
      %v740 = vpop.f32.mrf.mxu0
      %v741 = vadd.f32 0.0, %v740
      %742 = vmatmul.bf16.gmra.mxu0 %v673
      %v743 = vpop.f32.mrf.mxu0
      %v744 = vadd.f32 0.0, %v743
      %v745 = vpop.f32.mrf.mxu0
      %v746 = vadd.f32 0.0, %v745
      %747 = vmatmul.bf16.gmra.mxu0 %v676
      %v748 = vpop.f32.mrf.mxu0
      %v749 = vadd.f32 0.0, %v748
      %v750 = vpop.f32.mrf.mxu0
      %v751 = vadd.f32 0.0, %v750
      %752 = vmatmul.bf16.gmra.mxu0 %v679
      %v753 = vpop.f32.mrf.mxu0
      %v754 = vadd.f32 0.0, %v753
      %v755 = vpop.f32.mrf.mxu0
      %v756 = vadd.f32 0.0, %v755
      %757 = vmatmul.bf16.gmra.mxu0 %v682
      %v758 = vpop.f32.mrf.mxu0
      %v759 = vadd.f32 0.0, %v758
      %v760 = vpop.f32.mrf.mxu0
      %v761 = vadd.f32 0.0, %v760
      %762 = vmatmul.bf16.gmra.mxu0 %v685
      %v763 = vpop.f32.mrf.mxu0
      %v764 = vadd.f32 0.0, %v763
      %v765 = vpop.f32.mrf.mxu0
      %v766 = vadd.f32 0.0, %v765
      %767 = vmatmul.bf16.gmra.mxu0 %v688
      %v768 = vpop.f32.mrf.mxu0
      %v769 = vadd.f32 0.0, %v768
      %v770 = vpop.f32.mrf.mxu0
      %v771 = vadd.f32 0.0, %v770
      %772 = vmatmul.bf16.gmra.mxu0 %v691
      %v773 = vpop.f32.mrf.mxu0
      %v774 = vadd.f32 0.0, %v773
      %v775 = vpop.f32.mrf.mxu0
      %v776 = vadd.f32 0.0, %v775
      %777 = vmatmul.bf16.gmra.mxu0 %v694
      %v778 = vpop.f32.mrf.mxu0
      %v779 = vadd.f32 0.0, %v778
      %v780 = vpop.f32.mrf.mxu0
      %v781 = vadd.f32 0.0, %v780
      %782 = vmatmul.bf16.gmra.mxu0 %v697
      %v783 = vpop.f32.mrf.mxu0
      %v784 = vadd.f32 0.0, %v783
      %v785 = vpop.f32.mrf.mxu0
      %v786 = vadd.f32 0.0, %v785
      %787 = vdwg.mxu0
      %v788 = vadd.f32 %v602, %v709
      %v789 = vadd.f32 %v603, %v711
      %v790 = vadd.f32 %v604, %v714
      %v791 = vadd.f32 %v605, %v716
      %v792 = vadd.f32 %v606, %v719
      %v793 = vadd.f32 %v607, %v721
      %v794 = vadd.f32 %v608, %v724
      %v795 = vadd.f32 %v609, %v726
      %v796 = vadd.f32 %v610, %v729
      %v797 = vadd.f32 %v611, %v731
      %v798 = vadd.f32 %v612, %v734
      %v799 = vadd.f32 %v613, %v736
      %v800 = vadd.f32 %v614, %v739
      %v801 = vadd.f32 %v615, %v741
      %v802 = vadd.f32 %v616, %v744
      %v803 = vadd.f32 %v617, %v746
      %v804 = vadd.f32 %v618, %v749
      %v805 = vadd.f32 %v619, %v751
      %v806 = vadd.f32 %v620, %v754
      %v807 = vadd.f32 %v621, %v756
      %v808 = vadd.f32 %v622, %v759
      %v809 = vadd.f32 %v623, %v761
      %v810 = vadd.f32 %v624, %v764
      %v811 = vadd.f32 %v625, %v766
      %v812 = vadd.f32 %v626, %v769
      %v813 = vadd.f32 %v627, %v771
      %v814 = vadd.f32 %v628, %v774
      %v815 = vadd.f32 %v629, %v776
      %v816 = vadd.f32 %v630, %v779
      %v817 = vadd.f32 %v631, %v781
      %v818 = vadd.f32 %v632, %v784
      %v819 = vadd.f32 %v633, %v786
      %v820 = vld [vmem:[%s4] sm:$0xf]
      %v821 = vld [vmem:[%s4 + $0x4] sm:$0xf]
      %v822 = vld [vmem:[%s4 + $0x8] sm:$0xf]
      %v823 = vld [vmem:[%s4 + $0xc] sm:$0xf]
      %v828 = vunpack.c.l.b16 %v820
      %v829 = vunpack.c.l.b16 %v821
      %v830 = vunpack.c.l.b16 %v822
      %v831 = vunpack.c.l.b16 %v823
      %v832 = vpack.c.b16 %v829, %v828
      %v833 = vpack.c.b16 %v831, %v830
      %v837 = vsel %vm461, %v428, 0
      %v840 = vsel %vm461, %v429, 0
      %v843 = vsel %vm461, %v430, 0
      %v846 = vsel %vm461, %v431, 0
      %v849 = vsel %vm461, %v432, 0
      %v852 = vsel %vm461, %v433, 0
      %v855 = vsel %vm461, %v434, 0
      %v858 = vsel %vm461, %v435, 0
      %v861 = vsel %vm461, %v436, 0
      %v864 = vsel %vm461, %v437, 0
      %v867 = vsel %vm461, %v438, 0
      %v870 = vsel %vm461, %v439, 0
      %v873 = vsel %vm461, %v440, 0
      %v876 = vsel %vm461, %v441, 0
      %v879 = vsel %vm461, %v442, 0
      %v882 = vsel %vm461, %v443, 0
      %884 = vmatpush.bf16.msra.mxu0 0
      %885 = vmatpush.bf16.msra.mxu0 0
      %886 = vmatpush.bf16.msra.mxu0 0
      %887 = vmatpush.bf16.msra.mxu0 0
      %888 = vmatpush.bf16.msra.mxu0 0
      %889 = vmatpush.bf16.msra.mxu0 0
      %890 = vmatpush.bf16.msra.mxu0 %v833
      %891 = vmatpush.bf16.msra.mxu0 %v832
      %892 = vmatmul.bf16.gmra.mxu0 %v837
      %v893 = vpop.f32.mrf.mxu0
      %v894 = vadd.f32 0.0, %v893
      %v895 = vpop.f32.mrf.mxu0
      %v896 = vadd.f32 0.0, %v895
      %897 = vmatmul.bf16.gmra.mxu0 %v840
      %v898 = vpop.f32.mrf.mxu0
      %v899 = vadd.f32 0.0, %v898
      %v900 = vpop.f32.mrf.mxu0
      %v901 = vadd.f32 0.0, %v900
      %902 = vmatmul.bf16.gmra.mxu0 %v843
      %v903 = vpop.f32.mrf.mxu0
      %v904 = vadd.f32 0.0, %v903
      %v905 = vpop.f32.mrf.mxu0
      %v906 = vadd.f32 0.0, %v905
      %907 = vmatmul.bf16.gmra.mxu0 %v846
      %v908 = vpop.f32.mrf.mxu0
      %v909 = vadd.f32 0.0, %v908
      %v910 = vpop.f32.mrf.mxu0
      %v911 = vadd.f32 0.0, %v910
      %912 = vmatmul.bf16.gmra.mxu0 %v849
      %v913 = vpop.f32.mrf.mxu0
      %v914 = vadd.f32 0.0, %v913
      %v915 = vpop.f32.mrf.mxu0
      %v916 = vadd.f32 0.0, %v915
      %917 = vmatmul.bf16.gmra.mxu0 %v852
      %v918 = vpop.f32.mrf.mxu0
      %v919 = vadd.f32 0.0, %v918
      %v920 = vpop.f32.mrf.mxu0
      %v921 = vadd.f32 0.0, %v920
      %922 = vmatmul.bf16.gmra.mxu0 %v855
      %v923 = vpop.f32.mrf.mxu0
      %v924 = vadd.f32 0.0, %v923
      %v925 = vpop.f32.mrf.mxu0
      %v926 = vadd.f32 0.0, %v925
      %927 = vmatmul.bf16.gmra.mxu0 %v858
      %v928 = vpop.f32.mrf.mxu0
      %v929 = vadd.f32 0.0, %v928
      %v930 = vpop.f32.mrf.mxu0
      %v931 = vadd.f32 0.0, %v930
      %932 = vmatmul.bf16.gmra.mxu0 %v861
      %v933 = vpop.f32.mrf.mxu0
      %v934 = vadd.f32 0.0, %v933
      %v935 = vpop.f32.mrf.mxu0
      %v936 = vadd.f32 0.0, %v935
      %937 = vmatmul.bf16.gmra.mxu0 %v864
      %v938 = vpop.f32.mrf.mxu0
      %v939 = vadd.f32 0.0, %v938
      %v940 = vpop.f32.mrf.mxu0
      %v941 = vadd.f32 0.0, %v940
      %942 = vmatmul.bf16.gmra.mxu0 %v867
      %v943 = vpop.f32.mrf.mxu0
      %v944 = vadd.f32 0.0, %v943
      %v945 = vpop.f32.mrf.mxu0
      %v946 = vadd.f32 0.0, %v945
      %947 = vmatmul.bf16.gmra.mxu0 %v870
      %v948 = vpop.f32.mrf.mxu0
      %v949 = vadd.f32 0.0, %v948
      %v950 = vpop.f32.mrf.mxu0
      %v951 = vadd.f32 0.0, %v950
      %952 = vmatmul.bf16.gmra.mxu0 %v873
      %v953 = vpop.f32.mrf.mxu0
      %v954 = vadd.f32 0.0, %v953
      %v955 = vpop.f32.mrf.mxu0
      %v956 = vadd.f32 0.0, %v955
      %957 = vmatmul.bf16.gmra.mxu0 %v876
      %v958 = vpop.f32.mrf.mxu0
      %v959 = vadd.f32 0.0, %v958
      %v960 = vpop.f32.mrf.mxu0
      %v961 = vadd.f32 0.0, %v960
      %962 = vmatmul.bf16.gmra.mxu0 %v879
      %v963 = vpop.f32.mrf.mxu0
      %v964 = vadd.f32 0.0, %v963
      %v965 = vpop.f32.mrf.mxu0
      %v966 = vadd.f32 0.0, %v965
      %967 = vmatmul.bf16.gmra.mxu0 %v882
      %v968 = vpop.f32.mrf.mxu0
      %v969 = vadd.f32 0.0, %v968
      %v970 = vpop.f32.mrf.mxu0
      %v971 = vadd.f32 0.0, %v970
      %972 = vdwg.mxu0
      %v973 = vadd.f32 %v788, %v894
      %v974 = vadd.f32 %v789, %v896
      %v975 = vadd.f32 %v790, %v899
      %v976 = vadd.f32 %v791, %v901
      %v977 = vadd.f32 %v792, %v904
      %v978 = vadd.f32 %v793, %v906
      %v979 = vadd.f32 %v794, %v909
      %v980 = vadd.f32 %v795, %v911
      %v981 = vadd.f32 %v796, %v914
      %v982 = vadd.f32 %v797, %v916
      %v983 = vadd.f32 %v798, %v919
      %v984 = vadd.f32 %v799, %v921
      %v985 = vadd.f32 %v800, %v924
      %v986 = vadd.f32 %v801, %v926
      %v987 = vadd.f32 %v802, %v929
      %v988 = vadd.f32 %v803, %v931
      %v989 = vadd.f32 %v804, %v934
      %v990 = vadd.f32 %v805, %v936
      %v991 = vadd.f32 %v806, %v939
      %v992 = vadd.f32 %v807, %v941
      %v993 = vadd.f32 %v808, %v944
      %v994 = vadd.f32 %v809, %v946
      %v995 = vadd.f32 %v810, %v949
      %v996 = vadd.f32 %v811, %v951
      %v997 = vadd.f32 %v812, %v954
      %v998 = vadd.f32 %v813, %v956
      %v999 = vadd.f32 %v814, %v959
      %v1000 = vadd.f32 %v815, %v961
      %v1001 = vadd.f32 %v816, %v964
      %v1002 = vadd.f32 %v817, %v966
      %v1003 = vadd.f32 %v818, %v969
      %v1004 = vadd.f32 %v819, %v971
      %s1005 = scalar_lea.vmem %s5, 1
      %v1006 = vld [vmem:[%s1005] sm:$0x1]
      %s1007 = scalar_lea.vmem %s3, 16
      %v1008 = vld [vmem:[%s1007] sm:$0xf]
      %v1009 = vld [vmem:[%s1007 + $0x4] sm:$0xf]
      %v1010 = vld [vmem:[%s1007 + $0x8] sm:$0xf]
      %v1011 = vld [vmem:[%s1007 + $0xc] sm:$0xf]
      %v1016 = vunpack.c.l.b16 %v1008
      %v1017 = vunpack.c.l.b16 %v1009
      %v1018 = vunpack.c.l.b16 %v1010
      %v1019 = vunpack.c.l.b16 %v1011
      %v1020 = vpack.c.b16 %v1017, %v1016
      %v1021 = vpack.c.b16 %v1019, %v1018
      %1024 = vmatpush.bf16.msra.mxu0 0
      %1025 = vmatpush.bf16.msra.mxu0 0
      %1026 = vmatpush.bf16.msra.mxu0 0
      %1027 = vmatpush.bf16.msra.mxu0 0
      %1028 = vmatpush.bf16.msra.mxu0 0
      %1029 = vmatpush.bf16.msra.mxu0 0
      %1030 = vmatpush.bf16.msra.mxu0 %v1021
      %1031 = vmatpush.bf16.msra.mxu0 %v1020
      %1032 = vmatmul.bf16.gmra.mxu0 %v463
      %v1033 = vpop.f32.mrf.mxu0
      %v1034 = vadd.f32 0.0, %v1033
      %v1035 = vpop.f32.mrf.mxu0
      %v1036 = vadd.f32 0.0, %v1035
      %1037 = vmatmul.bf16.gmra.mxu0 %v466
      %v1038 = vpop.f32.mrf.mxu0
      %v1039 = vadd.f32 0.0, %v1038
      %v1040 = vpop.f32.mrf.mxu0
      %v1041 = vadd.f32 0.0, %v1040
      %1042 = vmatmul.bf16.gmra.mxu0 %v469
      %v1043 = vpop.f32.mrf.mxu0
      %v1044 = vadd.f32 0.0, %v1043
      %v1045 = vpop.f32.mrf.mxu0
      %v1046 = vadd.f32 0.0, %v1045
      %1047 = vmatmul.bf16.gmra.mxu0 %v472
      %v1048 = vpop.f32.mrf.mxu0
      %v1049 = vadd.f32 0.0, %v1048
      %v1050 = vpop.f32.mrf.mxu0
      %v1051 = vadd.f32 0.0, %v1050
      %1052 = vmatmul.bf16.gmra.mxu0 %v475
      %v1053 = vpop.f32.mrf.mxu0
      %v1054 = vadd.f32 0.0, %v1053
      %v1055 = vpop.f32.mrf.mxu0
      %v1056 = vadd.f32 0.0, %v1055
      %1057 = vmatmul.bf16.gmra.mxu0 %v478
      %v1058 = vpop.f32.mrf.mxu0
      %v1059 = vadd.f32 0.0, %v1058
      %v1060 = vpop.f32.mrf.mxu0
      %v1061 = vadd.f32 0.0, %v1060
      %1062 = vmatmul.bf16.gmra.mxu0 %v481
      %v1063 = vpop.f32.mrf.mxu0
      %v1064 = vadd.f32 0.0, %v1063
      %v1065 = vpop.f32.mrf.mxu0
      %v1066 = vadd.f32 0.0, %v1065
      %1067 = vmatmul.bf16.gmra.mxu0 %v484
      %v1068 = vpop.f32.mrf.mxu0
      %v1069 = vadd.f32 0.0, %v1068
      %v1070 = vpop.f32.mrf.mxu0
      %v1071 = vadd.f32 0.0, %v1070
      %1072 = vmatmul.bf16.gmra.mxu0 %v487
      %v1073 = vpop.f32.mrf.mxu0
      %v1074 = vadd.f32 0.0, %v1073
      %v1075 = vpop.f32.mrf.mxu0
      %v1076 = vadd.f32 0.0, %v1075
      %1077 = vmatmul.bf16.gmra.mxu0 %v490
      %v1078 = vpop.f32.mrf.mxu0
      %v1079 = vadd.f32 0.0, %v1078
      %v1080 = vpop.f32.mrf.mxu0
      %v1081 = vadd.f32 0.0, %v1080
      %1082 = vmatmul.bf16.gmra.mxu0 %v493
      %v1083 = vpop.f32.mrf.mxu0
      %v1084 = vadd.f32 0.0, %v1083
      %v1085 = vpop.f32.mrf.mxu0
      %v1086 = vadd.f32 0.0, %v1085
      %1087 = vmatmul.bf16.gmra.mxu0 %v496
      %v1088 = vpop.f32.mrf.mxu0
      %v1089 = vadd.f32 0.0, %v1088
      %v1090 = vpop.f32.mrf.mxu0
      %v1091 = vadd.f32 0.0, %v1090
      %1092 = vmatmul.bf16.gmra.mxu0 %v499
      %v1093 = vpop.f32.mrf.mxu0
      %v1094 = vadd.f32 0.0, %v1093
      %v1095 = vpop.f32.mrf.mxu0
      %v1096 = vadd.f32 0.0, %v1095
      %1097 = vmatmul.bf16.gmra.mxu0 %v502
      %v1098 = vpop.f32.mrf.mxu0
      %v1099 = vadd.f32 0.0, %v1098
      %v1100 = vpop.f32.mrf.mxu0
      %v1101 = vadd.f32 0.0, %v1100
      %1102 = vmatmul.bf16.gmra.mxu0 %v505
      %v1103 = vpop.f32.mrf.mxu0
      %v1104 = vadd.f32 0.0, %v1103
      %v1105 = vpop.f32.mrf.mxu0
      %v1106 = vadd.f32 0.0, %v1105
      %1107 = vmatmul.bf16.gmra.mxu0 %v508
      %v1108 = vpop.f32.mrf.mxu0
      %v1109 = vadd.f32 0.0, %v1108
      %v1110 = vpop.f32.mrf.mxu0
      %v1111 = vadd.f32 0.0, %v1110
      %1112 = vdwg.mxu0
      %v1114 = vperm.slane %v1006, 0
      %v1116 = vadd.f32 %v1114, %v1034
      %v1117 = vadd.f32 %v1114, %v1036
      %v1118 = vadd.f32 %v1114, %v1039
      %v1119 = vadd.f32 %v1114, %v1041
      %v1120 = vadd.f32 %v1114, %v1044
      %v1121 = vadd.f32 %v1114, %v1046
      %v1122 = vadd.f32 %v1114, %v1049
      %v1123 = vadd.f32 %v1114, %v1051
      %v1124 = vadd.f32 %v1114, %v1054
      %v1125 = vadd.f32 %v1114, %v1056
      %v1126 = vadd.f32 %v1114, %v1059
      %v1127 = vadd.f32 %v1114, %v1061
      %v1128 = vadd.f32 %v1114, %v1064
      %v1129 = vadd.f32 %v1114, %v1066
      %v1130 = vadd.f32 %v1114, %v1069
      %v1131 = vadd.f32 %v1114, %v1071
      %v1132 = vadd.f32 %v1114, %v1074
      %v1133 = vadd.f32 %v1114, %v1076
      %v1134 = vadd.f32 %v1114, %v1079
      %v1135 = vadd.f32 %v1114, %v1081
      %v1136 = vadd.f32 %v1114, %v1084
      %v1137 = vadd.f32 %v1114, %v1086
      %v1138 = vadd.f32 %v1114, %v1089
      %v1139 = vadd.f32 %v1114, %v1091
      %v1140 = vadd.f32 %v1114, %v1094
      %v1141 = vadd.f32 %v1114, %v1096
      %v1142 = vadd.f32 %v1114, %v1099
      %v1143 = vadd.f32 %v1114, %v1101
      %v1144 = vadd.f32 %v1114, %v1104
      %v1145 = vadd.f32 %v1114, %v1106
      %v1146 = vadd.f32 %v1114, %v1109
      %v1147 = vadd.f32 %v1114, %v1111
      %s1148 = scalar_lea.vmem %s3, 80
      %v1149 = vld [vmem:[%s1148] sm:$0xf]
      %v1150 = vld [vmem:[%s1148 + $0x4] sm:$0xf]
      %v1151 = vld [vmem:[%s1148 + $0x8] sm:$0xf]
      %v1152 = vld [vmem:[%s1148 + $0xc] sm:$0xf]
      %v1157 = vunpack.c.l.b16 %v1149
      %v1158 = vunpack.c.l.b16 %v1150
      %v1159 = vunpack.c.l.b16 %v1151
      %v1160 = vunpack.c.l.b16 %v1152
      %v1161 = vpack.c.b16 %v1158, %v1157
      %v1162 = vpack.c.b16 %v1160, %v1159
      %1165 = vmatpush.bf16.msra.mxu0 0
      %1166 = vmatpush.bf16.msra.mxu0 0
      %1167 = vmatpush.bf16.msra.mxu0 0
      %1168 = vmatpush.bf16.msra.mxu0 0
      %1169 = vmatpush.bf16.msra.mxu0 0
      %1170 = vmatpush.bf16.msra.mxu0 0
      %1171 = vmatpush.bf16.msra.mxu0 %v1162
      %1172 = vmatpush.bf16.msra.mxu0 %v1161
      %1173 = vmatmul.bf16.gmra.mxu0 %v652
      %v1174 = vpop.f32.mrf.mxu0
      %v1175 = vadd.f32 0.0, %v1174
      %v1176 = vpop.f32.mrf.mxu0
      %v1177 = vadd.f32 0.0, %v1176
      %1178 = vmatmul.bf16.gmra.mxu0 %v655
      %v1179 = vpop.f32.mrf.mxu0
      %v1180 = vadd.f32 0.0, %v1179
      %v1181 = vpop.f32.mrf.mxu0
      %v1182 = vadd.f32 0.0, %v1181
      %1183 = vmatmul.bf16.gmra.mxu0 %v658
      %v1184 = vpop.f32.mrf.mxu0
      %v1185 = vadd.f32 0.0, %v1184
      %v1186 = vpop.f32.mrf.mxu0
      %v1187 = vadd.f32 0.0, %v1186
      %1188 = vmatmul.bf16.gmra.mxu0 %v661
      %v1189 = vpop.f32.mrf.mxu0
      %v1190 = vadd.f32 0.0, %v1189
      %v1191 = vpop.f32.mrf.mxu0
      %v1192 = vadd.f32 0.0, %v1191
      %1193 = vmatmul.bf16.gmra.mxu0 %v664
      %v1194 = vpop.f32.mrf.mxu0
      %v1195 = vadd.f32 0.0, %v1194
      %v1196 = vpop.f32.mrf.mxu0
      %v1197 = vadd.f32 0.0, %v1196
      %1198 = vmatmul.bf16.gmra.mxu0 %v667
      %v1199 = vpop.f32.mrf.mxu0
      %v1200 = vadd.f32 0.0, %v1199
      %v1201 = vpop.f32.mrf.mxu0
      %v1202 = vadd.f32 0.0, %v1201
      %1203 = vmatmul.bf16.gmra.mxu0 %v670
      %v1204 = vpop.f32.mrf.mxu0
      %v1205 = vadd.f32 0.0, %v1204
      %v1206 = vpop.f32.mrf.mxu0
      %v1207 = vadd.f32 0.0, %v1206
      %1208 = vmatmul.bf16.gmra.mxu0 %v673
      %v1209 = vpop.f32.mrf.mxu0
      %v1210 = vadd.f32 0.0, %v1209
      %v1211 = vpop.f32.mrf.mxu0
      %v1212 = vadd.f32 0.0, %v1211
      %1213 = vmatmul.bf16.gmra.mxu0 %v676
      %v1214 = vpop.f32.mrf.mxu0
      %v1215 = vadd.f32 0.0, %v1214
      %v1216 = vpop.f32.mrf.mxu0
      %v1217 = vadd.f32 0.0, %v1216
      %1218 = vmatmul.bf16.gmra.mxu0 %v679
      %v1219 = vpop.f32.mrf.mxu0
      %v1220 = vadd.f32 0.0, %v1219
      %v1221 = vpop.f32.mrf.mxu0
      %v1222 = vadd.f32 0.0, %v1221
      %1223 = vmatmul.bf16.gmra.mxu0 %v682
      %v1224 = vpop.f32.mrf.mxu0
      %v1225 = vadd.f32 0.0, %v1224
      %v1226 = vpop.f32.mrf.mxu0
      %v1227 = vadd.f32 0.0, %v1226
      %1228 = vmatmul.bf16.gmra.mxu0 %v685
      %v1229 = vpop.f32.mrf.mxu0
      %v1230 = vadd.f32 0.0, %v1229
      %v1231 = vpop.f32.mrf.mxu0
      %v1232 = vadd.f32 0.0, %v1231
      %1233 = vmatmul.bf16.gmra.mxu0 %v688
      %v1234 = vpop.f32.mrf.mxu0
      %v1235 = vadd.f32 0.0, %v1234
      %v1236 = vpop.f32.mrf.mxu0
      %v1237 = vadd.f32 0.0, %v1236
      %1238 = vmatmul.bf16.gmra.mxu0 %v691
      %v1239 = vpop.f32.mrf.mxu0
      %v1240 = vadd.f32 0.0, %v1239
      %v1241 = vpop.f32.mrf.mxu0
      %v1242 = vadd.f32 0.0, %v1241
      %1243 = vmatmul.bf16.gmra.mxu0 %v694
      %v1244 = vpop.f32.mrf.mxu0
      %v1245 = vadd.f32 0.0, %v1244
      %v1246 = vpop.f32.mrf.mxu0
      %v1247 = vadd.f32 0.0, %v1246
      %1248 = vmatmul.bf16.gmra.mxu0 %v697
      %v1249 = vpop.f32.mrf.mxu0
      %v1250 = vadd.f32 0.0, %v1249
      %v1251 = vpop.f32.mrf.mxu0
      %v1252 = vadd.f32 0.0, %v1251
      %1253 = vdwg.mxu0
      %v1254 = vadd.f32 %v1116, %v1175
      %v1255 = vadd.f32 %v1117, %v1177
      %v1256 = vadd.f32 %v1118, %v1180
      %v1257 = vadd.f32 %v1119, %v1182
      %v1258 = vadd.f32 %v1120, %v1185
      %v1259 = vadd.f32 %v1121, %v1187
      %v1260 = vadd.f32 %v1122, %v1190
      %v1261 = vadd.f32 %v1123, %v1192
      %v1262 = vadd.f32 %v1124, %v1195
      %v1263 = vadd.f32 %v1125, %v1197
      %v1264 = vadd.f32 %v1126, %v1200
      %v1265 = vadd.f32 %v1127, %v1202
      %v1266 = vadd.f32 %v1128, %v1205
      %v1267 = vadd.f32 %v1129, %v1207
      %v1268 = vadd.f32 %v1130, %v1210
      %v1269 = vadd.f32 %v1131, %v1212
      %v1270 = vadd.f32 %v1132, %v1215
      %v1271 = vadd.f32 %v1133, %v1217
      %v1272 = vadd.f32 %v1134, %v1220
      %v1273 = vadd.f32 %v1135, %v1222
      %v1274 = vadd.f32 %v1136, %v1225
      %v1275 = vadd.f32 %v1137, %v1227
      %v1276 = vadd.f32 %v1138, %v1230
      %v1277 = vadd.f32 %v1139, %v1232
      %v1278 = vadd.f32 %v1140, %v1235
      %v1279 = vadd.f32 %v1141, %v1237
      %v1280 = vadd.f32 %v1142, %v1240
      %v1281 = vadd.f32 %v1143, %v1242
      %v1282 = vadd.f32 %v1144, %v1245
      %v1283 = vadd.f32 %v1145, %v1247
      %v1284 = vadd.f32 %v1146, %v1250
      %v1285 = vadd.f32 %v1147, %v1252
      %s1286 = scalar_lea.vmem %s4, 16
      %v1287 = vld [vmem:[%s1286] sm:$0xf]
      %v1288 = vld [vmem:[%s1286 + $0x4] sm:$0xf]
      %v1289 = vld [vmem:[%s1286 + $0x8] sm:$0xf]
      %v1290 = vld [vmem:[%s1286 + $0xc] sm:$0xf]
      %v1295 = vunpack.c.l.b16 %v1287
      %v1296 = vunpack.c.l.b16 %v1288
      %v1297 = vunpack.c.l.b16 %v1289
      %v1298 = vunpack.c.l.b16 %v1290
      %v1299 = vpack.c.b16 %v1296, %v1295
      %v1300 = vpack.c.b16 %v1298, %v1297
      %1303 = vmatpush.bf16.msra.mxu0 0
      %1304 = vmatpush.bf16.msra.mxu0 0
      %1305 = vmatpush.bf16.msra.mxu0 0
      %1306 = vmatpush.bf16.msra.mxu0 0
      %1307 = vmatpush.bf16.msra.mxu0 0
      %1308 = vmatpush.bf16.msra.mxu0 0
      %1309 = vmatpush.bf16.msra.mxu0 %v1300
      %1310 = vmatpush.bf16.msra.mxu0 %v1299
      %1311 = vmatmul.bf16.gmra.mxu0 %v837
      %v1312 = vpop.f32.mrf.mxu0
      %v1313 = vadd.f32 0.0, %v1312
      %v1314 = vpop.f32.mrf.mxu0
      %v1315 = vadd.f32 0.0, %v1314
      %1316 = vmatmul.bf16.gmra.mxu0 %v840
      %v1317 = vpop.f32.mrf.mxu0
      %v1318 = vadd.f32 0.0, %v1317
      %v1319 = vpop.f32.mrf.mxu0
      %v1320 = vadd.f32 0.0, %v1319
      %1321 = vmatmul.bf16.gmra.mxu0 %v843
      %v1322 = vpop.f32.mrf.mxu0
      %v1323 = vadd.f32 0.0, %v1322
      %v1324 = vpop.f32.mrf.mxu0
      %v1325 = vadd.f32 0.0, %v1324
      %1326 = vmatmul.bf16.gmra.mxu0 %v846
      %v1327 = vpop.f32.mrf.mxu0
      %v1328 = vadd.f32 0.0, %v1327
      %v1329 = vpop.f32.mrf.mxu0
      %v1330 = vadd.f32 0.0, %v1329
      %1331 = vmatmul.bf16.gmra.mxu0 %v849
      %v1332 = vpop.f32.mrf.mxu0
      %v1333 = vadd.f32 0.0, %v1332
      %v1334 = vpop.f32.mrf.mxu0
      %v1335 = vadd.f32 0.0, %v1334
      %1336 = vmatmul.bf16.gmra.mxu0 %v852
      %v1337 = vpop.f32.mrf.mxu0
      %v1338 = vadd.f32 0.0, %v1337
      %v1339 = vpop.f32.mrf.mxu0
      %v1340 = vadd.f32 0.0, %v1339
      %1341 = vmatmul.bf16.gmra.mxu0 %v855
      %v1342 = vpop.f32.mrf.mxu0
      %v1343 = vadd.f32 0.0, %v1342
      %v1344 = vpop.f32.mrf.mxu0
      %v1345 = vadd.f32 0.0, %v1344
      %1346 = vmatmul.bf16.gmra.mxu0 %v858
      %v1347 = vpop.f32.mrf.mxu0
      %v1348 = vadd.f32 0.0, %v1347
      %v1349 = vpop.f32.mrf.mxu0
      %v1350 = vadd.f32 0.0, %v1349
      %1351 = vmatmul.bf16.gmra.mxu0 %v861
      %v1352 = vpop.f32.mrf.mxu0
      %v1353 = vadd.f32 0.0, %v1352
      %v1354 = vpop.f32.mrf.mxu0
      %v1355 = vadd.f32 0.0, %v1354
      %1356 = vmatmul.bf16.gmra.mxu0 %v864
      %v1357 = vpop.f32.mrf.mxu0
      %v1358 = vadd.f32 0.0, %v1357
      %v1359 = vpop.f32.mrf.mxu0
      %v1360 = vadd.f32 0.0, %v1359
      %1361 = vmatmul.bf16.gmra.mxu0 %v867
      %v1362 = vpop.f32.mrf.mxu0
      %v1363 = vadd.f32 0.0, %v1362
      %v1364 = vpop.f32.mrf.mxu0
      %v1365 = vadd.f32 0.0, %v1364
      %1366 = vmatmul.bf16.gmra.mxu0 %v870
      %v1367 = vpop.f32.mrf.mxu0
      %v1368 = vadd.f32 0.0, %v1367
      %v1369 = vpop.f32.mrf.mxu0
      %v1370 = vadd.f32 0.0, %v1369
      %1371 = vmatmul.bf16.gmra.mxu0 %v873
      %v1372 = vpop.f32.mrf.mxu0
      %v1373 = vadd.f32 0.0, %v1372
      %v1374 = vpop.f32.mrf.mxu0
      %v1375 = vadd.f32 0.0, %v1374
      %1376 = vmatmul.bf16.gmra.mxu0 %v876
      %v1377 = vpop.f32.mrf.mxu0
      %v1378 = vadd.f32 0.0, %v1377
      %v1379 = vpop.f32.mrf.mxu0
      %v1380 = vadd.f32 0.0, %v1379
      %1381 = vmatmul.bf16.gmra.mxu0 %v879
      %v1382 = vpop.f32.mrf.mxu0
      %v1383 = vadd.f32 0.0, %v1382
      %v1384 = vpop.f32.mrf.mxu0
      %v1385 = vadd.f32 0.0, %v1384
      %1386 = vmatmul.bf16.gmra.mxu0 %v882
      %v1387 = vpop.f32.mrf.mxu0
      %v1388 = vadd.f32 0.0, %v1387
      %v1389 = vpop.f32.mrf.mxu0
      %v1390 = vadd.f32 0.0, %v1389
      %1391 = vdwg.mxu0
      %v1392 = vadd.f32 %v1254, %v1313
      %v1393 = vadd.f32 %v1255, %v1315
      %v1394 = vadd.f32 %v1256, %v1318
      %v1395 = vadd.f32 %v1257, %v1320
      %v1396 = vadd.f32 %v1258, %v1323
      %v1397 = vadd.f32 %v1259, %v1325
      %v1398 = vadd.f32 %v1260, %v1328
      %v1399 = vadd.f32 %v1261, %v1330
      %v1400 = vadd.f32 %v1262, %v1333
      %v1401 = vadd.f32 %v1263, %v1335
      %v1402 = vadd.f32 %v1264, %v1338
      %v1403 = vadd.f32 %v1265, %v1340
      %v1404 = vadd.f32 %v1266, %v1343
      %v1405 = vadd.f32 %v1267, %v1345
      %v1406 = vadd.f32 %v1268, %v1348
      %v1407 = vadd.f32 %v1269, %v1350
      %v1408 = vadd.f32 %v1270, %v1353
      %v1409 = vadd.f32 %v1271, %v1355
      %v1410 = vadd.f32 %v1272, %v1358
      %v1411 = vadd.f32 %v1273, %v1360
      %v1412 = vadd.f32 %v1274, %v1363
      %v1413 = vadd.f32 %v1275, %v1365
      %v1414 = vadd.f32 %v1276, %v1368
      %v1415 = vadd.f32 %v1277, %v1370
      %v1416 = vadd.f32 %v1278, %v1373
      %v1417 = vadd.f32 %v1279, %v1375
      %v1418 = vadd.f32 %v1280, %v1378
      %v1419 = vadd.f32 %v1281, %v1380
      %v1420 = vadd.f32 %v1282, %v1383
      %v1421 = vadd.f32 %v1283, %v1385
      %v1422 = vadd.f32 %v1284, %v1388
      %v1423 = vadd.f32 %v1285, %v1390
      %s1424 = scalar_lea.vmem %s5, 2
      %v1425 = vld [vmem:[%s1424] sm:$0x1]
      %s1426 = scalar_lea.vmem %s3, 32
      %v1427 = vld [vmem:[%s1426] sm:$0xf]
      %v1428 = vld [vmem:[%s1426 + $0x4] sm:$0xf]
      %v1429 = vld [vmem:[%s1426 + $0x8] sm:$0xf]
      %v1430 = vld [vmem:[%s1426 + $0xc] sm:$0xf]
      %v1435 = vunpack.c.l.b16 %v1427
      %v1436 = vunpack.c.l.b16 %v1428
      %v1437 = vunpack.c.l.b16 %v1429
      %v1438 = vunpack.c.l.b16 %v1430
      %v1439 = vpack.c.b16 %v1436, %v1435
      %v1440 = vpack.c.b16 %v1438, %v1437
      %1443 = vmatpush.bf16.msra.mxu0 0
      %1444 = vmatpush.bf16.msra.mxu0 0
      %1445 = vmatpush.bf16.msra.mxu0 0
      %1446 = vmatpush.bf16.msra.mxu0 0
      %1447 = vmatpush.bf16.msra.mxu0 0
      %1448 = vmatpush.bf16.msra.mxu0 0
      %1449 = vmatpush.bf16.msra.mxu0 %v1440
      %1450 = vmatpush.bf16.msra.mxu0 %v1439
      %1451 = vmatmul.bf16.gmra.mxu0 %v463
      %v1452 = vpop.f32.mrf.mxu0
      %v1453 = vadd.f32 0.0, %v1452
      %v1454 = vpop.f32.mrf.mxu0
      %v1455 = vadd.f32 0.0, %v1454
      %1456 = vmatmul.bf16.gmra.mxu0 %v466
      %v1457 = vpop.f32.mrf.mxu0
      %v1458 = vadd.f32 0.0, %v1457
      %v1459 = vpop.f32.mrf.mxu0
      %v1460 = vadd.f32 0.0, %v1459
      %1461 = vmatmul.bf16.gmra.mxu0 %v469
      %v1462 = vpop.f32.mrf.mxu0
      %v1463 = vadd.f32 0.0, %v1462
      %v1464 = vpop.f32.mrf.mxu0
      %v1465 = vadd.f32 0.0, %v1464
      %1466 = vmatmul.bf16.gmra.mxu0 %v472
      %v1467 = vpop.f32.mrf.mxu0
      %v1468 = vadd.f32 0.0, %v1467
      %v1469 = vpop.f32.mrf.mxu0
      %v1470 = vadd.f32 0.0, %v1469
      %1471 = vmatmul.bf16.gmra.mxu0 %v475
      %v1472 = vpop.f32.mrf.mxu0
      %v1473 = vadd.f32 0.0, %v1472
      %v1474 = vpop.f32.mrf.mxu0
      %v1475 = vadd.f32 0.0, %v1474
      %1476 = vmatmul.bf16.gmra.mxu0 %v478
      %v1477 = vpop.f32.mrf.mxu0
      %v1478 = vadd.f32 0.0, %v1477
      %v1479 = vpop.f32.mrf.mxu0
      %v1480 = vadd.f32 0.0, %v1479
      %1481 = vmatmul.bf16.gmra.mxu0 %v481
      %v1482 = vpop.f32.mrf.mxu0
      %v1483 = vadd.f32 0.0, %v1482
      %v1484 = vpop.f32.mrf.mxu0
      %v1485 = vadd.f32 0.0, %v1484
      %1486 = vmatmul.bf16.gmra.mxu0 %v484
      %v1487 = vpop.f32.mrf.mxu0
      %v1488 = vadd.f32 0.0, %v1487
      %v1489 = vpop.f32.mrf.mxu0
      %v1490 = vadd.f32 0.0, %v1489
      %1491 = vmatmul.bf16.gmra.mxu0 %v487
      %v1492 = vpop.f32.mrf.mxu0
      %v1493 = vadd.f32 0.0, %v1492
      %v1494 = vpop.f32.mrf.mxu0
      %v1495 = vadd.f32 0.0, %v1494
      %1496 = vmatmul.bf16.gmra.mxu0 %v490
      %v1497 = vpop.f32.mrf.mxu0
      %v1498 = vadd.f32 0.0, %v1497
      %v1499 = vpop.f32.mrf.mxu0
      %v1500 = vadd.f32 0.0, %v1499
      %1501 = vmatmul.bf16.gmra.mxu0 %v493
      %v1502 = vpop.f32.mrf.mxu0
      %v1503 = vadd.f32 0.0, %v1502
      %v1504 = vpop.f32.mrf.mxu0
      %v1505 = vadd.f32 0.0, %v1504
      %1506 = vmatmul.bf16.gmra.mxu0 %v496
      %v1507 = vpop.f32.mrf.mxu0
      %v1508 = vadd.f32 0.0, %v1507
      %v1509 = vpop.f32.mrf.mxu0
      %v1510 = vadd.f32 0.0, %v1509
      %1511 = vmatmul.bf16.gmra.mxu0 %v499
      %v1512 = vpop.f32.mrf.mxu0
      %v1513 = vadd.f32 0.0, %v1512
      %v1514 = vpop.f32.mrf.mxu0
      %v1515 = vadd.f32 0.0, %v1514
      %1516 = vmatmul.bf16.gmra.mxu0 %v502
      %v1517 = vpop.f32.mrf.mxu0
      %v1518 = vadd.f32 0.0, %v1517
      %v1519 = vpop.f32.mrf.mxu0
      %v1520 = vadd.f32 0.0, %v1519
      %1521 = vmatmul.bf16.gmra.mxu0 %v505
      %v1522 = vpop.f32.mrf.mxu0
      %v1523 = vadd.f32 0.0, %v1522
      %v1524 = vpop.f32.mrf.mxu0
      %v1525 = vadd.f32 0.0, %v1524
      %1526 = vmatmul.bf16.gmra.mxu0 %v508
      %v1527 = vpop.f32.mrf.mxu0
      %v1528 = vadd.f32 0.0, %v1527
      %v1529 = vpop.f32.mrf.mxu0
      %v1530 = vadd.f32 0.0, %v1529
      %1531 = vdwg.mxu0
      %v1533 = vperm.slane %v1425, 0
      %v1535 = vadd.f32 %v1533, %v1453
      %v1536 = vadd.f32 %v1533, %v1455
      %v1537 = vadd.f32 %v1533, %v1458
      %v1538 = vadd.f32 %v1533, %v1460
      %v1539 = vadd.f32 %v1533, %v1463
      %v1540 = vadd.f32 %v1533, %v1465
      %v1541 = vadd.f32 %v1533, %v1468
      %v1542 = vadd.f32 %v1533, %v1470
      %v1543 = vadd.f32 %v1533, %v1473
      %v1544 = vadd.f32 %v1533, %v1475
      %v1545 = vadd.f32 %v1533, %v1478
      %v1546 = vadd.f32 %v1533, %v1480
      %v1547 = vadd.f32 %v1533, %v1483
      %v1548 = vadd.f32 %v1533, %v1485
      %v1549 = vadd.f32 %v1533, %v1488
      %v1550 = vadd.f32 %v1533, %v1490
      %v1551 = vadd.f32 %v1533, %v1493
      %v1552 = vadd.f32 %v1533, %v1495
      %v1553 = vadd.f32 %v1533, %v1498
      %v1554 = vadd.f32 %v1533, %v1500
      %v1555 = vadd.f32 %v1533, %v1503
      %v1556 = vadd.f32 %v1533, %v1505
      %v1557 = vadd.f32 %v1533, %v1508
      %v1558 = vadd.f32 %v1533, %v1510
      %v1559 = vadd.f32 %v1533, %v1513
      %v1560 = vadd.f32 %v1533, %v1515
      %v1561 = vadd.f32 %v1533, %v1518
      %v1562 = vadd.f32 %v1533, %v1520
      %v1563 = vadd.f32 %v1533, %v1523
      %v1564 = vadd.f32 %v1533, %v1525
      %v1565 = vadd.f32 %v1533, %v1528
      %v1566 = vadd.f32 %v1533, %v1530
      %s1567 = scalar_lea.vmem %s3, 96
      %v1568 = vld [vmem:[%s1567] sm:$0xf]
      %v1569 = vld [vmem:[%s1567 + $0x4] sm:$0xf]
      %v1570 = vld [vmem:[%s1567 + $0x8] sm:$0xf]
      %v1571 = vld [vmem:[%s1567 + $0xc] sm:$0xf]
      %v1576 = vunpack.c.l.b16 %v1568
      %v1577 = vunpack.c.l.b16 %v1569
      %v1578 = vunpack.c.l.b16 %v1570
      %v1579 = vunpack.c.l.b16 %v1571
      %v1580 = vpack.c.b16 %v1577, %v1576
      %v1581 = vpack.c.b16 %v1579, %v1578
      %1584 = vmatpush.bf16.msra.mxu0 0
      %1585 = vmatpush.bf16.msra.mxu0 0
      %1586 = vmatpush.bf16.msra.mxu0 0
      %1587 = vmatpush.bf16.msra.mxu0 0
      %1588 = vmatpush.bf16.msra.mxu0 0
      %1589 = vmatpush.bf16.msra.mxu0 0
      %1590 = vmatpush.bf16.msra.mxu0 %v1581
      %1591 = vmatpush.bf16.msra.mxu0 %v1580
      %1592 = vmatmul.bf16.gmra.mxu0 %v652
      %v1593 = vpop.f32.mrf.mxu0
      %v1594 = vadd.f32 0.0, %v1593
      %v1595 = vpop.f32.mrf.mxu0
      %v1596 = vadd.f32 0.0, %v1595
      %1597 = vmatmul.bf16.gmra.mxu0 %v655
      %v1598 = vpop.f32.mrf.mxu0
      %v1599 = vadd.f32 0.0, %v1598
      %v1600 = vpop.f32.mrf.mxu0
      %v1601 = vadd.f32 0.0, %v1600
      %1602 = vmatmul.bf16.gmra.mxu0 %v658
      %v1603 = vpop.f32.mrf.mxu0
      %v1604 = vadd.f32 0.0, %v1603
      %v1605 = vpop.f32.mrf.mxu0
      %v1606 = vadd.f32 0.0, %v1605
      %1607 = vmatmul.bf16.gmra.mxu0 %v661
      %v1608 = vpop.f32.mrf.mxu0
      %v1609 = vadd.f32 0.0, %v1608
      %v1610 = vpop.f32.mrf.mxu0
      %v1611 = vadd.f32 0.0, %v1610
      %1612 = vmatmul.bf16.gmra.mxu0 %v664
      %v1613 = vpop.f32.mrf.mxu0
      %v1614 = vadd.f32 0.0, %v1613
      %v1615 = vpop.f32.mrf.mxu0
      %v1616 = vadd.f32 0.0, %v1615
      %1617 = vmatmul.bf16.gmra.mxu0 %v667
      %v1618 = vpop.f32.mrf.mxu0
      %v1619 = vadd.f32 0.0, %v1618
      %v1620 = vpop.f32.mrf.mxu0
      %v1621 = vadd.f32 0.0, %v1620
      %1622 = vmatmul.bf16.gmra.mxu0 %v670
      %v1623 = vpop.f32.mrf.mxu0
      %v1624 = vadd.f32 0.0, %v1623
      %v1625 = vpop.f32.mrf.mxu0
      %v1626 = vadd.f32 0.0, %v1625
      %1627 = vmatmul.bf16.gmra.mxu0 %v673
      %v1628 = vpop.f32.mrf.mxu0
      %v1629 = vadd.f32 0.0, %v1628
      %v1630 = vpop.f32.mrf.mxu0
      %v1631 = vadd.f32 0.0, %v1630
      %1632 = vmatmul.bf16.gmra.mxu0 %v676
      %v1633 = vpop.f32.mrf.mxu0
      %v1634 = vadd.f32 0.0, %v1633
      %v1635 = vpop.f32.mrf.mxu0
      %v1636 = vadd.f32 0.0, %v1635
      %1637 = vmatmul.bf16.gmra.mxu0 %v679
      %v1638 = vpop.f32.mrf.mxu0
      %v1639 = vadd.f32 0.0, %v1638
      %v1640 = vpop.f32.mrf.mxu0
      %v1641 = vadd.f32 0.0, %v1640
      %1642 = vmatmul.bf16.gmra.mxu0 %v682
      %v1643 = vpop.f32.mrf.mxu0
      %v1644 = vadd.f32 0.0, %v1643
      %v1645 = vpop.f32.mrf.mxu0
      %v1646 = vadd.f32 0.0, %v1645
      %1647 = vmatmul.bf16.gmra.mxu0 %v685
      %v1648 = vpop.f32.mrf.mxu0
      %v1649 = vadd.f32 0.0, %v1648
      %v1650 = vpop.f32.mrf.mxu0
      %v1651 = vadd.f32 0.0, %v1650
      %1652 = vmatmul.bf16.gmra.mxu0 %v688
      %v1653 = vpop.f32.mrf.mxu0
      %v1654 = vadd.f32 0.0, %v1653
      %v1655 = vpop.f32.mrf.mxu0
      %v1656 = vadd.f32 0.0, %v1655
      %1657 = vmatmul.bf16.gmra.mxu0 %v691
      %v1658 = vpop.f32.mrf.mxu0
      %v1659 = vadd.f32 0.0, %v1658
      %v1660 = vpop.f32.mrf.mxu0
      %v1661 = vadd.f32 0.0, %v1660
      %1662 = vmatmul.bf16.gmra.mxu0 %v694
      %v1663 = vpop.f32.mrf.mxu0
      %v1664 = vadd.f32 0.0, %v1663
      %v1665 = vpop.f32.mrf.mxu0
      %v1666 = vadd.f32 0.0, %v1665
      %1667 = vmatmul.bf16.gmra.mxu0 %v697
      %v1668 = vpop.f32.mrf.mxu0
      %v1669 = vadd.f32 0.0, %v1668
      %v1670 = vpop.f32.mrf.mxu0
      %v1671 = vadd.f32 0.0, %v1670
      %1672 = vdwg.mxu0
      %v1673 = vadd.f32 %v1535, %v1594
      %v1674 = vadd.f32 %v1536, %v1596
      %v1675 = vadd.f32 %v1537, %v1599
      %v1676 = vadd.f32 %v1538, %v1601
      %v1677 = vadd.f32 %v1539, %v1604
      %v1678 = vadd.f32 %v1540, %v1606
      %v1679 = vadd.f32 %v1541, %v1609
      %v1680 = vadd.f32 %v1542, %v1611
      %v1681 = vadd.f32 %v1543, %v1614
      %v1682 = vadd.f32 %v1544, %v1616
      %v1683 = vadd.f32 %v1545, %v1619
      %v1684 = vadd.f32 %v1546, %v1621
      %v1685 = vadd.f32 %v1547, %v1624
      %v1686 = vadd.f32 %v1548, %v1626
      %v1687 = vadd.f32 %v1549, %v1629
      %v1688 = vadd.f32 %v1550, %v1631
      %v1689 = vadd.f32 %v1551, %v1634
      %v1690 = vadd.f32 %v1552, %v1636
      %v1691 = vadd.f32 %v1553, %v1639
      %v1692 = vadd.f32 %v1554, %v1641
      %v1693 = vadd.f32 %v1555, %v1644
      %v1694 = vadd.f32 %v1556, %v1646
      %v1695 = vadd.f32 %v1557, %v1649
      %v1696 = vadd.f32 %v1558, %v1651
      %v1697 = vadd.f32 %v1559, %v1654
      %v1698 = vadd.f32 %v1560, %v1656
      %v1699 = vadd.f32 %v1561, %v1659
      %v1700 = vadd.f32 %v1562, %v1661
      %v1701 = vadd.f32 %v1563, %v1664
      %v1702 = vadd.f32 %v1564, %v1666
      %v1703 = vadd.f32 %v1565, %v1669
      %v1704 = vadd.f32 %v1566, %v1671
      %s1705 = scalar_lea.vmem %s4, 32
      %v1706 = vld [vmem:[%s1705] sm:$0xf]
      %v1707 = vld [vmem:[%s1705 + $0x4] sm:$0xf]
      %v1708 = vld [vmem:[%s1705 + $0x8] sm:$0xf]
      %v1709 = vld [vmem:[%s1705 + $0xc] sm:$0xf]
      %v1714 = vunpack.c.l.b16 %v1706
      %v1715 = vunpack.c.l.b16 %v1707
      %v1716 = vunpack.c.l.b16 %v1708
      %v1717 = vunpack.c.l.b16 %v1709
      %v1718 = vpack.c.b16 %v1715, %v1714
      %v1719 = vpack.c.b16 %v1717, %v1716
      %1722 = vmatpush.bf16.msra.mxu0 0
      %1723 = vmatpush.bf16.msra.mxu0 0
      %1724 = vmatpush.bf16.msra.mxu0 0
      %1725 = vmatpush.bf16.msra.mxu0 0
      %1726 = vmatpush.bf16.msra.mxu0 0
      %1727 = vmatpush.bf16.msra.mxu0 0
      %1728 = vmatpush.bf16.msra.mxu0 %v1719
      %1729 = vmatpush.bf16.msra.mxu0 %v1718
      %1730 = vmatmul.bf16.gmra.mxu0 %v837
      %v1731 = vpop.f32.mrf.mxu0
      %v1732 = vadd.f32 0.0, %v1731
      %v1733 = vpop.f32.mrf.mxu0
      %v1734 = vadd.f32 0.0, %v1733
      %1735 = vmatmul.bf16.gmra.mxu0 %v840
      %v1736 = vpop.f32.mrf.mxu0
      %v1737 = vadd.f32 0.0, %v1736
      %v1738 = vpop.f32.mrf.mxu0
      %v1739 = vadd.f32 0.0, %v1738
      %1740 = vmatmul.bf16.gmra.mxu0 %v843
      %v1741 = vpop.f32.mrf.mxu0
      %v1742 = vadd.f32 0.0, %v1741
      %v1743 = vpop.f32.mrf.mxu0
      %v1744 = vadd.f32 0.0, %v1743
      %1745 = vmatmul.bf16.gmra.mxu0 %v846
      %v1746 = vpop.f32.mrf.mxu0
      %v1747 = vadd.f32 0.0, %v1746
      %v1748 = vpop.f32.mrf.mxu0
      %v1749 = vadd.f32 0.0, %v1748
      %1750 = vmatmul.bf16.gmra.mxu0 %v849
      %v1751 = vpop.f32.mrf.mxu0
      %v1752 = vadd.f32 0.0, %v1751
      %v1753 = vpop.f32.mrf.mxu0
      %v1754 = vadd.f32 0.0, %v1753
      %1755 = vmatmul.bf16.gmra.mxu0 %v852
      %v1756 = vpop.f32.mrf.mxu0
      %v1757 = vadd.f32 0.0, %v1756
      %v1758 = vpop.f32.mrf.mxu0
      %v1759 = vadd.f32 0.0, %v1758
      %1760 = vmatmul.bf16.gmra.mxu0 %v855
      %v1761 = vpop.f32.mrf.mxu0
      %v1762 = vadd.f32 0.0, %v1761
      %v1763 = vpop.f32.mrf.mxu0
      %v1764 = vadd.f32 0.0, %v1763
      %1765 = vmatmul.bf16.gmra.mxu0 %v858
      %v1766 = vpop.f32.mrf.mxu0
      %v1767 = vadd.f32 0.0, %v1766
      %v1768 = vpop.f32.mrf.mxu0
      %v1769 = vadd.f32 0.0, %v1768
      %1770 = vmatmul.bf16.gmra.mxu0 %v861
      %v1771 = vpop.f32.mrf.mxu0
      %v1772 = vadd.f32 0.0, %v1771
      %v1773 = vpop.f32.mrf.mxu0
      %v1774 = vadd.f32 0.0, %v1773
      %1775 = vmatmul.bf16.gmra.mxu0 %v864
      %v1776 = vpop.f32.mrf.mxu0
      %v1777 = vadd.f32 0.0, %v1776
      %v1778 = vpop.f32.mrf.mxu0
      %v1779 = vadd.f32 0.0, %v1778
      %1780 = vmatmul.bf16.gmra.mxu0 %v867
      %v1781 = vpop.f32.mrf.mxu0
      %v1782 = vadd.f32 0.0, %v1781
      %v1783 = vpop.f32.mrf.mxu0
      %v1784 = vadd.f32 0.0, %v1783
      %1785 = vmatmul.bf16.gmra.mxu0 %v870
      %v1786 = vpop.f32.mrf.mxu0
      %v1787 = vadd.f32 0.0, %v1786
      %v1788 = vpop.f32.mrf.mxu0
      %v1789 = vadd.f32 0.0, %v1788
      %1790 = vmatmul.bf16.gmra.mxu0 %v873
      %v1791 = vpop.f32.mrf.mxu0
      %v1792 = vadd.f32 0.0, %v1791
      %v1793 = vpop.f32.mrf.mxu0
      %v1794 = vadd.f32 0.0, %v1793
      %1795 = vmatmul.bf16.gmra.mxu0 %v876
      %v1796 = vpop.f32.mrf.mxu0
      %v1797 = vadd.f32 0.0, %v1796
      %v1798 = vpop.f32.mrf.mxu0
      %v1799 = vadd.f32 0.0, %v1798
      %1800 = vmatmul.bf16.gmra.mxu0 %v879
      %v1801 = vpop.f32.mrf.mxu0
      %v1802 = vadd.f32 0.0, %v1801
      %v1803 = vpop.f32.mrf.mxu0
      %v1804 = vadd.f32 0.0, %v1803
      %1805 = vmatmul.bf16.gmra.mxu0 %v882
      %v1806 = vpop.f32.mrf.mxu0
      %v1807 = vadd.f32 0.0, %v1806
      %v1808 = vpop.f32.mrf.mxu0
      %v1809 = vadd.f32 0.0, %v1808
      %1810 = vdwg.mxu0
      %v1811 = vadd.f32 %v1673, %v1732
      %v1812 = vadd.f32 %v1674, %v1734
      %v1813 = vadd.f32 %v1675, %v1737
      %v1814 = vadd.f32 %v1676, %v1739
      %v1815 = vadd.f32 %v1677, %v1742
      %v1816 = vadd.f32 %v1678, %v1744
      %v1817 = vadd.f32 %v1679, %v1747
      %v1818 = vadd.f32 %v1680, %v1749
      %v1819 = vadd.f32 %v1681, %v1752
      %v1820 = vadd.f32 %v1682, %v1754
      %v1821 = vadd.f32 %v1683, %v1757
      %v1822 = vadd.f32 %v1684, %v1759
      %v1823 = vadd.f32 %v1685, %v1762
      %v1824 = vadd.f32 %v1686, %v1764
      %v1825 = vadd.f32 %v1687, %v1767
      %v1826 = vadd.f32 %v1688, %v1769
      %v1827 = vadd.f32 %v1689, %v1772
      %v1828 = vadd.f32 %v1690, %v1774
      %v1829 = vadd.f32 %v1691, %v1777
      %v1830 = vadd.f32 %v1692, %v1779
      %v1831 = vadd.f32 %v1693, %v1782
      %v1832 = vadd.f32 %v1694, %v1784
      %v1833 = vadd.f32 %v1695, %v1787
      %v1834 = vadd.f32 %v1696, %v1789
      %v1835 = vadd.f32 %v1697, %v1792
      %v1836 = vadd.f32 %v1698, %v1794
      %v1837 = vadd.f32 %v1699, %v1797
      %v1838 = vadd.f32 %v1700, %v1799
      %v1839 = vadd.f32 %v1701, %v1802
      %v1840 = vadd.f32 %v1702, %v1804
      %v1841 = vadd.f32 %v1703, %v1807
      %v1842 = vadd.f32 %v1704, %v1809
      %s1843 = scalar_lea.vmem %s5, 3
      %v1844 = vld [vmem:[%s1843] sm:$0x1]
      %s1845 = scalar_lea.vmem %s3, 48
      %v1846 = vld [vmem:[%s1845] sm:$0xf]
      %v1847 = vld [vmem:[%s1845 + $0x4] sm:$0xf]
      %v1848 = vld [vmem:[%s1845 + $0x8] sm:$0xf]
      %v1849 = vld [vmem:[%s1845 + $0xc] sm:$0xf]
      %v1854 = vunpack.c.l.b16 %v1846
      %v1855 = vunpack.c.l.b16 %v1847
      %v1856 = vunpack.c.l.b16 %v1848
      %v1857 = vunpack.c.l.b16 %v1849
      %v1858 = vpack.c.b16 %v1855, %v1854
      %v1859 = vpack.c.b16 %v1857, %v1856
      %1862 = vmatpush.bf16.msra.mxu0 0
      %1863 = vmatpush.bf16.msra.mxu0 0
      %1864 = vmatpush.bf16.msra.mxu0 0
      %1865 = vmatpush.bf16.msra.mxu0 0
      %1866 = vmatpush.bf16.msra.mxu0 0
      %1867 = vmatpush.bf16.msra.mxu0 0
      %1868 = vmatpush.bf16.msra.mxu0 %v1859
      %1869 = vmatpush.bf16.msra.mxu0 %v1858
      %1870 = vmatmul.bf16.gmra.mxu0 %v463
      %v1871 = vpop.f32.mrf.mxu0
      %v1872 = vadd.f32 0.0, %v1871
      %v1873 = vpop.f32.mrf.mxu0
      %v1874 = vadd.f32 0.0, %v1873
      %1875 = vmatmul.bf16.gmra.mxu0 %v466
      %v1876 = vpop.f32.mrf.mxu0
      %v1877 = vadd.f32 0.0, %v1876
      %v1878 = vpop.f32.mrf.mxu0
      %v1879 = vadd.f32 0.0, %v1878
      %1880 = vmatmul.bf16.gmra.mxu0 %v469
      %v1881 = vpop.f32.mrf.mxu0
      %v1882 = vadd.f32 0.0, %v1881
      %v1883 = vpop.f32.mrf.mxu0
      %v1884 = vadd.f32 0.0, %v1883
      %1885 = vmatmul.bf16.gmra.mxu0 %v472
      %v1886 = vpop.f32.mrf.mxu0
      %v1887 = vadd.f32 0.0, %v1886
      %v1888 = vpop.f32.mrf.mxu0
      %v1889 = vadd.f32 0.0, %v1888
      %1890 = vmatmul.bf16.gmra.mxu0 %v475
      %v1891 = vpop.f32.mrf.mxu0
      %v1892 = vadd.f32 0.0, %v1891
      %v1893 = vpop.f32.mrf.mxu0
      %v1894 = vadd.f32 0.0, %v1893
      %1895 = vmatmul.bf16.gmra.mxu0 %v478
      %v1896 = vpop.f32.mrf.mxu0
      %v1897 = vadd.f32 0.0, %v1896
      %v1898 = vpop.f32.mrf.mxu0
      %v1899 = vadd.f32 0.0, %v1898
      %1900 = vmatmul.bf16.gmra.mxu0 %v481
      %v1901 = vpop.f32.mrf.mxu0
      %v1902 = vadd.f32 0.0, %v1901
      %v1903 = vpop.f32.mrf.mxu0
      %v1904 = vadd.f32 0.0, %v1903
      %1905 = vmatmul.bf16.gmra.mxu0 %v484
      %v1906 = vpop.f32.mrf.mxu0
      %v1907 = vadd.f32 0.0, %v1906
      %v1908 = vpop.f32.mrf.mxu0
      %v1909 = vadd.f32 0.0, %v1908
      %1910 = vmatmul.bf16.gmra.mxu0 %v487
      %v1911 = vpop.f32.mrf.mxu0
      %v1912 = vadd.f32 0.0, %v1911
      %v1913 = vpop.f32.mrf.mxu0
      %v1914 = vadd.f32 0.0, %v1913
      %1915 = vmatmul.bf16.gmra.mxu0 %v490
      %v1916 = vpop.f32.mrf.mxu0
      %v1917 = vadd.f32 0.0, %v1916
      %v1918 = vpop.f32.mrf.mxu0
      %v1919 = vadd.f32 0.0, %v1918
      %1920 = vmatmul.bf16.gmra.mxu0 %v493
      %v1921 = vpop.f32.mrf.mxu0
      %v1922 = vadd.f32 0.0, %v1921
      %v1923 = vpop.f32.mrf.mxu0
      %v1924 = vadd.f32 0.0, %v1923
      %1925 = vmatmul.bf16.gmra.mxu0 %v496
      %v1926 = vpop.f32.mrf.mxu0
      %v1927 = vadd.f32 0.0, %v1926
      %v1928 = vpop.f32.mrf.mxu0
      %v1929 = vadd.f32 0.0, %v1928
      %1930 = vmatmul.bf16.gmra.mxu0 %v499
      %v1931 = vpop.f32.mrf.mxu0
      %v1932 = vadd.f32 0.0, %v1931
      %v1933 = vpop.f32.mrf.mxu0
      %v1934 = vadd.f32 0.0, %v1933
      %1935 = vmatmul.bf16.gmra.mxu0 %v502
      %v1936 = vpop.f32.mrf.mxu0
      %v1937 = vadd.f32 0.0, %v1936
      %v1938 = vpop.f32.mrf.mxu0
      %v1939 = vadd.f32 0.0, %v1938
      %1940 = vmatmul.bf16.gmra.mxu0 %v505
      %v1941 = vpop.f32.mrf.mxu0
      %v1942 = vadd.f32 0.0, %v1941
      %v1943 = vpop.f32.mrf.mxu0
      %v1944 = vadd.f32 0.0, %v1943
      %1945 = vmatmul.bf16.gmra.mxu0 %v508
      %v1946 = vpop.f32.mrf.mxu0
      %v1947 = vadd.f32 0.0, %v1946
      %v1948 = vpop.f32.mrf.mxu0
      %v1949 = vadd.f32 0.0, %v1948
      %1950 = vdwg.mxu0
      %v1952 = vperm.slane %v1844, 0
      %v1954 = vadd.f32 %v1952, %v1872
      %v1955 = vadd.f32 %v1952, %v1874
      %v1956 = vadd.f32 %v1952, %v1877
      %v1957 = vadd.f32 %v1952, %v1879
      %v1958 = vadd.f32 %v1952, %v1882
      %v1959 = vadd.f32 %v1952, %v1884
      %v1960 = vadd.f32 %v1952, %v1887
      %v1961 = vadd.f32 %v1952, %v1889
      %v1962 = vadd.f32 %v1952, %v1892
      %v1963 = vadd.f32 %v1952, %v1894
      %v1964 = vadd.f32 %v1952, %v1897
      %v1965 = vadd.f32 %v1952, %v1899
      %v1966 = vadd.f32 %v1952, %v1902
      %v1967 = vadd.f32 %v1952, %v1904
      %v1968 = vadd.f32 %v1952, %v1907
      %v1969 = vadd.f32 %v1952, %v1909
      %v1970 = vadd.f32 %v1952, %v1912
      %v1971 = vadd.f32 %v1952, %v1914
      %v1972 = vadd.f32 %v1952, %v1917
      %v1973 = vadd.f32 %v1952, %v1919
      %v1974 = vadd.f32 %v1952, %v1922
      %v1975 = vadd.f32 %v1952, %v1924
      %v1976 = vadd.f32 %v1952, %v1927
      %v1977 = vadd.f32 %v1952, %v1929
      %v1978 = vadd.f32 %v1952, %v1932
      %v1979 = vadd.f32 %v1952, %v1934
      %v1980 = vadd.f32 %v1952, %v1937
      %v1981 = vadd.f32 %v1952, %v1939
      %v1982 = vadd.f32 %v1952, %v1942
      %v1983 = vadd.f32 %v1952, %v1944
      %v1984 = vadd.f32 %v1952, %v1947
      %v1985 = vadd.f32 %v1952, %v1949
      %s1986 = scalar_lea.vmem %s3, 112
      %v1987 = vld [vmem:[%s1986] sm:$0xf]
      %v1988 = vld [vmem:[%s1986 + $0x4] sm:$0xf]
      %v1989 = vld [vmem:[%s1986 + $0x8] sm:$0xf]
      %v1990 = vld [vmem:[%s1986 + $0xc] sm:$0xf]
      %v1995 = vunpack.c.l.b16 %v1987
      %v1996 = vunpack.c.l.b16 %v1988
      %v1997 = vunpack.c.l.b16 %v1989
      %v1998 = vunpack.c.l.b16 %v1990
      %v1999 = vpack.c.b16 %v1996, %v1995
      %v2000 = vpack.c.b16 %v1998, %v1997
      %2003 = vmatpush.bf16.msra.mxu0 0
      %2004 = vmatpush.bf16.msra.mxu0 0
      %2005 = vmatpush.bf16.msra.mxu0 0
      %2006 = vmatpush.bf16.msra.mxu0 0
      %2007 = vmatpush.bf16.msra.mxu0 0
      %2008 = vmatpush.bf16.msra.mxu0 0
      %2009 = vmatpush.bf16.msra.mxu0 %v2000
      %2010 = vmatpush.bf16.msra.mxu0 %v1999
      %2011 = vmatmul.bf16.gmra.mxu0 %v652
      %v2012 = vpop.f32.mrf.mxu0
      %v2013 = vadd.f32 0.0, %v2012
      %v2014 = vpop.f32.mrf.mxu0
      %v2015 = vadd.f32 0.0, %v2014
      %2016 = vmatmul.bf16.gmra.mxu0 %v655
      %v2017 = vpop.f32.mrf.mxu0
      %v2018 = vadd.f32 0.0, %v2017
      %v2019 = vpop.f32.mrf.mxu0
      %v2020 = vadd.f32 0.0, %v2019
      %2021 = vmatmul.bf16.gmra.mxu0 %v658
      %v2022 = vpop.f32.mrf.mxu0
      %v2023 = vadd.f32 0.0, %v2022
      %v2024 = vpop.f32.mrf.mxu0
      %v2025 = vadd.f32 0.0, %v2024
      %2026 = vmatmul.bf16.gmra.mxu0 %v661
      %v2027 = vpop.f32.mrf.mxu0
      %v2028 = vadd.f32 0.0, %v2027
      %v2029 = vpop.f32.mrf.mxu0
      %v2030 = vadd.f32 0.0, %v2029
      %2031 = vmatmul.bf16.gmra.mxu0 %v664
      %v2032 = vpop.f32.mrf.mxu0
      %v2033 = vadd.f32 0.0, %v2032
      %v2034 = vpop.f32.mrf.mxu0
      %v2035 = vadd.f32 0.0, %v2034
      %2036 = vmatmul.bf16.gmra.mxu0 %v667
      %v2037 = vpop.f32.mrf.mxu0
      %v2038 = vadd.f32 0.0, %v2037
      %v2039 = vpop.f32.mrf.mxu0
      %v2040 = vadd.f32 0.0, %v2039
      %2041 = vmatmul.bf16.gmra.mxu0 %v670
      %v2042 = vpop.f32.mrf.mxu0
      %v2043 = vadd.f32 0.0, %v2042
      %v2044 = vpop.f32.mrf.mxu0
      %v2045 = vadd.f32 0.0, %v2044
      %2046 = vmatmul.bf16.gmra.mxu0 %v673
      %v2047 = vpop.f32.mrf.mxu0
      %v2048 = vadd.f32 0.0, %v2047
      %v2049 = vpop.f32.mrf.mxu0
      %v2050 = vadd.f32 0.0, %v2049
      %2051 = vmatmul.bf16.gmra.mxu0 %v676
      %v2052 = vpop.f32.mrf.mxu0
      %v2053 = vadd.f32 0.0, %v2052
      %v2054 = vpop.f32.mrf.mxu0
      %v2055 = vadd.f32 0.0, %v2054
      %2056 = vmatmul.bf16.gmra.mxu0 %v679
      %v2057 = vpop.f32.mrf.mxu0
      %v2058 = vadd.f32 0.0, %v2057
      %v2059 = vpop.f32.mrf.mxu0
      %v2060 = vadd.f32 0.0, %v2059
      %2061 = vmatmul.bf16.gmra.mxu0 %v682
      %v2062 = vpop.f32.mrf.mxu0
      %v2063 = vadd.f32 0.0, %v2062
      %v2064 = vpop.f32.mrf.mxu0
      %v2065 = vadd.f32 0.0, %v2064
      %2066 = vmatmul.bf16.gmra.mxu0 %v685
      %v2067 = vpop.f32.mrf.mxu0
      %v2068 = vadd.f32 0.0, %v2067
      %v2069 = vpop.f32.mrf.mxu0
      %v2070 = vadd.f32 0.0, %v2069
      %2071 = vmatmul.bf16.gmra.mxu0 %v688
      %v2072 = vpop.f32.mrf.mxu0
      %v2073 = vadd.f32 0.0, %v2072
      %v2074 = vpop.f32.mrf.mxu0
      %v2075 = vadd.f32 0.0, %v2074
      %2076 = vmatmul.bf16.gmra.mxu0 %v691
      %v2077 = vpop.f32.mrf.mxu0
      %v2078 = vadd.f32 0.0, %v2077
      %v2079 = vpop.f32.mrf.mxu0
      %v2080 = vadd.f32 0.0, %v2079
      %2081 = vmatmul.bf16.gmra.mxu0 %v694
      %v2082 = vpop.f32.mrf.mxu0
      %v2083 = vadd.f32 0.0, %v2082
      %v2084 = vpop.f32.mrf.mxu0
      %v2085 = vadd.f32 0.0, %v2084
      %2086 = vmatmul.bf16.gmra.mxu0 %v697
      %v2087 = vpop.f32.mrf.mxu0
      %v2088 = vadd.f32 0.0, %v2087
      %v2089 = vpop.f32.mrf.mxu0
      %v2090 = vadd.f32 0.0, %v2089
      %2091 = vdwg.mxu0
      %v2092 = vadd.f32 %v1954, %v2013
      %v2093 = vadd.f32 %v1955, %v2015
      %v2094 = vadd.f32 %v1956, %v2018
      %v2095 = vadd.f32 %v1957, %v2020
      %v2096 = vadd.f32 %v1958, %v2023
      %v2097 = vadd.f32 %v1959, %v2025
      %v2098 = vadd.f32 %v1960, %v2028
      %v2099 = vadd.f32 %v1961, %v2030
      %v2100 = vadd.f32 %v1962, %v2033
      %v2101 = vadd.f32 %v1963, %v2035
      %v2102 = vadd.f32 %v1964, %v2038
      %v2103 = vadd.f32 %v1965, %v2040
      %v2104 = vadd.f32 %v1966, %v2043
      %v2105 = vadd.f32 %v1967, %v2045
      %v2106 = vadd.f32 %v1968, %v2048
      %v2107 = vadd.f32 %v1969, %v2050
      %v2108 = vadd.f32 %v1970, %v2053
      %v2109 = vadd.f32 %v1971, %v2055
      %v2110 = vadd.f32 %v1972, %v2058
      %v2111 = vadd.f32 %v1973, %v2060
      %v2112 = vadd.f32 %v1974, %v2063
      %v2113 = vadd.f32 %v1975, %v2065
      %v2114 = vadd.f32 %v1976, %v2068
      %v2115 = vadd.f32 %v1977, %v2070
      %v2116 = vadd.f32 %v1978, %v2073
      %v2117 = vadd.f32 %v1979, %v2075
      %v2118 = vadd.f32 %v1980, %v2078
      %v2119 = vadd.f32 %v1981, %v2080
      %v2120 = vadd.f32 %v1982, %v2083
      %v2121 = vadd.f32 %v1983, %v2085
      %v2122 = vadd.f32 %v1984, %v2088
      %v2123 = vadd.f32 %v1985, %v2090
      %s2124 = scalar_lea.vmem %s4, 48
      %v2125 = vld [vmem:[%s2124] sm:$0xf]
      %v2126 = vld [vmem:[%s2124 + $0x4] sm:$0xf]
      %v2127 = vld [vmem:[%s2124 + $0x8] sm:$0xf]
      %v2128 = vld [vmem:[%s2124 + $0xc] sm:$0xf]
      %v2133 = vunpack.c.l.b16 %v2125
      %v2134 = vunpack.c.l.b16 %v2126
      %v2135 = vunpack.c.l.b16 %v2127
      %v2136 = vunpack.c.l.b16 %v2128
      %v2137 = vpack.c.b16 %v2134, %v2133
      %v2138 = vpack.c.b16 %v2136, %v2135
      %2141 = vmatpush.bf16.msra.mxu0 0
      %2142 = vmatpush.bf16.msra.mxu0 0
      %2143 = vmatpush.bf16.msra.mxu0 0
      %2144 = vmatpush.bf16.msra.mxu0 0
      %2145 = vmatpush.bf16.msra.mxu0 0
      %2146 = vmatpush.bf16.msra.mxu0 0
      %2147 = vmatpush.bf16.msra.mxu0 %v2138
      %2148 = vmatpush.bf16.msra.mxu0 %v2137
      %2149 = vmatmul.bf16.gmra.mxu0 %v837
      %v2150 = vpop.f32.mrf.mxu0
      %v2151 = vadd.f32 0.0, %v2150
      %v2152 = vpop.f32.mrf.mxu0
      %v2153 = vadd.f32 0.0, %v2152
      %2154 = vmatmul.bf16.gmra.mxu0 %v840
      %v2155 = vpop.f32.mrf.mxu0
      %v2156 = vadd.f32 0.0, %v2155
      %v2157 = vpop.f32.mrf.mxu0
      %v2158 = vadd.f32 0.0, %v2157
      %2159 = vmatmul.bf16.gmra.mxu0 %v843
      %v2160 = vpop.f32.mrf.mxu0
      %v2161 = vadd.f32 0.0, %v2160
      %v2162 = vpop.f32.mrf.mxu0
      %v2163 = vadd.f32 0.0, %v2162
      %2164 = vmatmul.bf16.gmra.mxu0 %v846
      %v2165 = vpop.f32.mrf.mxu0
      %v2166 = vadd.f32 0.0, %v2165
      %v2167 = vpop.f32.mrf.mxu0
      %v2168 = vadd.f32 0.0, %v2167
      %2169 = vmatmul.bf16.gmra.mxu0 %v849
      %v2170 = vpop.f32.mrf.mxu0
      %v2171 = vadd.f32 0.0, %v2170
      %v2172 = vpop.f32.mrf.mxu0
      %v2173 = vadd.f32 0.0, %v2172
      %2174 = vmatmul.bf16.gmra.mxu0 %v852
      %v2175 = vpop.f32.mrf.mxu0
      %v2176 = vadd.f32 0.0, %v2175
      %v2177 = vpop.f32.mrf.mxu0
      %v2178 = vadd.f32 0.0, %v2177
      %2179 = vmatmul.bf16.gmra.mxu0 %v855
      %v2180 = vpop.f32.mrf.mxu0
      %v2181 = vadd.f32 0.0, %v2180
      %v2182 = vpop.f32.mrf.mxu0
      %v2183 = vadd.f32 0.0, %v2182
      %2184 = vmatmul.bf16.gmra.mxu0 %v858
      %v2185 = vpop.f32.mrf.mxu0
      %v2186 = vadd.f32 0.0, %v2185
      %v2187 = vpop.f32.mrf.mxu0
      %v2188 = vadd.f32 0.0, %v2187
      %2189 = vmatmul.bf16.gmra.mxu0 %v861
      %v2190 = vpop.f32.mrf.mxu0
      %v2191 = vadd.f32 0.0, %v2190
      %v2192 = vpop.f32.mrf.mxu0
      %v2193 = vadd.f32 0.0, %v2192
      %2194 = vmatmul.bf16.gmra.mxu0 %v864
      %v2195 = vpop.f32.mrf.mxu0
      %v2196 = vadd.f32 0.0, %v2195
      %v2197 = vpop.f32.mrf.mxu0
      %v2198 = vadd.f32 0.0, %v2197
      %2199 = vmatmul.bf16.gmra.mxu0 %v867
      %v2200 = vpop.f32.mrf.mxu0
      %v2201 = vadd.f32 0.0, %v2200
      %v2202 = vpop.f32.mrf.mxu0
      %v2203 = vadd.f32 0.0, %v2202
      %2204 = vmatmul.bf16.gmra.mxu0 %v870
      %v2205 = vpop.f32.mrf.mxu0
      %v2206 = vadd.f32 0.0, %v2205
      %v2207 = vpop.f32.mrf.mxu0
      %v2208 = vadd.f32 0.0, %v2207
      %2209 = vmatmul.bf16.gmra.mxu0 %v873
      %v2210 = vpop.f32.mrf.mxu0
      %v2211 = vadd.f32 0.0, %v2210
      %v2212 = vpop.f32.mrf.mxu0
      %v2213 = vadd.f32 0.0, %v2212
      %2214 = vmatmul.bf16.gmra.mxu0 %v876
      %v2215 = vpop.f32.mrf.mxu0
      %v2216 = vadd.f32 0.0, %v2215
      %v2217 = vpop.f32.mrf.mxu0
      %v2218 = vadd.f32 0.0, %v2217
      %2219 = vmatmul.bf16.gmra.mxu0 %v879
      %v2220 = vpop.f32.mrf.mxu0
      %v2221 = vadd.f32 0.0, %v2220
      %v2222 = vpop.f32.mrf.mxu0
      %v2223 = vadd.f32 0.0, %v2222
      %2224 = vmatmul.bf16.gmra.mxu0 %v882
      %v2225 = vpop.f32.mrf.mxu0
      %v2226 = vadd.f32 0.0, %v2225
      %v2227 = vpop.f32.mrf.mxu0
      %v2228 = vadd.f32 0.0, %v2227
      %2229 = vdwg.mxu0
      %v2230 = vadd.f32 %v2092, %v2151
      %v2231 = vadd.f32 %v2093, %v2153
      %v2232 = vadd.f32 %v2094, %v2156
      %v2233 = vadd.f32 %v2095, %v2158
      %v2234 = vadd.f32 %v2096, %v2161
      %v2235 = vadd.f32 %v2097, %v2163
      %v2236 = vadd.f32 %v2098, %v2166
      %v2237 = vadd.f32 %v2099, %v2168
      %v2238 = vadd.f32 %v2100, %v2171
      %v2239 = vadd.f32 %v2101, %v2173
      %v2240 = vadd.f32 %v2102, %v2176
      %v2241 = vadd.f32 %v2103, %v2178
      %v2242 = vadd.f32 %v2104, %v2181
      %v2243 = vadd.f32 %v2105, %v2183
      %v2244 = vadd.f32 %v2106, %v2186
      %v2245 = vadd.f32 %v2107, %v2188
      %v2246 = vadd.f32 %v2108, %v2191
      %v2247 = vadd.f32 %v2109, %v2193
      %v2248 = vadd.f32 %v2110, %v2196
      %v2249 = vadd.f32 %v2111, %v2198
      %v2250 = vadd.f32 %v2112, %v2201
      %v2251 = vadd.f32 %v2113, %v2203
      %v2252 = vadd.f32 %v2114, %v2206
      %v2253 = vadd.f32 %v2115, %v2208
      %v2254 = vadd.f32 %v2116, %v2211
      %v2255 = vadd.f32 %v2117, %v2213
      %v2256 = vadd.f32 %v2118, %v2216
      %v2257 = vadd.f32 %v2119, %v2218
      %v2258 = vadd.f32 %v2120, %v2221
      %v2259 = vadd.f32 %v2121, %v2223
      %v2260 = vadd.f32 %v2122, %v2226
      %v2261 = vadd.f32 %v2123, %v2228
      %v2262 = vxor.u32 %v973, 2147483648
      %v2263 = vxor.u32 %v974, 2147483648
      %v2264 = vxor.u32 %v975, 2147483648
      %v2265 = vxor.u32 %v976, 2147483648
      %v2266 = vxor.u32 %v977, 2147483648
      %v2267 = vxor.u32 %v978, 2147483648
      %v2268 = vxor.u32 %v979, 2147483648
      %v2269 = vxor.u32 %v980, 2147483648
      %v2270 = vxor.u32 %v981, 2147483648
      %v2271 = vxor.u32 %v982, 2147483648
      %v2272 = vxor.u32 %v983, 2147483648
      %v2273 = vxor.u32 %v984, 2147483648
      %v2274 = vxor.u32 %v985, 2147483648
      %v2275 = vxor.u32 %v986, 2147483648
      %v2276 = vxor.u32 %v987, 2147483648
      %v2277 = vxor.u32 %v988, 2147483648
      %v2278 = vxor.u32 %v989, 2147483648
      %v2279 = vxor.u32 %v990, 2147483648
      %v2280 = vxor.u32 %v991, 2147483648
      %v2281 = vxor.u32 %v992, 2147483648
      %v2282 = vxor.u32 %v993, 2147483648
      %v2283 = vxor.u32 %v994, 2147483648
      %v2284 = vxor.u32 %v995, 2147483648
      %v2285 = vxor.u32 %v996, 2147483648
      %v2286 = vxor.u32 %v997, 2147483648
      %v2287 = vxor.u32 %v998, 2147483648
      %v2288 = vxor.u32 %v999, 2147483648
      %v2289 = vxor.u32 %v1000, 2147483648
      %v2290 = vxor.u32 %v1001, 2147483648
      %v2291 = vxor.u32 %v1002, 2147483648
      %v2292 = vxor.u32 %v1003, 2147483648
      %v2293 = vxor.u32 %v1004, 2147483648
      %v2294 = vmul.f32 %v2262, 1.442695
      %v2295 = vpow.pop %v2294
      %v2296 = vmul.f32 %v2263, 1.442695
      %v2297 = vpow.pop %v2296
      %v2298 = vmul.f32 %v2264, 1.442695
      %v2299 = vpow.pop %v2298
      %v2300 = vmul.f32 %v2265, 1.442695
      %v2301 = vpow.pop %v2300
      %v2302 = vmul.f32 %v2266, 1.442695
      %v2303 = vpow.pop %v2302
      %v2304 = vmul.f32 %v2267, 1.442695
      %v2305 = vpow.pop %v2304
      %v2306 = vmul.f32 %v2268, 1.442695
      %v2307 = vpow.pop %v2306
      %v2308 = vmul.f32 %v2269, 1.442695
      %v2309 = vpow.pop %v2308
      %v2310 = vmul.f32 %v2270, 1.442695
      %v2311 = vpow.pop %v2310
      %v2312 = vmul.f32 %v2271, 1.442695
      %v2313 = vpow.pop %v2312
      %v2314 = vmul.f32 %v2272, 1.442695
      %v2315 = vpow.pop %v2314
      %v2316 = vmul.f32 %v2273, 1.442695
      %v2317 = vpow.pop %v2316
      %v2318 = vmul.f32 %v2274, 1.442695
      %v2319 = vpow.pop %v2318
      %v2320 = vmul.f32 %v2275, 1.442695
      %v2321 = vpow.pop %v2320
      %v2322 = vmul.f32 %v2276, 1.442695
      %v2323 = vpow.pop %v2322
      %v2324 = vmul.f32 %v2277, 1.442695
      %v2325 = vpow.pop %v2324
      %v2326 = vmul.f32 %v2278, 1.442695
      %v2327 = vpow.pop %v2326
      %v2328 = vmul.f32 %v2279, 1.442695
      %v2329 = vpow.pop %v2328
      %v2330 = vmul.f32 %v2280, 1.442695
      %v2331 = vpow.pop %v2330
      %v2332 = vmul.f32 %v2281, 1.442695
      %v2333 = vpow.pop %v2332
      %v2334 = vmul.f32 %v2282, 1.442695
      %v2335 = vpow.pop %v2334
      %v2336 = vmul.f32 %v2283, 1.442695
      %v2337 = vpow.pop %v2336
      %v2338 = vmul.f32 %v2284, 1.442695
      %v2339 = vpow.pop %v2338
      %v2340 = vmul.f32 %v2285, 1.442695
      %v2341 = vpow.pop %v2340
      %v2342 = vmul.f32 %v2286, 1.442695
      %v2343 = vpow.pop %v2342
      %v2344 = vmul.f32 %v2287, 1.442695
      %v2345 = vpow.pop %v2344
      %v2346 = vmul.f32 %v2288, 1.442695
      %v2347 = vpow.pop %v2346
      %v2348 = vmul.f32 %v2289, 1.442695
      %v2349 = vpow.pop %v2348
      %v2350 = vmul.f32 %v2290, 1.442695
      %v2351 = vpow.pop %v2350
      %v2352 = vmul.f32 %v2291, 1.442695
      %v2353 = vpow.pop %v2352
      %v2354 = vmul.f32 %v2292, 1.442695
      %v2355 = vpow.pop %v2354
      %v2356 = vmul.f32 %v2293, 1.442695
      %v2357 = vpow.pop %v2356
      %v2358 = vadd.f32 %v2295, 1.0
      %v2359 = vadd.f32 %v2297, 1.0
      %v2360 = vadd.f32 %v2299, 1.0
      %v2361 = vadd.f32 %v2301, 1.0
      %v2362 = vadd.f32 %v2303, 1.0
      %v2363 = vadd.f32 %v2305, 1.0
      %v2364 = vadd.f32 %v2307, 1.0
      %v2365 = vadd.f32 %v2309, 1.0
      %v2366 = vadd.f32 %v2311, 1.0
      %v2367 = vadd.f32 %v2313, 1.0
      %v2368 = vadd.f32 %v2315, 1.0
      %v2369 = vadd.f32 %v2317, 1.0
      %v2370 = vadd.f32 %v2319, 1.0
      %v2371 = vadd.f32 %v2321, 1.0
      %v2372 = vadd.f32 %v2323, 1.0
      %v2373 = vadd.f32 %v2325, 1.0
      %v2374 = vadd.f32 %v2327, 1.0
      %v2375 = vadd.f32 %v2329, 1.0
      %v2376 = vadd.f32 %v2331, 1.0
      %v2377 = vadd.f32 %v2333, 1.0
      %v2378 = vadd.f32 %v2335, 1.0
      %v2379 = vadd.f32 %v2337, 1.0
      %v2380 = vadd.f32 %v2339, 1.0
      %v2381 = vadd.f32 %v2341, 1.0
      %v2382 = vadd.f32 %v2343, 1.0
      %v2383 = vadd.f32 %v2345, 1.0
      %v2384 = vadd.f32 %v2347, 1.0
      %v2385 = vadd.f32 %v2349, 1.0
      %v2386 = vadd.f32 %v2351, 1.0
      %v2387 = vadd.f32 %v2353, 1.0
      %v2388 = vadd.f32 %v2355, 1.0
      %v2389 = vadd.f32 %v2357, 1.0
      %v2390 = vrcp.pop %v2358
      %v2391 = vmul.f32 %v2358, %v2390
      %v2392 = vsub.f32 1.0, %v2391
      %v2393 = vmul.f32 %v2390, %v2392
      %v2394 = vadd.f32 %v2390, %v2393
      %vm2395 = vweird.f32 %v2358
      %vm2396 = vweird.f32 %v2390
      %vm2397 = vmor %vm2395, %vm2396
      %v2398 = vsel %vm2397, %v2390, %v2394
      %v2399 = vand.u32 2147483647, %v2358
      %vm2400 = vcmp.eq.f32.partialorder %v2399, 8.507059e+37
      %v2401 = vand.u32 %v2358, 2147483648
      %v2402 = vor.u32 1.1754944e-38, %v2401
      %v2403 = vsel %vm2400, %v2402, %v2398
      %v2404 = vmul.f32 1.0, %v2403
      %v2405 = vrcp.pop %v2359
      %v2406 = vmul.f32 %v2359, %v2405
      %v2407 = vsub.f32 1.0, %v2406
      %v2408 = vmul.f32 %v2405, %v2407
      %v2409 = vadd.f32 %v2405, %v2408
      %vm2410 = vweird.f32 %v2359
      %vm2411 = vweird.f32 %v2405
      %vm2412 = vmor %vm2410, %vm2411
      %v2413 = vsel %vm2412, %v2405, %v2409
      %v2414 = vand.u32 2147483647, %v2359
      %vm2415 = vcmp.eq.f32.partialorder %v2414, 8.507059e+37
      %v2416 = vand.u32 %v2359, 2147483648
      %v2417 = vor.u32 1.1754944e-38, %v2416
      %v2418 = vsel %vm2415, %v2417, %v2413
      %v2419 = vmul.f32 1.0, %v2418
      %v2420 = vrcp.pop %v2360
      %v2421 = vmul.f32 %v2360, %v2420
      %v2422 = vsub.f32 1.0, %v2421
      %v2423 = vmul.f32 %v2420, %v2422
      %v2424 = vadd.f32 %v2420, %v2423
      %vm2425 = vweird.f32 %v2360
      %vm2426 = vweird.f32 %v2420
      %vm2427 = vmor %vm2425, %vm2426
      %v2428 = vsel %vm2427, %v2420, %v2424
      %v2429 = vand.u32 2147483647, %v2360
      %vm2430 = vcmp.eq.f32.partialorder %v2429, 8.507059e+37
      %v2431 = vand.u32 %v2360, 2147483648
      %v2432 = vor.u32 1.1754944e-38, %v2431
      %v2433 = vsel %vm2430, %v2432, %v2428
      %v2434 = vmul.f32 1.0, %v2433
      %v2435 = vrcp.pop %v2361
      %v2436 = vmul.f32 %v2361, %v2435
      %v2437 = vsub.f32 1.0, %v2436
      %v2438 = vmul.f32 %v2435, %v2437
      %v2439 = vadd.f32 %v2435, %v2438
      %vm2440 = vweird.f32 %v2361
      %vm2441 = vweird.f32 %v2435
      %vm2442 = vmor %vm2440, %vm2441
      %v2443 = vsel %vm2442, %v2435, %v2439
      %v2444 = vand.u32 2147483647, %v2361
      %vm2445 = vcmp.eq.f32.partialorder %v2444, 8.507059e+37
      %v2446 = vand.u32 %v2361, 2147483648
      %v2447 = vor.u32 1.1754944e-38, %v2446
      %v2448 = vsel %vm2445, %v2447, %v2443
      %v2449 = vmul.f32 1.0, %v2448
      %v2450 = vrcp.pop %v2362
      %v2451 = vmul.f32 %v2362, %v2450
      %v2452 = vsub.f32 1.0, %v2451
      %v2453 = vmul.f32 %v2450, %v2452
      %v2454 = vadd.f32 %v2450, %v2453
      %vm2455 = vweird.f32 %v2362
      %vm2456 = vweird.f32 %v2450
      %vm2457 = vmor %vm2455, %vm2456
      %v2458 = vsel %vm2457, %v2450, %v2454
      %v2459 = vand.u32 2147483647, %v2362
      %vm2460 = vcmp.eq.f32.partialorder %v2459, 8.507059e+37
      %v2461 = vand.u32 %v2362, 2147483648
      %v2462 = vor.u32 1.1754944e-38, %v2461
      %v2463 = vsel %vm2460, %v2462, %v2458
      %v2464 = vmul.f32 1.0, %v2463
      %v2465 = vrcp.pop %v2363
      %v2466 = vmul.f32 %v2363, %v2465
      %v2467 = vsub.f32 1.0, %v2466
      %v2468 = vmul.f32 %v2465, %v2467
      %v2469 = vadd.f32 %v2465, %v2468
      %vm2470 = vweird.f32 %v2363
      %vm2471 = vweird.f32 %v2465
      %vm2472 = vmor %vm2470, %vm2471
      %v2473 = vsel %vm2472, %v2465, %v2469
      %v2474 = vand.u32 2147483647, %v2363
      %vm2475 = vcmp.eq.f32.partialorder %v2474, 8.507059e+37
      %v2476 = vand.u32 %v2363, 2147483648
      %v2477 = vor.u32 1.1754944e-38, %v2476
      %v2478 = vsel %vm2475, %v2477, %v2473
      %v2479 = vmul.f32 1.0, %v2478
      %v2480 = vrcp.pop %v2364
      %v2481 = vmul.f32 %v2364, %v2480
      %v2482 = vsub.f32 1.0, %v2481
      %v2483 = vmul.f32 %v2480, %v2482
      %v2484 = vadd.f32 %v2480, %v2483
      %vm2485 = vweird.f32 %v2364
      %vm2486 = vweird.f32 %v2480
      %vm2487 = vmor %vm2485, %vm2486
      %v2488 = vsel %vm2487, %v2480, %v2484
      %v2489 = vand.u32 2147483647, %v2364
      %vm2490 = vcmp.eq.f32.partialorder %v2489, 8.507059e+37
      %v2491 = vand.u32 %v2364, 2147483648
      %v2492 = vor.u32 1.1754944e-38, %v2491
      %v2493 = vsel %vm2490, %v2492, %v2488
      %v2494 = vmul.f32 1.0, %v2493
      %v2495 = vrcp.pop %v2365
      %v2496 = vmul.f32 %v2365, %v2495
      %v2497 = vsub.f32 1.0, %v2496
      %v2498 = vmul.f32 %v2495, %v2497
      %v2499 = vadd.f32 %v2495, %v2498
      %vm2500 = vweird.f32 %v2365
      %vm2501 = vweird.f32 %v2495
      %vm2502 = vmor %vm2500, %vm2501
      %v2503 = vsel %vm2502, %v2495, %v2499
      %v2504 = vand.u32 2147483647, %v2365
      %vm2505 = vcmp.eq.f32.partialorder %v2504, 8.507059e+37
      %v2506 = vand.u32 %v2365, 2147483648
      %v2507 = vor.u32 1.1754944e-38, %v2506
      %v2508 = vsel %vm2505, %v2507, %v2503
      %v2509 = vmul.f32 1.0, %v2508
      %v2510 = vrcp.pop %v2366
      %v2511 = vmul.f32 %v2366, %v2510
      %v2512 = vsub.f32 1.0, %v2511
      %v2513 = vmul.f32 %v2510, %v2512
      %v2514 = vadd.f32 %v2510, %v2513
      %vm2515 = vweird.f32 %v2366
      %vm2516 = vweird.f32 %v2510
      %vm2517 = vmor %vm2515, %vm2516
      %v2518 = vsel %vm2517, %v2510, %v2514
      %v2519 = vand.u32 2147483647, %v2366
      %vm2520 = vcmp.eq.f32.partialorder %v2519, 8.507059e+37
      %v2521 = vand.u32 %v2366, 2147483648
      %v2522 = vor.u32 1.1754944e-38, %v2521
      %v2523 = vsel %vm2520, %v2522, %v2518
      %v2524 = vmul.f32 1.0, %v2523
      %v2525 = vrcp.pop %v2367
      %v2526 = vmul.f32 %v2367, %v2525
      %v2527 = vsub.f32 1.0, %v2526
      %v2528 = vmul.f32 %v2525, %v2527
      %v2529 = vadd.f32 %v2525, %v2528
      %vm2530 = vweird.f32 %v2367
      %vm2531 = vweird.f32 %v2525
      %vm2532 = vmor %vm2530, %vm2531
      %v2533 = vsel %vm2532, %v2525, %v2529
      %v2534 = vand.u32 2147483647, %v2367
      %vm2535 = vcmp.eq.f32.partialorder %v2534, 8.507059e+37
      %v2536 = vand.u32 %v2367, 2147483648
      %v2537 = vor.u32 1.1754944e-38, %v2536
      %v2538 = vsel %vm2535, %v2537, %v2533
      %v2539 = vmul.f32 1.0, %v2538
      %v2540 = vrcp.pop %v2368
      %v2541 = vmul.f32 %v2368, %v2540
      %v2542 = vsub.f32 1.0, %v2541
      %v2543 = vmul.f32 %v2540, %v2542
      %v2544 = vadd.f32 %v2540, %v2543
      %vm2545 = vweird.f32 %v2368
      %vm2546 = vweird.f32 %v2540
      %vm2547 = vmor %vm2545, %vm2546
      %v2548 = vsel %vm2547, %v2540, %v2544
      %v2549 = vand.u32 2147483647, %v2368
      %vm2550 = vcmp.eq.f32.partialorder %v2549, 8.507059e+37
      %v2551 = vand.u32 %v2368, 2147483648
      %v2552 = vor.u32 1.1754944e-38, %v2551
      %v2553 = vsel %vm2550, %v2552, %v2548
      %v2554 = vmul.f32 1.0, %v2553
      %v2555 = vrcp.pop %v2369
      %v2556 = vmul.f32 %v2369, %v2555
      %v2557 = vsub.f32 1.0, %v2556
      %v2558 = vmul.f32 %v2555, %v2557
      %v2559 = vadd.f32 %v2555, %v2558
      %vm2560 = vweird.f32 %v2369
      %vm2561 = vweird.f32 %v2555
      %vm2562 = vmor %vm2560, %vm2561
      %v2563 = vsel %vm2562, %v2555, %v2559
      %v2564 = vand.u32 2147483647, %v2369
      %vm2565 = vcmp.eq.f32.partialorder %v2564, 8.507059e+37
      %v2566 = vand.u32 %v2369, 2147483648
      %v2567 = vor.u32 1.1754944e-38, %v2566
      %v2568 = vsel %vm2565, %v2567, %v2563
      %v2569 = vmul.f32 1.0, %v2568
      %v2570 = vrcp.pop %v2370
      %v2571 = vmul.f32 %v2370, %v2570
      %v2572 = vsub.f32 1.0, %v2571
      %v2573 = vmul.f32 %v2570, %v2572
      %v2574 = vadd.f32 %v2570, %v2573
      %vm2575 = vweird.f32 %v2370
      %vm2576 = vweird.f32 %v2570
      %vm2577 = vmor %vm2575, %vm2576
      %v2578 = vsel %vm2577, %v2570, %v2574
      %v2579 = vand.u32 2147483647, %v2370
      %vm2580 = vcmp.eq.f32.partialorder %v2579, 8.507059e+37
      %v2581 = vand.u32 %v2370, 2147483648
      %v2582 = vor.u32 1.1754944e-38, %v2581
      %v2583 = vsel %vm2580, %v2582, %v2578
      %v2584 = vmul.f32 1.0, %v2583
      %v2585 = vrcp.pop %v2371
      %v2586 = vmul.f32 %v2371, %v2585
      %v2587 = vsub.f32 1.0, %v2586
      %v2588 = vmul.f32 %v2585, %v2587
      %v2589 = vadd.f32 %v2585, %v2588
      %vm2590 = vweird.f32 %v2371
      %vm2591 = vweird.f32 %v2585
      %vm2592 = vmor %vm2590, %vm2591
      %v2593 = vsel %vm2592, %v2585, %v2589
      %v2594 = vand.u32 2147483647, %v2371
      %vm2595 = vcmp.eq.f32.partialorder %v2594, 8.507059e+37
      %v2596 = vand.u32 %v2371, 2147483648
      %v2597 = vor.u32 1.1754944e-38, %v2596
      %v2598 = vsel %vm2595, %v2597, %v2593
      %v2599 = vmul.f32 1.0, %v2598
      %v2600 = vrcp.pop %v2372
      %v2601 = vmul.f32 %v2372, %v2600
      %v2602 = vsub.f32 1.0, %v2601
      %v2603 = vmul.f32 %v2600, %v2602
      %v2604 = vadd.f32 %v2600, %v2603
      %vm2605 = vweird.f32 %v2372
      %vm2606 = vweird.f32 %v2600
      %vm2607 = vmor %vm2605, %vm2606
      %v2608 = vsel %vm2607, %v2600, %v2604
      %v2609 = vand.u32 2147483647, %v2372
      %vm2610 = vcmp.eq.f32.partialorder %v2609, 8.507059e+37
      %v2611 = vand.u32 %v2372, 2147483648
      %v2612 = vor.u32 1.1754944e-38, %v2611
      %v2613 = vsel %vm2610, %v2612, %v2608
      %v2614 = vmul.f32 1.0, %v2613
      %v2615 = vrcp.pop %v2373
      %v2616 = vmul.f32 %v2373, %v2615
      %v2617 = vsub.f32 1.0, %v2616
      %v2618 = vmul.f32 %v2615, %v2617
      %v2619 = vadd.f32 %v2615, %v2618
      %vm2620 = vweird.f32 %v2373
      %vm2621 = vweird.f32 %v2615
      %vm2622 = vmor %vm2620, %vm2621
      %v2623 = vsel %vm2622, %v2615, %v2619
      %v2624 = vand.u32 2147483647, %v2373
      %vm2625 = vcmp.eq.f32.partialorder %v2624, 8.507059e+37
      %v2626 = vand.u32 %v2373, 2147483648
      %v2627 = vor.u32 1.1754944e-38, %v2626
      %v2628 = vsel %vm2625, %v2627, %v2623
      %v2629 = vmul.f32 1.0, %v2628
      %v2630 = vrcp.pop %v2374
      %v2631 = vmul.f32 %v2374, %v2630
      %v2632 = vsub.f32 1.0, %v2631
      %v2633 = vmul.f32 %v2630, %v2632
      %v2634 = vadd.f32 %v2630, %v2633
      %vm2635 = vweird.f32 %v2374
      %vm2636 = vweird.f32 %v2630
      %vm2637 = vmor %vm2635, %vm2636
      %v2638 = vsel %vm2637, %v2630, %v2634
      %v2639 = vand.u32 2147483647, %v2374
      %vm2640 = vcmp.eq.f32.partialorder %v2639, 8.507059e+37
      %v2641 = vand.u32 %v2374, 2147483648
      %v2642 = vor.u32 1.1754944e-38, %v2641
      %v2643 = vsel %vm2640, %v2642, %v2638
      %v2644 = vmul.f32 1.0, %v2643
      %v2645 = vrcp.pop %v2375
      %v2646 = vmul.f32 %v2375, %v2645
      %v2647 = vsub.f32 1.0, %v2646
      %v2648 = vmul.f32 %v2645, %v2647
      %v2649 = vadd.f32 %v2645, %v2648
      %vm2650 = vweird.f32 %v2375
      %vm2651 = vweird.f32 %v2645
      %vm2652 = vmor %vm2650, %vm2651
      %v2653 = vsel %vm2652, %v2645, %v2649
      %v2654 = vand.u32 2147483647, %v2375
      %vm2655 = vcmp.eq.f32.partialorder %v2654, 8.507059e+37
      %v2656 = vand.u32 %v2375, 2147483648
      %v2657 = vor.u32 1.1754944e-38, %v2656
      %v2658 = vsel %vm2655, %v2657, %v2653
      %v2659 = vmul.f32 1.0, %v2658
      %v2660 = vrcp.pop %v2376
      %v2661 = vmul.f32 %v2376, %v2660
      %v2662 = vsub.f32 1.0, %v2661
      %v2663 = vmul.f32 %v2660, %v2662
      %v2664 = vadd.f32 %v2660, %v2663
      %vm2665 = vweird.f32 %v2376
      %vm2666 = vweird.f32 %v2660
      %vm2667 = vmor %vm2665, %vm2666
      %v2668 = vsel %vm2667, %v2660, %v2664
      %v2669 = vand.u32 2147483647, %v2376
      %vm2670 = vcmp.eq.f32.partialorder %v2669, 8.507059e+37
      %v2671 = vand.u32 %v2376, 2147483648
      %v2672 = vor.u32 1.1754944e-38, %v2671
      %v2673 = vsel %vm2670, %v2672, %v2668
      %v2674 = vmul.f32 1.0, %v2673
      %v2675 = vrcp.pop %v2377
      %v2676 = vmul.f32 %v2377, %v2675
      %v2677 = vsub.f32 1.0, %v2676
      %v2678 = vmul.f32 %v2675, %v2677
      %v2679 = vadd.f32 %v2675, %v2678
      %vm2680 = vweird.f32 %v2377
      %vm2681 = vweird.f32 %v2675
      %vm2682 = vmor %vm2680, %vm2681
      %v2683 = vsel %vm2682, %v2675, %v2679
      %v2684 = vand.u32 2147483647, %v2377
      %vm2685 = vcmp.eq.f32.partialorder %v2684, 8.507059e+37
      %v2686 = vand.u32 %v2377, 2147483648
      %v2687 = vor.u32 1.1754944e-38, %v2686
      %v2688 = vsel %vm2685, %v2687, %v2683
      %v2689 = vmul.f32 1.0, %v2688
      %v2690 = vrcp.pop %v2378
      %v2691 = vmul.f32 %v2378, %v2690
      %v2692 = vsub.f32 1.0, %v2691
      %v2693 = vmul.f32 %v2690, %v2692
      %v2694 = vadd.f32 %v2690, %v2693
      %vm2695 = vweird.f32 %v2378
      %vm2696 = vweird.f32 %v2690
      %vm2697 = vmor %vm2695, %vm2696
      %v2698 = vsel %vm2697, %v2690, %v2694
      %v2699 = vand.u32 2147483647, %v2378
      %vm2700 = vcmp.eq.f32.partialorder %v2699, 8.507059e+37
      %v2701 = vand.u32 %v2378, 2147483648
      %v2702 = vor.u32 1.1754944e-38, %v2701
      %v2703 = vsel %vm2700, %v2702, %v2698
      %v2704 = vmul.f32 1.0, %v2703
      %v2705 = vrcp.pop %v2379
      %v2706 = vmul.f32 %v2379, %v2705
      %v2707 = vsub.f32 1.0, %v2706
      %v2708 = vmul.f32 %v2705, %v2707
      %v2709 = vadd.f32 %v2705, %v2708
      %vm2710 = vweird.f32 %v2379
      %vm2711 = vweird.f32 %v2705
      %vm2712 = vmor %vm2710, %vm2711
      %v2713 = vsel %vm2712, %v2705, %v2709
      %v2714 = vand.u32 2147483647, %v2379
      %vm2715 = vcmp.eq.f32.partialorder %v2714, 8.507059e+37
      %v2716 = vand.u32 %v2379, 2147483648
      %v2717 = vor.u32 1.1754944e-38, %v2716
      %v2718 = vsel %vm2715, %v2717, %v2713
      %v2719 = vmul.f32 1.0, %v2718
      %v2720 = vrcp.pop %v2380
      %v2721 = vmul.f32 %v2380, %v2720
      %v2722 = vsub.f32 1.0, %v2721
      %v2723 = vmul.f32 %v2720, %v2722
      %v2724 = vadd.f32 %v2720, %v2723
      %vm2725 = vweird.f32 %v2380
      %vm2726 = vweird.f32 %v2720
      %vm2727 = vmor %vm2725, %vm2726
      %v2728 = vsel %vm2727, %v2720, %v2724
      %v2729 = vand.u32 2147483647, %v2380
      %vm2730 = vcmp.eq.f32.partialorder %v2729, 8.507059e+37
      %v2731 = vand.u32 %v2380, 2147483648
      %v2732 = vor.u32 1.1754944e-38, %v2731
      %v2733 = vsel %vm2730, %v2732, %v2728
      %v2734 = vmul.f32 1.0, %v2733
      %v2735 = vrcp.pop %v2381
      %v2736 = vmul.f32 %v2381, %v2735
      %v2737 = vsub.f32 1.0, %v2736
      %v2738 = vmul.f32 %v2735, %v2737
      %v2739 = vadd.f32 %v2735, %v2738
      %vm2740 = vweird.f32 %v2381
      %vm2741 = vweird.f32 %v2735
      %vm2742 = vmor %vm2740, %vm2741
      %v2743 = vsel %vm2742, %v2735, %v2739
      %v2744 = vand.u32 2147483647, %v2381
      %vm2745 = vcmp.eq.f32.partialorder %v2744, 8.507059e+37
      %v2746 = vand.u32 %v2381, 2147483648
      %v2747 = vor.u32 1.1754944e-38, %v2746
      %v2748 = vsel %vm2745, %v2747, %v2743
      %v2749 = vmul.f32 1.0, %v2748
      %v2750 = vrcp.pop %v2382
      %v2751 = vmul.f32 %v2382, %v2750
      %v2752 = vsub.f32 1.0, %v2751
      %v2753 = vmul.f32 %v2750, %v2752
      %v2754 = vadd.f32 %v2750, %v2753
      %vm2755 = vweird.f32 %v2382
      %vm2756 = vweird.f32 %v2750
      %vm2757 = vmor %vm2755, %vm2756
      %v2758 = vsel %vm2757, %v2750, %v2754
      %v2759 = vand.u32 2147483647, %v2382
      %vm2760 = vcmp.eq.f32.partialorder %v2759, 8.507059e+37
      %v2761 = vand.u32 %v2382, 2147483648
      %v2762 = vor.u32 1.1754944e-38, %v2761
      %v2763 = vsel %vm2760, %v2762, %v2758
      %v2764 = vmul.f32 1.0, %v2763
      %v2765 = vrcp.pop %v2383
      %v2766 = vmul.f32 %v2383, %v2765
      %v2767 = vsub.f32 1.0, %v2766
      %v2768 = vmul.f32 %v2765, %v2767
      %v2769 = vadd.f32 %v2765, %v2768
      %vm2770 = vweird.f32 %v2383
      %vm2771 = vweird.f32 %v2765
      %vm2772 = vmor %vm2770, %vm2771
      %v2773 = vsel %vm2772, %v2765, %v2769
      %v2774 = vand.u32 2147483647, %v2383
      %vm2775 = vcmp.eq.f32.partialorder %v2774, 8.507059e+37
      %v2776 = vand.u32 %v2383, 2147483648
      %v2777 = vor.u32 1.1754944e-38, %v2776
      %v2778 = vsel %vm2775, %v2777, %v2773
      %v2779 = vmul.f32 1.0, %v2778
      %v2780 = vrcp.pop %v2384
      %v2781 = vmul.f32 %v2384, %v2780
      %v2782 = vsub.f32 1.0, %v2781
      %v2783 = vmul.f32 %v2780, %v2782
      %v2784 = vadd.f32 %v2780, %v2783
      %vm2785 = vweird.f32 %v2384
      %vm2786 = vweird.f32 %v2780
      %vm2787 = vmor %vm2785, %vm2786
      %v2788 = vsel %vm2787, %v2780, %v2784
      %v2789 = vand.u32 2147483647, %v2384
      %vm2790 = vcmp.eq.f32.partialorder %v2789, 8.507059e+37
      %v2791 = vand.u32 %v2384, 2147483648
      %v2792 = vor.u32 1.1754944e-38, %v2791
      %v2793 = vsel %vm2790, %v2792, %v2788
      %v2794 = vmul.f32 1.0, %v2793
      %v2795 = vrcp.pop %v2385
      %v2796 = vmul.f32 %v2385, %v2795
      %v2797 = vsub.f32 1.0, %v2796
      %v2798 = vmul.f32 %v2795, %v2797
      %v2799 = vadd.f32 %v2795, %v2798
      %vm2800 = vweird.f32 %v2385
      %vm2801 = vweird.f32 %v2795
      %vm2802 = vmor %vm2800, %vm2801
      %v2803 = vsel %vm2802, %v2795, %v2799
      %v2804 = vand.u32 2147483647, %v2385
      %vm2805 = vcmp.eq.f32.partialorder %v2804, 8.507059e+37
      %v2806 = vand.u32 %v2385, 2147483648
      %v2807 = vor.u32 1.1754944e-38, %v2806
      %v2808 = vsel %vm2805, %v2807, %v2803
      %v2809 = vmul.f32 1.0, %v2808
      %v2810 = vrcp.pop %v2386
      %v2811 = vmul.f32 %v2386, %v2810
      %v2812 = vsub.f32 1.0, %v2811
      %v2813 = vmul.f32 %v2810, %v2812
      %v2814 = vadd.f32 %v2810, %v2813
      %vm2815 = vweird.f32 %v2386
      %vm2816 = vweird.f32 %v2810
      %vm2817 = vmor %vm2815, %vm2816
      %v2818 = vsel %vm2817, %v2810, %v2814
      %v2819 = vand.u32 2147483647, %v2386
      %vm2820 = vcmp.eq.f32.partialorder %v2819, 8.507059e+37
      %v2821 = vand.u32 %v2386, 2147483648
      %v2822 = vor.u32 1.1754944e-38, %v2821
      %v2823 = vsel %vm2820, %v2822, %v2818
      %v2824 = vmul.f32 1.0, %v2823
      %v2825 = vrcp.pop %v2387
      %v2826 = vmul.f32 %v2387, %v2825
      %v2827 = vsub.f32 1.0, %v2826
      %v2828 = vmul.f32 %v2825, %v2827
      %v2829 = vadd.f32 %v2825, %v2828
      %vm2830 = vweird.f32 %v2387
      %vm2831 = vweird.f32 %v2825
      %vm2832 = vmor %vm2830, %vm2831
      %v2833 = vsel %vm2832, %v2825, %v2829
      %v2834 = vand.u32 2147483647, %v2387
      %vm2835 = vcmp.eq.f32.partialorder %v2834, 8.507059e+37
      %v2836 = vand.u32 %v2387, 2147483648
      %v2837 = vor.u32 1.1754944e-38, %v2836
      %v2838 = vsel %vm2835, %v2837, %v2833
      %v2839 = vmul.f32 1.0, %v2838
      %v2840 = vrcp.pop %v2388
      %v2841 = vmul.f32 %v2388, %v2840
      %v2842 = vsub.f32 1.0, %v2841
      %v2843 = vmul.f32 %v2840, %v2842
      %v2844 = vadd.f32 %v2840, %v2843
      %vm2845 = vweird.f32 %v2388
      %vm2846 = vweird.f32 %v2840
      %vm2847 = vmor %vm2845, %vm2846
      %v2848 = vsel %vm2847, %v2840, %v2844
      %v2849 = vand.u32 2147483647, %v2388
      %vm2850 = vcmp.eq.f32.partialorder %v2849, 8.507059e+37
      %v2851 = vand.u32 %v2388, 2147483648
      %v2852 = vor.u32 1.1754944e-38, %v2851
      %v2853 = vsel %vm2850, %v2852, %v2848
      %v2854 = vmul.f32 1.0, %v2853
      %v2855 = vrcp.pop %v2389
      %v2856 = vmul.f32 %v2389, %v2855
      %v2857 = vsub.f32 1.0, %v2856
      %v2858 = vmul.f32 %v2855, %v2857
      %v2859 = vadd.f32 %v2855, %v2858
      %vm2860 = vweird.f32 %v2389
      %vm2861 = vweird.f32 %v2855
      %vm2862 = vmor %vm2860, %vm2861
      %v2863 = vsel %vm2862, %v2855, %v2859
      %v2864 = vand.u32 2147483647, %v2389
      %vm2865 = vcmp.eq.f32.partialorder %v2864, 8.507059e+37
      %v2866 = vand.u32 %v2389, 2147483648
      %v2867 = vor.u32 1.1754944e-38, %v2866
      %v2868 = vsel %vm2865, %v2867, %v2863
      %v2869 = vmul.f32 1.0, %v2868
      %v2870 = vxor.u32 %v1392, 2147483648
      %v2871 = vxor.u32 %v1393, 2147483648
      %v2872 = vxor.u32 %v1394, 2147483648
      %v2873 = vxor.u32 %v1395, 2147483648
      %v2874 = vxor.u32 %v1396, 2147483648
      %v2875 = vxor.u32 %v1397, 2147483648
      %v2876 = vxor.u32 %v1398, 2147483648
      %v2877 = vxor.u32 %v1399, 2147483648
      %v2878 = vxor.u32 %v1400, 2147483648
      %v2879 = vxor.u32 %v1401, 2147483648
      %v2880 = vxor.u32 %v1402, 2147483648
      %v2881 = vxor.u32 %v1403, 2147483648
      %v2882 = vxor.u32 %v1404, 2147483648
      %v2883 = vxor.u32 %v1405, 2147483648
      %v2884 = vxor.u32 %v1406, 2147483648
      %v2885 = vxor.u32 %v1407, 2147483648
      %v2886 = vxor.u32 %v1408, 2147483648
      %v2887 = vxor.u32 %v1409, 2147483648
      %v2888 = vxor.u32 %v1410, 2147483648
      %v2889 = vxor.u32 %v1411, 2147483648
      %v2890 = vxor.u32 %v1412, 2147483648
      %v2891 = vxor.u32 %v1413, 2147483648
      %v2892 = vxor.u32 %v1414, 2147483648
      %v2893 = vxor.u32 %v1415, 2147483648
      %v2894 = vxor.u32 %v1416, 2147483648
      %v2895 = vxor.u32 %v1417, 2147483648
      %v2896 = vxor.u32 %v1418, 2147483648
      %v2897 = vxor.u32 %v1419, 2147483648
      %v2898 = vxor.u32 %v1420, 2147483648
      %v2899 = vxor.u32 %v1421, 2147483648
      %v2900 = vxor.u32 %v1422, 2147483648
      %v2901 = vxor.u32 %v1423, 2147483648
      %v2902 = vmul.f32 %v2870, 1.442695
      %v2903 = vpow.pop %v2902
      %v2904 = vmul.f32 %v2871, 1.442695
      %v2905 = vpow.pop %v2904
      %v2906 = vmul.f32 %v2872, 1.442695
      %v2907 = vpow.pop %v2906
      %v2908 = vmul.f32 %v2873, 1.442695
      %v2909 = vpow.pop %v2908
      %v2910 = vmul.f32 %v2874, 1.442695
      %v2911 = vpow.pop %v2910
      %v2912 = vmul.f32 %v2875, 1.442695
      %v2913 = vpow.pop %v2912
      %v2914 = vmul.f32 %v2876, 1.442695
      %v2915 = vpow.pop %v2914
      %v2916 = vmul.f32 %v2877, 1.442695
      %v2917 = vpow.pop %v2916
      %v2918 = vmul.f32 %v2878, 1.442695
      %v2919 = vpow.pop %v2918
      %v2920 = vmul.f32 %v2879, 1.442695
      %v2921 = vpow.pop %v2920
      %v2922 = vmul.f32 %v2880, 1.442695
      %v2923 = vpow.pop %v2922
      %v2924 = vmul.f32 %v2881, 1.442695
      %v2925 = vpow.pop %v2924
      %v2926 = vmul.f32 %v2882, 1.442695
      %v2927 = vpow.pop %v2926
      %v2928 = vmul.f32 %v2883, 1.442695
      %v2929 = vpow.pop %v2928
      %v2930 = vmul.f32 %v2884, 1.442695
      %v2931 = vpow.pop %v2930
      %v2932 = vmul.f32 %v2885, 1.442695
      %v2933 = vpow.pop %v2932
      %v2934 = vmul.f32 %v2886, 1.442695
      %v2935 = vpow.pop %v2934
      %v2936 = vmul.f32 %v2887, 1.442695
      %v2937 = vpow.pop %v2936
      %v2938 = vmul.f32 %v2888, 1.442695
      %v2939 = vpow.pop %v2938
      %v2940 = vmul.f32 %v2889, 1.442695
      %v2941 = vpow.pop %v2940
      %v2942 = vmul.f32 %v2890, 1.442695
      %v2943 = vpow.pop %v2942
      %v2944 = vmul.f32 %v2891, 1.442695
      %v2945 = vpow.pop %v2944
      %v2946 = vmul.f32 %v2892, 1.442695
      %v2947 = vpow.pop %v2946
      %v2948 = vmul.f32 %v2893, 1.442695
      %v2949 = vpow.pop %v2948
      %v2950 = vmul.f32 %v2894, 1.442695
      %v2951 = vpow.pop %v2950
      %v2952 = vmul.f32 %v2895, 1.442695
      %v2953 = vpow.pop %v2952
      %v2954 = vmul.f32 %v2896, 1.442695
      %v2955 = vpow.pop %v2954
      %v2956 = vmul.f32 %v2897, 1.442695
      %v2957 = vpow.pop %v2956
      %v2958 = vmul.f32 %v2898, 1.442695
      %v2959 = vpow.pop %v2958
      %v2960 = vmul.f32 %v2899, 1.442695
      %v2961 = vpow.pop %v2960
      %v2962 = vmul.f32 %v2900, 1.442695
      %v2963 = vpow.pop %v2962
      %v2964 = vmul.f32 %v2901, 1.442695
      %v2965 = vpow.pop %v2964
      %v2966 = vadd.f32 %v2903, 1.0
      %v2967 = vadd.f32 %v2905, 1.0
      %v2968 = vadd.f32 %v2907, 1.0
      %v2969 = vadd.f32 %v2909, 1.0
      %v2970 = vadd.f32 %v2911, 1.0
      %v2971 = vadd.f32 %v2913, 1.0
      %v2972 = vadd.f32 %v2915, 1.0
      %v2973 = vadd.f32 %v2917, 1.0
      %v2974 = vadd.f32 %v2919, 1.0
      %v2975 = vadd.f32 %v2921, 1.0
      %v2976 = vadd.f32 %v2923, 1.0
      %v2977 = vadd.f32 %v2925, 1.0
      %v2978 = vadd.f32 %v2927, 1.0
      %v2979 = vadd.f32 %v2929, 1.0
      %v2980 = vadd.f32 %v2931, 1.0
      %v2981 = vadd.f32 %v2933, 1.0
      %v2982 = vadd.f32 %v2935, 1.0
      %v2983 = vadd.f32 %v2937, 1.0
      %v2984 = vadd.f32 %v2939, 1.0
      %v2985 = vadd.f32 %v2941, 1.0
      %v2986 = vadd.f32 %v2943, 1.0
      %v2987 = vadd.f32 %v2945, 1.0
      %v2988 = vadd.f32 %v2947, 1.0
      %v2989 = vadd.f32 %v2949, 1.0
      %v2990 = vadd.f32 %v2951, 1.0
      %v2991 = vadd.f32 %v2953, 1.0
      %v2992 = vadd.f32 %v2955, 1.0
      %v2993 = vadd.f32 %v2957, 1.0
      %v2994 = vadd.f32 %v2959, 1.0
      %v2995 = vadd.f32 %v2961, 1.0
      %v2996 = vadd.f32 %v2963, 1.0
      %v2997 = vadd.f32 %v2965, 1.0
      %v2998 = vrcp.pop %v2966
      %v2999 = vmul.f32 %v2966, %v2998
      %v3000 = vsub.f32 1.0, %v2999
      %v3001 = vmul.f32 %v2998, %v3000
      %v3002 = vadd.f32 %v2998, %v3001
      %vm3003 = vweird.f32 %v2966
      %vm3004 = vweird.f32 %v2998
      %vm3005 = vmor %vm3003, %vm3004
      %v3006 = vsel %vm3005, %v2998, %v3002
      %v3007 = vand.u32 2147483647, %v2966
      %vm3008 = vcmp.eq.f32.partialorder %v3007, 8.507059e+37
      %v3009 = vand.u32 %v2966, 2147483648
      %v3010 = vor.u32 1.1754944e-38, %v3009
      %v3011 = vsel %vm3008, %v3010, %v3006
      %v3012 = vmul.f32 1.0, %v3011
      %v3013 = vrcp.pop %v2967
      %v3014 = vmul.f32 %v2967, %v3013
      %v3015 = vsub.f32 1.0, %v3014
      %v3016 = vmul.f32 %v3013, %v3015
      %v3017 = vadd.f32 %v3013, %v3016
      %vm3018 = vweird.f32 %v2967
      %vm3019 = vweird.f32 %v3013
      %vm3020 = vmor %vm3018, %vm3019
      %v3021 = vsel %vm3020, %v3013, %v3017
      %v3022 = vand.u32 2147483647, %v2967
      %vm3023 = vcmp.eq.f32.partialorder %v3022, 8.507059e+37
      %v3024 = vand.u32 %v2967, 2147483648
      %v3025 = vor.u32 1.1754944e-38, %v3024
      %v3026 = vsel %vm3023, %v3025, %v3021
      %v3027 = vmul.f32 1.0, %v3026
      %v3028 = vrcp.pop %v2968
      %v3029 = vmul.f32 %v2968, %v3028
      %v3030 = vsub.f32 1.0, %v3029
      %v3031 = vmul.f32 %v3028, %v3030
      %v3032 = vadd.f32 %v3028, %v3031
      %vm3033 = vweird.f32 %v2968
      %vm3034 = vweird.f32 %v3028
      %vm3035 = vmor %vm3033, %vm3034
      %v3036 = vsel %vm3035, %v3028, %v3032
      %v3037 = vand.u32 2147483647, %v2968
      %vm3038 = vcmp.eq.f32.partialorder %v3037, 8.507059e+37
      %v3039 = vand.u32 %v2968, 2147483648
      %v3040 = vor.u32 1.1754944e-38, %v3039
      %v3041 = vsel %vm3038, %v3040, %v3036
      %v3042 = vmul.f32 1.0, %v3041
      %v3043 = vrcp.pop %v2969
      %v3044 = vmul.f32 %v2969, %v3043
      %v3045 = vsub.f32 1.0, %v3044
      %v3046 = vmul.f32 %v3043, %v3045
      %v3047 = vadd.f32 %v3043, %v3046
      %vm3048 = vweird.f32 %v2969
      %vm3049 = vweird.f32 %v3043
      %vm3050 = vmor %vm3048, %vm3049
      %v3051 = vsel %vm3050, %v3043, %v3047
      %v3052 = vand.u32 2147483647, %v2969
      %vm3053 = vcmp.eq.f32.partialorder %v3052, 8.507059e+37
      %v3054 = vand.u32 %v2969, 2147483648
      %v3055 = vor.u32 1.1754944e-38, %v3054
      %v3056 = vsel %vm3053, %v3055, %v3051
      %v3057 = vmul.f32 1.0, %v3056
      %v3058 = vrcp.pop %v2970
      %v3059 = vmul.f32 %v2970, %v3058
      %v3060 = vsub.f32 1.0, %v3059
      %v3061 = vmul.f32 %v3058, %v3060
      %v3062 = vadd.f32 %v3058, %v3061
      %vm3063 = vweird.f32 %v2970
      %vm3064 = vweird.f32 %v3058
      %vm3065 = vmor %vm3063, %vm3064
      %v3066 = vsel %vm3065, %v3058, %v3062
      %v3067 = vand.u32 2147483647, %v2970
      %vm3068 = vcmp.eq.f32.partialorder %v3067, 8.507059e+37
      %v3069 = vand.u32 %v2970, 2147483648
      %v3070 = vor.u32 1.1754944e-38, %v3069
      %v3071 = vsel %vm3068, %v3070, %v3066
      %v3072 = vmul.f32 1.0, %v3071
      %v3073 = vrcp.pop %v2971
      %v3074 = vmul.f32 %v2971, %v3073
      %v3075 = vsub.f32 1.0, %v3074
      %v3076 = vmul.f32 %v3073, %v3075
      %v3077 = vadd.f32 %v3073, %v3076
      %vm3078 = vweird.f32 %v2971
      %vm3079 = vweird.f32 %v3073
      %vm3080 = vmor %vm3078, %vm3079
      %v3081 = vsel %vm3080, %v3073, %v3077
      %v3082 = vand.u32 2147483647, %v2971
      %vm3083 = vcmp.eq.f32.partialorder %v3082, 8.507059e+37
      %v3084 = vand.u32 %v2971, 2147483648
      %v3085 = vor.u32 1.1754944e-38, %v3084
      %v3086 = vsel %vm3083, %v3085, %v3081
      %v3087 = vmul.f32 1.0, %v3086
      %v3088 = vrcp.pop %v2972
      %v3089 = vmul.f32 %v2972, %v3088
      %v3090 = vsub.f32 1.0, %v3089
      %v3091 = vmul.f32 %v3088, %v3090
      %v3092 = vadd.f32 %v3088, %v3091
      %vm3093 = vweird.f32 %v2972
      %vm3094 = vweird.f32 %v3088
      %vm3095 = vmor %vm3093, %vm3094
      %v3096 = vsel %vm3095, %v3088, %v3092
      %v3097 = vand.u32 2147483647, %v2972
      %vm3098 = vcmp.eq.f32.partialorder %v3097, 8.507059e+37
      %v3099 = vand.u32 %v2972, 2147483648
      %v3100 = vor.u32 1.1754944e-38, %v3099
      %v3101 = vsel %vm3098, %v3100, %v3096
      %v3102 = vmul.f32 1.0, %v3101
      %v3103 = vrcp.pop %v2973
      %v3104 = vmul.f32 %v2973, %v3103
      %v3105 = vsub.f32 1.0, %v3104
      %v3106 = vmul.f32 %v3103, %v3105
      %v3107 = vadd.f32 %v3103, %v3106
      %vm3108 = vweird.f32 %v2973
      %vm3109 = vweird.f32 %v3103
      %vm3110 = vmor %vm3108, %vm3109
      %v3111 = vsel %vm3110, %v3103, %v3107
      %v3112 = vand.u32 2147483647, %v2973
      %vm3113 = vcmp.eq.f32.partialorder %v3112, 8.507059e+37
      %v3114 = vand.u32 %v2973, 2147483648
      %v3115 = vor.u32 1.1754944e-38, %v3114
      %v3116 = vsel %vm3113, %v3115, %v3111
      %v3117 = vmul.f32 1.0, %v3116
      %v3118 = vrcp.pop %v2974
      %v3119 = vmul.f32 %v2974, %v3118
      %v3120 = vsub.f32 1.0, %v3119
      %v3121 = vmul.f32 %v3118, %v3120
      %v3122 = vadd.f32 %v3118, %v3121
      %vm3123 = vweird.f32 %v2974
      %vm3124 = vweird.f32 %v3118
      %vm3125 = vmor %vm3123, %vm3124
      %v3126 = vsel %vm3125, %v3118, %v3122
      %v3127 = vand.u32 2147483647, %v2974
      %vm3128 = vcmp.eq.f32.partialorder %v3127, 8.507059e+37
      %v3129 = vand.u32 %v2974, 2147483648
      %v3130 = vor.u32 1.1754944e-38, %v3129
      %v3131 = vsel %vm3128, %v3130, %v3126
      %v3132 = vmul.f32 1.0, %v3131
      %v3133 = vrcp.pop %v2975
      %v3134 = vmul.f32 %v2975, %v3133
      %v3135 = vsub.f32 1.0, %v3134
      %v3136 = vmul.f32 %v3133, %v3135
      %v3137 = vadd.f32 %v3133, %v3136
      %vm3138 = vweird.f32 %v2975
      %vm3139 = vweird.f32 %v3133
      %vm3140 = vmor %vm3138, %vm3139
      %v3141 = vsel %vm3140, %v3133, %v3137
      %v3142 = vand.u32 2147483647, %v2975
      %vm3143 = vcmp.eq.f32.partialorder %v3142, 8.507059e+37
      %v3144 = vand.u32 %v2975, 2147483648
      %v3145 = vor.u32 1.1754944e-38, %v3144
      %v3146 = vsel %vm3143, %v3145, %v3141
      %v3147 = vmul.f32 1.0, %v3146
      %v3148 = vrcp.pop %v2976
      %v3149 = vmul.f32 %v2976, %v3148
      %v3150 = vsub.f32 1.0, %v3149
      %v3151 = vmul.f32 %v3148, %v3150
      %v3152 = vadd.f32 %v3148, %v3151
      %vm3153 = vweird.f32 %v2976
      %vm3154 = vweird.f32 %v3148
      %vm3155 = vmor %vm3153, %vm3154
      %v3156 = vsel %vm3155, %v3148, %v3152
      %v3157 = vand.u32 2147483647, %v2976
      %vm3158 = vcmp.eq.f32.partialorder %v3157, 8.507059e+37
      %v3159 = vand.u32 %v2976, 2147483648
      %v3160 = vor.u32 1.1754944e-38, %v3159
      %v3161 = vsel %vm3158, %v3160, %v3156
      %v3162 = vmul.f32 1.0, %v3161
      %v3163 = vrcp.pop %v2977
      %v3164 = vmul.f32 %v2977, %v3163
      %v3165 = vsub.f32 1.0, %v3164
      %v3166 = vmul.f32 %v3163, %v3165
      %v3167 = vadd.f32 %v3163, %v3166
      %vm3168 = vweird.f32 %v2977
      %vm3169 = vweird.f32 %v3163
      %vm3170 = vmor %vm3168, %vm3169
      %v3171 = vsel %vm3170, %v3163, %v3167
      %v3172 = vand.u32 2147483647, %v2977
      %vm3173 = vcmp.eq.f32.partialorder %v3172, 8.507059e+37
      %v3174 = vand.u32 %v2977, 2147483648
      %v3175 = vor.u32 1.1754944e-38, %v3174
      %v3176 = vsel %vm3173, %v3175, %v3171
      %v3177 = vmul.f32 1.0, %v3176
      %v3178 = vrcp.pop %v2978
      %v3179 = vmul.f32 %v2978, %v3178
      %v3180 = vsub.f32 1.0, %v3179
      %v3181 = vmul.f32 %v3178, %v3180
      %v3182 = vadd.f32 %v3178, %v3181
      %vm3183 = vweird.f32 %v2978
      %vm3184 = vweird.f32 %v3178
      %vm3185 = vmor %vm3183, %vm3184
      %v3186 = vsel %vm3185, %v3178, %v3182
      %v3187 = vand.u32 2147483647, %v2978
      %vm3188 = vcmp.eq.f32.partialorder %v3187, 8.507059e+37
      %v3189 = vand.u32 %v2978, 2147483648
      %v3190 = vor.u32 1.1754944e-38, %v3189
      %v3191 = vsel %vm3188, %v3190, %v3186
      %v3192 = vmul.f32 1.0, %v3191
      %v3193 = vrcp.pop %v2979
      %v3194 = vmul.f32 %v2979, %v3193
      %v3195 = vsub.f32 1.0, %v3194
      %v3196 = vmul.f32 %v3193, %v3195
      %v3197 = vadd.f32 %v3193, %v3196
      %vm3198 = vweird.f32 %v2979
      %vm3199 = vweird.f32 %v3193
      %vm3200 = vmor %vm3198, %vm3199
      %v3201 = vsel %vm3200, %v3193, %v3197
      %v3202 = vand.u32 2147483647, %v2979
      %vm3203 = vcmp.eq.f32.partialorder %v3202, 8.507059e+37
      %v3204 = vand.u32 %v2979, 2147483648
      %v3205 = vor.u32 1.1754944e-38, %v3204
      %v3206 = vsel %vm3203, %v3205, %v3201
      %v3207 = vmul.f32 1.0, %v3206
      %v3208 = vrcp.pop %v2980
      %v3209 = vmul.f32 %v2980, %v3208
      %v3210 = vsub.f32 1.0, %v3209
      %v3211 = vmul.f32 %v3208, %v3210
      %v3212 = vadd.f32 %v3208, %v3211
      %vm3213 = vweird.f32 %v2980
      %vm3214 = vweird.f32 %v3208
      %vm3215 = vmor %vm3213, %vm3214
      %v3216 = vsel %vm3215, %v3208, %v3212
      %v3217 = vand.u32 2147483647, %v2980
      %vm3218 = vcmp.eq.f32.partialorder %v3217, 8.507059e+37
      %v3219 = vand.u32 %v2980, 2147483648
      %v3220 = vor.u32 1.1754944e-38, %v3219
      %v3221 = vsel %vm3218, %v3220, %v3216
      %v3222 = vmul.f32 1.0, %v3221
      %v3223 = vrcp.pop %v2981
      %v3224 = vmul.f32 %v2981, %v3223
      %v3225 = vsub.f32 1.0, %v3224
      %v3226 = vmul.f32 %v3223, %v3225
      %v3227 = vadd.f32 %v3223, %v3226
      %vm3228 = vweird.f32 %v2981
      %vm3229 = vweird.f32 %v3223
      %vm3230 = vmor %vm3228, %vm3229
      %v3231 = vsel %vm3230, %v3223, %v3227
      %v3232 = vand.u32 2147483647, %v2981
      %vm3233 = vcmp.eq.f32.partialorder %v3232, 8.507059e+37
      %v3234 = vand.u32 %v2981, 2147483648
      %v3235 = vor.u32 1.1754944e-38, %v3234
      %v3236 = vsel %vm3233, %v3235, %v3231
      %v3237 = vmul.f32 1.0, %v3236
      %v3238 = vrcp.pop %v2982
      %v3239 = vmul.f32 %v2982, %v3238
      %v3240 = vsub.f32 1.0, %v3239
      %v3241 = vmul.f32 %v3238, %v3240
      %v3242 = vadd.f32 %v3238, %v3241
      %vm3243 = vweird.f32 %v2982
      %vm3244 = vweird.f32 %v3238
      %vm3245 = vmor %vm3243, %vm3244
      %v3246 = vsel %vm3245, %v3238, %v3242
      %v3247 = vand.u32 2147483647, %v2982
      %vm3248 = vcmp.eq.f32.partialorder %v3247, 8.507059e+37
      %v3249 = vand.u32 %v2982, 2147483648
      %v3250 = vor.u32 1.1754944e-38, %v3249
      %v3251 = vsel %vm3248, %v3250, %v3246
      %v3252 = vmul.f32 1.0, %v3251
      %v3253 = vrcp.pop %v2983
      %v3254 = vmul.f32 %v2983, %v3253
      %v3255 = vsub.f32 1.0, %v3254
      %v3256 = vmul.f32 %v3253, %v3255
      %v3257 = vadd.f32 %v3253, %v3256
      %vm3258 = vweird.f32 %v2983
      %vm3259 = vweird.f32 %v3253
      %vm3260 = vmor %vm3258, %vm3259
      %v3261 = vsel %vm3260, %v3253, %v3257
      %v3262 = vand.u32 2147483647, %v2983
      %vm3263 = vcmp.eq.f32.partialorder %v3262, 8.507059e+37
      %v3264 = vand.u32 %v2983, 2147483648
      %v3265 = vor.u32 1.1754944e-38, %v3264
      %v3266 = vsel %vm3263, %v3265, %v3261
      %v3267 = vmul.f32 1.0, %v3266
      %v3268 = vrcp.pop %v2984
      %v3269 = vmul.f32 %v2984, %v3268
      %v3270 = vsub.f32 1.0, %v3269
      %v3271 = vmul.f32 %v3268, %v3270
      %v3272 = vadd.f32 %v3268, %v3271
      %vm3273 = vweird.f32 %v2984
      %vm3274 = vweird.f32 %v3268
      %vm3275 = vmor %vm3273, %vm3274
      %v3276 = vsel %vm3275, %v3268, %v3272
      %v3277 = vand.u32 2147483647, %v2984
      %vm3278 = vcmp.eq.f32.partialorder %v3277, 8.507059e+37
      %v3279 = vand.u32 %v2984, 2147483648
      %v3280 = vor.u32 1.1754944e-38, %v3279
      %v3281 = vsel %vm3278, %v3280, %v3276
      %v3282 = vmul.f32 1.0, %v3281
      %v3283 = vrcp.pop %v2985
      %v3284 = vmul.f32 %v2985, %v3283
      %v3285 = vsub.f32 1.0, %v3284
      %v3286 = vmul.f32 %v3283, %v3285
      %v3287 = vadd.f32 %v3283, %v3286
      %vm3288 = vweird.f32 %v2985
      %vm3289 = vweird.f32 %v3283
      %vm3290 = vmor %vm3288, %vm3289
      %v3291 = vsel %vm3290, %v3283, %v3287
      %v3292 = vand.u32 2147483647, %v2985
      %vm3293 = vcmp.eq.f32.partialorder %v3292, 8.507059e+37
      %v3294 = vand.u32 %v2985, 2147483648
      %v3295 = vor.u32 1.1754944e-38, %v3294
      %v3296 = vsel %vm3293, %v3295, %v3291
      %v3297 = vmul.f32 1.0, %v3296
      %v3298 = vrcp.pop %v2986
      %v3299 = vmul.f32 %v2986, %v3298
      %v3300 = vsub.f32 1.0, %v3299
      %v3301 = vmul.f32 %v3298, %v3300
      %v3302 = vadd.f32 %v3298, %v3301
      %vm3303 = vweird.f32 %v2986
      %vm3304 = vweird.f32 %v3298
      %vm3305 = vmor %vm3303, %vm3304
      %v3306 = vsel %vm3305, %v3298, %v3302
      %v3307 = vand.u32 2147483647, %v2986
      %vm3308 = vcmp.eq.f32.partialorder %v3307, 8.507059e+37
      %v3309 = vand.u32 %v2986, 2147483648
      %v3310 = vor.u32 1.1754944e-38, %v3309
      %v3311 = vsel %vm3308, %v3310, %v3306
      %v3312 = vmul.f32 1.0, %v3311
      %v3313 = vrcp.pop %v2987
      %v3314 = vmul.f32 %v2987, %v3313
      %v3315 = vsub.f32 1.0, %v3314
      %v3316 = vmul.f32 %v3313, %v3315
      %v3317 = vadd.f32 %v3313, %v3316
      %vm3318 = vweird.f32 %v2987
      %vm3319 = vweird.f32 %v3313
      %vm3320 = vmor %vm3318, %vm3319
      %v3321 = vsel %vm3320, %v3313, %v3317
      %v3322 = vand.u32 2147483647, %v2987
      %vm3323 = vcmp.eq.f32.partialorder %v3322, 8.507059e+37
      %v3324 = vand.u32 %v2987, 2147483648
      %v3325 = vor.u32 1.1754944e-38, %v3324
      %v3326 = vsel %vm3323, %v3325, %v3321
      %v3327 = vmul.f32 1.0, %v3326
      %v3328 = vrcp.pop %v2988
      %v3329 = vmul.f32 %v2988, %v3328
      %v3330 = vsub.f32 1.0, %v3329
      %v3331 = vmul.f32 %v3328, %v3330
      %v3332 = vadd.f32 %v3328, %v3331
      %vm3333 = vweird.f32 %v2988
      %vm3334 = vweird.f32 %v3328
      %vm3335 = vmor %vm3333, %vm3334
      %v3336 = vsel %vm3335, %v3328, %v3332
      %v3337 = vand.u32 2147483647, %v2988
      %vm3338 = vcmp.eq.f32.partialorder %v3337, 8.507059e+37
      %v3339 = vand.u32 %v2988, 2147483648
      %v3340 = vor.u32 1.1754944e-38, %v3339
      %v3341 = vsel %vm3338, %v3340, %v3336
      %v3342 = vmul.f32 1.0, %v3341
      %v3343 = vrcp.pop %v2989
      %v3344 = vmul.f32 %v2989, %v3343
      %v3345 = vsub.f32 1.0, %v3344
      %v3346 = vmul.f32 %v3343, %v3345
      %v3347 = vadd.f32 %v3343, %v3346
      %vm3348 = vweird.f32 %v2989
      %vm3349 = vweird.f32 %v3343
      %vm3350 = vmor %vm3348, %vm3349
      %v3351 = vsel %vm3350, %v3343, %v3347
      %v3352 = vand.u32 2147483647, %v2989
      %vm3353 = vcmp.eq.f32.partialorder %v3352, 8.507059e+37
      %v3354 = vand.u32 %v2989, 2147483648
      %v3355 = vor.u32 1.1754944e-38, %v3354
      %v3356 = vsel %vm3353, %v3355, %v3351
      %v3357 = vmul.f32 1.0, %v3356
      %v3358 = vrcp.pop %v2990
      %v3359 = vmul.f32 %v2990, %v3358
      %v3360 = vsub.f32 1.0, %v3359
      %v3361 = vmul.f32 %v3358, %v3360
      %v3362 = vadd.f32 %v3358, %v3361
      %vm3363 = vweird.f32 %v2990
      %vm3364 = vweird.f32 %v3358
      %vm3365 = vmor %vm3363, %vm3364
      %v3366 = vsel %vm3365, %v3358, %v3362
      %v3367 = vand.u32 2147483647, %v2990
      %vm3368 = vcmp.eq.f32.partialorder %v3367, 8.507059e+37
      %v3369 = vand.u32 %v2990, 2147483648
      %v3370 = vor.u32 1.1754944e-38, %v3369
      %v3371 = vsel %vm3368, %v3370, %v3366
      %v3372 = vmul.f32 1.0, %v3371
      %v3373 = vrcp.pop %v2991
      %v3374 = vmul.f32 %v2991, %v3373
      %v3375 = vsub.f32 1.0, %v3374
      %v3376 = vmul.f32 %v3373, %v3375
      %v3377 = vadd.f32 %v3373, %v3376
      %vm3378 = vweird.f32 %v2991
      %vm3379 = vweird.f32 %v3373
      %vm3380 = vmor %vm3378, %vm3379
      %v3381 = vsel %vm3380, %v3373, %v3377
      %v3382 = vand.u32 2147483647, %v2991
      %vm3383 = vcmp.eq.f32.partialorder %v3382, 8.507059e+37
      %v3384 = vand.u32 %v2991, 2147483648
      %v3385 = vor.u32 1.1754944e-38, %v3384
      %v3386 = vsel %vm3383, %v3385, %v3381
      %v3387 = vmul.f32 1.0, %v3386
      %v3388 = vrcp.pop %v2992
      %v3389 = vmul.f32 %v2992, %v3388
      %v3390 = vsub.f32 1.0, %v3389
      %v3391 = vmul.f32 %v3388, %v3390
      %v3392 = vadd.f32 %v3388, %v3391
      %vm3393 = vweird.f32 %v2992
      %vm3394 = vweird.f32 %v3388
      %vm3395 = vmor %vm3393, %vm3394
      %v3396 = vsel %vm3395, %v3388, %v3392
      %v3397 = vand.u32 2147483647, %v2992
      %vm3398 = vcmp.eq.f32.partialorder %v3397, 8.507059e+37
      %v3399 = vand.u32 %v2992, 2147483648
      %v3400 = vor.u32 1.1754944e-38, %v3399
      %v3401 = vsel %vm3398, %v3400, %v3396
      %v3402 = vmul.f32 1.0, %v3401
      %v3403 = vrcp.pop %v2993
      %v3404 = vmul.f32 %v2993, %v3403
      %v3405 = vsub.f32 1.0, %v3404
      %v3406 = vmul.f32 %v3403, %v3405
      %v3407 = vadd.f32 %v3403, %v3406
      %vm3408 = vweird.f32 %v2993
      %vm3409 = vweird.f32 %v3403
      %vm3410 = vmor %vm3408, %vm3409
      %v3411 = vsel %vm3410, %v3403, %v3407
      %v3412 = vand.u32 2147483647, %v2993
      %vm3413 = vcmp.eq.f32.partialorder %v3412, 8.507059e+37
      %v3414 = vand.u32 %v2993, 2147483648
      %v3415 = vor.u32 1.1754944e-38, %v3414
      %v3416 = vsel %vm3413, %v3415, %v3411
      %v3417 = vmul.f32 1.0, %v3416
      %v3418 = vrcp.pop %v2994
      %v3419 = vmul.f32 %v2994, %v3418
      %v3420 = vsub.f32 1.0, %v3419
      %v3421 = vmul.f32 %v3418, %v3420
      %v3422 = vadd.f32 %v3418, %v3421
      %vm3423 = vweird.f32 %v2994
      %vm3424 = vweird.f32 %v3418
      %vm3425 = vmor %vm3423, %vm3424
      %v3426 = vsel %vm3425, %v3418, %v3422
      %v3427 = vand.u32 2147483647, %v2994
      %vm3428 = vcmp.eq.f32.partialorder %v3427, 8.507059e+37
      %v3429 = vand.u32 %v2994, 2147483648
      %v3430 = vor.u32 1.1754944e-38, %v3429
      %v3431 = vsel %vm3428, %v3430, %v3426
      %v3432 = vmul.f32 1.0, %v3431
      %v3433 = vrcp.pop %v2995
      %v3434 = vmul.f32 %v2995, %v3433
      %v3435 = vsub.f32 1.0, %v3434
      %v3436 = vmul.f32 %v3433, %v3435
      %v3437 = vadd.f32 %v3433, %v3436
      %vm3438 = vweird.f32 %v2995
      %vm3439 = vweird.f32 %v3433
      %vm3440 = vmor %vm3438, %vm3439
      %v3441 = vsel %vm3440, %v3433, %v3437
      %v3442 = vand.u32 2147483647, %v2995
      %vm3443 = vcmp.eq.f32.partialorder %v3442, 8.507059e+37
      %v3444 = vand.u32 %v2995, 2147483648
      %v3445 = vor.u32 1.1754944e-38, %v3444
      %v3446 = vsel %vm3443, %v3445, %v3441
      %v3447 = vmul.f32 1.0, %v3446
      %v3448 = vrcp.pop %v2996
      %v3449 = vmul.f32 %v2996, %v3448
      %v3450 = vsub.f32 1.0, %v3449
      %v3451 = vmul.f32 %v3448, %v3450
      %v3452 = vadd.f32 %v3448, %v3451
      %vm3453 = vweird.f32 %v2996
      %vm3454 = vweird.f32 %v3448
      %vm3455 = vmor %vm3453, %vm3454
      %v3456 = vsel %vm3455, %v3448, %v3452
      %v3457 = vand.u32 2147483647, %v2996
      %vm3458 = vcmp.eq.f32.partialorder %v3457, 8.507059e+37
      %v3459 = vand.u32 %v2996, 2147483648
      %v3460 = vor.u32 1.1754944e-38, %v3459
      %v3461 = vsel %vm3458, %v3460, %v3456
      %v3462 = vmul.f32 1.0, %v3461
      %v3463 = vrcp.pop %v2997
      %v3464 = vmul.f32 %v2997, %v3463
      %v3465 = vsub.f32 1.0, %v3464
      %v3466 = vmul.f32 %v3463, %v3465
      %v3467 = vadd.f32 %v3463, %v3466
      %vm3468 = vweird.f32 %v2997
      %vm3469 = vweird.f32 %v3463
      %vm3470 = vmor %vm3468, %vm3469
      %v3471 = vsel %vm3470, %v3463, %v3467
      %v3472 = vand.u32 2147483647, %v2997
      %vm3473 = vcmp.eq.f32.partialorder %v3472, 8.507059e+37
      %v3474 = vand.u32 %v2997, 2147483648
      %v3475 = vor.u32 1.1754944e-38, %v3474
      %v3476 = vsel %vm3473, %v3475, %v3471
      %v3477 = vmul.f32 1.0, %v3476
      %v3478 = vtanh.pop %v1811
      %v3479 = vtanh.pop %v1812
      %v3480 = vtanh.pop %v1813
      %v3481 = vtanh.pop %v1814
      %v3482 = vtanh.pop %v1815
      %v3483 = vtanh.pop %v1816
      %v3484 = vtanh.pop %v1817
      %v3485 = vtanh.pop %v1818
      %v3486 = vtanh.pop %v1819
      %v3487 = vtanh.pop %v1820
      %v3488 = vtanh.pop %v1821
      %v3489 = vtanh.pop %v1822
      %v3490 = vtanh.pop %v1823
      %v3491 = vtanh.pop %v1824
      %v3492 = vtanh.pop %v1825
      %v3493 = vtanh.pop %v1826
      %v3494 = vtanh.pop %v1827
      %v3495 = vtanh.pop %v1828
      %v3496 = vtanh.pop %v1829
      %v3497 = vtanh.pop %v1830
      %v3498 = vtanh.pop %v1831
      %v3499 = vtanh.pop %v1832
      %v3500 = vtanh.pop %v1833
      %v3501 = vtanh.pop %v1834
      %v3502 = vtanh.pop %v1835
      %v3503 = vtanh.pop %v1836
      %v3504 = vtanh.pop %v1837
      %v3505 = vtanh.pop %v1838
      %v3506 = vtanh.pop %v1839
      %v3507 = vtanh.pop %v1840
      %v3508 = vtanh.pop %v1841
      %v3509 = vtanh.pop %v1842
      %v3510 = vxor.u32 %v2230, 2147483648
      %v3511 = vxor.u32 %v2231, 2147483648
      %v3512 = vxor.u32 %v2232, 2147483648
      %v3513 = vxor.u32 %v2233, 2147483648
      %v3514 = vxor.u32 %v2234, 2147483648
      %v3515 = vxor.u32 %v2235, 2147483648
      %v3516 = vxor.u32 %v2236, 2147483648
      %v3517 = vxor.u32 %v2237, 2147483648
      %v3518 = vxor.u32 %v2238, 2147483648
      %v3519 = vxor.u32 %v2239, 2147483648
      %v3520 = vxor.u32 %v2240, 2147483648
      %v3521 = vxor.u32 %v2241, 2147483648
      %v3522 = vxor.u32 %v2242, 2147483648
      %v3523 = vxor.u32 %v2243, 2147483648
      %v3524 = vxor.u32 %v2244, 2147483648
      %v3525 = vxor.u32 %v2245, 2147483648
      %v3526 = vxor.u32 %v2246, 2147483648
      %v3527 = vxor.u32 %v2247, 2147483648
      %v3528 = vxor.u32 %v2248, 2147483648
      %v3529 = vxor.u32 %v2249, 2147483648
      %v3530 = vxor.u32 %v2250, 2147483648
      %v3531 = vxor.u32 %v2251, 2147483648
      %v3532 = vxor.u32 %v2252, 2147483648
      %v3533 = vxor.u32 %v2253, 2147483648
      %v3534 = vxor.u32 %v2254, 2147483648
      %v3535 = vxor.u32 %v2255, 2147483648
      %v3536 = vxor.u32 %v2256, 2147483648
      %v3537 = vxor.u32 %v2257, 2147483648
      %v3538 = vxor.u32 %v2258, 2147483648
      %v3539 = vxor.u32 %v2259, 2147483648
      %v3540 = vxor.u32 %v2260, 2147483648
      %v3541 = vxor.u32 %v2261, 2147483648
      %v3542 = vmul.f32 %v3510, 1.442695
      %v3543 = vpow.pop %v3542
      %v3544 = vmul.f32 %v3511, 1.442695
      %v3545 = vpow.pop %v3544
      %v3546 = vmul.f32 %v3512, 1.442695
      %v3547 = vpow.pop %v3546
      %v3548 = vmul.f32 %v3513, 1.442695
      %v3549 = vpow.pop %v3548
      %v3550 = vmul.f32 %v3514, 1.442695
      %v3551 = vpow.pop %v3550
      %v3552 = vmul.f32 %v3515, 1.442695
      %v3553 = vpow.pop %v3552
      %v3554 = vmul.f32 %v3516, 1.442695
      %v3555 = vpow.pop %v3554
      %v3556 = vmul.f32 %v3517, 1.442695
      %v3557 = vpow.pop %v3556
      %v3558 = vmul.f32 %v3518, 1.442695
      %v3559 = vpow.pop %v3558
      %v3560 = vmul.f32 %v3519, 1.442695
      %v3561 = vpow.pop %v3560
      %v3562 = vmul.f32 %v3520, 1.442695
      %v3563 = vpow.pop %v3562
      %v3564 = vmul.f32 %v3521, 1.442695
      %v3565 = vpow.pop %v3564
      %v3566 = vmul.f32 %v3522, 1.442695
      %v3567 = vpow.pop %v3566
      %v3568 = vmul.f32 %v3523, 1.442695
      %v3569 = vpow.pop %v3568
      %v3570 = vmul.f32 %v3524, 1.442695
      %v3571 = vpow.pop %v3570
      %v3572 = vmul.f32 %v3525, 1.442695
      %v3573 = vpow.pop %v3572
      %v3574 = vmul.f32 %v3526, 1.442695
      %v3575 = vpow.pop %v3574
      %v3576 = vmul.f32 %v3527, 1.442695
      %v3577 = vpow.pop %v3576
      %v3578 = vmul.f32 %v3528, 1.442695
      %v3579 = vpow.pop %v3578
      %v3580 = vmul.f32 %v3529, 1.442695
      %v3581 = vpow.pop %v3580
      %v3582 = vmul.f32 %v3530, 1.442695
      %v3583 = vpow.pop %v3582
      %v3584 = vmul.f32 %v3531, 1.442695
      %v3585 = vpow.pop %v3584
      %v3586 = vmul.f32 %v3532, 1.442695
      %v3587 = vpow.pop %v3586
      %v3588 = vmul.f32 %v3533, 1.442695
      %v3589 = vpow.pop %v3588
      %v3590 = vmul.f32 %v3534, 1.442695
      %v3591 = vpow.pop %v3590
      %v3592 = vmul.f32 %v3535, 1.442695
      %v3593 = vpow.pop %v3592
      %v3594 = vmul.f32 %v3536, 1.442695
      %v3595 = vpow.pop %v3594
      %v3596 = vmul.f32 %v3537, 1.442695
      %v3597 = vpow.pop %v3596
      %v3598 = vmul.f32 %v3538, 1.442695
      %v3599 = vpow.pop %v3598
      %v3600 = vmul.f32 %v3539, 1.442695
      %v3601 = vpow.pop %v3600
      %v3602 = vmul.f32 %v3540, 1.442695
      %v3603 = vpow.pop %v3602
      %v3604 = vmul.f32 %v3541, 1.442695
      %v3605 = vpow.pop %v3604
      %v3606 = vadd.f32 %v3543, 1.0
      %v3607 = vadd.f32 %v3545, 1.0
      %v3608 = vadd.f32 %v3547, 1.0
      %v3609 = vadd.f32 %v3549, 1.0
      %v3610 = vadd.f32 %v3551, 1.0
      %v3611 = vadd.f32 %v3553, 1.0
      %v3612 = vadd.f32 %v3555, 1.0
      %v3613 = vadd.f32 %v3557, 1.0
      %v3614 = vadd.f32 %v3559, 1.0
      %v3615 = vadd.f32 %v3561, 1.0
      %v3616 = vadd.f32 %v3563, 1.0
      %v3617 = vadd.f32 %v3565, 1.0
      %v3618 = vadd.f32 %v3567, 1.0
      %v3619 = vadd.f32 %v3569, 1.0
      %v3620 = vadd.f32 %v3571, 1.0
      %v3621 = vadd.f32 %v3573, 1.0
      %v3622 = vadd.f32 %v3575, 1.0
      %v3623 = vadd.f32 %v3577, 1.0
      %v3624 = vadd.f32 %v3579, 1.0
      %v3625 = vadd.f32 %v3581, 1.0
      %v3626 = vadd.f32 %v3583, 1.0
      %v3627 = vadd.f32 %v3585, 1.0
      %v3628 = vadd.f32 %v3587, 1.0
      %v3629 = vadd.f32 %v3589, 1.0
      %v3630 = vadd.f32 %v3591, 1.0
      %v3631 = vadd.f32 %v3593, 1.0
      %v3632 = vadd.f32 %v3595, 1.0
      %v3633 = vadd.f32 %v3597, 1.0
      %v3634 = vadd.f32 %v3599, 1.0
      %v3635 = vadd.f32 %v3601, 1.0
      %v3636 = vadd.f32 %v3603, 1.0
      %v3637 = vadd.f32 %v3605, 1.0
      %v3638 = vrcp.pop %v3606
      %v3639 = vmul.f32 %v3606, %v3638
      %v3640 = vsub.f32 1.0, %v3639
      %v3641 = vmul.f32 %v3638, %v3640
      %v3642 = vadd.f32 %v3638, %v3641
      %vm3643 = vweird.f32 %v3606
      %vm3644 = vweird.f32 %v3638
      %vm3645 = vmor %vm3643, %vm3644
      %v3646 = vsel %vm3645, %v3638, %v3642
      %v3647 = vand.u32 2147483647, %v3606
      %vm3648 = vcmp.eq.f32.partialorder %v3647, 8.507059e+37
      %v3649 = vand.u32 %v3606, 2147483648
      %v3650 = vor.u32 1.1754944e-38, %v3649
      %v3651 = vsel %vm3648, %v3650, %v3646
      %v3652 = vmul.f32 1.0, %v3651
      %v3653 = vrcp.pop %v3607
      %v3654 = vmul.f32 %v3607, %v3653
      %v3655 = vsub.f32 1.0, %v3654
      %v3656 = vmul.f32 %v3653, %v3655
      %v3657 = vadd.f32 %v3653, %v3656
      %vm3658 = vweird.f32 %v3607
      %vm3659 = vweird.f32 %v3653
      %vm3660 = vmor %vm3658, %vm3659
      %v3661 = vsel %vm3660, %v3653, %v3657
      %v3662 = vand.u32 2147483647, %v3607
      %vm3663 = vcmp.eq.f32.partialorder %v3662, 8.507059e+37
      %v3664 = vand.u32 %v3607, 2147483648
      %v3665 = vor.u32 1.1754944e-38, %v3664
      %v3666 = vsel %vm3663, %v3665, %v3661
      %v3667 = vmul.f32 1.0, %v3666
      %v3668 = vrcp.pop %v3608
      %v3669 = vmul.f32 %v3608, %v3668
      %v3670 = vsub.f32 1.0, %v3669
      %v3671 = vmul.f32 %v3668, %v3670
      %v3672 = vadd.f32 %v3668, %v3671
      %vm3673 = vweird.f32 %v3608
      %vm3674 = vweird.f32 %v3668
      %vm3675 = vmor %vm3673, %vm3674
      %v3676 = vsel %vm3675, %v3668, %v3672
      %v3677 = vand.u32 2147483647, %v3608
      %vm3678 = vcmp.eq.f32.partialorder %v3677, 8.507059e+37
      %v3679 = vand.u32 %v3608, 2147483648
      %v3680 = vor.u32 1.1754944e-38, %v3679
      %v3681 = vsel %vm3678, %v3680, %v3676
      %v3682 = vmul.f32 1.0, %v3681
      %v3683 = vrcp.pop %v3609
      %v3684 = vmul.f32 %v3609, %v3683
      %v3685 = vsub.f32 1.0, %v3684
      %v3686 = vmul.f32 %v3683, %v3685
      %v3687 = vadd.f32 %v3683, %v3686
      %vm3688 = vweird.f32 %v3609
      %vm3689 = vweird.f32 %v3683
      %vm3690 = vmor %vm3688, %vm3689
      %v3691 = vsel %vm3690, %v3683, %v3687
      %v3692 = vand.u32 2147483647, %v3609
      %vm3693 = vcmp.eq.f32.partialorder %v3692, 8.507059e+37
      %v3694 = vand.u32 %v3609, 2147483648
      %v3695 = vor.u32 1.1754944e-38, %v3694
      %v3696 = vsel %vm3693, %v3695, %v3691
      %v3697 = vmul.f32 1.0, %v3696
      %v3698 = vrcp.pop %v3610
      %v3699 = vmul.f32 %v3610, %v3698
      %v3700 = vsub.f32 1.0, %v3699
      %v3701 = vmul.f32 %v3698, %v3700
      %v3702 = vadd.f32 %v3698, %v3701
      %vm3703 = vweird.f32 %v3610
      %vm3704 = vweird.f32 %v3698
      %vm3705 = vmor %vm3703, %vm3704
      %v3706 = vsel %vm3705, %v3698, %v3702
      %v3707 = vand.u32 2147483647, %v3610
      %vm3708 = vcmp.eq.f32.partialorder %v3707, 8.507059e+37
      %v3709 = vand.u32 %v3610, 2147483648
      %v3710 = vor.u32 1.1754944e-38, %v3709
      %v3711 = vsel %vm3708, %v3710, %v3706
      %v3712 = vmul.f32 1.0, %v3711
      %v3713 = vrcp.pop %v3611
      %v3714 = vmul.f32 %v3611, %v3713
      %v3715 = vsub.f32 1.0, %v3714
      %v3716 = vmul.f32 %v3713, %v3715
      %v3717 = vadd.f32 %v3713, %v3716
      %vm3718 = vweird.f32 %v3611
      %vm3719 = vweird.f32 %v3713
      %vm3720 = vmor %vm3718, %vm3719
      %v3721 = vsel %vm3720, %v3713, %v3717
      %v3722 = vand.u32 2147483647, %v3611
      %vm3723 = vcmp.eq.f32.partialorder %v3722, 8.507059e+37
      %v3724 = vand.u32 %v3611, 2147483648
      %v3725 = vor.u32 1.1754944e-38, %v3724
      %v3726 = vsel %vm3723, %v3725, %v3721
      %v3727 = vmul.f32 1.0, %v3726
      %v3728 = vrcp.pop %v3612
      %v3729 = vmul.f32 %v3612, %v3728
      %v3730 = vsub.f32 1.0, %v3729
      %v3731 = vmul.f32 %v3728, %v3730
      %v3732 = vadd.f32 %v3728, %v3731
      %vm3733 = vweird.f32 %v3612
      %vm3734 = vweird.f32 %v3728
      %vm3735 = vmor %vm3733, %vm3734
      %v3736 = vsel %vm3735, %v3728, %v3732
      %v3737 = vand.u32 2147483647, %v3612
      %vm3738 = vcmp.eq.f32.partialorder %v3737, 8.507059e+37
      %v3739 = vand.u32 %v3612, 2147483648
      %v3740 = vor.u32 1.1754944e-38, %v3739
      %v3741 = vsel %vm3738, %v3740, %v3736
      %v3742 = vmul.f32 1.0, %v3741
      %v3743 = vrcp.pop %v3613
      %v3744 = vmul.f32 %v3613, %v3743
      %v3745 = vsub.f32 1.0, %v3744
      %v3746 = vmul.f32 %v3743, %v3745
      %v3747 = vadd.f32 %v3743, %v3746
      %vm3748 = vweird.f32 %v3613
      %vm3749 = vweird.f32 %v3743
      %vm3750 = vmor %vm3748, %vm3749
      %v3751 = vsel %vm3750, %v3743, %v3747
      %v3752 = vand.u32 2147483647, %v3613
      %vm3753 = vcmp.eq.f32.partialorder %v3752, 8.507059e+37
      %v3754 = vand.u32 %v3613, 2147483648
      %v3755 = vor.u32 1.1754944e-38, %v3754
      %v3756 = vsel %vm3753, %v3755, %v3751
      %v3757 = vmul.f32 1.0, %v3756
      %v3758 = vrcp.pop %v3614
      %v3759 = vmul.f32 %v3614, %v3758
      %v3760 = vsub.f32 1.0, %v3759
      %v3761 = vmul.f32 %v3758, %v3760
      %v3762 = vadd.f32 %v3758, %v3761
      %vm3763 = vweird.f32 %v3614
      %vm3764 = vweird.f32 %v3758
      %vm3765 = vmor %vm3763, %vm3764
      %v3766 = vsel %vm3765, %v3758, %v3762
      %v3767 = vand.u32 2147483647, %v3614
      %vm3768 = vcmp.eq.f32.partialorder %v3767, 8.507059e+37
      %v3769 = vand.u32 %v3614, 2147483648
      %v3770 = vor.u32 1.1754944e-38, %v3769
      %v3771 = vsel %vm3768, %v3770, %v3766
      %v3772 = vmul.f32 1.0, %v3771
      %v3773 = vrcp.pop %v3615
      %v3774 = vmul.f32 %v3615, %v3773
      %v3775 = vsub.f32 1.0, %v3774
      %v3776 = vmul.f32 %v3773, %v3775
      %v3777 = vadd.f32 %v3773, %v3776
      %vm3778 = vweird.f32 %v3615
      %vm3779 = vweird.f32 %v3773
      %vm3780 = vmor %vm3778, %vm3779
      %v3781 = vsel %vm3780, %v3773, %v3777
      %v3782 = vand.u32 2147483647, %v3615
      %vm3783 = vcmp.eq.f32.partialorder %v3782, 8.507059e+37
      %v3784 = vand.u32 %v3615, 2147483648
      %v3785 = vor.u32 1.1754944e-38, %v3784
      %v3786 = vsel %vm3783, %v3785, %v3781
      %v3787 = vmul.f32 1.0, %v3786
      %v3788 = vrcp.pop %v3616
      %v3789 = vmul.f32 %v3616, %v3788
      %v3790 = vsub.f32 1.0, %v3789
      %v3791 = vmul.f32 %v3788, %v3790
      %v3792 = vadd.f32 %v3788, %v3791
      %vm3793 = vweird.f32 %v3616
      %vm3794 = vweird.f32 %v3788
      %vm3795 = vmor %vm3793, %vm3794
      %v3796 = vsel %vm3795, %v3788, %v3792
      %v3797 = vand.u32 2147483647, %v3616
      %vm3798 = vcmp.eq.f32.partialorder %v3797, 8.507059e+37
      %v3799 = vand.u32 %v3616, 2147483648
      %v3800 = vor.u32 1.1754944e-38, %v3799
      %v3801 = vsel %vm3798, %v3800, %v3796
      %v3802 = vmul.f32 1.0, %v3801
      %v3803 = vrcp.pop %v3617
      %v3804 = vmul.f32 %v3617, %v3803
      %v3805 = vsub.f32 1.0, %v3804
      %v3806 = vmul.f32 %v3803, %v3805
      %v3807 = vadd.f32 %v3803, %v3806
      %vm3808 = vweird.f32 %v3617
      %vm3809 = vweird.f32 %v3803
      %vm3810 = vmor %vm3808, %vm3809
      %v3811 = vsel %vm3810, %v3803, %v3807
      %v3812 = vand.u32 2147483647, %v3617
      %vm3813 = vcmp.eq.f32.partialorder %v3812, 8.507059e+37
      %v3814 = vand.u32 %v3617, 2147483648
      %v3815 = vor.u32 1.1754944e-38, %v3814
      %v3816 = vsel %vm3813, %v3815, %v3811
      %v3817 = vmul.f32 1.0, %v3816
      %v3818 = vrcp.pop %v3618
      %v3819 = vmul.f32 %v3618, %v3818
      %v3820 = vsub.f32 1.0, %v3819
      %v3821 = vmul.f32 %v3818, %v3820
      %v3822 = vadd.f32 %v3818, %v3821
      %vm3823 = vweird.f32 %v3618
      %vm3824 = vweird.f32 %v3818
      %vm3825 = vmor %vm3823, %vm3824
      %v3826 = vsel %vm3825, %v3818, %v3822
      %v3827 = vand.u32 2147483647, %v3618
      %vm3828 = vcmp.eq.f32.partialorder %v3827, 8.507059e+37
      %v3829 = vand.u32 %v3618, 2147483648
      %v3830 = vor.u32 1.1754944e-38, %v3829
      %v3831 = vsel %vm3828, %v3830, %v3826
      %v3832 = vmul.f32 1.0, %v3831
      %v3833 = vrcp.pop %v3619
      %v3834 = vmul.f32 %v3619, %v3833
      %v3835 = vsub.f32 1.0, %v3834
      %v3836 = vmul.f32 %v3833, %v3835
      %v3837 = vadd.f32 %v3833, %v3836
      %vm3838 = vweird.f32 %v3619
      %vm3839 = vweird.f32 %v3833
      %vm3840 = vmor %vm3838, %vm3839
      %v3841 = vsel %vm3840, %v3833, %v3837
      %v3842 = vand.u32 2147483647, %v3619
      %vm3843 = vcmp.eq.f32.partialorder %v3842, 8.507059e+37
      %v3844 = vand.u32 %v3619, 2147483648
      %v3845 = vor.u32 1.1754944e-38, %v3844
      %v3846 = vsel %vm3843, %v3845, %v3841
      %v3847 = vmul.f32 1.0, %v3846
      %v3848 = vrcp.pop %v3620
      %v3849 = vmul.f32 %v3620, %v3848
      %v3850 = vsub.f32 1.0, %v3849
      %v3851 = vmul.f32 %v3848, %v3850
      %v3852 = vadd.f32 %v3848, %v3851
      %vm3853 = vweird.f32 %v3620
      %vm3854 = vweird.f32 %v3848
      %vm3855 = vmor %vm3853, %vm3854
      %v3856 = vsel %vm3855, %v3848, %v3852
      %v3857 = vand.u32 2147483647, %v3620
      %vm3858 = vcmp.eq.f32.partialorder %v3857, 8.507059e+37
      %v3859 = vand.u32 %v3620, 2147483648
      %v3860 = vor.u32 1.1754944e-38, %v3859
      %v3861 = vsel %vm3858, %v3860, %v3856
      %v3862 = vmul.f32 1.0, %v3861
      %v3863 = vrcp.pop %v3621
      %v3864 = vmul.f32 %v3621, %v3863
      %v3865 = vsub.f32 1.0, %v3864
      %v3866 = vmul.f32 %v3863, %v3865
      %v3867 = vadd.f32 %v3863, %v3866
      %vm3868 = vweird.f32 %v3621
      %vm3869 = vweird.f32 %v3863
      %vm3870 = vmor %vm3868, %vm3869
      %v3871 = vsel %vm3870, %v3863, %v3867
      %v3872 = vand.u32 2147483647, %v3621
      %vm3873 = vcmp.eq.f32.partialorder %v3872, 8.507059e+37
      %v3874 = vand.u32 %v3621, 2147483648
      %v3875 = vor.u32 1.1754944e-38, %v3874
      %v3876 = vsel %vm3873, %v3875, %v3871
      %v3877 = vmul.f32 1.0, %v3876
      %v3878 = vrcp.pop %v3622
      %v3879 = vmul.f32 %v3622, %v3878
      %v3880 = vsub.f32 1.0, %v3879
      %v3881 = vmul.f32 %v3878, %v3880
      %v3882 = vadd.f32 %v3878, %v3881
      %vm3883 = vweird.f32 %v3622
      %vm3884 = vweird.f32 %v3878
      %vm3885 = vmor %vm3883, %vm3884
      %v3886 = vsel %vm3885, %v3878, %v3882
      %v3887 = vand.u32 2147483647, %v3622
      %vm3888 = vcmp.eq.f32.partialorder %v3887, 8.507059e+37
      %v3889 = vand.u32 %v3622, 2147483648
      %v3890 = vor.u32 1.1754944e-38, %v3889
      %v3891 = vsel %vm3888, %v3890, %v3886
      %v3892 = vmul.f32 1.0, %v3891
      %v3893 = vrcp.pop %v3623
      %v3894 = vmul.f32 %v3623, %v3893
      %v3895 = vsub.f32 1.0, %v3894
      %v3896 = vmul.f32 %v3893, %v3895
      %v3897 = vadd.f32 %v3893, %v3896
      %vm3898 = vweird.f32 %v3623
      %vm3899 = vweird.f32 %v3893
      %vm3900 = vmor %vm3898, %vm3899
      %v3901 = vsel %vm3900, %v3893, %v3897
      %v3902 = vand.u32 2147483647, %v3623
      %vm3903 = vcmp.eq.f32.partialorder %v3902, 8.507059e+37
      %v3904 = vand.u32 %v3623, 2147483648
      %v3905 = vor.u32 1.1754944e-38, %v3904
      %v3906 = vsel %vm3903, %v3905, %v3901
      %v3907 = vmul.f32 1.0, %v3906
      %v3908 = vrcp.pop %v3624
      %v3909 = vmul.f32 %v3624, %v3908
      %v3910 = vsub.f32 1.0, %v3909
      %v3911 = vmul.f32 %v3908, %v3910
      %v3912 = vadd.f32 %v3908, %v3911
      %vm3913 = vweird.f32 %v3624
      %vm3914 = vweird.f32 %v3908
      %vm3915 = vmor %vm3913, %vm3914
      %v3916 = vsel %vm3915, %v3908, %v3912
      %v3917 = vand.u32 2147483647, %v3624
      %vm3918 = vcmp.eq.f32.partialorder %v3917, 8.507059e+37
      %v3919 = vand.u32 %v3624, 2147483648
      %v3920 = vor.u32 1.1754944e-38, %v3919
      %v3921 = vsel %vm3918, %v3920, %v3916
      %v3922 = vmul.f32 1.0, %v3921
      %v3923 = vrcp.pop %v3625
      %v3924 = vmul.f32 %v3625, %v3923
      %v3925 = vsub.f32 1.0, %v3924
      %v3926 = vmul.f32 %v3923, %v3925
      %v3927 = vadd.f32 %v3923, %v3926
      %vm3928 = vweird.f32 %v3625
      %vm3929 = vweird.f32 %v3923
      %vm3930 = vmor %vm3928, %vm3929
      %v3931 = vsel %vm3930, %v3923, %v3927
      %v3932 = vand.u32 2147483647, %v3625
      %vm3933 = vcmp.eq.f32.partialorder %v3932, 8.507059e+37
      %v3934 = vand.u32 %v3625, 2147483648
      %v3935 = vor.u32 1.1754944e-38, %v3934
      %v3936 = vsel %vm3933, %v3935, %v3931
      %v3937 = vmul.f32 1.0, %v3936
      %v3938 = vrcp.pop %v3626
      %v3939 = vmul.f32 %v3626, %v3938
      %v3940 = vsub.f32 1.0, %v3939
      %v3941 = vmul.f32 %v3938, %v3940
      %v3942 = vadd.f32 %v3938, %v3941
      %vm3943 = vweird.f32 %v3626
      %vm3944 = vweird.f32 %v3938
      %vm3945 = vmor %vm3943, %vm3944
      %v3946 = vsel %vm3945, %v3938, %v3942
      %v3947 = vand.u32 2147483647, %v3626
      %vm3948 = vcmp.eq.f32.partialorder %v3947, 8.507059e+37
      %v3949 = vand.u32 %v3626, 2147483648
      %v3950 = vor.u32 1.1754944e-38, %v3949
      %v3951 = vsel %vm3948, %v3950, %v3946
      %v3952 = vmul.f32 1.0, %v3951
      %v3953 = vrcp.pop %v3627
      %v3954 = vmul.f32 %v3627, %v3953
      %v3955 = vsub.f32 1.0, %v3954
      %v3956 = vmul.f32 %v3953, %v3955
      %v3957 = vadd.f32 %v3953, %v3956
      %vm3958 = vweird.f32 %v3627
      %vm3959 = vweird.f32 %v3953
      %vm3960 = vmor %vm3958, %vm3959
      %v3961 = vsel %vm3960, %v3953, %v3957
      %v3962 = vand.u32 2147483647, %v3627
      %vm3963 = vcmp.eq.f32.partialorder %v3962, 8.507059e+37
      %v3964 = vand.u32 %v3627, 2147483648
      %v3965 = vor.u32 1.1754944e-38, %v3964
      %v3966 = vsel %vm3963, %v3965, %v3961
      %v3967 = vmul.f32 1.0, %v3966
      %v3968 = vrcp.pop %v3628
      %v3969 = vmul.f32 %v3628, %v3968
      %v3970 = vsub.f32 1.0, %v3969
      %v3971 = vmul.f32 %v3968, %v3970
      %v3972 = vadd.f32 %v3968, %v3971
      %vm3973 = vweird.f32 %v3628
      %vm3974 = vweird.f32 %v3968
      %vm3975 = vmor %vm3973, %vm3974
      %v3976 = vsel %vm3975, %v3968, %v3972
      %v3977 = vand.u32 2147483647, %v3628
      %vm3978 = vcmp.eq.f32.partialorder %v3977, 8.507059e+37
      %v3979 = vand.u32 %v3628, 2147483648
      %v3980 = vor.u32 1.1754944e-38, %v3979
      %v3981 = vsel %vm3978, %v3980, %v3976
      %v3982 = vmul.f32 1.0, %v3981
      %v3983 = vrcp.pop %v3629
      %v3984 = vmul.f32 %v3629, %v3983
      %v3985 = vsub.f32 1.0, %v3984
      %v3986 = vmul.f32 %v3983, %v3985
      %v3987 = vadd.f32 %v3983, %v3986
      %vm3988 = vweird.f32 %v3629
      %vm3989 = vweird.f32 %v3983
      %vm3990 = vmor %vm3988, %vm3989
      %v3991 = vsel %vm3990, %v3983, %v3987
      %v3992 = vand.u32 2147483647, %v3629
      %vm3993 = vcmp.eq.f32.partialorder %v3992, 8.507059e+37
      %v3994 = vand.u32 %v3629, 2147483648
      %v3995 = vor.u32 1.1754944e-38, %v3994
      %v3996 = vsel %vm3993, %v3995, %v3991
      %v3997 = vmul.f32 1.0, %v3996
      %v3998 = vrcp.pop %v3630
      %v3999 = vmul.f32 %v3630, %v3998
      %v4000 = vsub.f32 1.0, %v3999
      %v4001 = vmul.f32 %v3998, %v4000
      %v4002 = vadd.f32 %v3998, %v4001
      %vm4003 = vweird.f32 %v3630
      %vm4004 = vweird.f32 %v3998
      %vm4005 = vmor %vm4003, %vm4004
      %v4006 = vsel %vm4005, %v3998, %v4002
      %v4007 = vand.u32 2147483647, %v3630
      %vm4008 = vcmp.eq.f32.partialorder %v4007, 8.507059e+37
      %v4009 = vand.u32 %v3630, 2147483648
      %v4010 = vor.u32 1.1754944e-38, %v4009
      %v4011 = vsel %vm4008, %v4010, %v4006
      %v4012 = vmul.f32 1.0, %v4011
      %v4013 = vrcp.pop %v3631
      %v4014 = vmul.f32 %v3631, %v4013
      %v4015 = vsub.f32 1.0, %v4014
      %v4016 = vmul.f32 %v4013, %v4015
      %v4017 = vadd.f32 %v4013, %v4016
      %vm4018 = vweird.f32 %v3631
      %vm4019 = vweird.f32 %v4013
      %vm4020 = vmor %vm4018, %vm4019
      %v4021 = vsel %vm4020, %v4013, %v4017
      %v4022 = vand.u32 2147483647, %v3631
      %vm4023 = vcmp.eq.f32.partialorder %v4022, 8.507059e+37
      %v4024 = vand.u32 %v3631, 2147483648
      %v4025 = vor.u32 1.1754944e-38, %v4024
      %v4026 = vsel %vm4023, %v4025, %v4021
      %v4027 = vmul.f32 1.0, %v4026
      %v4028 = vrcp.pop %v3632
      %v4029 = vmul.f32 %v3632, %v4028
      %v4030 = vsub.f32 1.0, %v4029
      %v4031 = vmul.f32 %v4028, %v4030
      %v4032 = vadd.f32 %v4028, %v4031
      %vm4033 = vweird.f32 %v3632
      %vm4034 = vweird.f32 %v4028
      %vm4035 = vmor %vm4033, %vm4034
      %v4036 = vsel %vm4035, %v4028, %v4032
      %v4037 = vand.u32 2147483647, %v3632
      %vm4038 = vcmp.eq.f32.partialorder %v4037, 8.507059e+37
      %v4039 = vand.u32 %v3632, 2147483648
      %v4040 = vor.u32 1.1754944e-38, %v4039
      %v4041 = vsel %vm4038, %v4040, %v4036
      %v4042 = vmul.f32 1.0, %v4041
      %v4043 = vrcp.pop %v3633
      %v4044 = vmul.f32 %v3633, %v4043
      %v4045 = vsub.f32 1.0, %v4044
      %v4046 = vmul.f32 %v4043, %v4045
      %v4047 = vadd.f32 %v4043, %v4046
      %vm4048 = vweird.f32 %v3633
      %vm4049 = vweird.f32 %v4043
      %vm4050 = vmor %vm4048, %vm4049
      %v4051 = vsel %vm4050, %v4043, %v4047
      %v4052 = vand.u32 2147483647, %v3633
      %vm4053 = vcmp.eq.f32.partialorder %v4052, 8.507059e+37
      %v4054 = vand.u32 %v3633, 2147483648
      %v4055 = vor.u32 1.1754944e-38, %v4054
      %v4056 = vsel %vm4053, %v4055, %v4051
      %v4057 = vmul.f32 1.0, %v4056
      %v4058 = vrcp.pop %v3634
      %v4059 = vmul.f32 %v3634, %v4058
      %v4060 = vsub.f32 1.0, %v4059
      %v4061 = vmul.f32 %v4058, %v4060
      %v4062 = vadd.f32 %v4058, %v4061
      %vm4063 = vweird.f32 %v3634
      %vm4064 = vweird.f32 %v4058
      %vm4065 = vmor %vm4063, %vm4064
      %v4066 = vsel %vm4065, %v4058, %v4062
      %v4067 = vand.u32 2147483647, %v3634
      %vm4068 = vcmp.eq.f32.partialorder %v4067, 8.507059e+37
      %v4069 = vand.u32 %v3634, 2147483648
      %v4070 = vor.u32 1.1754944e-38, %v4069
      %v4071 = vsel %vm4068, %v4070, %v4066
      %v4072 = vmul.f32 1.0, %v4071
      %v4073 = vrcp.pop %v3635
      %v4074 = vmul.f32 %v3635, %v4073
      %v4075 = vsub.f32 1.0, %v4074
      %v4076 = vmul.f32 %v4073, %v4075
      %v4077 = vadd.f32 %v4073, %v4076
      %vm4078 = vweird.f32 %v3635
      %vm4079 = vweird.f32 %v4073
      %vm4080 = vmor %vm4078, %vm4079
      %v4081 = vsel %vm4080, %v4073, %v4077
      %v4082 = vand.u32 2147483647, %v3635
      %vm4083 = vcmp.eq.f32.partialorder %v4082, 8.507059e+37
      %v4084 = vand.u32 %v3635, 2147483648
      %v4085 = vor.u32 1.1754944e-38, %v4084
      %v4086 = vsel %vm4083, %v4085, %v4081
      %v4087 = vmul.f32 1.0, %v4086
      %v4088 = vrcp.pop %v3636
      %v4089 = vmul.f32 %v3636, %v4088
      %v4090 = vsub.f32 1.0, %v4089
      %v4091 = vmul.f32 %v4088, %v4090
      %v4092 = vadd.f32 %v4088, %v4091
      %vm4093 = vweird.f32 %v3636
      %vm4094 = vweird.f32 %v4088
      %vm4095 = vmor %vm4093, %vm4094
      %v4096 = vsel %vm4095, %v4088, %v4092
      %v4097 = vand.u32 2147483647, %v3636
      %vm4098 = vcmp.eq.f32.partialorder %v4097, 8.507059e+37
      %v4099 = vand.u32 %v3636, 2147483648
      %v4100 = vor.u32 1.1754944e-38, %v4099
      %v4101 = vsel %vm4098, %v4100, %v4096
      %v4102 = vmul.f32 1.0, %v4101
      %v4103 = vrcp.pop %v3637
      %v4104 = vmul.f32 %v3637, %v4103
      %v4105 = vsub.f32 1.0, %v4104
      %v4106 = vmul.f32 %v4103, %v4105
      %v4107 = vadd.f32 %v4103, %v4106
      %vm4108 = vweird.f32 %v3637
      %vm4109 = vweird.f32 %v4103
      %vm4110 = vmor %vm4108, %vm4109
      %v4111 = vsel %vm4110, %v4103, %v4107
      %v4112 = vand.u32 2147483647, %v3637
      %vm4113 = vcmp.eq.f32.partialorder %v4112, 8.507059e+37
      %v4114 = vand.u32 %v3637, 2147483648
      %v4115 = vor.u32 1.1754944e-38, %v4114
      %v4116 = vsel %vm4113, %v4115, %v4111
      %v4117 = vmul.f32 1.0, %v4116
      %4150 = vrot.lane.b32.xlu0 %v396, 64
      %v4151 = vpop.permute.xlu0 %4150
      %4152 = vrot.lane.b32.xlu0 %v397, 64
      %v4153 = vpop.permute.xlu0 %4152
      %4154 = vrot.lane.b32.xlu0 %v398, 64
      %v4155 = vpop.permute.xlu0 %4154
      %4156 = vrot.lane.b32.xlu0 %v399, 64
      %v4157 = vpop.permute.xlu0 %4156
      %4158 = vrot.lane.b32.xlu0 %v400, 64
      %v4159 = vpop.permute.xlu0 %4158
      %4160 = vrot.lane.b32.xlu0 %v401, 64
      %v4161 = vpop.permute.xlu0 %4160
      %4162 = vrot.lane.b32.xlu0 %v402, 64
      %v4163 = vpop.permute.xlu0 %4162
      %4164 = vrot.lane.b32.xlu0 %v403, 64
      %v4165 = vpop.permute.xlu0 %4164
      %4166 = vrot.lane.b32.xlu0 %v404, 64
      %v4167 = vpop.permute.xlu0 %4166
      %4168 = vrot.lane.b32.xlu0 %v405, 64
      %v4169 = vpop.permute.xlu0 %4168
      %4170 = vrot.lane.b32.xlu0 %v406, 64
      %v4171 = vpop.permute.xlu0 %4170
      %4172 = vrot.lane.b32.xlu0 %v407, 64
      %v4173 = vpop.permute.xlu0 %4172
      %4174 = vrot.lane.b32.xlu0 %v408, 64
      %v4175 = vpop.permute.xlu0 %4174
      %4176 = vrot.lane.b32.xlu0 %v409, 64
      %v4177 = vpop.permute.xlu0 %4176
      %4178 = vrot.lane.b32.xlu0 %v410, 64
      %v4179 = vpop.permute.xlu0 %4178
      %4180 = vrot.lane.b32.xlu0 %v411, 64
      %v4181 = vpop.permute.xlu0 %4180
      %4182 = vrot.lane.b32.xlu0 %v412, 64
      %v4183 = vpop.permute.xlu0 %4182
      %4184 = vrot.lane.b32.xlu0 %v413, 64
      %v4185 = vpop.permute.xlu0 %4184
      %4186 = vrot.lane.b32.xlu0 %v414, 64
      %v4187 = vpop.permute.xlu0 %4186
      %4188 = vrot.lane.b32.xlu0 %v415, 64
      %v4189 = vpop.permute.xlu0 %4188
      %4190 = vrot.lane.b32.xlu0 %v416, 64
      %v4191 = vpop.permute.xlu0 %4190
      %4192 = vrot.lane.b32.xlu0 %v417, 64
      %v4193 = vpop.permute.xlu0 %4192
      %4194 = vrot.lane.b32.xlu0 %v418, 64
      %v4195 = vpop.permute.xlu0 %4194
      %4196 = vrot.lane.b32.xlu0 %v419, 64
      %v4197 = vpop.permute.xlu0 %4196
      %4198 = vrot.lane.b32.xlu0 %v420, 64
      %v4199 = vpop.permute.xlu0 %4198
      %4200 = vrot.lane.b32.xlu0 %v421, 64
      %v4201 = vpop.permute.xlu0 %4200
      %4202 = vrot.lane.b32.xlu0 %v422, 64
      %v4203 = vpop.permute.xlu0 %4202
      %4204 = vrot.lane.b32.xlu0 %v423, 64
      %v4205 = vpop.permute.xlu0 %4204
      %4206 = vrot.lane.b32.xlu0 %v424, 64
      %v4207 = vpop.permute.xlu0 %4206
      %4208 = vrot.lane.b32.xlu0 %v425, 64
      %v4209 = vpop.permute.xlu0 %4208
      %4210 = vrot.lane.b32.xlu0 %v426, 64
      %v4211 = vpop.permute.xlu0 %4210
      %4212 = vrot.lane.b32.xlu0 %v427, 64
      %v4213 = vpop.permute.xlu0 %4212
      %v4246 = vmul.f32 %v3012, %v4151
      %v4247 = vmul.f32 %v3027, %v4153
      %v4248 = vmul.f32 %v3042, %v4155
      %v4249 = vmul.f32 %v3057, %v4157
      %v4250 = vmul.f32 %v3072, %v4159
      %v4251 = vmul.f32 %v3087, %v4161
      %v4252 = vmul.f32 %v3102, %v4163
      %v4253 = vmul.f32 %v3117, %v4165
      %v4254 = vmul.f32 %v3132, %v4167
      %v4255 = vmul.f32 %v3147, %v4169
      %v4256 = vmul.f32 %v3162, %v4171
      %v4257 = vmul.f32 %v3177, %v4173
      %v4258 = vmul.f32 %v3192, %v4175
      %v4259 = vmul.f32 %v3207, %v4177
      %v4260 = vmul.f32 %v3222, %v4179
      %v4261 = vmul.f32 %v3237, %v4181
      %v4262 = vmul.f32 %v3252, %v4183
      %v4263 = vmul.f32 %v3267, %v4185
      %v4264 = vmul.f32 %v3282, %v4187
      %v4265 = vmul.f32 %v3297, %v4189
      %v4266 = vmul.f32 %v3312, %v4191
      %v4267 = vmul.f32 %v3327, %v4193
      %v4268 = vmul.f32 %v3342, %v4195
      %v4269 = vmul.f32 %v3357, %v4197
      %v4270 = vmul.f32 %v3372, %v4199
      %v4271 = vmul.f32 %v3387, %v4201
      %v4272 = vmul.f32 %v3402, %v4203
      %v4273 = vmul.f32 %v3417, %v4205
      %v4274 = vmul.f32 %v3432, %v4207
      %v4275 = vmul.f32 %v3447, %v4209
      %v4276 = vmul.f32 %v3462, %v4211
      %v4277 = vmul.f32 %v3477, %v4213
      %v4278 = vmul.f32 %v2404, %v3478
      %v4279 = vmul.f32 %v2419, %v3479
      %v4280 = vmul.f32 %v2434, %v3480
      %v4281 = vmul.f32 %v2449, %v3481
      %v4282 = vmul.f32 %v2464, %v3482
      %v4283 = vmul.f32 %v2479, %v3483
      %v4284 = vmul.f32 %v2494, %v3484
      %v4285 = vmul.f32 %v2509, %v3485
      %v4286 = vmul.f32 %v2524, %v3486
      %v4287 = vmul.f32 %v2539, %v3487
      %v4288 = vmul.f32 %v2554, %v3488
      %v4289 = vmul.f32 %v2569, %v3489
      %v4290 = vmul.f32 %v2584, %v3490
      %v4291 = vmul.f32 %v2599, %v3491
      %v4292 = vmul.f32 %v2614, %v3492
      %v4293 = vmul.f32 %v2629, %v3493
      %v4294 = vmul.f32 %v2644, %v3494
      %v4295 = vmul.f32 %v2659, %v3495
      %v4296 = vmul.f32 %v2674, %v3496
      %v4297 = vmul.f32 %v2689, %v3497
      %v4298 = vmul.f32 %v2704, %v3498
      %v4299 = vmul.f32 %v2719, %v3499
      %v4300 = vmul.f32 %v2734, %v3500
      %v4301 = vmul.f32 %v2749, %v3501
      %v4302 = vmul.f32 %v2764, %v3502
      %v4303 = vmul.f32 %v2779, %v3503
      %v4304 = vmul.f32 %v2794, %v3504
      %v4305 = vmul.f32 %v2809, %v3505
      %v4306 = vmul.f32 %v2824, %v3506
      %v4307 = vmul.f32 %v2839, %v3507
      %v4308 = vmul.f32 %v2854, %v3508
      %v4309 = vmul.f32 %v2869, %v3509
      %v4310 = vadd.f32 %v4246, %v4278
      %v4311 = vadd.f32 %v4247, %v4279
      %v4312 = vadd.f32 %v4248, %v4280
      %v4313 = vadd.f32 %v4249, %v4281
      %v4314 = vadd.f32 %v4250, %v4282
      %v4315 = vadd.f32 %v4251, %v4283
      %v4316 = vadd.f32 %v4252, %v4284
      %v4317 = vadd.f32 %v4253, %v4285
      %v4318 = vadd.f32 %v4254, %v4286
      %v4319 = vadd.f32 %v4255, %v4287
      %v4320 = vadd.f32 %v4256, %v4288
      %v4321 = vadd.f32 %v4257, %v4289
      %v4322 = vadd.f32 %v4258, %v4290
      %v4323 = vadd.f32 %v4259, %v4291
      %v4324 = vadd.f32 %v4260, %v4292
      %v4325 = vadd.f32 %v4261, %v4293
      %v4326 = vadd.f32 %v4262, %v4294
      %v4327 = vadd.f32 %v4263, %v4295
      %v4328 = vadd.f32 %v4264, %v4296
      %v4329 = vadd.f32 %v4265, %v4297
      %v4330 = vadd.f32 %v4266, %v4298
      %v4331 = vadd.f32 %v4267, %v4299
      %v4332 = vadd.f32 %v4268, %v4300
      %v4333 = vadd.f32 %v4269, %v4301
      %v4334 = vadd.f32 %v4270, %v4302
      %v4335 = vadd.f32 %v4271, %v4303
      %v4336 = vadd.f32 %v4272, %v4304
      %v4337 = vadd.f32 %v4273, %v4305
      %v4338 = vadd.f32 %v4274, %v4306
      %v4339 = vadd.f32 %v4275, %v4307
      %v4340 = vadd.f32 %v4276, %v4308
      %v4341 = vadd.f32 %v4277, %v4309
      %v4342 = vtanh.pop %v4310
      %v4343 = vtanh.pop %v4311
      %v4344 = vtanh.pop %v4312
      %v4345 = vtanh.pop %v4313
      %v4346 = vtanh.pop %v4314
      %v4347 = vtanh.pop %v4315
      %v4348 = vtanh.pop %v4316
      %v4349 = vtanh.pop %v4317
      %v4350 = vtanh.pop %v4318
      %v4351 = vtanh.pop %v4319
      %v4352 = vtanh.pop %v4320
      %v4353 = vtanh.pop %v4321
      %v4354 = vtanh.pop %v4322
      %v4355 = vtanh.pop %v4323
      %v4356 = vtanh.pop %v4324
      %v4357 = vtanh.pop %v4325
      %v4358 = vtanh.pop %v4326
      %v4359 = vtanh.pop %v4327
      %v4360 = vtanh.pop %v4328
      %v4361 = vtanh.pop %v4329
      %v4362 = vtanh.pop %v4330
      %v4363 = vtanh.pop %v4331
      %v4364 = vtanh.pop %v4332
      %v4365 = vtanh.pop %v4333
      %v4366 = vtanh.pop %v4334
      %v4367 = vtanh.pop %v4335
      %v4368 = vtanh.pop %v4336
      %v4369 = vtanh.pop %v4337
      %v4370 = vtanh.pop %v4338
      %v4371 = vtanh.pop %v4339
      %v4372 = vtanh.pop %v4340
      %v4373 = vtanh.pop %v4341
      %v4374 = vmul.f32 %v3652, %v4342
      %v4375 = vmul.f32 %v3667, %v4343
      %v4376 = vmul.f32 %v3682, %v4344
      %v4377 = vmul.f32 %v3697, %v4345
      %v4378 = vmul.f32 %v3712, %v4346
      %v4379 = vmul.f32 %v3727, %v4347
      %v4380 = vmul.f32 %v3742, %v4348
      %v4381 = vmul.f32 %v3757, %v4349
      %v4382 = vmul.f32 %v3772, %v4350
      %v4383 = vmul.f32 %v3787, %v4351
      %v4384 = vmul.f32 %v3802, %v4352
      %v4385 = vmul.f32 %v3817, %v4353
      %v4386 = vmul.f32 %v3832, %v4354
      %v4387 = vmul.f32 %v3847, %v4355
      %v4388 = vmul.f32 %v3862, %v4356
      %v4389 = vmul.f32 %v3877, %v4357
      %v4390 = vmul.f32 %v3892, %v4358
      %v4391 = vmul.f32 %v3907, %v4359
      %v4392 = vmul.f32 %v3922, %v4360
      %v4393 = vmul.f32 %v3937, %v4361
      %v4394 = vmul.f32 %v3952, %v4362
      %v4395 = vmul.f32 %v3967, %v4363
      %v4396 = vmul.f32 %v3982, %v4364
      %v4397 = vmul.f32 %v3997, %v4365
      %v4398 = vmul.f32 %v4012, %v4366
      %v4399 = vmul.f32 %v4027, %v4367
      %v4400 = vmul.f32 %v4042, %v4368
      %v4401 = vmul.f32 %v4057, %v4369
      %v4402 = vmul.f32 %v4072, %v4370
      %v4403 = vmul.f32 %v4087, %v4371
      %v4404 = vmul.f32 %v4102, %v4372
      %v4405 = vmul.f32 %v4117, %v4373
      %4406 = vst.msk [vmem:[%s297] sm:$0xff] %vm461, %v4374
      %4407 = vst.msk [vmem:[%s297 + $0x8] sm:$0xff] %vm461, %v4375
      %4408 = vst.msk [vmem:[%s297 + $0x10] sm:$0xff] %vm461, %v4376
      %4409 = vst.msk [vmem:[%s297 + $0x18] sm:$0xff] %vm461, %v4377
      %4410 = vst.msk [vmem:[%s297 + $0x20] sm:$0xff] %vm461, %v4378
      %4411 = vst.msk [vmem:[%s297 + $0x28] sm:$0xff] %vm461, %v4379
      %4412 = vst.msk [vmem:[%s297 + $0x30] sm:$0xff] %vm461, %v4380
      %4413 = vst.msk [vmem:[%s297 + $0x38] sm:$0xff] %vm461, %v4381
      %4414 = vst.msk [vmem:[%s297 + $0x40] sm:$0xff] %vm461, %v4382
      %4415 = vst.msk [vmem:[%s297 + $0x48] sm:$0xff] %vm461, %v4383
      %4416 = vst.msk [vmem:[%s297 + $0x50] sm:$0xff] %vm461, %v4384
      %4417 = vst.msk [vmem:[%s297 + $0x58] sm:$0xff] %vm461, %v4385
      %4418 = vst.msk [vmem:[%s297 + $0x60] sm:$0xff] %vm461, %v4386
      %4419 = vst.msk [vmem:[%s297 + $0x68] sm:$0xff] %vm461, %v4387
      %4420 = vst.msk [vmem:[%s297 + $0x70] sm:$0xff] %vm461, %v4388
      %4421 = vst.msk [vmem:[%s297 + $0x78] sm:$0xff] %vm461, %v4389
      %4422 = vst.msk [vmem:[%s297 + $0x80] sm:$0xff] %vm461, %v4390
      %4423 = vst.msk [vmem:[%s297 + $0x88] sm:$0xff] %vm461, %v4391
      %4424 = vst.msk [vmem:[%s297 + $0x90] sm:$0xff] %vm461, %v4392
      %4425 = vst.msk [vmem:[%s297 + $0x98] sm:$0xff] %vm461, %v4393
      %4426 = vst.msk [vmem:[%s297 + $0xa0] sm:$0xff] %vm461, %v4394
      %4427 = vst.msk [vmem:[%s297 + $0xa8] sm:$0xff] %vm461, %v4395
      %4428 = vst.msk [vmem:[%s297 + $0xb0] sm:$0xff] %vm461, %v4396
      %4429 = vst.msk [vmem:[%s297 + $0xb8] sm:$0xff] %vm461, %v4397
      %4430 = vst.msk [vmem:[%s297 + $0xc0] sm:$0xff] %vm461, %v4398
      %4431 = vst.msk [vmem:[%s297 + $0xc8] sm:$0xff] %vm461, %v4399
      %4432 = vst.msk [vmem:[%s297 + $0xd0] sm:$0xff] %vm461, %v4400
      %4433 = vst.msk [vmem:[%s297 + $0xd8] sm:$0xff] %vm461, %v4401
      %4434 = vst.msk [vmem:[%s297 + $0xe0] sm:$0xff] %vm461, %v4402
      %4435 = vst.msk [vmem:[%s297 + $0xe8] sm:$0xff] %vm461, %v4403
      %4436 = vst.msk [vmem:[%s297 + $0xf0] sm:$0xff] %vm461, %v4404
      %4437 = vst.msk [vmem:[%s297 + $0xf8] sm:$0xff] %vm461, %v4405
      %4470 = vrot.lane.b32.xlu0 %v4310, 64
      %v4471 = vpop.permute.xlu0 %4470
      %4472 = vrot.lane.b32.xlu0 %v4311, 64
      %v4473 = vpop.permute.xlu0 %4472
      %4474 = vrot.lane.b32.xlu0 %v4312, 64
      %v4475 = vpop.permute.xlu0 %4474
      %4476 = vrot.lane.b32.xlu0 %v4313, 64
      %v4477 = vpop.permute.xlu0 %4476
      %4478 = vrot.lane.b32.xlu0 %v4314, 64
      %v4479 = vpop.permute.xlu0 %4478
      %4480 = vrot.lane.b32.xlu0 %v4315, 64
      %v4481 = vpop.permute.xlu0 %4480
      %4482 = vrot.lane.b32.xlu0 %v4316, 64
      %v4483 = vpop.permute.xlu0 %4482
      %4484 = vrot.lane.b32.xlu0 %v4317, 64
      %v4485 = vpop.permute.xlu0 %4484
      %4486 = vrot.lane.b32.xlu0 %v4318, 64
      %v4487 = vpop.permute.xlu0 %4486
      %4488 = vrot.lane.b32.xlu0 %v4319, 64
      %v4489 = vpop.permute.xlu0 %4488
      %4490 = vrot.lane.b32.xlu0 %v4320, 64
      %v4491 = vpop.permute.xlu0 %4490
      %4492 = vrot.lane.b32.xlu0 %v4321, 64
      %v4493 = vpop.permute.xlu0 %4492
      %4494 = vrot.lane.b32.xlu0 %v4322, 64
      %v4495 = vpop.permute.xlu0 %4494
      %4496 = vrot.lane.b32.xlu0 %v4323, 64
      %v4497 = vpop.permute.xlu0 %4496
      %4498 = vrot.lane.b32.xlu0 %v4324, 64
      %v4499 = vpop.permute.xlu0 %4498
      %4500 = vrot.lane.b32.xlu0 %v4325, 64
      %v4501 = vpop.permute.xlu0 %4500
      %4502 = vrot.lane.b32.xlu0 %v4326, 64
      %v4503 = vpop.permute.xlu0 %4502
      %4504 = vrot.lane.b32.xlu0 %v4327, 64
      %v4505 = vpop.permute.xlu0 %4504
      %4506 = vrot.lane.b32.xlu0 %v4328, 64
      %v4507 = vpop.permute.xlu0 %4506
      %4508 = vrot.lane.b32.xlu0 %v4329, 64
      %v4509 = vpop.permute.xlu0 %4508
      %4510 = vrot.lane.b32.xlu0 %v4330, 64
      %v4511 = vpop.permute.xlu0 %4510
      %4512 = vrot.lane.b32.xlu0 %v4331, 64
      %v4513 = vpop.permute.xlu0 %4512
      %4514 = vrot.lane.b32.xlu0 %v4332, 64
      %v4515 = vpop.permute.xlu0 %4514
      %4516 = vrot.lane.b32.xlu0 %v4333, 64
      %v4517 = vpop.permute.xlu0 %4516
      %4518 = vrot.lane.b32.xlu0 %v4334, 64
      %v4519 = vpop.permute.xlu0 %4518
      %4520 = vrot.lane.b32.xlu0 %v4335, 64
      %v4521 = vpop.permute.xlu0 %4520
      %4522 = vrot.lane.b32.xlu0 %v4336, 64
      %v4523 = vpop.permute.xlu0 %4522
      %4524 = vrot.lane.b32.xlu0 %v4337, 64
      %v4525 = vpop.permute.xlu0 %4524
      %4526 = vrot.lane.b32.xlu0 %v4338, 64
      %v4527 = vpop.permute.xlu0 %4526
      %4528 = vrot.lane.b32.xlu0 %v4339, 64
      %v4529 = vpop.permute.xlu0 %4528
      %4530 = vrot.lane.b32.xlu0 %v4340, 64
      %v4531 = vpop.permute.xlu0 %4530
      %4532 = vrot.lane.b32.xlu0 %v4341, 64
      %v4533 = vpop.permute.xlu0 %4532
      %vm4566 = vcmask 785920
      %4567 = vst.msk [vmem:[%s297] sm:$0xff] %vm4566, %v4471
      %4568 = vst.msk [vmem:[%s297 + $0x8] sm:$0xff] %vm4566, %v4473
      %4569 = vst.msk [vmem:[%s297 + $0x10] sm:$0xff] %vm4566, %v4475
      %4570 = vst.msk [vmem:[%s297 + $0x18] sm:$0xff] %vm4566, %v4477
      %4571 = vst.msk [vmem:[%s297 + $0x20] sm:$0xff] %vm4566, %v4479
      %4572 = vst.msk [vmem:[%s297 + $0x28] sm:$0xff] %vm4566, %v4481
      %4573 = vst.msk [vmem:[%s297 + $0x30] sm:$0xff] %vm4566, %v4483
      %4574 = vst.msk [vmem:[%s297 + $0x38] sm:$0xff] %vm4566, %v4485
      %4575 = vst.msk [vmem:[%s297 + $0x40] sm:$0xff] %vm4566, %v4487
      %4576 = vst.msk [vmem:[%s297 + $0x48] sm:$0xff] %vm4566, %v4489
      %4577 = vst.msk [vmem:[%s297 + $0x50] sm:$0xff] %vm4566, %v4491
      %4578 = vst.msk [vmem:[%s297 + $0x58] sm:$0xff] %vm4566, %v4493
      %4579 = vst.msk [vmem:[%s297 + $0x60] sm:$0xff] %vm4566, %v4495
      %4580 = vst.msk [vmem:[%s297 + $0x68] sm:$0xff] %vm4566, %v4497
      %4581 = vst.msk [vmem:[%s297 + $0x70] sm:$0xff] %vm4566, %v4499
      %4582 = vst.msk [vmem:[%s297 + $0x78] sm:$0xff] %vm4566, %v4501
      %4583 = vst.msk [vmem:[%s297 + $0x80] sm:$0xff] %vm4566, %v4503
      %4584 = vst.msk [vmem:[%s297 + $0x88] sm:$0xff] %vm4566, %v4505
      %4585 = vst.msk [vmem:[%s297 + $0x90] sm:$0xff] %vm4566, %v4507
      %4586 = vst.msk [vmem:[%s297 + $0x98] sm:$0xff] %vm4566, %v4509
      %4587 = vst.msk [vmem:[%s297 + $0xa0] sm:$0xff] %vm4566, %v4511
      %4588 = vst.msk [vmem:[%s297 + $0xa8] sm:$0xff] %vm4566, %v4513
      %4589 = vst.msk [vmem:[%s297 + $0xb0] sm:$0xff] %vm4566, %v4515
      %4590 = vst.msk [vmem:[%s297 + $0xb8] sm:$0xff] %vm4566, %v4517
      %4591 = vst.msk [vmem:[%s297 + $0xc0] sm:$0xff] %vm4566, %v4519
      %4592 = vst.msk [vmem:[%s297 + $0xc8] sm:$0xff] %vm4566, %v4521
      %4593 = vst.msk [vmem:[%s297 + $0xd0] sm:$0xff] %vm4566, %v4523
      %4594 = vst.msk [vmem:[%s297 + $0xd8] sm:$0xff] %vm4566, %v4525
      %4595 = vst.msk [vmem:[%s297 + $0xe0] sm:$0xff] %vm4566, %v4527
      %4596 = vst.msk [vmem:[%s297 + $0xe8] sm:$0xff] %vm4566, %v4529
      %4597 = vst.msk [vmem:[%s297 + $0xf0] sm:$0xff] %vm4566, %v4531
      %4598 = vst.msk [vmem:[%s297 + $0xf8] sm:$0xff] %vm4566, %v4533
      %v4599 = vpack.c.bf16 %v4375, %v4374
      %v4600 = vpack.c.bf16 %v4377, %v4376
      %v4601 = vpack.c.bf16 %v4379, %v4378
      %v4602 = vpack.c.bf16 %v4381, %v4380
      %v4603 = vpack.c.bf16 %v4383, %v4382
      %v4604 = vpack.c.bf16 %v4385, %v4384
      %v4605 = vpack.c.bf16 %v4387, %v4386
      %v4606 = vpack.c.bf16 %v4389, %v4388
      %v4607 = vpack.c.bf16 %v4391, %v4390
      %v4608 = vpack.c.bf16 %v4393, %v4392
      %v4609 = vpack.c.bf16 %v4395, %v4394
      %v4610 = vpack.c.bf16 %v4397, %v4396
      %v4611 = vpack.c.bf16 %v4399, %v4398
      %v4612 = vpack.c.bf16 %v4401, %v4400
      %v4613 = vpack.c.bf16 %v4403, %v4402
      %v4614 = vpack.c.bf16 %v4405, %v4404
      %s4615 = scalar_lea.vmem %s5, 4
      %v4616 = vld [vmem:[%s4615] sm:$0x1]
      %s4617 = scalar_lea.vmem %s3, 128
      %v4618 = vld [vmem:[%s4617] sm:$0xf]
      %v4619 = vld [vmem:[%s4617 + $0x4] sm:$0xf]
      %v4620 = vld [vmem:[%s4617 + $0x8] sm:$0xf]
      %v4621 = vld [vmem:[%s4617 + $0xc] sm:$0xf]
      %v4626 = vunpack.c.l.b16 %v4618
      %v4627 = vunpack.c.l.b16 %v4619
      %v4628 = vunpack.c.l.b16 %v4620
      %v4629 = vunpack.c.l.b16 %v4621
      %v4630 = vpack.c.b16 %v4627, %v4626
      %v4631 = vpack.c.b16 %v4629, %v4628
      %v4635 = vsel %vm461, %v4599, 0
      %v4638 = vsel %vm461, %v4600, 0
      %v4641 = vsel %vm461, %v4601, 0
      %v4644 = vsel %vm461, %v4602, 0
      %v4647 = vsel %vm461, %v4603, 0
      %v4650 = vsel %vm461, %v4604, 0
      %v4653 = vsel %vm461, %v4605, 0
      %v4656 = vsel %vm461, %v4606, 0
      %v4659 = vsel %vm461, %v4607, 0
      %v4662 = vsel %vm461, %v4608, 0
      %v4665 = vsel %vm461, %v4609, 0
      %v4668 = vsel %vm461, %v4610, 0
      %v4671 = vsel %vm461, %v4611, 0
      %v4674 = vsel %vm461, %v4612, 0
      %v4677 = vsel %vm461, %v4613, 0
      %v4680 = vsel %vm461, %v4614, 0
      %4682 = vmatpush.bf16.msra.mxu0 0
      %4683 = vmatpush.bf16.msra.mxu0 0
      %4684 = vmatpush.bf16.msra.mxu0 0
      %4685 = vmatpush.bf16.msra.mxu0 0
      %4686 = vmatpush.bf16.msra.mxu0 0
      %4687 = vmatpush.bf16.msra.mxu0 0
      %4688 = vmatpush.bf16.msra.mxu0 %v4631
      %4689 = vmatpush.bf16.msra.mxu0 %v4630
      %4690 = vmatmul.bf16.gmra.mxu0 %v4635
      %v4691 = vpop.f32.mrf.mxu0
      %v4692 = vadd.f32 0.0, %v4691
      %v4693 = vpop.f32.mrf.mxu0
      %v4694 = vadd.f32 0.0, %v4693
      %4695 = vmatmul.bf16.gmra.mxu0 %v4638
      %v4696 = vpop.f32.mrf.mxu0
      %v4697 = vadd.f32 0.0, %v4696
      %v4698 = vpop.f32.mrf.mxu0
      %v4699 = vadd.f32 0.0, %v4698
      %4700 = vmatmul.bf16.gmra.mxu0 %v4641
      %v4701 = vpop.f32.mrf.mxu0
      %v4702 = vadd.f32 0.0, %v4701
      %v4703 = vpop.f32.mrf.mxu0
      %v4704 = vadd.f32 0.0, %v4703
      %4705 = vmatmul.bf16.gmra.mxu0 %v4644
      %v4706 = vpop.f32.mrf.mxu0
      %v4707 = vadd.f32 0.0, %v4706
      %v4708 = vpop.f32.mrf.mxu0
      %v4709 = vadd.f32 0.0, %v4708
      %4710 = vmatmul.bf16.gmra.mxu0 %v4647
      %v4711 = vpop.f32.mrf.mxu0
      %v4712 = vadd.f32 0.0, %v4711
      %v4713 = vpop.f32.mrf.mxu0
      %v4714 = vadd.f32 0.0, %v4713
      %4715 = vmatmul.bf16.gmra.mxu0 %v4650
      %v4716 = vpop.f32.mrf.mxu0
      %v4717 = vadd.f32 0.0, %v4716
      %v4718 = vpop.f32.mrf.mxu0
      %v4719 = vadd.f32 0.0, %v4718
      %4720 = vmatmul.bf16.gmra.mxu0 %v4653
      %v4721 = vpop.f32.mrf.mxu0
      %v4722 = vadd.f32 0.0, %v4721
      %v4723 = vpop.f32.mrf.mxu0
      %v4724 = vadd.f32 0.0, %v4723
      %4725 = vmatmul.bf16.gmra.mxu0 %v4656
      %v4726 = vpop.f32.mrf.mxu0
      %v4727 = vadd.f32 0.0, %v4726
      %v4728 = vpop.f32.mrf.mxu0
      %v4729 = vadd.f32 0.0, %v4728
      %4730 = vmatmul.bf16.gmra.mxu0 %v4659
      %v4731 = vpop.f32.mrf.mxu0
      %v4732 = vadd.f32 0.0, %v4731
      %v4733 = vpop.f32.mrf.mxu0
      %v4734 = vadd.f32 0.0, %v4733
      %4735 = vmatmul.bf16.gmra.mxu0 %v4662
      %v4736 = vpop.f32.mrf.mxu0
      %v4737 = vadd.f32 0.0, %v4736
      %v4738 = vpop.f32.mrf.mxu0
      %v4739 = vadd.f32 0.0, %v4738
      %4740 = vmatmul.bf16.gmra.mxu0 %v4665
      %v4741 = vpop.f32.mrf.mxu0
      %v4742 = vadd.f32 0.0, %v4741
      %v4743 = vpop.f32.mrf.mxu0
      %v4744 = vadd.f32 0.0, %v4743
      %4745 = vmatmul.bf16.gmra.mxu0 %v4668
      %v4746 = vpop.f32.mrf.mxu0
      %v4747 = vadd.f32 0.0, %v4746
      %v4748 = vpop.f32.mrf.mxu0
      %v4749 = vadd.f32 0.0, %v4748
      %4750 = vmatmul.bf16.gmra.mxu0 %v4671
      %v4751 = vpop.f32.mrf.mxu0
      %v4752 = vadd.f32 0.0, %v4751
      %v4753 = vpop.f32.mrf.mxu0
      %v4754 = vadd.f32 0.0, %v4753
      %4755 = vmatmul.bf16.gmra.mxu0 %v4674
      %v4756 = vpop.f32.mrf.mxu0
      %v4757 = vadd.f32 0.0, %v4756
      %v4758 = vpop.f32.mrf.mxu0
      %v4759 = vadd.f32 0.0, %v4758
      %4760 = vmatmul.bf16.gmra.mxu0 %v4677
      %v4761 = vpop.f32.mrf.mxu0
      %v4762 = vadd.f32 0.0, %v4761
      %v4763 = vpop.f32.mrf.mxu0
      %v4764 = vadd.f32 0.0, %v4763
      %4765 = vmatmul.bf16.gmra.mxu0 %v4680
      %v4766 = vpop.f32.mrf.mxu0
      %v4767 = vadd.f32 0.0, %v4766
      %v4768 = vpop.f32.mrf.mxu0
      %v4769 = vadd.f32 0.0, %v4768
      %4770 = vdwg.mxu0
      %v4772 = vperm.slane %v4616, 0
      %v4774 = vadd.f32 %v4772, %v4692
      %v4775 = vadd.f32 %v4772, %v4694
      %v4776 = vadd.f32 %v4772, %v4697
      %v4777 = vadd.f32 %v4772, %v4699
      %v4778 = vadd.f32 %v4772, %v4702
      %v4779 = vadd.f32 %v4772, %v4704
      %v4780 = vadd.f32 %v4772, %v4707
      %v4781 = vadd.f32 %v4772, %v4709
      %v4782 = vadd.f32 %v4772, %v4712
      %v4783 = vadd.f32 %v4772, %v4714
      %v4784 = vadd.f32 %v4772, %v4717
      %v4785 = vadd.f32 %v4772, %v4719
      %v4786 = vadd.f32 %v4772, %v4722
      %v4787 = vadd.f32 %v4772, %v4724
      %v4788 = vadd.f32 %v4772, %v4727
      %v4789 = vadd.f32 %v4772, %v4729
      %v4790 = vadd.f32 %v4772, %v4732
      %v4791 = vadd.f32 %v4772, %v4734
      %v4792 = vadd.f32 %v4772, %v4737
      %v4793 = vadd.f32 %v4772, %v4739
      %v4794 = vadd.f32 %v4772, %v4742
      %v4795 = vadd.f32 %v4772, %v4744
      %v4796 = vadd.f32 %v4772, %v4747
      %v4797 = vadd.f32 %v4772, %v4749
      %v4798 = vadd.f32 %v4772, %v4752
      %v4799 = vadd.f32 %v4772, %v4754
      %v4800 = vadd.f32 %v4772, %v4757
      %v4801 = vadd.f32 %v4772, %v4759
      %v4802 = vadd.f32 %v4772, %v4762
      %v4803 = vadd.f32 %v4772, %v4764
      %v4804 = vadd.f32 %v4772, %v4767
      %v4805 = vadd.f32 %v4772, %v4769
      %s4806 = scalar_lea.vmem %s4, 64
      %v4807 = vld [vmem:[%s4806] sm:$0xf]
      %v4808 = vld [vmem:[%s4806 + $0x4] sm:$0xf]
      %v4809 = vld [vmem:[%s4806 + $0x8] sm:$0xf]
      %v4810 = vld [vmem:[%s4806 + $0xc] sm:$0xf]
      %4827 = vrot.lane.b32.xlu0 %v428, 96
      %v4828 = vpop.permute.xlu0 %4827
      %4829 = vrot.lane.b32.xlu0 %v429, 96
      %v4830 = vpop.permute.xlu0 %4829
      %4831 = vrot.lane.b32.xlu0 %v430, 96
      %v4832 = vpop.permute.xlu0 %4831
      %4833 = vrot.lane.b32.xlu0 %v431, 96
      %v4834 = vpop.permute.xlu0 %4833
      %4835 = vrot.lane.b32.xlu0 %v432, 96
      %v4836 = vpop.permute.xlu0 %4835
      %4837 = vrot.lane.b32.xlu0 %v433, 96
      %v4838 = vpop.permute.xlu0 %4837
      %4839 = vrot.lane.b32.xlu0 %v434, 96
      %v4840 = vpop.permute.xlu0 %4839
      %4841 = vrot.lane.b32.xlu0 %v435, 96
      %v4842 = vpop.permute.xlu0 %4841
      %4843 = vrot.lane.b32.xlu0 %v436, 96
      %v4844 = vpop.permute.xlu0 %4843
      %4845 = vrot.lane.b32.xlu0 %v437, 96
      %v4846 = vpop.permute.xlu0 %4845
      %4847 = vrot.lane.b32.xlu0 %v438, 96
      %v4848 = vpop.permute.xlu0 %4847
      %4849 = vrot.lane.b32.xlu0 %v439, 96
      %v4850 = vpop.permute.xlu0 %4849
      %4851 = vrot.lane.b32.xlu0 %v440, 96
      %v4852 = vpop.permute.xlu0 %4851
      %4853 = vrot.lane.b32.xlu0 %v441, 96
      %v4854 = vpop.permute.xlu0 %4853
      %4855 = vrot.lane.b32.xlu0 %v442, 96
      %v4856 = vpop.permute.xlu0 %4855
      %4857 = vrot.lane.b32.xlu0 %v443, 96
      %v4858 = vpop.permute.xlu0 %4857
      %v4863 = vunpack.c.l.b16 %v4807
      %v4864 = vunpack.c.l.b16 %v4808
      %v4865 = vunpack.c.l.b16 %v4809
      %v4866 = vunpack.c.l.b16 %v4810
      %v4867 = vpack.c.b16 %v4864, %v4863
      %v4868 = vpack.c.b16 %v4866, %v4865
      %v4872 = vsel %vm461, %v4828, 0
      %v4875 = vsel %vm461, %v4830, 0
      %v4878 = vsel %vm461, %v4832, 0
      %v4881 = vsel %vm461, %v4834, 0
      %v4884 = vsel %vm461, %v4836, 0
      %v4887 = vsel %vm461, %v4838, 0
      %v4890 = vsel %vm461, %v4840, 0
      %v4893 = vsel %vm461, %v4842, 0
      %v4896 = vsel %vm461, %v4844, 0
      %v4899 = vsel %vm461, %v4846, 0
      %v4902 = vsel %vm461, %v4848, 0
      %v4905 = vsel %vm461, %v4850, 0
      %v4908 = vsel %vm461, %v4852, 0
      %v4911 = vsel %vm461, %v4854, 0
      %v4914 = vsel %vm461, %v4856, 0
      %v4917 = vsel %vm461, %v4858, 0
      %4919 = vmatpush.bf16.msra.mxu0 0
      %4920 = vmatpush.bf16.msra.mxu0 0
      %4921 = vmatpush.bf16.msra.mxu0 0
      %4922 = vmatpush.bf16.msra.mxu0 0
      %4923 = vmatpush.bf16.msra.mxu0 0
      %4924 = vmatpush.bf16.msra.mxu0 0
      %4925 = vmatpush.bf16.msra.mxu0 %v4868
      %4926 = vmatpush.bf16.msra.mxu0 %v4867
      %4927 = vmatmul.bf16.gmra.mxu0 %v4872
      %v4928 = vpop.f32.mrf.mxu0
      %v4929 = vadd.f32 0.0, %v4928
      %v4930 = vpop.f32.mrf.mxu0
      %v4931 = vadd.f32 0.0, %v4930
      %4932 = vmatmul.bf16.gmra.mxu0 %v4875
      %v4933 = vpop.f32.mrf.mxu0
      %v4934 = vadd.f32 0.0, %v4933
      %v4935 = vpop.f32.mrf.mxu0
      %v4936 = vadd.f32 0.0, %v4935
      %4937 = vmatmul.bf16.gmra.mxu0 %v4878
      %v4938 = vpop.f32.mrf.mxu0
      %v4939 = vadd.f32 0.0, %v4938
      %v4940 = vpop.f32.mrf.mxu0
      %v4941 = vadd.f32 0.0, %v4940
      %4942 = vmatmul.bf16.gmra.mxu0 %v4881
      %v4943 = vpop.f32.mrf.mxu0
      %v4944 = vadd.f32 0.0, %v4943
      %v4945 = vpop.f32.mrf.mxu0
      %v4946 = vadd.f32 0.0, %v4945
      %4947 = vmatmul.bf16.gmra.mxu0 %v4884
      %v4948 = vpop.f32.mrf.mxu0
      %v4949 = vadd.f32 0.0, %v4948
      %v4950 = vpop.f32.mrf.mxu0
      %v4951 = vadd.f32 0.0, %v4950
      %4952 = vmatmul.bf16.gmra.mxu0 %v4887
      %v4953 = vpop.f32.mrf.mxu0
      %v4954 = vadd.f32 0.0, %v4953
      %v4955 = vpop.f32.mrf.mxu0
      %v4956 = vadd.f32 0.0, %v4955
      %4957 = vmatmul.bf16.gmra.mxu0 %v4890
      %v4958 = vpop.f32.mrf.mxu0
      %v4959 = vadd.f32 0.0, %v4958
      %v4960 = vpop.f32.mrf.mxu0
      %v4961 = vadd.f32 0.0, %v4960
      %4962 = vmatmul.bf16.gmra.mxu0 %v4893
      %v4963 = vpop.f32.mrf.mxu0
      %v4964 = vadd.f32 0.0, %v4963
      %v4965 = vpop.f32.mrf.mxu0
      %v4966 = vadd.f32 0.0, %v4965
      %4967 = vmatmul.bf16.gmra.mxu0 %v4896
      %v4968 = vpop.f32.mrf.mxu0
      %v4969 = vadd.f32 0.0, %v4968
      %v4970 = vpop.f32.mrf.mxu0
      %v4971 = vadd.f32 0.0, %v4970
      %4972 = vmatmul.bf16.gmra.mxu0 %v4899
      %v4973 = vpop.f32.mrf.mxu0
      %v4974 = vadd.f32 0.0, %v4973
      %v4975 = vpop.f32.mrf.mxu0
      %v4976 = vadd.f32 0.0, %v4975
      %4977 = vmatmul.bf16.gmra.mxu0 %v4902
      %v4978 = vpop.f32.mrf.mxu0
      %v4979 = vadd.f32 0.0, %v4978
      %v4980 = vpop.f32.mrf.mxu0
      %v4981 = vadd.f32 0.0, %v4980
      %4982 = vmatmul.bf16.gmra.mxu0 %v4905
      %v4983 = vpop.f32.mrf.mxu0
      %v4984 = vadd.f32 0.0, %v4983
      %v4985 = vpop.f32.mrf.mxu0
      %v4986 = vadd.f32 0.0, %v4985
      %4987 = vmatmul.bf16.gmra.mxu0 %v4908
      %v4988 = vpop.f32.mrf.mxu0
      %v4989 = vadd.f32 0.0, %v4988
      %v4990 = vpop.f32.mrf.mxu0
      %v4991 = vadd.f32 0.0, %v4990
      %4992 = vmatmul.bf16.gmra.mxu0 %v4911
      %v4993 = vpop.f32.mrf.mxu0
      %v4994 = vadd.f32 0.0, %v4993
      %v4995 = vpop.f32.mrf.mxu0
      %v4996 = vadd.f32 0.0, %v4995
      %4997 = vmatmul.bf16.gmra.mxu0 %v4914
      %v4998 = vpop.f32.mrf.mxu0
      %v4999 = vadd.f32 0.0, %v4998
      %v5000 = vpop.f32.mrf.mxu0
      %v5001 = vadd.f32 0.0, %v5000
      %5002 = vmatmul.bf16.gmra.mxu0 %v4917
      %v5003 = vpop.f32.mrf.mxu0
      %v5004 = vadd.f32 0.0, %v5003
      %v5005 = vpop.f32.mrf.mxu0
      %v5006 = vadd.f32 0.0, %v5005
      %5007 = vdwg.mxu0
      %v5008 = vadd.f32 %v4774, %v4929
      %v5009 = vadd.f32 %v4775, %v4931
      %v5010 = vadd.f32 %v4776, %v4934
      %v5011 = vadd.f32 %v4777, %v4936
      %v5012 = vadd.f32 %v4778, %v4939
      %v5013 = vadd.f32 %v4779, %v4941
      %v5014 = vadd.f32 %v4780, %v4944
      %v5015 = vadd.f32 %v4781, %v4946
      %v5016 = vadd.f32 %v4782, %v4949
      %v5017 = vadd.f32 %v4783, %v4951
      %v5018 = vadd.f32 %v4784, %v4954
      %v5019 = vadd.f32 %v4785, %v4956
      %v5020 = vadd.f32 %v4786, %v4959
      %v5021 = vadd.f32 %v4787, %v4961
      %v5022 = vadd.f32 %v4788, %v4964
      %v5023 = vadd.f32 %v4789, %v4966
      %v5024 = vadd.f32 %v4790, %v4969
      %v5025 = vadd.f32 %v4791, %v4971
      %v5026 = vadd.f32 %v4792, %v4974
      %v5027 = vadd.f32 %v4793, %v4976
      %v5028 = vadd.f32 %v4794, %v4979
      %v5029 = vadd.f32 %v4795, %v4981
      %v5030 = vadd.f32 %v4796, %v4984
      %v5031 = vadd.f32 %v4797, %v4986
      %v5032 = vadd.f32 %v4798, %v4989
      %v5033 = vadd.f32 %v4799, %v4991
      %v5034 = vadd.f32 %v4800, %v4994
      %v5035 = vadd.f32 %v4801, %v4996
      %v5036 = vadd.f32 %v4802, %v4999
      %v5037 = vadd.f32 %v4803, %v5001
      %v5038 = vadd.f32 %v4804, %v5004
      %v5039 = vadd.f32 %v4805, %v5006
      %s5040 = scalar_lea.vmem %s5, 5
      %v5041 = vld [vmem:[%s5040] sm:$0x1]
      %s5042 = scalar_lea.vmem %s3, 144
      %v5043 = vld [vmem:[%s5042] sm:$0xf]
      %v5044 = vld [vmem:[%s5042 + $0x4] sm:$0xf]
      %v5045 = vld [vmem:[%s5042 + $0x8] sm:$0xf]
      %v5046 = vld [vmem:[%s5042 + $0xc] sm:$0xf]
      %v5051 = vunpack.c.l.b16 %v5043
      %v5052 = vunpack.c.l.b16 %v5044
      %v5053 = vunpack.c.l.b16 %v5045
      %v5054 = vunpack.c.l.b16 %v5046
      %v5055 = vpack.c.b16 %v5052, %v5051
      %v5056 = vpack.c.b16 %v5054, %v5053
      %5059 = vmatpush.bf16.msra.mxu0 0
      %5060 = vmatpush.bf16.msra.mxu0 0
      %5061 = vmatpush.bf16.msra.mxu0 0
      %5062 = vmatpush.bf16.msra.mxu0 0
      %5063 = vmatpush.bf16.msra.mxu0 0
      %5064 = vmatpush.bf16.msra.mxu0 0
      %5065 = vmatpush.bf16.msra.mxu0 %v5056
      %5066 = vmatpush.bf16.msra.mxu0 %v5055
      %5067 = vmatmul.bf16.gmra.mxu0 %v4635
      %v5068 = vpop.f32.mrf.mxu0
      %v5069 = vadd.f32 0.0, %v5068
      %v5070 = vpop.f32.mrf.mxu0
      %v5071 = vadd.f32 0.0, %v5070
      %5072 = vmatmul.bf16.gmra.mxu0 %v4638
      %v5073 = vpop.f32.mrf.mxu0
      %v5074 = vadd.f32 0.0, %v5073
      %v5075 = vpop.f32.mrf.mxu0
      %v5076 = vadd.f32 0.0, %v5075
      %5077 = vmatmul.bf16.gmra.mxu0 %v4641
      %v5078 = vpop.f32.mrf.mxu0
      %v5079 = vadd.f32 0.0, %v5078
      %v5080 = vpop.f32.mrf.mxu0
      %v5081 = vadd.f32 0.0, %v5080
      %5082 = vmatmul.bf16.gmra.mxu0 %v4644
      %v5083 = vpop.f32.mrf.mxu0
      %v5084 = vadd.f32 0.0, %v5083
      %v5085 = vpop.f32.mrf.mxu0
      %v5086 = vadd.f32 0.0, %v5085
      %5087 = vmatmul.bf16.gmra.mxu0 %v4647
      %v5088 = vpop.f32.mrf.mxu0
      %v5089 = vadd.f32 0.0, %v5088
      %v5090 = vpop.f32.mrf.mxu0
      %v5091 = vadd.f32 0.0, %v5090
      %5092 = vmatmul.bf16.gmra.mxu0 %v4650
      %v5093 = vpop.f32.mrf.mxu0
      %v5094 = vadd.f32 0.0, %v5093
      %v5095 = vpop.f32.mrf.mxu0
      %v5096 = vadd.f32 0.0, %v5095
      %5097 = vmatmul.bf16.gmra.mxu0 %v4653
      %v5098 = vpop.f32.mrf.mxu0
      %v5099 = vadd.f32 0.0, %v5098
      %v5100 = vpop.f32.mrf.mxu0
      %v5101 = vadd.f32 0.0, %v5100
      %5102 = vmatmul.bf16.gmra.mxu0 %v4656
      %v5103 = vpop.f32.mrf.mxu0
      %v5104 = vadd.f32 0.0, %v5103
      %v5105 = vpop.f32.mrf.mxu0
      %v5106 = vadd.f32 0.0, %v5105
      %5107 = vmatmul.bf16.gmra.mxu0 %v4659
      %v5108 = vpop.f32.mrf.mxu0
      %v5109 = vadd.f32 0.0, %v5108
      %v5110 = vpop.f32.mrf.mxu0
      %v5111 = vadd.f32 0.0, %v5110
      %5112 = vmatmul.bf16.gmra.mxu0 %v4662
      %v5113 = vpop.f32.mrf.mxu0
      %v5114 = vadd.f32 0.0, %v5113
      %v5115 = vpop.f32.mrf.mxu0
      %v5116 = vadd.f32 0.0, %v5115
      %5117 = vmatmul.bf16.gmra.mxu0 %v4665
      %v5118 = vpop.f32.mrf.mxu0
      %v5119 = vadd.f32 0.0, %v5118
      %v5120 = vpop.f32.mrf.mxu0
      %v5121 = vadd.f32 0.0, %v5120
      %5122 = vmatmul.bf16.gmra.mxu0 %v4668
      %v5123 = vpop.f32.mrf.mxu0
      %v5124 = vadd.f32 0.0, %v5123
      %v5125 = vpop.f32.mrf.mxu0
      %v5126 = vadd.f32 0.0, %v5125
      %5127 = vmatmul.bf16.gmra.mxu0 %v4671
      %v5128 = vpop.f32.mrf.mxu0
      %v5129 = vadd.f32 0.0, %v5128
      %v5130 = vpop.f32.mrf.mxu0
      %v5131 = vadd.f32 0.0, %v5130
      %5132 = vmatmul.bf16.gmra.mxu0 %v4674
      %v5133 = vpop.f32.mrf.mxu0
      %v5134 = vadd.f32 0.0, %v5133
      %v5135 = vpop.f32.mrf.mxu0
      %v5136 = vadd.f32 0.0, %v5135
      %5137 = vmatmul.bf16.gmra.mxu0 %v4677
      %v5138 = vpop.f32.mrf.mxu0
      %v5139 = vadd.f32 0.0, %v5138
      %v5140 = vpop.f32.mrf.mxu0
      %v5141 = vadd.f32 0.0, %v5140
      %5142 = vmatmul.bf16.gmra.mxu0 %v4680
      %v5143 = vpop.f32.mrf.mxu0
      %v5144 = vadd.f32 0.0, %v5143
      %v5145 = vpop.f32.mrf.mxu0
      %v5146 = vadd.f32 0.0, %v5145
      %5147 = vdwg.mxu0
      %v5149 = vperm.slane %v5041, 0
      %v5151 = vadd.f32 %v5149, %v5069
      %v5152 = vadd.f32 %v5149, %v5071
      %v5153 = vadd.f32 %v5149, %v5074
      %v5154 = vadd.f32 %v5149, %v5076
      %v5155 = vadd.f32 %v5149, %v5079
      %v5156 = vadd.f32 %v5149, %v5081
      %v5157 = vadd.f32 %v5149, %v5084
      %v5158 = vadd.f32 %v5149, %v5086
      %v5159 = vadd.f32 %v5149, %v5089
      %v5160 = vadd.f32 %v5149, %v5091
      %v5161 = vadd.f32 %v5149, %v5094
      %v5162 = vadd.f32 %v5149, %v5096
      %v5163 = vadd.f32 %v5149, %v5099
      %v5164 = vadd.f32 %v5149, %v5101
      %v5165 = vadd.f32 %v5149, %v5104
      %v5166 = vadd.f32 %v5149, %v5106
      %v5167 = vadd.f32 %v5149, %v5109
      %v5168 = vadd.f32 %v5149, %v5111
      %v5169 = vadd.f32 %v5149, %v5114
      %v5170 = vadd.f32 %v5149, %v5116
      %v5171 = vadd.f32 %v5149, %v5119
      %v5172 = vadd.f32 %v5149, %v5121
      %v5173 = vadd.f32 %v5149, %v5124
      %v5174 = vadd.f32 %v5149, %v5126
      %v5175 = vadd.f32 %v5149, %v5129
      %v5176 = vadd.f32 %v5149, %v5131
      %v5177 = vadd.f32 %v5149, %v5134
      %v5178 = vadd.f32 %v5149, %v5136
      %v5179 = vadd.f32 %v5149, %v5139
      %v5180 = vadd.f32 %v5149, %v5141
      %v5181 = vadd.f32 %v5149, %v5144
      %v5182 = vadd.f32 %v5149, %v5146
      %s5183 = scalar_lea.vmem %s4, 80
      %v5184 = vld [vmem:[%s5183] sm:$0xf]
      %v5185 = vld [vmem:[%s5183 + $0x4] sm:$0xf]
      %v5186 = vld [vmem:[%s5183 + $0x8] sm:$0xf]
      %v5187 = vld [vmem:[%s5183 + $0xc] sm:$0xf]
      %v5192 = vunpack.c.l.b16 %v5184
      %v5193 = vunpack.c.l.b16 %v5185
      %v5194 = vunpack.c.l.b16 %v5186
      %v5195 = vunpack.c.l.b16 %v5187
      %v5196 = vpack.c.b16 %v5193, %v5192
      %v5197 = vpack.c.b16 %v5195, %v5194
      %5200 = vmatpush.bf16.msra.mxu0 0
      %5201 = vmatpush.bf16.msra.mxu0 0
      %5202 = vmatpush.bf16.msra.mxu0 0
      %5203 = vmatpush.bf16.msra.mxu0 0
      %5204 = vmatpush.bf16.msra.mxu0 0
      %5205 = vmatpush.bf16.msra.mxu0 0
      %5206 = vmatpush.bf16.msra.mxu0 %v5197
      %5207 = vmatpush.bf16.msra.mxu0 %v5196
      %5208 = vmatmul.bf16.gmra.mxu0 %v4872
      %v5209 = vpop.f32.mrf.mxu0
      %v5210 = vadd.f32 0.0, %v5209
      %v5211 = vpop.f32.mrf.mxu0
      %v5212 = vadd.f32 0.0, %v5211
      %5213 = vmatmul.bf16.gmra.mxu0 %v4875
      %v5214 = vpop.f32.mrf.mxu0
      %v5215 = vadd.f32 0.0, %v5214
      %v5216 = vpop.f32.mrf.mxu0
      %v5217 = vadd.f32 0.0, %v5216
      %5218 = vmatmul.bf16.gmra.mxu0 %v4878
      %v5219 = vpop.f32.mrf.mxu0
      %v5220 = vadd.f32 0.0, %v5219
      %v5221 = vpop.f32.mrf.mxu0
      %v5222 = vadd.f32 0.0, %v5221
      %5223 = vmatmul.bf16.gmra.mxu0 %v4881
      %v5224 = vpop.f32.mrf.mxu0
      %v5225 = vadd.f32 0.0, %v5224
      %v5226 = vpop.f32.mrf.mxu0
      %v5227 = vadd.f32 0.0, %v5226
      %5228 = vmatmul.bf16.gmra.mxu0 %v4884
      %v5229 = vpop.f32.mrf.mxu0
      %v5230 = vadd.f32 0.0, %v5229
      %v5231 = vpop.f32.mrf.mxu0
      %v5232 = vadd.f32 0.0, %v5231
      %5233 = vmatmul.bf16.gmra.mxu0 %v4887
      %v5234 = vpop.f32.mrf.mxu0
      %v5235 = vadd.f32 0.0, %v5234
      %v5236 = vpop.f32.mrf.mxu0
      %v5237 = vadd.f32 0.0, %v5236
      %5238 = vmatmul.bf16.gmra.mxu0 %v4890
      %v5239 = vpop.f32.mrf.mxu0
      %v5240 = vadd.f32 0.0, %v5239
      %v5241 = vpop.f32.mrf.mxu0
      %v5242 = vadd.f32 0.0, %v5241
      %5243 = vmatmul.bf16.gmra.mxu0 %v4893
      %v5244 = vpop.f32.mrf.mxu0
      %v5245 = vadd.f32 0.0, %v5244
      %v5246 = vpop.f32.mrf.mxu0
      %v5247 = vadd.f32 0.0, %v5246
      %5248 = vmatmul.bf16.gmra.mxu0 %v4896
      %v5249 = vpop.f32.mrf.mxu0
      %v5250 = vadd.f32 0.0, %v5249
      %v5251 = vpop.f32.mrf.mxu0
      %v5252 = vadd.f32 0.0, %v5251
      %5253 = vmatmul.bf16.gmra.mxu0 %v4899
      %v5254 = vpop.f32.mrf.mxu0
      %v5255 = vadd.f32 0.0, %v5254
      %v5256 = vpop.f32.mrf.mxu0
      %v5257 = vadd.f32 0.0, %v5256
      %5258 = vmatmul.bf16.gmra.mxu0 %v4902
      %v5259 = vpop.f32.mrf.mxu0
      %v5260 = vadd.f32 0.0, %v5259
      %v5261 = vpop.f32.mrf.mxu0
      %v5262 = vadd.f32 0.0, %v5261
      %5263 = vmatmul.bf16.gmra.mxu0 %v4905
      %v5264 = vpop.f32.mrf.mxu0
      %v5265 = vadd.f32 0.0, %v5264
      %v5266 = vpop.f32.mrf.mxu0
      %v5267 = vadd.f32 0.0, %v5266
      %5268 = vmatmul.bf16.gmra.mxu0 %v4908
      %v5269 = vpop.f32.mrf.mxu0
      %v5270 = vadd.f32 0.0, %v5269
      %v5271 = vpop.f32.mrf.mxu0
      %v5272 = vadd.f32 0.0, %v5271
      %5273 = vmatmul.bf16.gmra.mxu0 %v4911
      %v5274 = vpop.f32.mrf.mxu0
      %v5275 = vadd.f32 0.0, %v5274
      %v5276 = vpop.f32.mrf.mxu0
      %v5277 = vadd.f32 0.0, %v5276
      %5278 = vmatmul.bf16.gmra.mxu0 %v4914
      %v5279 = vpop.f32.mrf.mxu0
      %v5280 = vadd.f32 0.0, %v5279
      %v5281 = vpop.f32.mrf.mxu0
      %v5282 = vadd.f32 0.0, %v5281
      %5283 = vmatmul.bf16.gmra.mxu0 %v4917
      %v5284 = vpop.f32.mrf.mxu0
      %v5285 = vadd.f32 0.0, %v5284
      %v5286 = vpop.f32.mrf.mxu0
      %v5287 = vadd.f32 0.0, %v5286
      %5288 = vdwg.mxu0
      %v5289 = vadd.f32 %v5151, %v5210
      %v5290 = vadd.f32 %v5152, %v5212
      %v5291 = vadd.f32 %v5153, %v5215
      %v5292 = vadd.f32 %v5154, %v5217
      %v5293 = vadd.f32 %v5155, %v5220
      %v5294 = vadd.f32 %v5156, %v5222
      %v5295 = vadd.f32 %v5157, %v5225
      %v5296 = vadd.f32 %v5158, %v5227
      %v5297 = vadd.f32 %v5159, %v5230
      %v5298 = vadd.f32 %v5160, %v5232
      %v5299 = vadd.f32 %v5161, %v5235
      %v5300 = vadd.f32 %v5162, %v5237
      %v5301 = vadd.f32 %v5163, %v5240
      %v5302 = vadd.f32 %v5164, %v5242
      %v5303 = vadd.f32 %v5165, %v5245
      %v5304 = vadd.f32 %v5166, %v5247
      %v5305 = vadd.f32 %v5167, %v5250
      %v5306 = vadd.f32 %v5168, %v5252
      %v5307 = vadd.f32 %v5169, %v5255
      %v5308 = vadd.f32 %v5170, %v5257
      %v5309 = vadd.f32 %v5171, %v5260
      %v5310 = vadd.f32 %v5172, %v5262
      %v5311 = vadd.f32 %v5173, %v5265
      %v5312 = vadd.f32 %v5174, %v5267
      %v5313 = vadd.f32 %v5175, %v5270
      %v5314 = vadd.f32 %v5176, %v5272
      %v5315 = vadd.f32 %v5177, %v5275
      %v5316 = vadd.f32 %v5178, %v5277
      %v5317 = vadd.f32 %v5179, %v5280
      %v5318 = vadd.f32 %v5180, %v5282
      %v5319 = vadd.f32 %v5181, %v5285
      %v5320 = vadd.f32 %v5182, %v5287
      %s5321 = scalar_lea.vmem %s5, 6
      %v5322 = vld [vmem:[%s5321] sm:$0x1]
      %s5323 = scalar_lea.vmem %s3, 160
      %v5324 = vld [vmem:[%s5323] sm:$0xf]
      %v5325 = vld [vmem:[%s5323 + $0x4] sm:$0xf]
      %v5326 = vld [vmem:[%s5323 + $0x8] sm:$0xf]
      %v5327 = vld [vmem:[%s5323 + $0xc] sm:$0xf]
      %v5332 = vunpack.c.l.b16 %v5324
      %v5333 = vunpack.c.l.b16 %v5325
      %v5334 = vunpack.c.l.b16 %v5326
      %v5335 = vunpack.c.l.b16 %v5327
      %v5336 = vpack.c.b16 %v5333, %v5332
      %v5337 = vpack.c.b16 %v5335, %v5334
      %5340 = vmatpush.bf16.msra.mxu0 0
      %5341 = vmatpush.bf16.msra.mxu0 0
      %5342 = vmatpush.bf16.msra.mxu0 0
      %5343 = vmatpush.bf16.msra.mxu0 0
      %5344 = vmatpush.bf16.msra.mxu0 0
      %5345 = vmatpush.bf16.msra.mxu0 0
      %5346 = vmatpush.bf16.msra.mxu0 %v5337
      %5347 = vmatpush.bf16.msra.mxu0 %v5336
      %5348 = vmatmul.bf16.gmra.mxu0 %v4635
      %v5349 = vpop.f32.mrf.mxu0
      %v5350 = vadd.f32 0.0, %v5349
      %v5351 = vpop.f32.mrf.mxu0
      %v5352 = vadd.f32 0.0, %v5351
      %5353 = vmatmul.bf16.gmra.mxu0 %v4638
      %v5354 = vpop.f32.mrf.mxu0
      %v5355 = vadd.f32 0.0, %v5354
      %v5356 = vpop.f32.mrf.mxu0
      %v5357 = vadd.f32 0.0, %v5356
      %5358 = vmatmul.bf16.gmra.mxu0 %v4641
      %v5359 = vpop.f32.mrf.mxu0
      %v5360 = vadd.f32 0.0, %v5359
      %v5361 = vpop.f32.mrf.mxu0
      %v5362 = vadd.f32 0.0, %v5361
      %5363 = vmatmul.bf16.gmra.mxu0 %v4644
      %v5364 = vpop.f32.mrf.mxu0
      %v5365 = vadd.f32 0.0, %v5364
      %v5366 = vpop.f32.mrf.mxu0
      %v5367 = vadd.f32 0.0, %v5366
      %5368 = vmatmul.bf16.gmra.mxu0 %v4647
      %v5369 = vpop.f32.mrf.mxu0
      %v5370 = vadd.f32 0.0, %v5369
      %v5371 = vpop.f32.mrf.mxu0
      %v5372 = vadd.f32 0.0, %v5371
      %5373 = vmatmul.bf16.gmra.mxu0 %v4650
      %v5374 = vpop.f32.mrf.mxu0
      %v5375 = vadd.f32 0.0, %v5374
      %v5376 = vpop.f32.mrf.mxu0
      %v5377 = vadd.f32 0.0, %v5376
      %5378 = vmatmul.bf16.gmra.mxu0 %v4653
      %v5379 = vpop.f32.mrf.mxu0
      %v5380 = vadd.f32 0.0, %v5379
      %v5381 = vpop.f32.mrf.mxu0
      %v5382 = vadd.f32 0.0, %v5381
      %5383 = vmatmul.bf16.gmra.mxu0 %v4656
      %v5384 = vpop.f32.mrf.mxu0
      %v5385 = vadd.f32 0.0, %v5384
      %v5386 = vpop.f32.mrf.mxu0
      %v5387 = vadd.f32 0.0, %v5386
      %5388 = vmatmul.bf16.gmra.mxu0 %v4659
      %v5389 = vpop.f32.mrf.mxu0
      %v5390 = vadd.f32 0.0, %v5389
      %v5391 = vpop.f32.mrf.mxu0
      %v5392 = vadd.f32 0.0, %v5391
      %5393 = vmatmul.bf16.gmra.mxu0 %v4662
      %v5394 = vpop.f32.mrf.mxu0
      %v5395 = vadd.f32 0.0, %v5394
      %v5396 = vpop.f32.mrf.mxu0
      %v5397 = vadd.f32 0.0, %v5396
      %5398 = vmatmul.bf16.gmra.mxu0 %v4665
      %v5399 = vpop.f32.mrf.mxu0
      %v5400 = vadd.f32 0.0, %v5399
      %v5401 = vpop.f32.mrf.mxu0
      %v5402 = vadd.f32 0.0, %v5401
      %5403 = vmatmul.bf16.gmra.mxu0 %v4668
      %v5404 = vpop.f32.mrf.mxu0
      %v5405 = vadd.f32 0.0, %v5404
      %v5406 = vpop.f32.mrf.mxu0
      %v5407 = vadd.f32 0.0, %v5406
      %5408 = vmatmul.bf16.gmra.mxu0 %v4671
      %v5409 = vpop.f32.mrf.mxu0
      %v5410 = vadd.f32 0.0, %v5409
      %v5411 = vpop.f32.mrf.mxu0
      %v5412 = vadd.f32 0.0, %v5411
      %5413 = vmatmul.bf16.gmra.mxu0 %v4674
      %v5414 = vpop.f32.mrf.mxu0
      %v5415 = vadd.f32 0.0, %v5414
      %v5416 = vpop.f32.mrf.mxu0
      %v5417 = vadd.f32 0.0, %v5416
      %5418 = vmatmul.bf16.gmra.mxu0 %v4677
      %v5419 = vpop.f32.mrf.mxu0
      %v5420 = vadd.f32 0.0, %v5419
      %v5421 = vpop.f32.mrf.mxu0
      %v5422 = vadd.f32 0.0, %v5421
      %5423 = vmatmul.bf16.gmra.mxu0 %v4680
      %v5424 = vpop.f32.mrf.mxu0
      %v5425 = vadd.f32 0.0, %v5424
      %v5426 = vpop.f32.mrf.mxu0
      %v5427 = vadd.f32 0.0, %v5426
      %5428 = vdwg.mxu0
      %v5430 = vperm.slane %v5322, 0
      %v5432 = vadd.f32 %v5430, %v5350
      %v5433 = vadd.f32 %v5430, %v5352
      %v5434 = vadd.f32 %v5430, %v5355
      %v5435 = vadd.f32 %v5430, %v5357
      %v5436 = vadd.f32 %v5430, %v5360
      %v5437 = vadd.f32 %v5430, %v5362
      %v5438 = vadd.f32 %v5430, %v5365
      %v5439 = vadd.f32 %v5430, %v5367
      %v5440 = vadd.f32 %v5430, %v5370
      %v5441 = vadd.f32 %v5430, %v5372
      %v5442 = vadd.f32 %v5430, %v5375
      %v5443 = vadd.f32 %v5430, %v5377
      %v5444 = vadd.f32 %v5430, %v5380
      %v5445 = vadd.f32 %v5430, %v5382
      %v5446 = vadd.f32 %v5430, %v5385
      %v5447 = vadd.f32 %v5430, %v5387
      %v5448 = vadd.f32 %v5430, %v5390
      %v5449 = vadd.f32 %v5430, %v5392
      %v5450 = vadd.f32 %v5430, %v5395
      %v5451 = vadd.f32 %v5430, %v5397
      %v5452 = vadd.f32 %v5430, %v5400
      %v5453 = vadd.f32 %v5430, %v5402
      %v5454 = vadd.f32 %v5430, %v5405
      %v5455 = vadd.f32 %v5430, %v5407
      %v5456 = vadd.f32 %v5430, %v5410
      %v5457 = vadd.f32 %v5430, %v5412
      %v5458 = vadd.f32 %v5430, %v5415
      %v5459 = vadd.f32 %v5430, %v5417
      %v5460 = vadd.f32 %v5430, %v5420
      %v5461 = vadd.f32 %v5430, %v5422
      %v5462 = vadd.f32 %v5430, %v5425
      %v5463 = vadd.f32 %v5430, %v5427
      %s5464 = scalar_lea.vmem %s4, 96
      %v5465 = vld [vmem:[%s5464] sm:$0xf]
      %v5466 = vld [vmem:[%s5464 + $0x4] sm:$0xf]
      %v5467 = vld [vmem:[%s5464 + $0x8] sm:$0xf]
      %v5468 = vld [vmem:[%s5464 + $0xc] sm:$0xf]
      %v5473 = vunpack.c.l.b16 %v5465
      %v5474 = vunpack.c.l.b16 %v5466
      %v5475 = vunpack.c.l.b16 %v5467
      %v5476 = vunpack.c.l.b16 %v5468
      %v5477 = vpack.c.b16 %v5474, %v5473
      %v5478 = vpack.c.b16 %v5476, %v5475
      %5481 = vmatpush.bf16.msra.mxu0 0
      %5482 = vmatpush.bf16.msra.mxu0 0
      %5483 = vmatpush.bf16.msra.mxu0 0
      %5484 = vmatpush.bf16.msra.mxu0 0
      %5485 = vmatpush.bf16.msra.mxu0 0
      %5486 = vmatpush.bf16.msra.mxu0 0
      %5487 = vmatpush.bf16.msra.mxu0 %v5478
      %5488 = vmatpush.bf16.msra.mxu0 %v5477
      %5489 = vmatmul.bf16.gmra.mxu0 %v4872
      %v5490 = vpop.f32.mrf.mxu0
      %v5491 = vadd.f32 0.0, %v5490
      %v5492 = vpop.f32.mrf.mxu0
      %v5493 = vadd.f32 0.0, %v5492
      %5494 = vmatmul.bf16.gmra.mxu0 %v4875
      %v5495 = vpop.f32.mrf.mxu0
      %v5496 = vadd.f32 0.0, %v5495
      %v5497 = vpop.f32.mrf.mxu0
      %v5498 = vadd.f32 0.0, %v5497
      %5499 = vmatmul.bf16.gmra.mxu0 %v4878
      %v5500 = vpop.f32.mrf.mxu0
      %v5501 = vadd.f32 0.0, %v5500
      %v5502 = vpop.f32.mrf.mxu0
      %v5503 = vadd.f32 0.0, %v5502
      %5504 = vmatmul.bf16.gmra.mxu0 %v4881
      %v5505 = vpop.f32.mrf.mxu0
      %v5506 = vadd.f32 0.0, %v5505
      %v5507 = vpop.f32.mrf.mxu0
      %v5508 = vadd.f32 0.0, %v5507
      %5509 = vmatmul.bf16.gmra.mxu0 %v4884
      %v5510 = vpop.f32.mrf.mxu0
      %v5511 = vadd.f32 0.0, %v5510
      %v5512 = vpop.f32.mrf.mxu0
      %v5513 = vadd.f32 0.0, %v5512
      %5514 = vmatmul.bf16.gmra.mxu0 %v4887
      %v5515 = vpop.f32.mrf.mxu0
      %v5516 = vadd.f32 0.0, %v5515
      %v5517 = vpop.f32.mrf.mxu0
      %v5518 = vadd.f32 0.0, %v5517
      %5519 = vmatmul.bf16.gmra.mxu0 %v4890
      %v5520 = vpop.f32.mrf.mxu0
      %v5521 = vadd.f32 0.0, %v5520
      %v5522 = vpop.f32.mrf.mxu0
      %v5523 = vadd.f32 0.0, %v5522
      %5524 = vmatmul.bf16.gmra.mxu0 %v4893
      %v5525 = vpop.f32.mrf.mxu0
      %v5526 = vadd.f32 0.0, %v5525
      %v5527 = vpop.f32.mrf.mxu0
      %v5528 = vadd.f32 0.0, %v5527
      %5529 = vmatmul.bf16.gmra.mxu0 %v4896
      %v5530 = vpop.f32.mrf.mxu0
      %v5531 = vadd.f32 0.0, %v5530
      %v5532 = vpop.f32.mrf.mxu0
      %v5533 = vadd.f32 0.0, %v5532
      %5534 = vmatmul.bf16.gmra.mxu0 %v4899
      %v5535 = vpop.f32.mrf.mxu0
      %v5536 = vadd.f32 0.0, %v5535
      %v5537 = vpop.f32.mrf.mxu0
      %v5538 = vadd.f32 0.0, %v5537
      %5539 = vmatmul.bf16.gmra.mxu0 %v4902
      %v5540 = vpop.f32.mrf.mxu0
      %v5541 = vadd.f32 0.0, %v5540
      %v5542 = vpop.f32.mrf.mxu0
      %v5543 = vadd.f32 0.0, %v5542
      %5544 = vmatmul.bf16.gmra.mxu0 %v4905
      %v5545 = vpop.f32.mrf.mxu0
      %v5546 = vadd.f32 0.0, %v5545
      %v5547 = vpop.f32.mrf.mxu0
      %v5548 = vadd.f32 0.0, %v5547
      %5549 = vmatmul.bf16.gmra.mxu0 %v4908
      %v5550 = vpop.f32.mrf.mxu0
      %v5551 = vadd.f32 0.0, %v5550
      %v5552 = vpop.f32.mrf.mxu0
      %v5553 = vadd.f32 0.0, %v5552
      %5554 = vmatmul.bf16.gmra.mxu0 %v4911
      %v5555 = vpop.f32.mrf.mxu0
      %v5556 = vadd.f32 0.0, %v5555
      %v5557 = vpop.f32.mrf.mxu0
      %v5558 = vadd.f32 0.0, %v5557
      %5559 = vmatmul.bf16.gmra.mxu0 %v4914
      %v5560 = vpop.f32.mrf.mxu0
      %v5561 = vadd.f32 0.0, %v5560
      %v5562 = vpop.f32.mrf.mxu0
      %v5563 = vadd.f32 0.0, %v5562
      %5564 = vmatmul.bf16.gmra.mxu0 %v4917
      %v5565 = vpop.f32.mrf.mxu0
      %v5566 = vadd.f32 0.0, %v5565
      %v5567 = vpop.f32.mrf.mxu0
      %v5568 = vadd.f32 0.0, %v5567
      %5569 = vdwg.mxu0
      %v5570 = vadd.f32 %v5432, %v5491
      %v5571 = vadd.f32 %v5433, %v5493
      %v5572 = vadd.f32 %v5434, %v5496
      %v5573 = vadd.f32 %v5435, %v5498
      %v5574 = vadd.f32 %v5436, %v5501
      %v5575 = vadd.f32 %v5437, %v5503
      %v5576 = vadd.f32 %v5438, %v5506
      %v5577 = vadd.f32 %v5439, %v5508
      %v5578 = vadd.f32 %v5440, %v5511
      %v5579 = vadd.f32 %v5441, %v5513
      %v5580 = vadd.f32 %v5442, %v5516
      %v5581 = vadd.f32 %v5443, %v5518
      %v5582 = vadd.f32 %v5444, %v5521
      %v5583 = vadd.f32 %v5445, %v5523
      %v5584 = vadd.f32 %v5446, %v5526
      %v5585 = vadd.f32 %v5447, %v5528
      %v5586 = vadd.f32 %v5448, %v5531
      %v5587 = vadd.f32 %v5449, %v5533
      %v5588 = vadd.f32 %v5450, %v5536
      %v5589 = vadd.f32 %v5451, %v5538
      %v5590 = vadd.f32 %v5452, %v5541
      %v5591 = vadd.f32 %v5453, %v5543
      %v5592 = vadd.f32 %v5454, %v5546
      %v5593 = vadd.f32 %v5455, %v5548
      %v5594 = vadd.f32 %v5456, %v5551
      %v5595 = vadd.f32 %v5457, %v5553
      %v5596 = vadd.f32 %v5458, %v5556
      %v5597 = vadd.f32 %v5459, %v5558
      %v5598 = vadd.f32 %v5460, %v5561
      %v5599 = vadd.f32 %v5461, %v5563
      %v5600 = vadd.f32 %v5462, %v5566
      %v5601 = vadd.f32 %v5463, %v5568
      %s5602 = scalar_lea.vmem %s5, 7
      %v5603 = vld [vmem:[%s5602] sm:$0x1]
      %s5604 = scalar_lea.vmem %s3, 176
      %v5605 = vld [vmem:[%s5604] sm:$0xf]
      %v5606 = vld [vmem:[%s5604 + $0x4] sm:$0xf]
      %v5607 = vld [vmem:[%s5604 + $0x8] sm:$0xf]
      %v5608 = vld [vmem:[%s5604 + $0xc] sm:$0xf]
      %v5613 = vunpack.c.l.b16 %v5605
      %v5614 = vunpack.c.l.b16 %v5606
      %v5615 = vunpack.c.l.b16 %v5607
      %v5616 = vunpack.c.l.b16 %v5608
      %v5617 = vpack.c.b16 %v5614, %v5613
      %v5618 = vpack.c.b16 %v5616, %v5615
      %5621 = vmatpush.bf16.msra.mxu0 0
      %5622 = vmatpush.bf16.msra.mxu0 0
      %5623 = vmatpush.bf16.msra.mxu0 0
      %5624 = vmatpush.bf16.msra.mxu0 0
      %5625 = vmatpush.bf16.msra.mxu0 0
      %5626 = vmatpush.bf16.msra.mxu0 0
      %5627 = vmatpush.bf16.msra.mxu0 %v5618
      %5628 = vmatpush.bf16.msra.mxu0 %v5617
      %5629 = vmatmul.bf16.gmra.mxu0 %v4635
      %v5630 = vpop.f32.mrf.mxu0
      %v5631 = vadd.f32 0.0, %v5630
      %v5632 = vpop.f32.mrf.mxu0
      %v5633 = vadd.f32 0.0, %v5632
      %5634 = vmatmul.bf16.gmra.mxu0 %v4638
      %v5635 = vpop.f32.mrf.mxu0
      %v5636 = vadd.f32 0.0, %v5635
      %v5637 = vpop.f32.mrf.mxu0
      %v5638 = vadd.f32 0.0, %v5637
      %5639 = vmatmul.bf16.gmra.mxu0 %v4641
      %v5640 = vpop.f32.mrf.mxu0
      %v5641 = vadd.f32 0.0, %v5640
      %v5642 = vpop.f32.mrf.mxu0
      %v5643 = vadd.f32 0.0, %v5642
      %5644 = vmatmul.bf16.gmra.mxu0 %v4644
      %v5645 = vpop.f32.mrf.mxu0
      %v5646 = vadd.f32 0.0, %v5645
      %v5647 = vpop.f32.mrf.mxu0
      %v5648 = vadd.f32 0.0, %v5647
      %5649 = vmatmul.bf16.gmra.mxu0 %v4647
      %v5650 = vpop.f32.mrf.mxu0
      %v5651 = vadd.f32 0.0, %v5650
      %v5652 = vpop.f32.mrf.mxu0
      %v5653 = vadd.f32 0.0, %v5652
      %5654 = vmatmul.bf16.gmra.mxu0 %v4650
      %v5655 = vpop.f32.mrf.mxu0
      %v5656 = vadd.f32 0.0, %v5655
      %v5657 = vpop.f32.mrf.mxu0
      %v5658 = vadd.f32 0.0, %v5657
      %5659 = vmatmul.bf16.gmra.mxu0 %v4653
      %v5660 = vpop.f32.mrf.mxu0
      %v5661 = vadd.f32 0.0, %v5660
      %v5662 = vpop.f32.mrf.mxu0
      %v5663 = vadd.f32 0.0, %v5662
      %5664 = vmatmul.bf16.gmra.mxu0 %v4656
      %v5665 = vpop.f32.mrf.mxu0
      %v5666 = vadd.f32 0.0, %v5665
      %v5667 = vpop.f32.mrf.mxu0
      %v5668 = vadd.f32 0.0, %v5667
      %5669 = vmatmul.bf16.gmra.mxu0 %v4659
      %v5670 = vpop.f32.mrf.mxu0
      %v5671 = vadd.f32 0.0, %v5670
      %v5672 = vpop.f32.mrf.mxu0
      %v5673 = vadd.f32 0.0, %v5672
      %5674 = vmatmul.bf16.gmra.mxu0 %v4662
      %v5675 = vpop.f32.mrf.mxu0
      %v5676 = vadd.f32 0.0, %v5675
      %v5677 = vpop.f32.mrf.mxu0
      %v5678 = vadd.f32 0.0, %v5677
      %5679 = vmatmul.bf16.gmra.mxu0 %v4665
      %v5680 = vpop.f32.mrf.mxu0
      %v5681 = vadd.f32 0.0, %v5680
      %v5682 = vpop.f32.mrf.mxu0
      %v5683 = vadd.f32 0.0, %v5682
      %5684 = vmatmul.bf16.gmra.mxu0 %v4668
      %v5685 = vpop.f32.mrf.mxu0
      %v5686 = vadd.f32 0.0, %v5685
      %v5687 = vpop.f32.mrf.mxu0
      %v5688 = vadd.f32 0.0, %v5687
      %5689 = vmatmul.bf16.gmra.mxu0 %v4671
      %v5690 = vpop.f32.mrf.mxu0
      %v5691 = vadd.f32 0.0, %v5690
      %v5692 = vpop.f32.mrf.mxu0
      %v5693 = vadd.f32 0.0, %v5692
      %5694 = vmatmul.bf16.gmra.mxu0 %v4674
      %v5695 = vpop.f32.mrf.mxu0
      %v5696 = vadd.f32 0.0, %v5695
      %v5697 = vpop.f32.mrf.mxu0
      %v5698 = vadd.f32 0.0, %v5697
      %5699 = vmatmul.bf16.gmra.mxu0 %v4677
      %v5700 = vpop.f32.mrf.mxu0
      %v5701 = vadd.f32 0.0, %v5700
      %v5702 = vpop.f32.mrf.mxu0
      %v5703 = vadd.f32 0.0, %v5702
      %5704 = vmatmul.bf16.gmra.mxu0 %v4680
      %v5705 = vpop.f32.mrf.mxu0
      %v5706 = vadd.f32 0.0, %v5705
      %v5707 = vpop.f32.mrf.mxu0
      %v5708 = vadd.f32 0.0, %v5707
      %5709 = vdwg.mxu0
      %v5711 = vperm.slane %v5603, 0
      %v5713 = vadd.f32 %v5711, %v5631
      %v5714 = vadd.f32 %v5711, %v5633
      %v5715 = vadd.f32 %v5711, %v5636
      %v5716 = vadd.f32 %v5711, %v5638
      %v5717 = vadd.f32 %v5711, %v5641
      %v5718 = vadd.f32 %v5711, %v5643
      %v5719 = vadd.f32 %v5711, %v5646
      %v5720 = vadd.f32 %v5711, %v5648
      %v5721 = vadd.f32 %v5711, %v5651
      %v5722 = vadd.f32 %v5711, %v5653
      %v5723 = vadd.f32 %v5711, %v5656
      %v5724 = vadd.f32 %v5711, %v5658
      %v5725 = vadd.f32 %v5711, %v5661
      %v5726 = vadd.f32 %v5711, %v5663
      %v5727 = vadd.f32 %v5711, %v5666
      %v5728 = vadd.f32 %v5711, %v5668
      %v5729 = vadd.f32 %v5711, %v5671
      %v5730 = vadd.f32 %v5711, %v5673
      %v5731 = vadd.f32 %v5711, %v5676
      %v5732 = vadd.f32 %v5711, %v5678
      %v5733 = vadd.f32 %v5711, %v5681
      %v5734 = vadd.f32 %v5711, %v5683
      %v5735 = vadd.f32 %v5711, %v5686
      %v5736 = vadd.f32 %v5711, %v5688
      %v5737 = vadd.f32 %v5711, %v5691
      %v5738 = vadd.f32 %v5711, %v5693
      %v5739 = vadd.f32 %v5711, %v5696
      %v5740 = vadd.f32 %v5711, %v5698
      %v5741 = vadd.f32 %v5711, %v5701
      %v5742 = vadd.f32 %v5711, %v5703
      %v5743 = vadd.f32 %v5711, %v5706
      %v5744 = vadd.f32 %v5711, %v5708
      %s5745 = scalar_lea.vmem %s4, 112
      %v5746 = vld [vmem:[%s5745] sm:$0xf]
      %v5747 = vld [vmem:[%s5745 + $0x4] sm:$0xf]
      %v5748 = vld [vmem:[%s5745 + $0x8] sm:$0xf]
      %v5749 = vld [vmem:[%s5745 + $0xc] sm:$0xf]
      %v5754 = vunpack.c.l.b16 %v5746
      %v5755 = vunpack.c.l.b16 %v5747
      %v5756 = vunpack.c.l.b16 %v5748
      %v5757 = vunpack.c.l.b16 %v5749
      %v5758 = vpack.c.b16 %v5755, %v5754
      %v5759 = vpack.c.b16 %v5757, %v5756
      %5762 = vmatpush.bf16.msra.mxu0 0
      %5763 = vmatpush.bf16.msra.mxu0 0
      %5764 = vmatpush.bf16.msra.mxu0 0
      %5765 = vmatpush.bf16.msra.mxu0 0
      %5766 = vmatpush.bf16.msra.mxu0 0
      %5767 = vmatpush.bf16.msra.mxu0 0
      %5768 = vmatpush.bf16.msra.mxu0 %v5759
      %5769 = vmatpush.bf16.msra.mxu0 %v5758
      %5770 = vmatmul.bf16.gmra.mxu0 %v4872
      %v5771 = vpop.f32.mrf.mxu0
      %v5772 = vadd.f32 0.0, %v5771
      %v5773 = vpop.f32.mrf.mxu0
      %v5774 = vadd.f32 0.0, %v5773
      %5775 = vmatmul.bf16.gmra.mxu0 %v4875
      %v5776 = vpop.f32.mrf.mxu0
      %v5777 = vadd.f32 0.0, %v5776
      %v5778 = vpop.f32.mrf.mxu0
      %v5779 = vadd.f32 0.0, %v5778
      %5780 = vmatmul.bf16.gmra.mxu0 %v4878
      %v5781 = vpop.f32.mrf.mxu0
      %v5782 = vadd.f32 0.0, %v5781
      %v5783 = vpop.f32.mrf.mxu0
      %v5784 = vadd.f32 0.0, %v5783
      %5785 = vmatmul.bf16.gmra.mxu0 %v4881
      %v5786 = vpop.f32.mrf.mxu0
      %v5787 = vadd.f32 0.0, %v5786
      %v5788 = vpop.f32.mrf.mxu0
      %v5789 = vadd.f32 0.0, %v5788
      %5790 = vmatmul.bf16.gmra.mxu0 %v4884
      %v5791 = vpop.f32.mrf.mxu0
      %v5792 = vadd.f32 0.0, %v5791
      %v5793 = vpop.f32.mrf.mxu0
      %v5794 = vadd.f32 0.0, %v5793
      %5795 = vmatmul.bf16.gmra.mxu0 %v4887
      %v5796 = vpop.f32.mrf.mxu0
      %v5797 = vadd.f32 0.0, %v5796
      %v5798 = vpop.f32.mrf.mxu0
      %v5799 = vadd.f32 0.0, %v5798
      %5800 = vmatmul.bf16.gmra.mxu0 %v4890
      %v5801 = vpop.f32.mrf.mxu0
      %v5802 = vadd.f32 0.0, %v5801
      %v5803 = vpop.f32.mrf.mxu0
      %v5804 = vadd.f32 0.0, %v5803
      %5805 = vmatmul.bf16.gmra.mxu0 %v4893
      %v5806 = vpop.f32.mrf.mxu0
      %v5807 = vadd.f32 0.0, %v5806
      %v5808 = vpop.f32.mrf.mxu0
      %v5809 = vadd.f32 0.0, %v5808
      %5810 = vmatmul.bf16.gmra.mxu0 %v4896
      %v5811 = vpop.f32.mrf.mxu0
      %v5812 = vadd.f32 0.0, %v5811
      %v5813 = vpop.f32.mrf.mxu0
      %v5814 = vadd.f32 0.0, %v5813
      %5815 = vmatmul.bf16.gmra.mxu0 %v4899
      %v5816 = vpop.f32.mrf.mxu0
      %v5817 = vadd.f32 0.0, %v5816
      %v5818 = vpop.f32.mrf.mxu0
      %v5819 = vadd.f32 0.0, %v5818
      %5820 = vmatmul.bf16.gmra.mxu0 %v4902
      %v5821 = vpop.f32.mrf.mxu0
      %v5822 = vadd.f32 0.0, %v5821
      %v5823 = vpop.f32.mrf.mxu0
      %v5824 = vadd.f32 0.0, %v5823
      %5825 = vmatmul.bf16.gmra.mxu0 %v4905
      %v5826 = vpop.f32.mrf.mxu0
      %v5827 = vadd.f32 0.0, %v5826
      %v5828 = vpop.f32.mrf.mxu0
      %v5829 = vadd.f32 0.0, %v5828
      %5830 = vmatmul.bf16.gmra.mxu0 %v4908
      %v5831 = vpop.f32.mrf.mxu0
      %v5832 = vadd.f32 0.0, %v5831
      %v5833 = vpop.f32.mrf.mxu0
      %v5834 = vadd.f32 0.0, %v5833
      %5835 = vmatmul.bf16.gmra.mxu0 %v4911
      %v5836 = vpop.f32.mrf.mxu0
      %v5837 = vadd.f32 0.0, %v5836
      %v5838 = vpop.f32.mrf.mxu0
      %v5839 = vadd.f32 0.0, %v5838
      %5840 = vmatmul.bf16.gmra.mxu0 %v4914
      %v5841 = vpop.f32.mrf.mxu0
      %v5842 = vadd.f32 0.0, %v5841
      %v5843 = vpop.f32.mrf.mxu0
      %v5844 = vadd.f32 0.0, %v5843
      %5845 = vmatmul.bf16.gmra.mxu0 %v4917
      %v5846 = vpop.f32.mrf.mxu0
      %v5847 = vadd.f32 0.0, %v5846
      %v5848 = vpop.f32.mrf.mxu0
      %v5849 = vadd.f32 0.0, %v5848
      %5850 = vdwg.mxu0
      %v5851 = vadd.f32 %v5713, %v5772
      %v5852 = vadd.f32 %v5714, %v5774
      %v5853 = vadd.f32 %v5715, %v5777
      %v5854 = vadd.f32 %v5716, %v5779
      %v5855 = vadd.f32 %v5717, %v5782
      %v5856 = vadd.f32 %v5718, %v5784
      %v5857 = vadd.f32 %v5719, %v5787
      %v5858 = vadd.f32 %v5720, %v5789
      %v5859 = vadd.f32 %v5721, %v5792
      %v5860 = vadd.f32 %v5722, %v5794
      %v5861 = vadd.f32 %v5723, %v5797
      %v5862 = vadd.f32 %v5724, %v5799
      %v5863 = vadd.f32 %v5725, %v5802
      %v5864 = vadd.f32 %v5726, %v5804
      %v5865 = vadd.f32 %v5727, %v5807
      %v5866 = vadd.f32 %v5728, %v5809
      %v5867 = vadd.f32 %v5729, %v5812
      %v5868 = vadd.f32 %v5730, %v5814
      %v5869 = vadd.f32 %v5731, %v5817
      %v5870 = vadd.f32 %v5732, %v5819
      %v5871 = vadd.f32 %v5733, %v5822
      %v5872 = vadd.f32 %v5734, %v5824
      %v5873 = vadd.f32 %v5735, %v5827
      %v5874 = vadd.f32 %v5736, %v5829
      %v5875 = vadd.f32 %v5737, %v5832
      %v5876 = vadd.f32 %v5738, %v5834
      %v5877 = vadd.f32 %v5739, %v5837
      %v5878 = vadd.f32 %v5740, %v5839
      %v5879 = vadd.f32 %v5741, %v5842
      %v5880 = vadd.f32 %v5742, %v5844
      %v5881 = vadd.f32 %v5743, %v5847
      %v5882 = vadd.f32 %v5744, %v5849
      %v5883 = vxor.u32 %v5008, 2147483648
      %v5884 = vxor.u32 %v5009, 2147483648
      %v5885 = vxor.u32 %v5010, 2147483648
      %v5886 = vxor.u32 %v5011, 2147483648
      %v5887 = vxor.u32 %v5012, 2147483648
      %v5888 = vxor.u32 %v5013, 2147483648
      %v5889 = vxor.u32 %v5014, 2147483648
      %v5890 = vxor.u32 %v5015, 2147483648
      %v5891 = vxor.u32 %v5016, 2147483648
      %v5892 = vxor.u32 %v5017, 2147483648
      %v5893 = vxor.u32 %v5018, 2147483648
      %v5894 = vxor.u32 %v5019, 2147483648
      %v5895 = vxor.u32 %v5020, 2147483648
      %v5896 = vxor.u32 %v5021, 2147483648
      %v5897 = vxor.u32 %v5022, 2147483648
      %v5898 = vxor.u32 %v5023, 2147483648
      %v5899 = vxor.u32 %v5024, 2147483648
      %v5900 = vxor.u32 %v5025, 2147483648
      %v5901 = vxor.u32 %v5026, 2147483648
      %v5902 = vxor.u32 %v5027, 2147483648
      %v5903 = vxor.u32 %v5028, 2147483648
      %v5904 = vxor.u32 %v5029, 2147483648
      %v5905 = vxor.u32 %v5030, 2147483648
      %v5906 = vxor.u32 %v5031, 2147483648
      %v5907 = vxor.u32 %v5032, 2147483648
      %v5908 = vxor.u32 %v5033, 2147483648
      %v5909 = vxor.u32 %v5034, 2147483648
      %v5910 = vxor.u32 %v5035, 2147483648
      %v5911 = vxor.u32 %v5036, 2147483648
      %v5912 = vxor.u32 %v5037, 2147483648
      %v5913 = vxor.u32 %v5038, 2147483648
      %v5914 = vxor.u32 %v5039, 2147483648
      %v5915 = vmul.f32 %v5883, 1.442695
      %v5916 = vpow.pop %v5915
      %v5917 = vmul.f32 %v5884, 1.442695
      %v5918 = vpow.pop %v5917
      %v5919 = vmul.f32 %v5885, 1.442695
      %v5920 = vpow.pop %v5919
      %v5921 = vmul.f32 %v5886, 1.442695
      %v5922 = vpow.pop %v5921
      %v5923 = vmul.f32 %v5887, 1.442695
      %v5924 = vpow.pop %v5923
      %v5925 = vmul.f32 %v5888, 1.442695
      %v5926 = vpow.pop %v5925
      %v5927 = vmul.f32 %v5889, 1.442695
      %v5928 = vpow.pop %v5927
      %v5929 = vmul.f32 %v5890, 1.442695
      %v5930 = vpow.pop %v5929
      %v5931 = vmul.f32 %v5891, 1.442695
      %v5932 = vpow.pop %v5931
      %v5933 = vmul.f32 %v5892, 1.442695
      %v5934 = vpow.pop %v5933
      %v5935 = vmul.f32 %v5893, 1.442695
      %v5936 = vpow.pop %v5935
      %v5937 = vmul.f32 %v5894, 1.442695
      %v5938 = vpow.pop %v5937
      %v5939 = vmul.f32 %v5895, 1.442695
      %v5940 = vpow.pop %v5939
      %v5941 = vmul.f32 %v5896, 1.442695
      %v5942 = vpow.pop %v5941
      %v5943 = vmul.f32 %v5897, 1.442695
      %v5944 = vpow.pop %v5943
      %v5945 = vmul.f32 %v5898, 1.442695
      %v5946 = vpow.pop %v5945
      %v5947 = vmul.f32 %v5899, 1.442695
      %v5948 = vpow.pop %v5947
      %v5949 = vmul.f32 %v5900, 1.442695
      %v5950 = vpow.pop %v5949
      %v5951 = vmul.f32 %v5901, 1.442695
      %v5952 = vpow.pop %v5951
      %v5953 = vmul.f32 %v5902, 1.442695
      %v5954 = vpow.pop %v5953
      %v5955 = vmul.f32 %v5903, 1.442695
      %v5956 = vpow.pop %v5955
      %v5957 = vmul.f32 %v5904, 1.442695
      %v5958 = vpow.pop %v5957
      %v5959 = vmul.f32 %v5905, 1.442695
      %v5960 = vpow.pop %v5959
      %v5961 = vmul.f32 %v5906, 1.442695
      %v5962 = vpow.pop %v5961
      %v5963 = vmul.f32 %v5907, 1.442695
      %v5964 = vpow.pop %v5963
      %v5965 = vmul.f32 %v5908, 1.442695
      %v5966 = vpow.pop %v5965
      %v5967 = vmul.f32 %v5909, 1.442695
      %v5968 = vpow.pop %v5967
      %v5969 = vmul.f32 %v5910, 1.442695
      %v5970 = vpow.pop %v5969
      %v5971 = vmul.f32 %v5911, 1.442695
      %v5972 = vpow.pop %v5971
      %v5973 = vmul.f32 %v5912, 1.442695
      %v5974 = vpow.pop %v5973
      %v5975 = vmul.f32 %v5913, 1.442695
      %v5976 = vpow.pop %v5975
      %v5977 = vmul.f32 %v5914, 1.442695
      %v5978 = vpow.pop %v5977
      %v5979 = vadd.f32 %v5916, 1.0
      %v5980 = vadd.f32 %v5918, 1.0
      %v5981 = vadd.f32 %v5920, 1.0
      %v5982 = vadd.f32 %v5922, 1.0
      %v5983 = vadd.f32 %v5924, 1.0
      %v5984 = vadd.f32 %v5926, 1.0
      %v5985 = vadd.f32 %v5928, 1.0
      %v5986 = vadd.f32 %v5930, 1.0
      %v5987 = vadd.f32 %v5932, 1.0
      %v5988 = vadd.f32 %v5934, 1.0
      %v5989 = vadd.f32 %v5936, 1.0
      %v5990 = vadd.f32 %v5938, 1.0
      %v5991 = vadd.f32 %v5940, 1.0
      %v5992 = vadd.f32 %v5942, 1.0
      %v5993 = vadd.f32 %v5944, 1.0
      %v5994 = vadd.f32 %v5946, 1.0
      %v5995 = vadd.f32 %v5948, 1.0
      %v5996 = vadd.f32 %v5950, 1.0
      %v5997 = vadd.f32 %v5952, 1.0
      %v5998 = vadd.f32 %v5954, 1.0
      %v5999 = vadd.f32 %v5956, 1.0
      %v6000 = vadd.f32 %v5958, 1.0
      %v6001 = vadd.f32 %v5960, 1.0
      %v6002 = vadd.f32 %v5962, 1.0
      %v6003 = vadd.f32 %v5964, 1.0
      %v6004 = vadd.f32 %v5966, 1.0
      %v6005 = vadd.f32 %v5968, 1.0
      %v6006 = vadd.f32 %v5970, 1.0
      %v6007 = vadd.f32 %v5972, 1.0
      %v6008 = vadd.f32 %v5974, 1.0
      %v6009 = vadd.f32 %v5976, 1.0
      %v6010 = vadd.f32 %v5978, 1.0
      %v6011 = vrcp.pop %v5979
      %v6012 = vmul.f32 %v5979, %v6011
      %v6013 = vsub.f32 1.0, %v6012
      %v6014 = vmul.f32 %v6011, %v6013
      %v6015 = vadd.f32 %v6011, %v6014
      %vm6016 = vweird.f32 %v5979
      %vm6017 = vweird.f32 %v6011
      %vm6018 = vmor %vm6016, %vm6017
      %v6019 = vsel %vm6018, %v6011, %v6015
      %v6020 = vand.u32 2147483647, %v5979
      %vm6021 = vcmp.eq.f32.partialorder %v6020, 8.507059e+37
      %v6022 = vand.u32 %v5979, 2147483648
      %v6023 = vor.u32 1.1754944e-38, %v6022
      %v6024 = vsel %vm6021, %v6023, %v6019
      %v6025 = vmul.f32 1.0, %v6024
      %v6026 = vrcp.pop %v5980
      %v6027 = vmul.f32 %v5980, %v6026
      %v6028 = vsub.f32 1.0, %v6027
      %v6029 = vmul.f32 %v6026, %v6028
      %v6030 = vadd.f32 %v6026, %v6029
      %vm6031 = vweird.f32 %v5980
      %vm6032 = vweird.f32 %v6026
      %vm6033 = vmor %vm6031, %vm6032
      %v6034 = vsel %vm6033, %v6026, %v6030
      %v6035 = vand.u32 2147483647, %v5980
      %vm6036 = vcmp.eq.f32.partialorder %v6035, 8.507059e+37
      %v6037 = vand.u32 %v5980, 2147483648
      %v6038 = vor.u32 1.1754944e-38, %v6037
      %v6039 = vsel %vm6036, %v6038, %v6034
      %v6040 = vmul.f32 1.0, %v6039
      %v6041 = vrcp.pop %v5981
      %v6042 = vmul.f32 %v5981, %v6041
      %v6043 = vsub.f32 1.0, %v6042
      %v6044 = vmul.f32 %v6041, %v6043
      %v6045 = vadd.f32 %v6041, %v6044
      %vm6046 = vweird.f32 %v5981
      %vm6047 = vweird.f32 %v6041
      %vm6048 = vmor %vm6046, %vm6047
      %v6049 = vsel %vm6048, %v6041, %v6045
      %v6050 = vand.u32 2147483647, %v5981
      %vm6051 = vcmp.eq.f32.partialorder %v6050, 8.507059e+37
      %v6052 = vand.u32 %v5981, 2147483648
      %v6053 = vor.u32 1.1754944e-38, %v6052
      %v6054 = vsel %vm6051, %v6053, %v6049
      %v6055 = vmul.f32 1.0, %v6054
      %v6056 = vrcp.pop %v5982
      %v6057 = vmul.f32 %v5982, %v6056
      %v6058 = vsub.f32 1.0, %v6057
      %v6059 = vmul.f32 %v6056, %v6058
      %v6060 = vadd.f32 %v6056, %v6059
      %vm6061 = vweird.f32 %v5982
      %vm6062 = vweird.f32 %v6056
      %vm6063 = vmor %vm6061, %vm6062
      %v6064 = vsel %vm6063, %v6056, %v6060
      %v6065 = vand.u32 2147483647, %v5982
      %vm6066 = vcmp.eq.f32.partialorder %v6065, 8.507059e+37
      %v6067 = vand.u32 %v5982, 2147483648
      %v6068 = vor.u32 1.1754944e-38, %v6067
      %v6069 = vsel %vm6066, %v6068, %v6064
      %v6070 = vmul.f32 1.0, %v6069
      %v6071 = vrcp.pop %v5983
      %v6072 = vmul.f32 %v5983, %v6071
      %v6073 = vsub.f32 1.0, %v6072
      %v6074 = vmul.f32 %v6071, %v6073
      %v6075 = vadd.f32 %v6071, %v6074
      %vm6076 = vweird.f32 %v5983
      %vm6077 = vweird.f32 %v6071
      %vm6078 = vmor %vm6076, %vm6077
      %v6079 = vsel %vm6078, %v6071, %v6075
      %v6080 = vand.u32 2147483647, %v5983
      %vm6081 = vcmp.eq.f32.partialorder %v6080, 8.507059e+37
      %v6082 = vand.u32 %v5983, 2147483648
      %v6083 = vor.u32 1.1754944e-38, %v6082
      %v6084 = vsel %vm6081, %v6083, %v6079
      %v6085 = vmul.f32 1.0, %v6084
      %v6086 = vrcp.pop %v5984
      %v6087 = vmul.f32 %v5984, %v6086
      %v6088 = vsub.f32 1.0, %v6087
      %v6089 = vmul.f32 %v6086, %v6088
      %v6090 = vadd.f32 %v6086, %v6089
      %vm6091 = vweird.f32 %v5984
      %vm6092 = vweird.f32 %v6086
      %vm6093 = vmor %vm6091, %vm6092
      %v6094 = vsel %vm6093, %v6086, %v6090
      %v6095 = vand.u32 2147483647, %v5984
      %vm6096 = vcmp.eq.f32.partialorder %v6095, 8.507059e+37
      %v6097 = vand.u32 %v5984, 2147483648
      %v6098 = vor.u32 1.1754944e-38, %v6097
      %v6099 = vsel %vm6096, %v6098, %v6094
      %v6100 = vmul.f32 1.0, %v6099
      %v6101 = vrcp.pop %v5985
      %v6102 = vmul.f32 %v5985, %v6101
      %v6103 = vsub.f32 1.0, %v6102
      %v6104 = vmul.f32 %v6101, %v6103
      %v6105 = vadd.f32 %v6101, %v6104
      %vm6106 = vweird.f32 %v5985
      %vm6107 = vweird.f32 %v6101
      %vm6108 = vmor %vm6106, %vm6107
      %v6109 = vsel %vm6108, %v6101, %v6105
      %v6110 = vand.u32 2147483647, %v5985
      %vm6111 = vcmp.eq.f32.partialorder %v6110, 8.507059e+37
      %v6112 = vand.u32 %v5985, 2147483648
      %v6113 = vor.u32 1.1754944e-38, %v6112
      %v6114 = vsel %vm6111, %v6113, %v6109
      %v6115 = vmul.f32 1.0, %v6114
      %v6116 = vrcp.pop %v5986
      %v6117 = vmul.f32 %v5986, %v6116
      %v6118 = vsub.f32 1.0, %v6117
      %v6119 = vmul.f32 %v6116, %v6118
      %v6120 = vadd.f32 %v6116, %v6119
      %vm6121 = vweird.f32 %v5986
      %vm6122 = vweird.f32 %v6116
      %vm6123 = vmor %vm6121, %vm6122
      %v6124 = vsel %vm6123, %v6116, %v6120
      %v6125 = vand.u32 2147483647, %v5986
      %vm6126 = vcmp.eq.f32.partialorder %v6125, 8.507059e+37
      %v6127 = vand.u32 %v5986, 2147483648
      %v6128 = vor.u32 1.1754944e-38, %v6127
      %v6129 = vsel %vm6126, %v6128, %v6124
      %v6130 = vmul.f32 1.0, %v6129
      %v6131 = vrcp.pop %v5987
      %v6132 = vmul.f32 %v5987, %v6131
      %v6133 = vsub.f32 1.0, %v6132
      %v6134 = vmul.f32 %v6131, %v6133
      %v6135 = vadd.f32 %v6131, %v6134
      %vm6136 = vweird.f32 %v5987
      %vm6137 = vweird.f32 %v6131
      %vm6138 = vmor %vm6136, %vm6137
      %v6139 = vsel %vm6138, %v6131, %v6135
      %v6140 = vand.u32 2147483647, %v5987
      %vm6141 = vcmp.eq.f32.partialorder %v6140, 8.507059e+37
      %v6142 = vand.u32 %v5987, 2147483648
      %v6143 = vor.u32 1.1754944e-38, %v6142
      %v6144 = vsel %vm6141, %v6143, %v6139
      %v6145 = vmul.f32 1.0, %v6144
      %v6146 = vrcp.pop %v5988
      %v6147 = vmul.f32 %v5988, %v6146
      %v6148 = vsub.f32 1.0, %v6147
      %v6149 = vmul.f32 %v6146, %v6148
      %v6150 = vadd.f32 %v6146, %v6149
      %vm6151 = vweird.f32 %v5988
      %vm6152 = vweird.f32 %v6146
      %vm6153 = vmor %vm6151, %vm6152
      %v6154 = vsel %vm6153, %v6146, %v6150
      %v6155 = vand.u32 2147483647, %v5988
      %vm6156 = vcmp.eq.f32.partialorder %v6155, 8.507059e+37
      %v6157 = vand.u32 %v5988, 2147483648
      %v6158 = vor.u32 1.1754944e-38, %v6157
      %v6159 = vsel %vm6156, %v6158, %v6154
      %v6160 = vmul.f32 1.0, %v6159
      %v6161 = vrcp.pop %v5989
      %v6162 = vmul.f32 %v5989, %v6161
      %v6163 = vsub.f32 1.0, %v6162
      %v6164 = vmul.f32 %v6161, %v6163
      %v6165 = vadd.f32 %v6161, %v6164
      %vm6166 = vweird.f32 %v5989
      %vm6167 = vweird.f32 %v6161
      %vm6168 = vmor %vm6166, %vm6167
      %v6169 = vsel %vm6168, %v6161, %v6165
      %v6170 = vand.u32 2147483647, %v5989
      %vm6171 = vcmp.eq.f32.partialorder %v6170, 8.507059e+37
      %v6172 = vand.u32 %v5989, 2147483648
      %v6173 = vor.u32 1.1754944e-38, %v6172
      %v6174 = vsel %vm6171, %v6173, %v6169
      %v6175 = vmul.f32 1.0, %v6174
      %v6176 = vrcp.pop %v5990
      %v6177 = vmul.f32 %v5990, %v6176
      %v6178 = vsub.f32 1.0, %v6177
      %v6179 = vmul.f32 %v6176, %v6178
      %v6180 = vadd.f32 %v6176, %v6179
      %vm6181 = vweird.f32 %v5990
      %vm6182 = vweird.f32 %v6176
      %vm6183 = vmor %vm6181, %vm6182
      %v6184 = vsel %vm6183, %v6176, %v6180
      %v6185 = vand.u32 2147483647, %v5990
      %vm6186 = vcmp.eq.f32.partialorder %v6185, 8.507059e+37
      %v6187 = vand.u32 %v5990, 2147483648
      %v6188 = vor.u32 1.1754944e-38, %v6187
      %v6189 = vsel %vm6186, %v6188, %v6184
      %v6190 = vmul.f32 1.0, %v6189
      %v6191 = vrcp.pop %v5991
      %v6192 = vmul.f32 %v5991, %v6191
      %v6193 = vsub.f32 1.0, %v6192
      %v6194 = vmul.f32 %v6191, %v6193
      %v6195 = vadd.f32 %v6191, %v6194
      %vm6196 = vweird.f32 %v5991
      %vm6197 = vweird.f32 %v6191
      %vm6198 = vmor %vm6196, %vm6197
      %v6199 = vsel %vm6198, %v6191, %v6195
      %v6200 = vand.u32 2147483647, %v5991
      %vm6201 = vcmp.eq.f32.partialorder %v6200, 8.507059e+37
      %v6202 = vand.u32 %v5991, 2147483648
      %v6203 = vor.u32 1.1754944e-38, %v6202
      %v6204 = vsel %vm6201, %v6203, %v6199
      %v6205 = vmul.f32 1.0, %v6204
      %v6206 = vrcp.pop %v5992
      %v6207 = vmul.f32 %v5992, %v6206
      %v6208 = vsub.f32 1.0, %v6207
      %v6209 = vmul.f32 %v6206, %v6208
      %v6210 = vadd.f32 %v6206, %v6209
      %vm6211 = vweird.f32 %v5992
      %vm6212 = vweird.f32 %v6206
      %vm6213 = vmor %vm6211, %vm6212
      %v6214 = vsel %vm6213, %v6206, %v6210
      %v6215 = vand.u32 2147483647, %v5992
      %vm6216 = vcmp.eq.f32.partialorder %v6215, 8.507059e+37
      %v6217 = vand.u32 %v5992, 2147483648
      %v6218 = vor.u32 1.1754944e-38, %v6217
      %v6219 = vsel %vm6216, %v6218, %v6214
      %v6220 = vmul.f32 1.0, %v6219
      %v6221 = vrcp.pop %v5993
      %v6222 = vmul.f32 %v5993, %v6221
      %v6223 = vsub.f32 1.0, %v6222
      %v6224 = vmul.f32 %v6221, %v6223
      %v6225 = vadd.f32 %v6221, %v6224
      %vm6226 = vweird.f32 %v5993
      %vm6227 = vweird.f32 %v6221
      %vm6228 = vmor %vm6226, %vm6227
      %v6229 = vsel %vm6228, %v6221, %v6225
      %v6230 = vand.u32 2147483647, %v5993
      %vm6231 = vcmp.eq.f32.partialorder %v6230, 8.507059e+37
      %v6232 = vand.u32 %v5993, 2147483648
      %v6233 = vor.u32 1.1754944e-38, %v6232
      %v6234 = vsel %vm6231, %v6233, %v6229
      %v6235 = vmul.f32 1.0, %v6234
      %v6236 = vrcp.pop %v5994
      %v6237 = vmul.f32 %v5994, %v6236
      %v6238 = vsub.f32 1.0, %v6237
      %v6239 = vmul.f32 %v6236, %v6238
      %v6240 = vadd.f32 %v6236, %v6239
      %vm6241 = vweird.f32 %v5994
      %vm6242 = vweird.f32 %v6236
      %vm6243 = vmor %vm6241, %vm6242
      %v6244 = vsel %vm6243, %v6236, %v6240
      %v6245 = vand.u32 2147483647, %v5994
      %vm6246 = vcmp.eq.f32.partialorder %v6245, 8.507059e+37
      %v6247 = vand.u32 %v5994, 2147483648
      %v6248 = vor.u32 1.1754944e-38, %v6247
      %v6249 = vsel %vm6246, %v6248, %v6244
      %v6250 = vmul.f32 1.0, %v6249
      %v6251 = vrcp.pop %v5995
      %v6252 = vmul.f32 %v5995, %v6251
      %v6253 = vsub.f32 1.0, %v6252
      %v6254 = vmul.f32 %v6251, %v6253
      %v6255 = vadd.f32 %v6251, %v6254
      %vm6256 = vweird.f32 %v5995
      %vm6257 = vweird.f32 %v6251
      %vm6258 = vmor %vm6256, %vm6257
      %v6259 = vsel %vm6258, %v6251, %v6255
      %v6260 = vand.u32 2147483647, %v5995
      %vm6261 = vcmp.eq.f32.partialorder %v6260, 8.507059e+37
      %v6262 = vand.u32 %v5995, 2147483648
      %v6263 = vor.u32 1.1754944e-38, %v6262
      %v6264 = vsel %vm6261, %v6263, %v6259
      %v6265 = vmul.f32 1.0, %v6264
      %v6266 = vrcp.pop %v5996
      %v6267 = vmul.f32 %v5996, %v6266
      %v6268 = vsub.f32 1.0, %v6267
      %v6269 = vmul.f32 %v6266, %v6268
      %v6270 = vadd.f32 %v6266, %v6269
      %vm6271 = vweird.f32 %v5996
      %vm6272 = vweird.f32 %v6266
      %vm6273 = vmor %vm6271, %vm6272
      %v6274 = vsel %vm6273, %v6266, %v6270
      %v6275 = vand.u32 2147483647, %v5996
      %vm6276 = vcmp.eq.f32.partialorder %v6275, 8.507059e+37
      %v6277 = vand.u32 %v5996, 2147483648
      %v6278 = vor.u32 1.1754944e-38, %v6277
      %v6279 = vsel %vm6276, %v6278, %v6274
      %v6280 = vmul.f32 1.0, %v6279
      %v6281 = vrcp.pop %v5997
      %v6282 = vmul.f32 %v5997, %v6281
      %v6283 = vsub.f32 1.0, %v6282
      %v6284 = vmul.f32 %v6281, %v6283
      %v6285 = vadd.f32 %v6281, %v6284
      %vm6286 = vweird.f32 %v5997
      %vm6287 = vweird.f32 %v6281
      %vm6288 = vmor %vm6286, %vm6287
      %v6289 = vsel %vm6288, %v6281, %v6285
      %v6290 = vand.u32 2147483647, %v5997
      %vm6291 = vcmp.eq.f32.partialorder %v6290, 8.507059e+37
      %v6292 = vand.u32 %v5997, 2147483648
      %v6293 = vor.u32 1.1754944e-38, %v6292
      %v6294 = vsel %vm6291, %v6293, %v6289
      %v6295 = vmul.f32 1.0, %v6294
      %v6296 = vrcp.pop %v5998
      %v6297 = vmul.f32 %v5998, %v6296
      %v6298 = vsub.f32 1.0, %v6297
      %v6299 = vmul.f32 %v6296, %v6298
      %v6300 = vadd.f32 %v6296, %v6299
      %vm6301 = vweird.f32 %v5998
      %vm6302 = vweird.f32 %v6296
      %vm6303 = vmor %vm6301, %vm6302
      %v6304 = vsel %vm6303, %v6296, %v6300
      %v6305 = vand.u32 2147483647, %v5998
      %vm6306 = vcmp.eq.f32.partialorder %v6305, 8.507059e+37
      %v6307 = vand.u32 %v5998, 2147483648
      %v6308 = vor.u32 1.1754944e-38, %v6307
      %v6309 = vsel %vm6306, %v6308, %v6304
      %v6310 = vmul.f32 1.0, %v6309
      %v6311 = vrcp.pop %v5999
      %v6312 = vmul.f32 %v5999, %v6311
      %v6313 = vsub.f32 1.0, %v6312
      %v6314 = vmul.f32 %v6311, %v6313
      %v6315 = vadd.f32 %v6311, %v6314
      %vm6316 = vweird.f32 %v5999
      %vm6317 = vweird.f32 %v6311
      %vm6318 = vmor %vm6316, %vm6317
      %v6319 = vsel %vm6318, %v6311, %v6315
      %v6320 = vand.u32 2147483647, %v5999
      %vm6321 = vcmp.eq.f32.partialorder %v6320, 8.507059e+37
      %v6322 = vand.u32 %v5999, 2147483648
      %v6323 = vor.u32 1.1754944e-38, %v6322
      %v6324 = vsel %vm6321, %v6323, %v6319
      %v6325 = vmul.f32 1.0, %v6324
      %v6326 = vrcp.pop %v6000
      %v6327 = vmul.f32 %v6000, %v6326
      %v6328 = vsub.f32 1.0, %v6327
      %v6329 = vmul.f32 %v6326, %v6328
      %v6330 = vadd.f32 %v6326, %v6329
      %vm6331 = vweird.f32 %v6000
      %vm6332 = vweird.f32 %v6326
      %vm6333 = vmor %vm6331, %vm6332
      %v6334 = vsel %vm6333, %v6326, %v6330
      %v6335 = vand.u32 2147483647, %v6000
      %vm6336 = vcmp.eq.f32.partialorder %v6335, 8.507059e+37
      %v6337 = vand.u32 %v6000, 2147483648
      %v6338 = vor.u32 1.1754944e-38, %v6337
      %v6339 = vsel %vm6336, %v6338, %v6334
      %v6340 = vmul.f32 1.0, %v6339
      %v6341 = vrcp.pop %v6001
      %v6342 = vmul.f32 %v6001, %v6341
      %v6343 = vsub.f32 1.0, %v6342
      %v6344 = vmul.f32 %v6341, %v6343
      %v6345 = vadd.f32 %v6341, %v6344
      %vm6346 = vweird.f32 %v6001
      %vm6347 = vweird.f32 %v6341
      %vm6348 = vmor %vm6346, %vm6347
      %v6349 = vsel %vm6348, %v6341, %v6345
      %v6350 = vand.u32 2147483647, %v6001
      %vm6351 = vcmp.eq.f32.partialorder %v6350, 8.507059e+37
      %v6352 = vand.u32 %v6001, 2147483648
      %v6353 = vor.u32 1.1754944e-38, %v6352
      %v6354 = vsel %vm6351, %v6353, %v6349
      %v6355 = vmul.f32 1.0, %v6354
      %v6356 = vrcp.pop %v6002
      %v6357 = vmul.f32 %v6002, %v6356
      %v6358 = vsub.f32 1.0, %v6357
      %v6359 = vmul.f32 %v6356, %v6358
      %v6360 = vadd.f32 %v6356, %v6359
      %vm6361 = vweird.f32 %v6002
      %vm6362 = vweird.f32 %v6356
      %vm6363 = vmor %vm6361, %vm6362
      %v6364 = vsel %vm6363, %v6356, %v6360
      %v6365 = vand.u32 2147483647, %v6002
      %vm6366 = vcmp.eq.f32.partialorder %v6365, 8.507059e+37
      %v6367 = vand.u32 %v6002, 2147483648
      %v6368 = vor.u32 1.1754944e-38, %v6367
      %v6369 = vsel %vm6366, %v6368, %v6364
      %v6370 = vmul.f32 1.0, %v6369
      %v6371 = vrcp.pop %v6003
      %v6372 = vmul.f32 %v6003, %v6371
      %v6373 = vsub.f32 1.0, %v6372
      %v6374 = vmul.f32 %v6371, %v6373
      %v6375 = vadd.f32 %v6371, %v6374
      %vm6376 = vweird.f32 %v6003
      %vm6377 = vweird.f32 %v6371
      %vm6378 = vmor %vm6376, %vm6377
      %v6379 = vsel %vm6378, %v6371, %v6375
      %v6380 = vand.u32 2147483647, %v6003
      %vm6381 = vcmp.eq.f32.partialorder %v6380, 8.507059e+37
      %v6382 = vand.u32 %v6003, 2147483648
      %v6383 = vor.u32 1.1754944e-38, %v6382
      %v6384 = vsel %vm6381, %v6383, %v6379
      %v6385 = vmul.f32 1.0, %v6384
      %v6386 = vrcp.pop %v6004
      %v6387 = vmul.f32 %v6004, %v6386
      %v6388 = vsub.f32 1.0, %v6387
      %v6389 = vmul.f32 %v6386, %v6388
      %v6390 = vadd.f32 %v6386, %v6389
      %vm6391 = vweird.f32 %v6004
      %vm6392 = vweird.f32 %v6386
      %vm6393 = vmor %vm6391, %vm6392
      %v6394 = vsel %vm6393, %v6386, %v6390
      %v6395 = vand.u32 2147483647, %v6004
      %vm6396 = vcmp.eq.f32.partialorder %v6395, 8.507059e+37
      %v6397 = vand.u32 %v6004, 2147483648
      %v6398 = vor.u32 1.1754944e-38, %v6397
      %v6399 = vsel %vm6396, %v6398, %v6394
      %v6400 = vmul.f32 1.0, %v6399
      %v6401 = vrcp.pop %v6005
      %v6402 = vmul.f32 %v6005, %v6401
      %v6403 = vsub.f32 1.0, %v6402
      %v6404 = vmul.f32 %v6401, %v6403
      %v6405 = vadd.f32 %v6401, %v6404
      %vm6406 = vweird.f32 %v6005
      %vm6407 = vweird.f32 %v6401
      %vm6408 = vmor %vm6406, %vm6407
      %v6409 = vsel %vm6408, %v6401, %v6405
      %v6410 = vand.u32 2147483647, %v6005
      %vm6411 = vcmp.eq.f32.partialorder %v6410, 8.507059e+37
      %v6412 = vand.u32 %v6005, 2147483648
      %v6413 = vor.u32 1.1754944e-38, %v6412
      %v6414 = vsel %vm6411, %v6413, %v6409
      %v6415 = vmul.f32 1.0, %v6414
      %v6416 = vrcp.pop %v6006
      %v6417 = vmul.f32 %v6006, %v6416
      %v6418 = vsub.f32 1.0, %v6417
      %v6419 = vmul.f32 %v6416, %v6418
      %v6420 = vadd.f32 %v6416, %v6419
      %vm6421 = vweird.f32 %v6006
      %vm6422 = vweird.f32 %v6416
      %vm6423 = vmor %vm6421, %vm6422
      %v6424 = vsel %vm6423, %v6416, %v6420
      %v6425 = vand.u32 2147483647, %v6006
      %vm6426 = vcmp.eq.f32.partialorder %v6425, 8.507059e+37
      %v6427 = vand.u32 %v6006, 2147483648
      %v6428 = vor.u32 1.1754944e-38, %v6427
      %v6429 = vsel %vm6426, %v6428, %v6424
      %v6430 = vmul.f32 1.0, %v6429
      %v6431 = vrcp.pop %v6007
      %v6432 = vmul.f32 %v6007, %v6431
      %v6433 = vsub.f32 1.0, %v6432
      %v6434 = vmul.f32 %v6431, %v6433
      %v6435 = vadd.f32 %v6431, %v6434
      %vm6436 = vweird.f32 %v6007
      %vm6437 = vweird.f32 %v6431
      %vm6438 = vmor %vm6436, %vm6437
      %v6439 = vsel %vm6438, %v6431, %v6435
      %v6440 = vand.u32 2147483647, %v6007
      %vm6441 = vcmp.eq.f32.partialorder %v6440, 8.507059e+37
      %v6442 = vand.u32 %v6007, 2147483648
      %v6443 = vor.u32 1.1754944e-38, %v6442
      %v6444 = vsel %vm6441, %v6443, %v6439
      %v6445 = vmul.f32 1.0, %v6444
      %v6446 = vrcp.pop %v6008
      %v6447 = vmul.f32 %v6008, %v6446
      %v6448 = vsub.f32 1.0, %v6447
      %v6449 = vmul.f32 %v6446, %v6448
      %v6450 = vadd.f32 %v6446, %v6449
      %vm6451 = vweird.f32 %v6008
      %vm6452 = vweird.f32 %v6446
      %vm6453 = vmor %vm6451, %vm6452
      %v6454 = vsel %vm6453, %v6446, %v6450
      %v6455 = vand.u32 2147483647, %v6008
      %vm6456 = vcmp.eq.f32.partialorder %v6455, 8.507059e+37
      %v6457 = vand.u32 %v6008, 2147483648
      %v6458 = vor.u32 1.1754944e-38, %v6457
      %v6459 = vsel %vm6456, %v6458, %v6454
      %v6460 = vmul.f32 1.0, %v6459
      %v6461 = vrcp.pop %v6009
      %v6462 = vmul.f32 %v6009, %v6461
      %v6463 = vsub.f32 1.0, %v6462
      %v6464 = vmul.f32 %v6461, %v6463
      %v6465 = vadd.f32 %v6461, %v6464
      %vm6466 = vweird.f32 %v6009
      %vm6467 = vweird.f32 %v6461
      %vm6468 = vmor %vm6466, %vm6467
      %v6469 = vsel %vm6468, %v6461, %v6465
      %v6470 = vand.u32 2147483647, %v6009
      %vm6471 = vcmp.eq.f32.partialorder %v6470, 8.507059e+37
      %v6472 = vand.u32 %v6009, 2147483648
      %v6473 = vor.u32 1.1754944e-38, %v6472
      %v6474 = vsel %vm6471, %v6473, %v6469
      %v6475 = vmul.f32 1.0, %v6474
      %v6476 = vrcp.pop %v6010
      %v6477 = vmul.f32 %v6010, %v6476
      %v6478 = vsub.f32 1.0, %v6477
      %v6479 = vmul.f32 %v6476, %v6478
      %v6480 = vadd.f32 %v6476, %v6479
      %vm6481 = vweird.f32 %v6010
      %vm6482 = vweird.f32 %v6476
      %vm6483 = vmor %vm6481, %vm6482
      %v6484 = vsel %vm6483, %v6476, %v6480
      %v6485 = vand.u32 2147483647, %v6010
      %vm6486 = vcmp.eq.f32.partialorder %v6485, 8.507059e+37
      %v6487 = vand.u32 %v6010, 2147483648
      %v6488 = vor.u32 1.1754944e-38, %v6487
      %v6489 = vsel %vm6486, %v6488, %v6484
      %v6490 = vmul.f32 1.0, %v6489
      %v6491 = vxor.u32 %v5289, 2147483648
      %v6492 = vxor.u32 %v5290, 2147483648
      %v6493 = vxor.u32 %v5291, 2147483648
      %v6494 = vxor.u32 %v5292, 2147483648
      %v6495 = vxor.u32 %v5293, 2147483648
      %v6496 = vxor.u32 %v5294, 2147483648
      %v6497 = vxor.u32 %v5295, 2147483648
      %v6498 = vxor.u32 %v5296, 2147483648
      %v6499 = vxor.u32 %v5297, 2147483648
      %v6500 = vxor.u32 %v5298, 2147483648
      %v6501 = vxor.u32 %v5299, 2147483648
      %v6502 = vxor.u32 %v5300, 2147483648
      %v6503 = vxor.u32 %v5301, 2147483648
      %v6504 = vxor.u32 %v5302, 2147483648
      %v6505 = vxor.u32 %v5303, 2147483648
      %v6506 = vxor.u32 %v5304, 2147483648
      %v6507 = vxor.u32 %v5305, 2147483648
      %v6508 = vxor.u32 %v5306, 2147483648
      %v6509 = vxor.u32 %v5307, 2147483648
      %v6510 = vxor.u32 %v5308, 2147483648
      %v6511 = vxor.u32 %v5309, 2147483648
      %v6512 = vxor.u32 %v5310, 2147483648
      %v6513 = vxor.u32 %v5311, 2147483648
      %v6514 = vxor.u32 %v5312, 2147483648
      %v6515 = vxor.u32 %v5313, 2147483648
      %v6516 = vxor.u32 %v5314, 2147483648
      %v6517 = vxor.u32 %v5315, 2147483648
      %v6518 = vxor.u32 %v5316, 2147483648
      %v6519 = vxor.u32 %v5317, 2147483648
      %v6520 = vxor.u32 %v5318, 2147483648
      %v6521 = vxor.u32 %v5319, 2147483648
      %v6522 = vxor.u32 %v5320, 2147483648
      %v6523 = vmul.f32 %v6491, 1.442695
      %v6524 = vpow.pop %v6523
      %v6525 = vmul.f32 %v6492, 1.442695
      %v6526 = vpow.pop %v6525
      %v6527 = vmul.f32 %v6493, 1.442695
      %v6528 = vpow.pop %v6527
      %v6529 = vmul.f32 %v6494, 1.442695
      %v6530 = vpow.pop %v6529
      %v6531 = vmul.f32 %v6495, 1.442695
      %v6532 = vpow.pop %v6531
      %v6533 = vmul.f32 %v6496, 1.442695
      %v6534 = vpow.pop %v6533
      %v6535 = vmul.f32 %v6497, 1.442695
      %v6536 = vpow.pop %v6535
      %v6537 = vmul.f32 %v6498, 1.442695
      %v6538 = vpow.pop %v6537
      %v6539 = vmul.f32 %v6499, 1.442695
      %v6540 = vpow.pop %v6539
      %v6541 = vmul.f32 %v6500, 1.442695
      %v6542 = vpow.pop %v6541
      %v6543 = vmul.f32 %v6501, 1.442695
      %v6544 = vpow.pop %v6543
      %v6545 = vmul.f32 %v6502, 1.442695
      %v6546 = vpow.pop %v6545
      %v6547 = vmul.f32 %v6503, 1.442695
      %v6548 = vpow.pop %v6547
      %v6549 = vmul.f32 %v6504, 1.442695
      %v6550 = vpow.pop %v6549
      %v6551 = vmul.f32 %v6505, 1.442695
      %v6552 = vpow.pop %v6551
      %v6553 = vmul.f32 %v6506, 1.442695
      %v6554 = vpow.pop %v6553
      %v6555 = vmul.f32 %v6507, 1.442695
      %v6556 = vpow.pop %v6555
      %v6557 = vmul.f32 %v6508, 1.442695
      %v6558 = vpow.pop %v6557
      %v6559 = vmul.f32 %v6509, 1.442695
      %v6560 = vpow.pop %v6559
      %v6561 = vmul.f32 %v6510, 1.442695
      %v6562 = vpow.pop %v6561
      %v6563 = vmul.f32 %v6511, 1.442695
      %v6564 = vpow.pop %v6563
      %v6565 = vmul.f32 %v6512, 1.442695
      %v6566 = vpow.pop %v6565
      %v6567 = vmul.f32 %v6513, 1.442695
      %v6568 = vpow.pop %v6567
      %v6569 = vmul.f32 %v6514, 1.442695
      %v6570 = vpow.pop %v6569
      %v6571 = vmul.f32 %v6515, 1.442695
      %v6572 = vpow.pop %v6571
      %v6573 = vmul.f32 %v6516, 1.442695
      %v6574 = vpow.pop %v6573
      %v6575 = vmul.f32 %v6517, 1.442695
      %v6576 = vpow.pop %v6575
      %v6577 = vmul.f32 %v6518, 1.442695
      %v6578 = vpow.pop %v6577
      %v6579 = vmul.f32 %v6519, 1.442695
      %v6580 = vpow.pop %v6579
      %v6581 = vmul.f32 %v6520, 1.442695
      %v6582 = vpow.pop %v6581
      %v6583 = vmul.f32 %v6521, 1.442695
      %v6584 = vpow.pop %v6583
      %v6585 = vmul.f32 %v6522, 1.442695
      %v6586 = vpow.pop %v6585
      %v6587 = vadd.f32 %v6524, 1.0
      %v6588 = vadd.f32 %v6526, 1.0
      %v6589 = vadd.f32 %v6528, 1.0
      %v6590 = vadd.f32 %v6530, 1.0
      %v6591 = vadd.f32 %v6532, 1.0
      %v6592 = vadd.f32 %v6534, 1.0
      %v6593 = vadd.f32 %v6536, 1.0
      %v6594 = vadd.f32 %v6538, 1.0
      %v6595 = vadd.f32 %v6540, 1.0
      %v6596 = vadd.f32 %v6542, 1.0
      %v6597 = vadd.f32 %v6544, 1.0
      %v6598 = vadd.f32 %v6546, 1.0
      %v6599 = vadd.f32 %v6548, 1.0
      %v6600 = vadd.f32 %v6550, 1.0
      %v6601 = vadd.f32 %v6552, 1.0
      %v6602 = vadd.f32 %v6554, 1.0
      %v6603 = vadd.f32 %v6556, 1.0
      %v6604 = vadd.f32 %v6558, 1.0
      %v6605 = vadd.f32 %v6560, 1.0
      %v6606 = vadd.f32 %v6562, 1.0
      %v6607 = vadd.f32 %v6564, 1.0
      %v6608 = vadd.f32 %v6566, 1.0
      %v6609 = vadd.f32 %v6568, 1.0
      %v6610 = vadd.f32 %v6570, 1.0
      %v6611 = vadd.f32 %v6572, 1.0
      %v6612 = vadd.f32 %v6574, 1.0
      %v6613 = vadd.f32 %v6576, 1.0
      %v6614 = vadd.f32 %v6578, 1.0
      %v6615 = vadd.f32 %v6580, 1.0
      %v6616 = vadd.f32 %v6582, 1.0
      %v6617 = vadd.f32 %v6584, 1.0
      %v6618 = vadd.f32 %v6586, 1.0
      %v6619 = vrcp.pop %v6587
      %v6620 = vmul.f32 %v6587, %v6619
      %v6621 = vsub.f32 1.0, %v6620
      %v6622 = vmul.f32 %v6619, %v6621
      %v6623 = vadd.f32 %v6619, %v6622
      %vm6624 = vweird.f32 %v6587
      %vm6625 = vweird.f32 %v6619
      %vm6626 = vmor %vm6624, %vm6625
      %v6627 = vsel %vm6626, %v6619, %v6623
      %v6628 = vand.u32 2147483647, %v6587
      %vm6629 = vcmp.eq.f32.partialorder %v6628, 8.507059e+37
      %v6630 = vand.u32 %v6587, 2147483648
      %v6631 = vor.u32 1.1754944e-38, %v6630
      %v6632 = vsel %vm6629, %v6631, %v6627
      %v6633 = vmul.f32 1.0, %v6632
      %v6634 = vrcp.pop %v6588
      %v6635 = vmul.f32 %v6588, %v6634
      %v6636 = vsub.f32 1.0, %v6635
      %v6637 = vmul.f32 %v6634, %v6636
      %v6638 = vadd.f32 %v6634, %v6637
      %vm6639 = vweird.f32 %v6588
      %vm6640 = vweird.f32 %v6634
      %vm6641 = vmor %vm6639, %vm6640
      %v6642 = vsel %vm6641, %v6634, %v6638
      %v6643 = vand.u32 2147483647, %v6588
      %vm6644 = vcmp.eq.f32.partialorder %v6643, 8.507059e+37
      %v6645 = vand.u32 %v6588, 2147483648
      %v6646 = vor.u32 1.1754944e-38, %v6645
      %v6647 = vsel %vm6644, %v6646, %v6642
      %v6648 = vmul.f32 1.0, %v6647
      %v6649 = vrcp.pop %v6589
      %v6650 = vmul.f32 %v6589, %v6649
      %v6651 = vsub.f32 1.0, %v6650
      %v6652 = vmul.f32 %v6649, %v6651
      %v6653 = vadd.f32 %v6649, %v6652
      %vm6654 = vweird.f32 %v6589
      %vm6655 = vweird.f32 %v6649
      %vm6656 = vmor %vm6654, %vm6655
      %v6657 = vsel %vm6656, %v6649, %v6653
      %v6658 = vand.u32 2147483647, %v6589
      %vm6659 = vcmp.eq.f32.partialorder %v6658, 8.507059e+37
      %v6660 = vand.u32 %v6589, 2147483648
      %v6661 = vor.u32 1.1754944e-38, %v6660
      %v6662 = vsel %vm6659, %v6661, %v6657
      %v6663 = vmul.f32 1.0, %v6662
      %v6664 = vrcp.pop %v6590
      %v6665 = vmul.f32 %v6590, %v6664
      %v6666 = vsub.f32 1.0, %v6665
      %v6667 = vmul.f32 %v6664, %v6666
      %v6668 = vadd.f32 %v6664, %v6667
      %vm6669 = vweird.f32 %v6590
      %vm6670 = vweird.f32 %v6664
      %vm6671 = vmor %vm6669, %vm6670
      %v6672 = vsel %vm6671, %v6664, %v6668
      %v6673 = vand.u32 2147483647, %v6590
      %vm6674 = vcmp.eq.f32.partialorder %v6673, 8.507059e+37
      %v6675 = vand.u32 %v6590, 2147483648
      %v6676 = vor.u32 1.1754944e-38, %v6675
      %v6677 = vsel %vm6674, %v6676, %v6672
      %v6678 = vmul.f32 1.0, %v6677
      %v6679 = vrcp.pop %v6591
      %v6680 = vmul.f32 %v6591, %v6679
      %v6681 = vsub.f32 1.0, %v6680
      %v6682 = vmul.f32 %v6679, %v6681
      %v6683 = vadd.f32 %v6679, %v6682
      %vm6684 = vweird.f32 %v6591
      %vm6685 = vweird.f32 %v6679
      %vm6686 = vmor %vm6684, %vm6685
      %v6687 = vsel %vm6686, %v6679, %v6683
      %v6688 = vand.u32 2147483647, %v6591
      %vm6689 = vcmp.eq.f32.partialorder %v6688, 8.507059e+37
      %v6690 = vand.u32 %v6591, 2147483648
      %v6691 = vor.u32 1.1754944e-38, %v6690
      %v6692 = vsel %vm6689, %v6691, %v6687
      %v6693 = vmul.f32 1.0, %v6692
      %v6694 = vrcp.pop %v6592
      %v6695 = vmul.f32 %v6592, %v6694
      %v6696 = vsub.f32 1.0, %v6695
      %v6697 = vmul.f32 %v6694, %v6696
      %v6698 = vadd.f32 %v6694, %v6697
      %vm6699 = vweird.f32 %v6592
      %vm6700 = vweird.f32 %v6694
      %vm6701 = vmor %vm6699, %vm6700
      %v6702 = vsel %vm6701, %v6694, %v6698
      %v6703 = vand.u32 2147483647, %v6592
      %vm6704 = vcmp.eq.f32.partialorder %v6703, 8.507059e+37
      %v6705 = vand.u32 %v6592, 2147483648
      %v6706 = vor.u32 1.1754944e-38, %v6705
      %v6707 = vsel %vm6704, %v6706, %v6702
      %v6708 = vmul.f32 1.0, %v6707
      %v6709 = vrcp.pop %v6593
      %v6710 = vmul.f32 %v6593, %v6709
      %v6711 = vsub.f32 1.0, %v6710
      %v6712 = vmul.f32 %v6709, %v6711
      %v6713 = vadd.f32 %v6709, %v6712
      %vm6714 = vweird.f32 %v6593
      %vm6715 = vweird.f32 %v6709
      %vm6716 = vmor %vm6714, %vm6715
      %v6717 = vsel %vm6716, %v6709, %v6713
      %v6718 = vand.u32 2147483647, %v6593
      %vm6719 = vcmp.eq.f32.partialorder %v6718, 8.507059e+37
      %v6720 = vand.u32 %v6593, 2147483648
      %v6721 = vor.u32 1.1754944e-38, %v6720
      %v6722 = vsel %vm6719, %v6721, %v6717
      %v6723 = vmul.f32 1.0, %v6722
      %v6724 = vrcp.pop %v6594
      %v6725 = vmul.f32 %v6594, %v6724
      %v6726 = vsub.f32 1.0, %v6725
      %v6727 = vmul.f32 %v6724, %v6726
      %v6728 = vadd.f32 %v6724, %v6727
      %vm6729 = vweird.f32 %v6594
      %vm6730 = vweird.f32 %v6724
      %vm6731 = vmor %vm6729, %vm6730
      %v6732 = vsel %vm6731, %v6724, %v6728
      %v6733 = vand.u32 2147483647, %v6594
      %vm6734 = vcmp.eq.f32.partialorder %v6733, 8.507059e+37
      %v6735 = vand.u32 %v6594, 2147483648
      %v6736 = vor.u32 1.1754944e-38, %v6735
      %v6737 = vsel %vm6734, %v6736, %v6732
      %v6738 = vmul.f32 1.0, %v6737
      %v6739 = vrcp.pop %v6595
      %v6740 = vmul.f32 %v6595, %v6739
      %v6741 = vsub.f32 1.0, %v6740
      %v6742 = vmul.f32 %v6739, %v6741
      %v6743 = vadd.f32 %v6739, %v6742
      %vm6744 = vweird.f32 %v6595
      %vm6745 = vweird.f32 %v6739
      %vm6746 = vmor %vm6744, %vm6745
      %v6747 = vsel %vm6746, %v6739, %v6743
      %v6748 = vand.u32 2147483647, %v6595
      %vm6749 = vcmp.eq.f32.partialorder %v6748, 8.507059e+37
      %v6750 = vand.u32 %v6595, 2147483648
      %v6751 = vor.u32 1.1754944e-38, %v6750
      %v6752 = vsel %vm6749, %v6751, %v6747
      %v6753 = vmul.f32 1.0, %v6752
      %v6754 = vrcp.pop %v6596
      %v6755 = vmul.f32 %v6596, %v6754
      %v6756 = vsub.f32 1.0, %v6755
      %v6757 = vmul.f32 %v6754, %v6756
      %v6758 = vadd.f32 %v6754, %v6757
      %vm6759 = vweird.f32 %v6596
      %vm6760 = vweird.f32 %v6754
      %vm6761 = vmor %vm6759, %vm6760
      %v6762 = vsel %vm6761, %v6754, %v6758
      %v6763 = vand.u32 2147483647, %v6596
      %vm6764 = vcmp.eq.f32.partialorder %v6763, 8.507059e+37
      %v6765 = vand.u32 %v6596, 2147483648
      %v6766 = vor.u32 1.1754944e-38, %v6765
      %v6767 = vsel %vm6764, %v6766, %v6762
      %v6768 = vmul.f32 1.0, %v6767
      %v6769 = vrcp.pop %v6597
      %v6770 = vmul.f32 %v6597, %v6769
      %v6771 = vsub.f32 1.0, %v6770
      %v6772 = vmul.f32 %v6769, %v6771
      %v6773 = vadd.f32 %v6769, %v6772
      %vm6774 = vweird.f32 %v6597
      %vm6775 = vweird.f32 %v6769
      %vm6776 = vmor %vm6774, %vm6775
      %v6777 = vsel %vm6776, %v6769, %v6773
      %v6778 = vand.u32 2147483647, %v6597
      %vm6779 = vcmp.eq.f32.partialorder %v6778, 8.507059e+37
      %v6780 = vand.u32 %v6597, 2147483648
      %v6781 = vor.u32 1.1754944e-38, %v6780
      %v6782 = vsel %vm6779, %v6781, %v6777
      %v6783 = vmul.f32 1.0, %v6782
      %v6784 = vrcp.pop %v6598
      %v6785 = vmul.f32 %v6598, %v6784
      %v6786 = vsub.f32 1.0, %v6785
      %v6787 = vmul.f32 %v6784, %v6786
      %v6788 = vadd.f32 %v6784, %v6787
      %vm6789 = vweird.f32 %v6598
      %vm6790 = vweird.f32 %v6784
      %vm6791 = vmor %vm6789, %vm6790
      %v6792 = vsel %vm6791, %v6784, %v6788
      %v6793 = vand.u32 2147483647, %v6598
      %vm6794 = vcmp.eq.f32.partialorder %v6793, 8.507059e+37
      %v6795 = vand.u32 %v6598, 2147483648
      %v6796 = vor.u32 1.1754944e-38, %v6795
      %v6797 = vsel %vm6794, %v6796, %v6792
      %v6798 = vmul.f32 1.0, %v6797
      %v6799 = vrcp.pop %v6599
      %v6800 = vmul.f32 %v6599, %v6799
      %v6801 = vsub.f32 1.0, %v6800
      %v6802 = vmul.f32 %v6799, %v6801
      %v6803 = vadd.f32 %v6799, %v6802
      %vm6804 = vweird.f32 %v6599
      %vm6805 = vweird.f32 %v6799
      %vm6806 = vmor %vm6804, %vm6805
      %v6807 = vsel %vm6806, %v6799, %v6803
      %v6808 = vand.u32 2147483647, %v6599
      %vm6809 = vcmp.eq.f32.partialorder %v6808, 8.507059e+37
      %v6810 = vand.u32 %v6599, 2147483648
      %v6811 = vor.u32 1.1754944e-38, %v6810
      %v6812 = vsel %vm6809, %v6811, %v6807
      %v6813 = vmul.f32 1.0, %v6812
      %v6814 = vrcp.pop %v6600
      %v6815 = vmul.f32 %v6600, %v6814
      %v6816 = vsub.f32 1.0, %v6815
      %v6817 = vmul.f32 %v6814, %v6816
      %v6818 = vadd.f32 %v6814, %v6817
      %vm6819 = vweird.f32 %v6600
      %vm6820 = vweird.f32 %v6814
      %vm6821 = vmor %vm6819, %vm6820
      %v6822 = vsel %vm6821, %v6814, %v6818
      %v6823 = vand.u32 2147483647, %v6600
      %vm6824 = vcmp.eq.f32.partialorder %v6823, 8.507059e+37
      %v6825 = vand.u32 %v6600, 2147483648
      %v6826 = vor.u32 1.1754944e-38, %v6825
      %v6827 = vsel %vm6824, %v6826, %v6822
      %v6828 = vmul.f32 1.0, %v6827
      %v6829 = vrcp.pop %v6601
      %v6830 = vmul.f32 %v6601, %v6829
      %v6831 = vsub.f32 1.0, %v6830
      %v6832 = vmul.f32 %v6829, %v6831
      %v6833 = vadd.f32 %v6829, %v6832
      %vm6834 = vweird.f32 %v6601
      %vm6835 = vweird.f32 %v6829
      %vm6836 = vmor %vm6834, %vm6835
      %v6837 = vsel %vm6836, %v6829, %v6833
      %v6838 = vand.u32 2147483647, %v6601
      %vm6839 = vcmp.eq.f32.partialorder %v6838, 8.507059e+37
      %v6840 = vand.u32 %v6601, 2147483648
      %v6841 = vor.u32 1.1754944e-38, %v6840
      %v6842 = vsel %vm6839, %v6841, %v6837
      %v6843 = vmul.f32 1.0, %v6842
      %v6844 = vrcp.pop %v6602
      %v6845 = vmul.f32 %v6602, %v6844
      %v6846 = vsub.f32 1.0, %v6845
      %v6847 = vmul.f32 %v6844, %v6846
      %v6848 = vadd.f32 %v6844, %v6847
      %vm6849 = vweird.f32 %v6602
      %vm6850 = vweird.f32 %v6844
      %vm6851 = vmor %vm6849, %vm6850
      %v6852 = vsel %vm6851, %v6844, %v6848
      %v6853 = vand.u32 2147483647, %v6602
      %vm6854 = vcmp.eq.f32.partialorder %v6853, 8.507059e+37
      %v6855 = vand.u32 %v6602, 2147483648
      %v6856 = vor.u32 1.1754944e-38, %v6855
      %v6857 = vsel %vm6854, %v6856, %v6852
      %v6858 = vmul.f32 1.0, %v6857
      %v6859 = vrcp.pop %v6603
      %v6860 = vmul.f32 %v6603, %v6859
      %v6861 = vsub.f32 1.0, %v6860
      %v6862 = vmul.f32 %v6859, %v6861
      %v6863 = vadd.f32 %v6859, %v6862
      %vm6864 = vweird.f32 %v6603
      %vm6865 = vweird.f32 %v6859
      %vm6866 = vmor %vm6864, %vm6865
      %v6867 = vsel %vm6866, %v6859, %v6863
      %v6868 = vand.u32 2147483647, %v6603
      %vm6869 = vcmp.eq.f32.partialorder %v6868, 8.507059e+37
      %v6870 = vand.u32 %v6603, 2147483648
      %v6871 = vor.u32 1.1754944e-38, %v6870
      %v6872 = vsel %vm6869, %v6871, %v6867
      %v6873 = vmul.f32 1.0, %v6872
      %v6874 = vrcp.pop %v6604
      %v6875 = vmul.f32 %v6604, %v6874
      %v6876 = vsub.f32 1.0, %v6875
      %v6877 = vmul.f32 %v6874, %v6876
      %v6878 = vadd.f32 %v6874, %v6877
      %vm6879 = vweird.f32 %v6604
      %vm6880 = vweird.f32 %v6874
      %vm6881 = vmor %vm6879, %vm6880
      %v6882 = vsel %vm6881, %v6874, %v6878
      %v6883 = vand.u32 2147483647, %v6604
      %vm6884 = vcmp.eq.f32.partialorder %v6883, 8.507059e+37
      %v6885 = vand.u32 %v6604, 2147483648
      %v6886 = vor.u32 1.1754944e-38, %v6885
      %v6887 = vsel %vm6884, %v6886, %v6882
      %v6888 = vmul.f32 1.0, %v6887
      %v6889 = vrcp.pop %v6605
      %v6890 = vmul.f32 %v6605, %v6889
      %v6891 = vsub.f32 1.0, %v6890
      %v6892 = vmul.f32 %v6889, %v6891
      %v6893 = vadd.f32 %v6889, %v6892
      %vm6894 = vweird.f32 %v6605
      %vm6895 = vweird.f32 %v6889
      %vm6896 = vmor %vm6894, %vm6895
      %v6897 = vsel %vm6896, %v6889, %v6893
      %v6898 = vand.u32 2147483647, %v6605
      %vm6899 = vcmp.eq.f32.partialorder %v6898, 8.507059e+37
      %v6900 = vand.u32 %v6605, 2147483648
      %v6901 = vor.u32 1.1754944e-38, %v6900
      %v6902 = vsel %vm6899, %v6901, %v6897
      %v6903 = vmul.f32 1.0, %v6902
      %v6904 = vrcp.pop %v6606
      %v6905 = vmul.f32 %v6606, %v6904
      %v6906 = vsub.f32 1.0, %v6905
      %v6907 = vmul.f32 %v6904, %v6906
      %v6908 = vadd.f32 %v6904, %v6907
      %vm6909 = vweird.f32 %v6606
      %vm6910 = vweird.f32 %v6904
      %vm6911 = vmor %vm6909, %vm6910
      %v6912 = vsel %vm6911, %v6904, %v6908
      %v6913 = vand.u32 2147483647, %v6606
      %vm6914 = vcmp.eq.f32.partialorder %v6913, 8.507059e+37
      %v6915 = vand.u32 %v6606, 2147483648
      %v6916 = vor.u32 1.1754944e-38, %v6915
      %v6917 = vsel %vm6914, %v6916, %v6912
      %v6918 = vmul.f32 1.0, %v6917
      %v6919 = vrcp.pop %v6607
      %v6920 = vmul.f32 %v6607, %v6919
      %v6921 = vsub.f32 1.0, %v6920
      %v6922 = vmul.f32 %v6919, %v6921
      %v6923 = vadd.f32 %v6919, %v6922
      %vm6924 = vweird.f32 %v6607
      %vm6925 = vweird.f32 %v6919
      %vm6926 = vmor %vm6924, %vm6925
      %v6927 = vsel %vm6926, %v6919, %v6923
      %v6928 = vand.u32 2147483647, %v6607
      %vm6929 = vcmp.eq.f32.partialorder %v6928, 8.507059e+37
      %v6930 = vand.u32 %v6607, 2147483648
      %v6931 = vor.u32 1.1754944e-38, %v6930
      %v6932 = vsel %vm6929, %v6931, %v6927
      %v6933 = vmul.f32 1.0, %v6932
      %v6934 = vrcp.pop %v6608
      %v6935 = vmul.f32 %v6608, %v6934
      %v6936 = vsub.f32 1.0, %v6935
      %v6937 = vmul.f32 %v6934, %v6936
      %v6938 = vadd.f32 %v6934, %v6937
      %vm6939 = vweird.f32 %v6608
      %vm6940 = vweird.f32 %v6934
      %vm6941 = vmor %vm6939, %vm6940
      %v6942 = vsel %vm6941, %v6934, %v6938
      %v6943 = vand.u32 2147483647, %v6608
      %vm6944 = vcmp.eq.f32.partialorder %v6943, 8.507059e+37
      %v6945 = vand.u32 %v6608, 2147483648
      %v6946 = vor.u32 1.1754944e-38, %v6945
      %v6947 = vsel %vm6944, %v6946, %v6942
      %v6948 = vmul.f32 1.0, %v6947
      %v6949 = vrcp.pop %v6609
      %v6950 = vmul.f32 %v6609, %v6949
      %v6951 = vsub.f32 1.0, %v6950
      %v6952 = vmul.f32 %v6949, %v6951
      %v6953 = vadd.f32 %v6949, %v6952
      %vm6954 = vweird.f32 %v6609
      %vm6955 = vweird.f32 %v6949
      %vm6956 = vmor %vm6954, %vm6955
      %v6957 = vsel %vm6956, %v6949, %v6953
      %v6958 = vand.u32 2147483647, %v6609
      %vm6959 = vcmp.eq.f32.partialorder %v6958, 8.507059e+37
      %v6960 = vand.u32 %v6609, 2147483648
      %v6961 = vor.u32 1.1754944e-38, %v6960
      %v6962 = vsel %vm6959, %v6961, %v6957
      %v6963 = vmul.f32 1.0, %v6962
      %v6964 = vrcp.pop %v6610
      %v6965 = vmul.f32 %v6610, %v6964
      %v6966 = vsub.f32 1.0, %v6965
      %v6967 = vmul.f32 %v6964, %v6966
      %v6968 = vadd.f32 %v6964, %v6967
      %vm6969 = vweird.f32 %v6610
      %vm6970 = vweird.f32 %v6964
      %vm6971 = vmor %vm6969, %vm6970
      %v6972 = vsel %vm6971, %v6964, %v6968
      %v6973 = vand.u32 2147483647, %v6610
      %vm6974 = vcmp.eq.f32.partialorder %v6973, 8.507059e+37
      %v6975 = vand.u32 %v6610, 2147483648
      %v6976 = vor.u32 1.1754944e-38, %v6975
      %v6977 = vsel %vm6974, %v6976, %v6972
      %v6978 = vmul.f32 1.0, %v6977
      %v6979 = vrcp.pop %v6611
      %v6980 = vmul.f32 %v6611, %v6979
      %v6981 = vsub.f32 1.0, %v6980
      %v6982 = vmul.f32 %v6979, %v6981
      %v6983 = vadd.f32 %v6979, %v6982
      %vm6984 = vweird.f32 %v6611
      %vm6985 = vweird.f32 %v6979
      %vm6986 = vmor %vm6984, %vm6985
      %v6987 = vsel %vm6986, %v6979, %v6983
      %v6988 = vand.u32 2147483647, %v6611
      %vm6989 = vcmp.eq.f32.partialorder %v6988, 8.507059e+37
      %v6990 = vand.u32 %v6611, 2147483648
      %v6991 = vor.u32 1.1754944e-38, %v6990
      %v6992 = vsel %vm6989, %v6991, %v6987
      %v6993 = vmul.f32 1.0, %v6992
      %v6994 = vrcp.pop %v6612
      %v6995 = vmul.f32 %v6612, %v6994
      %v6996 = vsub.f32 1.0, %v6995
      %v6997 = vmul.f32 %v6994, %v6996
      %v6998 = vadd.f32 %v6994, %v6997
      %vm6999 = vweird.f32 %v6612
      %vm7000 = vweird.f32 %v6994
      %vm7001 = vmor %vm6999, %vm7000
      %v7002 = vsel %vm7001, %v6994, %v6998
      %v7003 = vand.u32 2147483647, %v6612
      %vm7004 = vcmp.eq.f32.partialorder %v7003, 8.507059e+37
      %v7005 = vand.u32 %v6612, 2147483648
      %v7006 = vor.u32 1.1754944e-38, %v7005
      %v7007 = vsel %vm7004, %v7006, %v7002
      %v7008 = vmul.f32 1.0, %v7007
      %v7009 = vrcp.pop %v6613
      %v7010 = vmul.f32 %v6613, %v7009
      %v7011 = vsub.f32 1.0, %v7010
      %v7012 = vmul.f32 %v7009, %v7011
      %v7013 = vadd.f32 %v7009, %v7012
      %vm7014 = vweird.f32 %v6613
      %vm7015 = vweird.f32 %v7009
      %vm7016 = vmor %vm7014, %vm7015
      %v7017 = vsel %vm7016, %v7009, %v7013
      %v7018 = vand.u32 2147483647, %v6613
      %vm7019 = vcmp.eq.f32.partialorder %v7018, 8.507059e+37
      %v7020 = vand.u32 %v6613, 2147483648
      %v7021 = vor.u32 1.1754944e-38, %v7020
      %v7022 = vsel %vm7019, %v7021, %v7017
      %v7023 = vmul.f32 1.0, %v7022
      %v7024 = vrcp.pop %v6614
      %v7025 = vmul.f32 %v6614, %v7024
      %v7026 = vsub.f32 1.0, %v7025
      %v7027 = vmul.f32 %v7024, %v7026
      %v7028 = vadd.f32 %v7024, %v7027
      %vm7029 = vweird.f32 %v6614
      %vm7030 = vweird.f32 %v7024
      %vm7031 = vmor %vm7029, %vm7030
      %v7032 = vsel %vm7031, %v7024, %v7028
      %v7033 = vand.u32 2147483647, %v6614
      %vm7034 = vcmp.eq.f32.partialorder %v7033, 8.507059e+37
      %v7035 = vand.u32 %v6614, 2147483648
      %v7036 = vor.u32 1.1754944e-38, %v7035
      %v7037 = vsel %vm7034, %v7036, %v7032
      %v7038 = vmul.f32 1.0, %v7037
      %v7039 = vrcp.pop %v6615
      %v7040 = vmul.f32 %v6615, %v7039
      %v7041 = vsub.f32 1.0, %v7040
      %v7042 = vmul.f32 %v7039, %v7041
      %v7043 = vadd.f32 %v7039, %v7042
      %vm7044 = vweird.f32 %v6615
      %vm7045 = vweird.f32 %v7039
      %vm7046 = vmor %vm7044, %vm7045
      %v7047 = vsel %vm7046, %v7039, %v7043
      %v7048 = vand.u32 2147483647, %v6615
      %vm7049 = vcmp.eq.f32.partialorder %v7048, 8.507059e+37
      %v7050 = vand.u32 %v6615, 2147483648
      %v7051 = vor.u32 1.1754944e-38, %v7050
      %v7052 = vsel %vm7049, %v7051, %v7047
      %v7053 = vmul.f32 1.0, %v7052
      %v7054 = vrcp.pop %v6616
      %v7055 = vmul.f32 %v6616, %v7054
      %v7056 = vsub.f32 1.0, %v7055
      %v7057 = vmul.f32 %v7054, %v7056
      %v7058 = vadd.f32 %v7054, %v7057
      %vm7059 = vweird.f32 %v6616
      %vm7060 = vweird.f32 %v7054
      %vm7061 = vmor %vm7059, %vm7060
      %v7062 = vsel %vm7061, %v7054, %v7058
      %v7063 = vand.u32 2147483647, %v6616
      %vm7064 = vcmp.eq.f32.partialorder %v7063, 8.507059e+37
      %v7065 = vand.u32 %v6616, 2147483648
      %v7066 = vor.u32 1.1754944e-38, %v7065
      %v7067 = vsel %vm7064, %v7066, %v7062
      %v7068 = vmul.f32 1.0, %v7067
      %v7069 = vrcp.pop %v6617
      %v7070 = vmul.f32 %v6617, %v7069
      %v7071 = vsub.f32 1.0, %v7070
      %v7072 = vmul.f32 %v7069, %v7071
      %v7073 = vadd.f32 %v7069, %v7072
      %vm7074 = vweird.f32 %v6617
      %vm7075 = vweird.f32 %v7069
      %vm7076 = vmor %vm7074, %vm7075
      %v7077 = vsel %vm7076, %v7069, %v7073
      %v7078 = vand.u32 2147483647, %v6617
      %vm7079 = vcmp.eq.f32.partialorder %v7078, 8.507059e+37
      %v7080 = vand.u32 %v6617, 2147483648
      %v7081 = vor.u32 1.1754944e-38, %v7080
      %v7082 = vsel %vm7079, %v7081, %v7077
      %v7083 = vmul.f32 1.0, %v7082
      %v7084 = vrcp.pop %v6618
      %v7085 = vmul.f32 %v6618, %v7084
      %v7086 = vsub.f32 1.0, %v7085
      %v7087 = vmul.f32 %v7084, %v7086
      %v7088 = vadd.f32 %v7084, %v7087
      %vm7089 = vweird.f32 %v6618
      %vm7090 = vweird.f32 %v7084
      %vm7091 = vmor %vm7089, %vm7090
      %v7092 = vsel %vm7091, %v7084, %v7088
      %v7093 = vand.u32 2147483647, %v6618
      %vm7094 = vcmp.eq.f32.partialorder %v7093, 8.507059e+37
      %v7095 = vand.u32 %v6618, 2147483648
      %v7096 = vor.u32 1.1754944e-38, %v7095
      %v7097 = vsel %vm7094, %v7096, %v7092
      %v7098 = vmul.f32 1.0, %v7097
      %v7099 = vtanh.pop %v5570
      %v7100 = vtanh.pop %v5571
      %v7101 = vtanh.pop %v5572
      %v7102 = vtanh.pop %v5573
      %v7103 = vtanh.pop %v5574
      %v7104 = vtanh.pop %v5575
      %v7105 = vtanh.pop %v5576
      %v7106 = vtanh.pop %v5577
      %v7107 = vtanh.pop %v5578
      %v7108 = vtanh.pop %v5579
      %v7109 = vtanh.pop %v5580
      %v7110 = vtanh.pop %v5581
      %v7111 = vtanh.pop %v5582
      %v7112 = vtanh.pop %v5583
      %v7113 = vtanh.pop %v5584
      %v7114 = vtanh.pop %v5585
      %v7115 = vtanh.pop %v5586
      %v7116 = vtanh.pop %v5587
      %v7117 = vtanh.pop %v5588
      %v7118 = vtanh.pop %v5589
      %v7119 = vtanh.pop %v5590
      %v7120 = vtanh.pop %v5591
      %v7121 = vtanh.pop %v5592
      %v7122 = vtanh.pop %v5593
      %v7123 = vtanh.pop %v5594
      %v7124 = vtanh.pop %v5595
      %v7125 = vtanh.pop %v5596
      %v7126 = vtanh.pop %v5597
      %v7127 = vtanh.pop %v5598
      %v7128 = vtanh.pop %v5599
      %v7129 = vtanh.pop %v5600
      %v7130 = vtanh.pop %v5601
      %v7131 = vxor.u32 %v5851, 2147483648
      %v7132 = vxor.u32 %v5852, 2147483648
      %v7133 = vxor.u32 %v5853, 2147483648
      %v7134 = vxor.u32 %v5854, 2147483648
      %v7135 = vxor.u32 %v5855, 2147483648
      %v7136 = vxor.u32 %v5856, 2147483648
      %v7137 = vxor.u32 %v5857, 2147483648
      %v7138 = vxor.u32 %v5858, 2147483648
      %v7139 = vxor.u32 %v5859, 2147483648
      %v7140 = vxor.u32 %v5860, 2147483648
      %v7141 = vxor.u32 %v5861, 2147483648
      %v7142 = vxor.u32 %v5862, 2147483648
      %v7143 = vxor.u32 %v5863, 2147483648
      %v7144 = vxor.u32 %v5864, 2147483648
      %v7145 = vxor.u32 %v5865, 2147483648
      %v7146 = vxor.u32 %v5866, 2147483648
      %v7147 = vxor.u32 %v5867, 2147483648
      %v7148 = vxor.u32 %v5868, 2147483648
      %v7149 = vxor.u32 %v5869, 2147483648
      %v7150 = vxor.u32 %v5870, 2147483648
      %v7151 = vxor.u32 %v5871, 2147483648
      %v7152 = vxor.u32 %v5872, 2147483648
      %v7153 = vxor.u32 %v5873, 2147483648
      %v7154 = vxor.u32 %v5874, 2147483648
      %v7155 = vxor.u32 %v5875, 2147483648
      %v7156 = vxor.u32 %v5876, 2147483648
      %v7157 = vxor.u32 %v5877, 2147483648
      %v7158 = vxor.u32 %v5878, 2147483648
      %v7159 = vxor.u32 %v5879, 2147483648
      %v7160 = vxor.u32 %v5880, 2147483648
      %v7161 = vxor.u32 %v5881, 2147483648
      %v7162 = vxor.u32 %v5882, 2147483648
      %v7163 = vmul.f32 %v7131, 1.442695
      %v7164 = vpow.pop %v7163
      %v7165 = vmul.f32 %v7132, 1.442695
      %v7166 = vpow.pop %v7165
      %v7167 = vmul.f32 %v7133, 1.442695
      %v7168 = vpow.pop %v7167
      %v7169 = vmul.f32 %v7134, 1.442695
      %v7170 = vpow.pop %v7169
      %v7171 = vmul.f32 %v7135, 1.442695
      %v7172 = vpow.pop %v7171
      %v7173 = vmul.f32 %v7136, 1.442695
      %v7174 = vpow.pop %v7173
      %v7175 = vmul.f32 %v7137, 1.442695
      %v7176 = vpow.pop %v7175
      %v7177 = vmul.f32 %v7138, 1.442695
      %v7178 = vpow.pop %v7177
      %v7179 = vmul.f32 %v7139, 1.442695
      %v7180 = vpow.pop %v7179
      %v7181 = vmul.f32 %v7140, 1.442695
      %v7182 = vpow.pop %v7181
      %v7183 = vmul.f32 %v7141, 1.442695
      %v7184 = vpow.pop %v7183
      %v7185 = vmul.f32 %v7142, 1.442695
      %v7186 = vpow.pop %v7185
      %v7187 = vmul.f32 %v7143, 1.442695
      %v7188 = vpow.pop %v7187
      %v7189 = vmul.f32 %v7144, 1.442695
      %v7190 = vpow.pop %v7189
      %v7191 = vmul.f32 %v7145, 1.442695
      %v7192 = vpow.pop %v7191
      %v7193 = vmul.f32 %v7146, 1.442695
      %v7194 = vpow.pop %v7193
      %v7195 = vmul.f32 %v7147, 1.442695
      %v7196 = vpow.pop %v7195
      %v7197 = vmul.f32 %v7148, 1.442695
      %v7198 = vpow.pop %v7197
      %v7199 = vmul.f32 %v7149, 1.442695
      %v7200 = vpow.pop %v7199
      %v7201 = vmul.f32 %v7150, 1.442695
      %v7202 = vpow.pop %v7201
      %v7203 = vmul.f32 %v7151, 1.442695
      %v7204 = vpow.pop %v7203
      %v7205 = vmul.f32 %v7152, 1.442695
      %v7206 = vpow.pop %v7205
      %v7207 = vmul.f32 %v7153, 1.442695
      %v7208 = vpow.pop %v7207
      %v7209 = vmul.f32 %v7154, 1.442695
      %v7210 = vpow.pop %v7209
      %v7211 = vmul.f32 %v7155, 1.442695
      %v7212 = vpow.pop %v7211
      %v7213 = vmul.f32 %v7156, 1.442695
      %v7214 = vpow.pop %v7213
      %v7215 = vmul.f32 %v7157, 1.442695
      %v7216 = vpow.pop %v7215
      %v7217 = vmul.f32 %v7158, 1.442695
      %v7218 = vpow.pop %v7217
      %v7219 = vmul.f32 %v7159, 1.442695
      %v7220 = vpow.pop %v7219
      %v7221 = vmul.f32 %v7160, 1.442695
      %v7222 = vpow.pop %v7221
      %v7223 = vmul.f32 %v7161, 1.442695
      %v7224 = vpow.pop %v7223
      %v7225 = vmul.f32 %v7162, 1.442695
      %v7226 = vpow.pop %v7225
      %v7227 = vadd.f32 %v7164, 1.0
      %v7228 = vadd.f32 %v7166, 1.0
      %v7229 = vadd.f32 %v7168, 1.0
      %v7230 = vadd.f32 %v7170, 1.0
      %v7231 = vadd.f32 %v7172, 1.0
      %v7232 = vadd.f32 %v7174, 1.0
      %v7233 = vadd.f32 %v7176, 1.0
      %v7234 = vadd.f32 %v7178, 1.0
      %v7235 = vadd.f32 %v7180, 1.0
      %v7236 = vadd.f32 %v7182, 1.0
      %v7237 = vadd.f32 %v7184, 1.0
      %v7238 = vadd.f32 %v7186, 1.0
      %v7239 = vadd.f32 %v7188, 1.0
      %v7240 = vadd.f32 %v7190, 1.0
      %v7241 = vadd.f32 %v7192, 1.0
      %v7242 = vadd.f32 %v7194, 1.0
      %v7243 = vadd.f32 %v7196, 1.0
      %v7244 = vadd.f32 %v7198, 1.0
      %v7245 = vadd.f32 %v7200, 1.0
      %v7246 = vadd.f32 %v7202, 1.0
      %v7247 = vadd.f32 %v7204, 1.0
      %v7248 = vadd.f32 %v7206, 1.0
      %v7249 = vadd.f32 %v7208, 1.0
      %v7250 = vadd.f32 %v7210, 1.0
      %v7251 = vadd.f32 %v7212, 1.0
      %v7252 = vadd.f32 %v7214, 1.0
      %v7253 = vadd.f32 %v7216, 1.0
      %v7254 = vadd.f32 %v7218, 1.0
      %v7255 = vadd.f32 %v7220, 1.0
      %v7256 = vadd.f32 %v7222, 1.0
      %v7257 = vadd.f32 %v7224, 1.0
      %v7258 = vadd.f32 %v7226, 1.0
      %v7259 = vrcp.pop %v7227
      %v7260 = vmul.f32 %v7227, %v7259
      %v7261 = vsub.f32 1.0, %v7260
      %v7262 = vmul.f32 %v7259, %v7261
      %v7263 = vadd.f32 %v7259, %v7262
      %vm7264 = vweird.f32 %v7227
      %vm7265 = vweird.f32 %v7259
      %vm7266 = vmor %vm7264, %vm7265
      %v7267 = vsel %vm7266, %v7259, %v7263
      %v7268 = vand.u32 2147483647, %v7227
      %vm7269 = vcmp.eq.f32.partialorder %v7268, 8.507059e+37
      %v7270 = vand.u32 %v7227, 2147483648
      %v7271 = vor.u32 1.1754944e-38, %v7270
      %v7272 = vsel %vm7269, %v7271, %v7267
      %v7273 = vmul.f32 1.0, %v7272
      %v7274 = vrcp.pop %v7228
      %v7275 = vmul.f32 %v7228, %v7274
      %v7276 = vsub.f32 1.0, %v7275
      %v7277 = vmul.f32 %v7274, %v7276
      %v7278 = vadd.f32 %v7274, %v7277
      %vm7279 = vweird.f32 %v7228
      %vm7280 = vweird.f32 %v7274
      %vm7281 = vmor %vm7279, %vm7280
      %v7282 = vsel %vm7281, %v7274, %v7278
      %v7283 = vand.u32 2147483647, %v7228
      %vm7284 = vcmp.eq.f32.partialorder %v7283, 8.507059e+37
      %v7285 = vand.u32 %v7228, 2147483648
      %v7286 = vor.u32 1.1754944e-38, %v7285
      %v7287 = vsel %vm7284, %v7286, %v7282
      %v7288 = vmul.f32 1.0, %v7287
      %v7289 = vrcp.pop %v7229
      %v7290 = vmul.f32 %v7229, %v7289
      %v7291 = vsub.f32 1.0, %v7290
      %v7292 = vmul.f32 %v7289, %v7291
      %v7293 = vadd.f32 %v7289, %v7292
      %vm7294 = vweird.f32 %v7229
      %vm7295 = vweird.f32 %v7289
      %vm7296 = vmor %vm7294, %vm7295
      %v7297 = vsel %vm7296, %v7289, %v7293
      %v7298 = vand.u32 2147483647, %v7229
      %vm7299 = vcmp.eq.f32.partialorder %v7298, 8.507059e+37
      %v7300 = vand.u32 %v7229, 2147483648
      %v7301 = vor.u32 1.1754944e-38, %v7300
      %v7302 = vsel %vm7299, %v7301, %v7297
      %v7303 = vmul.f32 1.0, %v7302
      %v7304 = vrcp.pop %v7230
      %v7305 = vmul.f32 %v7230, %v7304
      %v7306 = vsub.f32 1.0, %v7305
      %v7307 = vmul.f32 %v7304, %v7306
      %v7308 = vadd.f32 %v7304, %v7307
      %vm7309 = vweird.f32 %v7230
      %vm7310 = vweird.f32 %v7304
      %vm7311 = vmor %vm7309, %vm7310
      %v7312 = vsel %vm7311, %v7304, %v7308
      %v7313 = vand.u32 2147483647, %v7230
      %vm7314 = vcmp.eq.f32.partialorder %v7313, 8.507059e+37
      %v7315 = vand.u32 %v7230, 2147483648
      %v7316 = vor.u32 1.1754944e-38, %v7315
      %v7317 = vsel %vm7314, %v7316, %v7312
      %v7318 = vmul.f32 1.0, %v7317
      %v7319 = vrcp.pop %v7231
      %v7320 = vmul.f32 %v7231, %v7319
      %v7321 = vsub.f32 1.0, %v7320
      %v7322 = vmul.f32 %v7319, %v7321
      %v7323 = vadd.f32 %v7319, %v7322
      %vm7324 = vweird.f32 %v7231
      %vm7325 = vweird.f32 %v7319
      %vm7326 = vmor %vm7324, %vm7325
      %v7327 = vsel %vm7326, %v7319, %v7323
      %v7328 = vand.u32 2147483647, %v7231
      %vm7329 = vcmp.eq.f32.partialorder %v7328, 8.507059e+37
      %v7330 = vand.u32 %v7231, 2147483648
      %v7331 = vor.u32 1.1754944e-38, %v7330
      %v7332 = vsel %vm7329, %v7331, %v7327
      %v7333 = vmul.f32 1.0, %v7332
      %v7334 = vrcp.pop %v7232
      %v7335 = vmul.f32 %v7232, %v7334
      %v7336 = vsub.f32 1.0, %v7335
      %v7337 = vmul.f32 %v7334, %v7336
      %v7338 = vadd.f32 %v7334, %v7337
      %vm7339 = vweird.f32 %v7232
      %vm7340 = vweird.f32 %v7334
      %vm7341 = vmor %vm7339, %vm7340
      %v7342 = vsel %vm7341, %v7334, %v7338
      %v7343 = vand.u32 2147483647, %v7232
      %vm7344 = vcmp.eq.f32.partialorder %v7343, 8.507059e+37
      %v7345 = vand.u32 %v7232, 2147483648
      %v7346 = vor.u32 1.1754944e-38, %v7345
      %v7347 = vsel %vm7344, %v7346, %v7342
      %v7348 = vmul.f32 1.0, %v7347
      %v7349 = vrcp.pop %v7233
      %v7350 = vmul.f32 %v7233, %v7349
      %v7351 = vsub.f32 1.0, %v7350
      %v7352 = vmul.f32 %v7349, %v7351
      %v7353 = vadd.f32 %v7349, %v7352
      %vm7354 = vweird.f32 %v7233
      %vm7355 = vweird.f32 %v7349
      %vm7356 = vmor %vm7354, %vm7355
      %v7357 = vsel %vm7356, %v7349, %v7353
      %v7358 = vand.u32 2147483647, %v7233
      %vm7359 = vcmp.eq.f32.partialorder %v7358, 8.507059e+37
      %v7360 = vand.u32 %v7233, 2147483648
      %v7361 = vor.u32 1.1754944e-38, %v7360
      %v7362 = vsel %vm7359, %v7361, %v7357
      %v7363 = vmul.f32 1.0, %v7362
      %v7364 = vrcp.pop %v7234
      %v7365 = vmul.f32 %v7234, %v7364
      %v7366 = vsub.f32 1.0, %v7365
      %v7367 = vmul.f32 %v7364, %v7366
      %v7368 = vadd.f32 %v7364, %v7367
      %vm7369 = vweird.f32 %v7234
      %vm7370 = vweird.f32 %v7364
      %vm7371 = vmor %vm7369, %vm7370
      %v7372 = vsel %vm7371, %v7364, %v7368
      %v7373 = vand.u32 2147483647, %v7234
      %vm7374 = vcmp.eq.f32.partialorder %v7373, 8.507059e+37
      %v7375 = vand.u32 %v7234, 2147483648
      %v7376 = vor.u32 1.1754944e-38, %v7375
      %v7377 = vsel %vm7374, %v7376, %v7372
      %v7378 = vmul.f32 1.0, %v7377
      %v7379 = vrcp.pop %v7235
      %v7380 = vmul.f32 %v7235, %v7379
      %v7381 = vsub.f32 1.0, %v7380
      %v7382 = vmul.f32 %v7379, %v7381
      %v7383 = vadd.f32 %v7379, %v7382
      %vm7384 = vweird.f32 %v7235
      %vm7385 = vweird.f32 %v7379
      %vm7386 = vmor %vm7384, %vm7385
      %v7387 = vsel %vm7386, %v7379, %v7383
      %v7388 = vand.u32 2147483647, %v7235
      %vm7389 = vcmp.eq.f32.partialorder %v7388, 8.507059e+37
      %v7390 = vand.u32 %v7235, 2147483648
      %v7391 = vor.u32 1.1754944e-38, %v7390
      %v7392 = vsel %vm7389, %v7391, %v7387
      %v7393 = vmul.f32 1.0, %v7392
      %v7394 = vrcp.pop %v7236
      %v7395 = vmul.f32 %v7236, %v7394
      %v7396 = vsub.f32 1.0, %v7395
      %v7397 = vmul.f32 %v7394, %v7396
      %v7398 = vadd.f32 %v7394, %v7397
      %vm7399 = vweird.f32 %v7236
      %vm7400 = vweird.f32 %v7394
      %vm7401 = vmor %vm7399, %vm7400
      %v7402 = vsel %vm7401, %v7394, %v7398
      %v7403 = vand.u32 2147483647, %v7236
      %vm7404 = vcmp.eq.f32.partialorder %v7403, 8.507059e+37
      %v7405 = vand.u32 %v7236, 2147483648
      %v7406 = vor.u32 1.1754944e-38, %v7405
      %v7407 = vsel %vm7404, %v7406, %v7402
      %v7408 = vmul.f32 1.0, %v7407
      %v7409 = vrcp.pop %v7237
      %v7410 = vmul.f32 %v7237, %v7409
      %v7411 = vsub.f32 1.0, %v7410
      %v7412 = vmul.f32 %v7409, %v7411
      %v7413 = vadd.f32 %v7409, %v7412
      %vm7414 = vweird.f32 %v7237
      %vm7415 = vweird.f32 %v7409
      %vm7416 = vmor %vm7414, %vm7415
      %v7417 = vsel %vm7416, %v7409, %v7413
      %v7418 = vand.u32 2147483647, %v7237
      %vm7419 = vcmp.eq.f32.partialorder %v7418, 8.507059e+37
      %v7420 = vand.u32 %v7237, 2147483648
      %v7421 = vor.u32 1.1754944e-38, %v7420
      %v7422 = vsel %vm7419, %v7421, %v7417
      %v7423 = vmul.f32 1.0, %v7422
      %v7424 = vrcp.pop %v7238
      %v7425 = vmul.f32 %v7238, %v7424
      %v7426 = vsub.f32 1.0, %v7425
      %v7427 = vmul.f32 %v7424, %v7426
      %v7428 = vadd.f32 %v7424, %v7427
      %vm7429 = vweird.f32 %v7238
      %vm7430 = vweird.f32 %v7424
      %vm7431 = vmor %vm7429, %vm7430
      %v7432 = vsel %vm7431, %v7424, %v7428
      %v7433 = vand.u32 2147483647, %v7238
      %vm7434 = vcmp.eq.f32.partialorder %v7433, 8.507059e+37
      %v7435 = vand.u32 %v7238, 2147483648
      %v7436 = vor.u32 1.1754944e-38, %v7435
      %v7437 = vsel %vm7434, %v7436, %v7432
      %v7438 = vmul.f32 1.0, %v7437
      %v7439 = vrcp.pop %v7239
      %v7440 = vmul.f32 %v7239, %v7439
      %v7441 = vsub.f32 1.0, %v7440
      %v7442 = vmul.f32 %v7439, %v7441
      %v7443 = vadd.f32 %v7439, %v7442
      %vm7444 = vweird.f32 %v7239
      %vm7445 = vweird.f32 %v7439
      %vm7446 = vmor %vm7444, %vm7445
      %v7447 = vsel %vm7446, %v7439, %v7443
      %v7448 = vand.u32 2147483647, %v7239
      %vm7449 = vcmp.eq.f32.partialorder %v7448, 8.507059e+37
      %v7450 = vand.u32 %v7239, 2147483648
      %v7451 = vor.u32 1.1754944e-38, %v7450
      %v7452 = vsel %vm7449, %v7451, %v7447
      %v7453 = vmul.f32 1.0, %v7452
      %v7454 = vrcp.pop %v7240
      %v7455 = vmul.f32 %v7240, %v7454
      %v7456 = vsub.f32 1.0, %v7455
      %v7457 = vmul.f32 %v7454, %v7456
      %v7458 = vadd.f32 %v7454, %v7457
      %vm7459 = vweird.f32 %v7240
      %vm7460 = vweird.f32 %v7454
      %vm7461 = vmor %vm7459, %vm7460
      %v7462 = vsel %vm7461, %v7454, %v7458
      %v7463 = vand.u32 2147483647, %v7240
      %vm7464 = vcmp.eq.f32.partialorder %v7463, 8.507059e+37
      %v7465 = vand.u32 %v7240, 2147483648
      %v7466 = vor.u32 1.1754944e-38, %v7465
      %v7467 = vsel %vm7464, %v7466, %v7462
      %v7468 = vmul.f32 1.0, %v7467
      %v7469 = vrcp.pop %v7241
      %v7470 = vmul.f32 %v7241, %v7469
      %v7471 = vsub.f32 1.0, %v7470
      %v7472 = vmul.f32 %v7469, %v7471
      %v7473 = vadd.f32 %v7469, %v7472
      %vm7474 = vweird.f32 %v7241
      %vm7475 = vweird.f32 %v7469
      %vm7476 = vmor %vm7474, %vm7475
      %v7477 = vsel %vm7476, %v7469, %v7473
      %v7478 = vand.u32 2147483647, %v7241
      %vm7479 = vcmp.eq.f32.partialorder %v7478, 8.507059e+37
      %v7480 = vand.u32 %v7241, 2147483648
      %v7481 = vor.u32 1.1754944e-38, %v7480
      %v7482 = vsel %vm7479, %v7481, %v7477
      %v7483 = vmul.f32 1.0, %v7482
      %v7484 = vrcp.pop %v7242
      %v7485 = vmul.f32 %v7242, %v7484
      %v7486 = vsub.f32 1.0, %v7485
      %v7487 = vmul.f32 %v7484, %v7486
      %v7488 = vadd.f32 %v7484, %v7487
      %vm7489 = vweird.f32 %v7242
      %vm7490 = vweird.f32 %v7484
      %vm7491 = vmor %vm7489, %vm7490
      %v7492 = vsel %vm7491, %v7484, %v7488
      %v7493 = vand.u32 2147483647, %v7242
      %vm7494 = vcmp.eq.f32.partialorder %v7493, 8.507059e+37
      %v7495 = vand.u32 %v7242, 2147483648
      %v7496 = vor.u32 1.1754944e-38, %v7495
      %v7497 = vsel %vm7494, %v7496, %v7492
      %v7498 = vmul.f32 1.0, %v7497
      %v7499 = vrcp.pop %v7243
      %v7500 = vmul.f32 %v7243, %v7499
      %v7501 = vsub.f32 1.0, %v7500
      %v7502 = vmul.f32 %v7499, %v7501
      %v7503 = vadd.f32 %v7499, %v7502
      %vm7504 = vweird.f32 %v7243
      %vm7505 = vweird.f32 %v7499
      %vm7506 = vmor %vm7504, %vm7505
      %v7507 = vsel %vm7506, %v7499, %v7503
      %v7508 = vand.u32 2147483647, %v7243
      %vm7509 = vcmp.eq.f32.partialorder %v7508, 8.507059e+37
      %v7510 = vand.u32 %v7243, 2147483648
      %v7511 = vor.u32 1.1754944e-38, %v7510
      %v7512 = vsel %vm7509, %v7511, %v7507
      %v7513 = vmul.f32 1.0, %v7512
      %v7514 = vrcp.pop %v7244
      %v7515 = vmul.f32 %v7244, %v7514
      %v7516 = vsub.f32 1.0, %v7515
      %v7517 = vmul.f32 %v7514, %v7516
      %v7518 = vadd.f32 %v7514, %v7517
      %vm7519 = vweird.f32 %v7244
      %vm7520 = vweird.f32 %v7514
      %vm7521 = vmor %vm7519, %vm7520
      %v7522 = vsel %vm7521, %v7514, %v7518
      %v7523 = vand.u32 2147483647, %v7244
      %vm7524 = vcmp.eq.f32.partialorder %v7523, 8.507059e+37
      %v7525 = vand.u32 %v7244, 2147483648
      %v7526 = vor.u32 1.1754944e-38, %v7525
      %v7527 = vsel %vm7524, %v7526, %v7522
      %v7528 = vmul.f32 1.0, %v7527
      %v7529 = vrcp.pop %v7245
      %v7530 = vmul.f32 %v7245, %v7529
      %v7531 = vsub.f32 1.0, %v7530
      %v7532 = vmul.f32 %v7529, %v7531
      %v7533 = vadd.f32 %v7529, %v7532
      %vm7534 = vweird.f32 %v7245
      %vm7535 = vweird.f32 %v7529
      %vm7536 = vmor %vm7534, %vm7535
      %v7537 = vsel %vm7536, %v7529, %v7533
      %v7538 = vand.u32 2147483647, %v7245
      %vm7539 = vcmp.eq.f32.partialorder %v7538, 8.507059e+37
      %v7540 = vand.u32 %v7245, 2147483648
      %v7541 = vor.u32 1.1754944e-38, %v7540
      %v7542 = vsel %vm7539, %v7541, %v7537
      %v7543 = vmul.f32 1.0, %v7542
      %v7544 = vrcp.pop %v7246
      %v7545 = vmul.f32 %v7246, %v7544
      %v7546 = vsub.f32 1.0, %v7545
      %v7547 = vmul.f32 %v7544, %v7546
      %v7548 = vadd.f32 %v7544, %v7547
      %vm7549 = vweird.f32 %v7246
      %vm7550 = vweird.f32 %v7544
      %vm7551 = vmor %vm7549, %vm7550
      %v7552 = vsel %vm7551, %v7544, %v7548
      %v7553 = vand.u32 2147483647, %v7246
      %vm7554 = vcmp.eq.f32.partialorder %v7553, 8.507059e+37
      %v7555 = vand.u32 %v7246, 2147483648
      %v7556 = vor.u32 1.1754944e-38, %v7555
      %v7557 = vsel %vm7554, %v7556, %v7552
      %v7558 = vmul.f32 1.0, %v7557
      %v7559 = vrcp.pop %v7247
      %v7560 = vmul.f32 %v7247, %v7559
      %v7561 = vsub.f32 1.0, %v7560
      %v7562 = vmul.f32 %v7559, %v7561
      %v7563 = vadd.f32 %v7559, %v7562
      %vm7564 = vweird.f32 %v7247
      %vm7565 = vweird.f32 %v7559
      %vm7566 = vmor %vm7564, %vm7565
      %v7567 = vsel %vm7566, %v7559, %v7563
      %v7568 = vand.u32 2147483647, %v7247
      %vm7569 = vcmp.eq.f32.partialorder %v7568, 8.507059e+37
      %v7570 = vand.u32 %v7247, 2147483648
      %v7571 = vor.u32 1.1754944e-38, %v7570
      %v7572 = vsel %vm7569, %v7571, %v7567
      %v7573 = vmul.f32 1.0, %v7572
      %v7574 = vrcp.pop %v7248
      %v7575 = vmul.f32 %v7248, %v7574
      %v7576 = vsub.f32 1.0, %v7575
      %v7577 = vmul.f32 %v7574, %v7576
      %v7578 = vadd.f32 %v7574, %v7577
      %vm7579 = vweird.f32 %v7248
      %vm7580 = vweird.f32 %v7574
      %vm7581 = vmor %vm7579, %vm7580
      %v7582 = vsel %vm7581, %v7574, %v7578
      %v7583 = vand.u32 2147483647, %v7248
      %vm7584 = vcmp.eq.f32.partialorder %v7583, 8.507059e+37
      %v7585 = vand.u32 %v7248, 2147483648
      %v7586 = vor.u32 1.1754944e-38, %v7585
      %v7587 = vsel %vm7584, %v7586, %v7582
      %v7588 = vmul.f32 1.0, %v7587
      %v7589 = vrcp.pop %v7249
      %v7590 = vmul.f32 %v7249, %v7589
      %v7591 = vsub.f32 1.0, %v7590
      %v7592 = vmul.f32 %v7589, %v7591
      %v7593 = vadd.f32 %v7589, %v7592
      %vm7594 = vweird.f32 %v7249
      %vm7595 = vweird.f32 %v7589
      %vm7596 = vmor %vm7594, %vm7595
      %v7597 = vsel %vm7596, %v7589, %v7593
      %v7598 = vand.u32 2147483647, %v7249
      %vm7599 = vcmp.eq.f32.partialorder %v7598, 8.507059e+37
      %v7600 = vand.u32 %v7249, 2147483648
      %v7601 = vor.u32 1.1754944e-38, %v7600
      %v7602 = vsel %vm7599, %v7601, %v7597
      %v7603 = vmul.f32 1.0, %v7602
      %v7604 = vrcp.pop %v7250
      %v7605 = vmul.f32 %v7250, %v7604
      %v7606 = vsub.f32 1.0, %v7605
      %v7607 = vmul.f32 %v7604, %v7606
      %v7608 = vadd.f32 %v7604, %v7607
      %vm7609 = vweird.f32 %v7250
      %vm7610 = vweird.f32 %v7604
      %vm7611 = vmor %vm7609, %vm7610
      %v7612 = vsel %vm7611, %v7604, %v7608
      %v7613 = vand.u32 2147483647, %v7250
      %vm7614 = vcmp.eq.f32.partialorder %v7613, 8.507059e+37
      %v7615 = vand.u32 %v7250, 2147483648
      %v7616 = vor.u32 1.1754944e-38, %v7615
      %v7617 = vsel %vm7614, %v7616, %v7612
      %v7618 = vmul.f32 1.0, %v7617
      %v7619 = vrcp.pop %v7251
      %v7620 = vmul.f32 %v7251, %v7619
      %v7621 = vsub.f32 1.0, %v7620
      %v7622 = vmul.f32 %v7619, %v7621
      %v7623 = vadd.f32 %v7619, %v7622
      %vm7624 = vweird.f32 %v7251
      %vm7625 = vweird.f32 %v7619
      %vm7626 = vmor %vm7624, %vm7625
      %v7627 = vsel %vm7626, %v7619, %v7623
      %v7628 = vand.u32 2147483647, %v7251
      %vm7629 = vcmp.eq.f32.partialorder %v7628, 8.507059e+37
      %v7630 = vand.u32 %v7251, 2147483648
      %v7631 = vor.u32 1.1754944e-38, %v7630
      %v7632 = vsel %vm7629, %v7631, %v7627
      %v7633 = vmul.f32 1.0, %v7632
      %v7634 = vrcp.pop %v7252
      %v7635 = vmul.f32 %v7252, %v7634
      %v7636 = vsub.f32 1.0, %v7635
      %v7637 = vmul.f32 %v7634, %v7636
      %v7638 = vadd.f32 %v7634, %v7637
      %vm7639 = vweird.f32 %v7252
      %vm7640 = vweird.f32 %v7634
      %vm7641 = vmor %vm7639, %vm7640
      %v7642 = vsel %vm7641, %v7634, %v7638
      %v7643 = vand.u32 2147483647, %v7252
      %vm7644 = vcmp.eq.f32.partialorder %v7643, 8.507059e+37
      %v7645 = vand.u32 %v7252, 2147483648
      %v7646 = vor.u32 1.1754944e-38, %v7645
      %v7647 = vsel %vm7644, %v7646, %v7642
      %v7648 = vmul.f32 1.0, %v7647
      %v7649 = vrcp.pop %v7253
      %v7650 = vmul.f32 %v7253, %v7649
      %v7651 = vsub.f32 1.0, %v7650
      %v7652 = vmul.f32 %v7649, %v7651
      %v7653 = vadd.f32 %v7649, %v7652
      %vm7654 = vweird.f32 %v7253
      %vm7655 = vweird.f32 %v7649
      %vm7656 = vmor %vm7654, %vm7655
      %v7657 = vsel %vm7656, %v7649, %v7653
      %v7658 = vand.u32 2147483647, %v7253
      %vm7659 = vcmp.eq.f32.partialorder %v7658, 8.507059e+37
      %v7660 = vand.u32 %v7253, 2147483648
      %v7661 = vor.u32 1.1754944e-38, %v7660
      %v7662 = vsel %vm7659, %v7661, %v7657
      %v7663 = vmul.f32 1.0, %v7662
      %v7664 = vrcp.pop %v7254
      %v7665 = vmul.f32 %v7254, %v7664
      %v7666 = vsub.f32 1.0, %v7665
      %v7667 = vmul.f32 %v7664, %v7666
      %v7668 = vadd.f32 %v7664, %v7667
      %vm7669 = vweird.f32 %v7254
      %vm7670 = vweird.f32 %v7664
      %vm7671 = vmor %vm7669, %vm7670
      %v7672 = vsel %vm7671, %v7664, %v7668
      %v7673 = vand.u32 2147483647, %v7254
      %vm7674 = vcmp.eq.f32.partialorder %v7673, 8.507059e+37
      %v7675 = vand.u32 %v7254, 2147483648
      %v7676 = vor.u32 1.1754944e-38, %v7675
      %v7677 = vsel %vm7674, %v7676, %v7672
      %v7678 = vmul.f32 1.0, %v7677
      %v7679 = vrcp.pop %v7255
      %v7680 = vmul.f32 %v7255, %v7679
      %v7681 = vsub.f32 1.0, %v7680
      %v7682 = vmul.f32 %v7679, %v7681
      %v7683 = vadd.f32 %v7679, %v7682
      %vm7684 = vweird.f32 %v7255
      %vm7685 = vweird.f32 %v7679
      %vm7686 = vmor %vm7684, %vm7685
      %v7687 = vsel %vm7686, %v7679, %v7683
      %v7688 = vand.u32 2147483647, %v7255
      %vm7689 = vcmp.eq.f32.partialorder %v7688, 8.507059e+37
      %v7690 = vand.u32 %v7255, 2147483648
      %v7691 = vor.u32 1.1754944e-38, %v7690
      %v7692 = vsel %vm7689, %v7691, %v7687
      %v7693 = vmul.f32 1.0, %v7692
      %v7694 = vrcp.pop %v7256
      %v7695 = vmul.f32 %v7256, %v7694
      %v7696 = vsub.f32 1.0, %v7695
      %v7697 = vmul.f32 %v7694, %v7696
      %v7698 = vadd.f32 %v7694, %v7697
      %vm7699 = vweird.f32 %v7256
      %vm7700 = vweird.f32 %v7694
      %vm7701 = vmor %vm7699, %vm7700
      %v7702 = vsel %vm7701, %v7694, %v7698
      %v7703 = vand.u32 2147483647, %v7256
      %vm7704 = vcmp.eq.f32.partialorder %v7703, 8.507059e+37
      %v7705 = vand.u32 %v7256, 2147483648
      %v7706 = vor.u32 1.1754944e-38, %v7705
      %v7707 = vsel %vm7704, %v7706, %v7702
      %v7708 = vmul.f32 1.0, %v7707
      %v7709 = vrcp.pop %v7257
      %v7710 = vmul.f32 %v7257, %v7709
      %v7711 = vsub.f32 1.0, %v7710
      %v7712 = vmul.f32 %v7709, %v7711
      %v7713 = vadd.f32 %v7709, %v7712
      %vm7714 = vweird.f32 %v7257
      %vm7715 = vweird.f32 %v7709
      %vm7716 = vmor %vm7714, %vm7715
      %v7717 = vsel %vm7716, %v7709, %v7713
      %v7718 = vand.u32 2147483647, %v7257
      %vm7719 = vcmp.eq.f32.partialorder %v7718, 8.507059e+37
      %v7720 = vand.u32 %v7257, 2147483648
      %v7721 = vor.u32 1.1754944e-38, %v7720
      %v7722 = vsel %vm7719, %v7721, %v7717
      %v7723 = vmul.f32 1.0, %v7722
      %v7724 = vrcp.pop %v7258
      %v7725 = vmul.f32 %v7258, %v7724
      %v7726 = vsub.f32 1.0, %v7725
      %v7727 = vmul.f32 %v7724, %v7726
      %v7728 = vadd.f32 %v7724, %v7727
      %vm7729 = vweird.f32 %v7258
      %vm7730 = vweird.f32 %v7724
      %vm7731 = vmor %vm7729, %vm7730
      %v7732 = vsel %vm7731, %v7724, %v7728
      %v7733 = vand.u32 2147483647, %v7258
      %vm7734 = vcmp.eq.f32.partialorder %v7733, 8.507059e+37
      %v7735 = vand.u32 %v7258, 2147483648
      %v7736 = vor.u32 1.1754944e-38, %v7735
      %v7737 = vsel %vm7734, %v7736, %v7732
      %v7738 = vmul.f32 1.0, %v7737
      %7739 = vrot.lane.b32.xlu0 %v396, 32
      %v7740 = vpop.permute.xlu0 %7739
      %7741 = vrot.lane.b32.xlu0 %v397, 32
      %v7742 = vpop.permute.xlu0 %7741
      %7743 = vrot.lane.b32.xlu0 %v398, 32
      %v7744 = vpop.permute.xlu0 %7743
      %7745 = vrot.lane.b32.xlu0 %v399, 32
      %v7746 = vpop.permute.xlu0 %7745
      %7747 = vrot.lane.b32.xlu0 %v400, 32
      %v7748 = vpop.permute.xlu0 %7747
      %7749 = vrot.lane.b32.xlu0 %v401, 32
      %v7750 = vpop.permute.xlu0 %7749
      %7751 = vrot.lane.b32.xlu0 %v402, 32
      %v7752 = vpop.permute.xlu0 %7751
      %7753 = vrot.lane.b32.xlu0 %v403, 32
      %v7754 = vpop.permute.xlu0 %7753
      %7755 = vrot.lane.b32.xlu0 %v404, 32
      %v7756 = vpop.permute.xlu0 %7755
      %7757 = vrot.lane.b32.xlu0 %v405, 32
      %v7758 = vpop.permute.xlu0 %7757
      %7759 = vrot.lane.b32.xlu0 %v406, 32
      %v7760 = vpop.permute.xlu0 %7759
      %7761 = vrot.lane.b32.xlu0 %v407, 32
      %v7762 = vpop.permute.xlu0 %7761
      %7763 = vrot.lane.b32.xlu0 %v408, 32
      %v7764 = vpop.permute.xlu0 %7763
      %7765 = vrot.lane.b32.xlu0 %v409, 32
      %v7766 = vpop.permute.xlu0 %7765
      %7767 = vrot.lane.b32.xlu0 %v410, 32
      %v7768 = vpop.permute.xlu0 %7767
      %7769 = vrot.lane.b32.xlu0 %v411, 32
      %v7770 = vpop.permute.xlu0 %7769
      %7771 = vrot.lane.b32.xlu0 %v412, 32
      %v7772 = vpop.permute.xlu0 %7771
      %7773 = vrot.lane.b32.xlu0 %v413, 32
      %v7774 = vpop.permute.xlu0 %7773
      %7775 = vrot.lane.b32.xlu0 %v414, 32
      %v7776 = vpop.permute.xlu0 %7775
      %7777 = vrot.lane.b32.xlu0 %v415, 32
      %v7778 = vpop.permute.xlu0 %7777
      %7779 = vrot.lane.b32.xlu0 %v416, 32
      %v7780 = vpop.permute.xlu0 %7779
      %7781 = vrot.lane.b32.xlu0 %v417, 32
      %v7782 = vpop.permute.xlu0 %7781
      %7783 = vrot.lane.b32.xlu0 %v418, 32
      %v7784 = vpop.permute.xlu0 %7783
      %7785 = vrot.lane.b32.xlu0 %v419, 32
      %v7786 = vpop.permute.xlu0 %7785
      %7787 = vrot.lane.b32.xlu0 %v420, 32
      %v7788 = vpop.permute.xlu0 %7787
      %7789 = vrot.lane.b32.xlu0 %v421, 32
      %v7790 = vpop.permute.xlu0 %7789
      %7791 = vrot.lane.b32.xlu0 %v422, 32
      %v7792 = vpop.permute.xlu0 %7791
      %7793 = vrot.lane.b32.xlu0 %v423, 32
      %v7794 = vpop.permute.xlu0 %7793
      %7795 = vrot.lane.b32.xlu0 %v424, 32
      %v7796 = vpop.permute.xlu0 %7795
      %7797 = vrot.lane.b32.xlu0 %v425, 32
      %v7798 = vpop.permute.xlu0 %7797
      %7799 = vrot.lane.b32.xlu0 %v426, 32
      %v7800 = vpop.permute.xlu0 %7799
      %7801 = vrot.lane.b32.xlu0 %v427, 32
      %v7802 = vpop.permute.xlu0 %7801
      %v7835 = vmul.f32 %v6633, %v7740
      %v7836 = vmul.f32 %v6648, %v7742
      %v7837 = vmul.f32 %v6663, %v7744
      %v7838 = vmul.f32 %v6678, %v7746
      %v7839 = vmul.f32 %v6693, %v7748
      %v7840 = vmul.f32 %v6708, %v7750
      %v7841 = vmul.f32 %v6723, %v7752
      %v7842 = vmul.f32 %v6738, %v7754
      %v7843 = vmul.f32 %v6753, %v7756
      %v7844 = vmul.f32 %v6768, %v7758
      %v7845 = vmul.f32 %v6783, %v7760
      %v7846 = vmul.f32 %v6798, %v7762
      %v7847 = vmul.f32 %v6813, %v7764
      %v7848 = vmul.f32 %v6828, %v7766
      %v7849 = vmul.f32 %v6843, %v7768
      %v7850 = vmul.f32 %v6858, %v7770
      %v7851 = vmul.f32 %v6873, %v7772
      %v7852 = vmul.f32 %v6888, %v7774
      %v7853 = vmul.f32 %v6903, %v7776
      %v7854 = vmul.f32 %v6918, %v7778
      %v7855 = vmul.f32 %v6933, %v7780
      %v7856 = vmul.f32 %v6948, %v7782
      %v7857 = vmul.f32 %v6963, %v7784
      %v7858 = vmul.f32 %v6978, %v7786
      %v7859 = vmul.f32 %v6993, %v7788
      %v7860 = vmul.f32 %v7008, %v7790
      %v7861 = vmul.f32 %v7023, %v7792
      %v7862 = vmul.f32 %v7038, %v7794
      %v7863 = vmul.f32 %v7053, %v7796
      %v7864 = vmul.f32 %v7068, %v7798
      %v7865 = vmul.f32 %v7083, %v7800
      %v7866 = vmul.f32 %v7098, %v7802
      %v7867 = vmul.f32 %v6025, %v7099
      %v7868 = vmul.f32 %v6040, %v7100
      %v7869 = vmul.f32 %v6055, %v7101
      %v7870 = vmul.f32 %v6070, %v7102
      %v7871 = vmul.f32 %v6085, %v7103
      %v7872 = vmul.f32 %v6100, %v7104
      %v7873 = vmul.f32 %v6115, %v7105
      %v7874 = vmul.f32 %v6130, %v7106
      %v7875 = vmul.f32 %v6145, %v7107
      %v7876 = vmul.f32 %v6160, %v7108
      %v7877 = vmul.f32 %v6175, %v7109
      %v7878 = vmul.f32 %v6190, %v7110
      %v7879 = vmul.f32 %v6205, %v7111
      %v7880 = vmul.f32 %v6220, %v7112
      %v7881 = vmul.f32 %v6235, %v7113
      %v7882 = vmul.f32 %v6250, %v7114
      %v7883 = vmul.f32 %v6265, %v7115
      %v7884 = vmul.f32 %v6280, %v7116
      %v7885 = vmul.f32 %v6295, %v7117
      %v7886 = vmul.f32 %v6310, %v7118
      %v7887 = vmul.f32 %v6325, %v7119
      %v7888 = vmul.f32 %v6340, %v7120
      %v7889 = vmul.f32 %v6355, %v7121
      %v7890 = vmul.f32 %v6370, %v7122
      %v7891 = vmul.f32 %v6385, %v7123
      %v7892 = vmul.f32 %v6400, %v7124
      %v7893 = vmul.f32 %v6415, %v7125
      %v7894 = vmul.f32 %v6430, %v7126
      %v7895 = vmul.f32 %v6445, %v7127
      %v7896 = vmul.f32 %v6460, %v7128
      %v7897 = vmul.f32 %v6475, %v7129
      %v7898 = vmul.f32 %v6490, %v7130
      %v7899 = vadd.f32 %v7835, %v7867
      %v7900 = vadd.f32 %v7836, %v7868
      %v7901 = vadd.f32 %v7837, %v7869
      %v7902 = vadd.f32 %v7838, %v7870
      %v7903 = vadd.f32 %v7839, %v7871
      %v7904 = vadd.f32 %v7840, %v7872
      %v7905 = vadd.f32 %v7841, %v7873
      %v7906 = vadd.f32 %v7842, %v7874
      %v7907 = vadd.f32 %v7843, %v7875
      %v7908 = vadd.f32 %v7844, %v7876
      %v7909 = vadd.f32 %v7845, %v7877
      %v7910 = vadd.f32 %v7846, %v7878
      %v7911 = vadd.f32 %v7847, %v7879
      %v7912 = vadd.f32 %v7848, %v7880
      %v7913 = vadd.f32 %v7849, %v7881
      %v7914 = vadd.f32 %v7850, %v7882
      %v7915 = vadd.f32 %v7851, %v7883
      %v7916 = vadd.f32 %v7852, %v7884
      %v7917 = vadd.f32 %v7853, %v7885
      %v7918 = vadd.f32 %v7854, %v7886
      %v7919 = vadd.f32 %v7855, %v7887
      %v7920 = vadd.f32 %v7856, %v7888
      %v7921 = vadd.f32 %v7857, %v7889
      %v7922 = vadd.f32 %v7858, %v7890
      %v7923 = vadd.f32 %v7859, %v7891
      %v7924 = vadd.f32 %v7860, %v7892
      %v7925 = vadd.f32 %v7861, %v7893
      %v7926 = vadd.f32 %v7862, %v7894
      %v7927 = vadd.f32 %v7863, %v7895
      %v7928 = vadd.f32 %v7864, %v7896
      %v7929 = vadd.f32 %v7865, %v7897
      %v7930 = vadd.f32 %v7866, %v7898
      %v7931 = vtanh.pop %v7899
      %v7932 = vtanh.pop %v7900
      %v7933 = vtanh.pop %v7901
      %v7934 = vtanh.pop %v7902
      %v7935 = vtanh.pop %v7903
      %v7936 = vtanh.pop %v7904
      %v7937 = vtanh.pop %v7905
      %v7938 = vtanh.pop %v7906
      %v7939 = vtanh.pop %v7907
      %v7940 = vtanh.pop %v7908
      %v7941 = vtanh.pop %v7909
      %v7942 = vtanh.pop %v7910
      %v7943 = vtanh.pop %v7911
      %v7944 = vtanh.pop %v7912
      %v7945 = vtanh.pop %v7913
      %v7946 = vtanh.pop %v7914
      %v7947 = vtanh.pop %v7915
      %v7948 = vtanh.pop %v7916
      %v7949 = vtanh.pop %v7917
      %v7950 = vtanh.pop %v7918
      %v7951 = vtanh.pop %v7919
      %v7952 = vtanh.pop %v7920
      %v7953 = vtanh.pop %v7921
      %v7954 = vtanh.pop %v7922
      %v7955 = vtanh.pop %v7923
      %v7956 = vtanh.pop %v7924
      %v7957 = vtanh.pop %v7925
      %v7958 = vtanh.pop %v7926
      %v7959 = vtanh.pop %v7927
      %v7960 = vtanh.pop %v7928
      %v7961 = vtanh.pop %v7929
      %v7962 = vtanh.pop %v7930
      %v7963 = vmul.f32 %v7273, %v7931
      %v7964 = vmul.f32 %v7288, %v7932
      %v7965 = vmul.f32 %v7303, %v7933
      %v7966 = vmul.f32 %v7318, %v7934
      %v7967 = vmul.f32 %v7333, %v7935
      %v7968 = vmul.f32 %v7348, %v7936
      %v7969 = vmul.f32 %v7363, %v7937
      %v7970 = vmul.f32 %v7378, %v7938
      %v7971 = vmul.f32 %v7393, %v7939
      %v7972 = vmul.f32 %v7408, %v7940
      %v7973 = vmul.f32 %v7423, %v7941
      %v7974 = vmul.f32 %v7438, %v7942
      %v7975 = vmul.f32 %v7453, %v7943
      %v7976 = vmul.f32 %v7468, %v7944
      %v7977 = vmul.f32 %v7483, %v7945
      %v7978 = vmul.f32 %v7498, %v7946
      %v7979 = vmul.f32 %v7513, %v7947
      %v7980 = vmul.f32 %v7528, %v7948
      %v7981 = vmul.f32 %v7543, %v7949
      %v7982 = vmul.f32 %v7558, %v7950
      %v7983 = vmul.f32 %v7573, %v7951
      %v7984 = vmul.f32 %v7588, %v7952
      %v7985 = vmul.f32 %v7603, %v7953
      %v7986 = vmul.f32 %v7618, %v7954
      %v7987 = vmul.f32 %v7633, %v7955
      %v7988 = vmul.f32 %v7648, %v7956
      %v7989 = vmul.f32 %v7663, %v7957
      %v7990 = vmul.f32 %v7678, %v7958
      %v7991 = vmul.f32 %v7693, %v7959
      %v7992 = vmul.f32 %v7708, %v7960
      %v7993 = vmul.f32 %v7723, %v7961
      %v7994 = vmul.f32 %v7738, %v7962
      %8027 = vrot.lane.b32.xlu0 %v7963, 32
      %v8028 = vpop.permute.xlu0 %8027
      %8029 = vrot.lane.b32.xlu0 %v7964, 32
      %v8030 = vpop.permute.xlu0 %8029
      %8031 = vrot.lane.b32.xlu0 %v7965, 32
      %v8032 = vpop.permute.xlu0 %8031
      %8033 = vrot.lane.b32.xlu0 %v7966, 32
      %v8034 = vpop.permute.xlu0 %8033
      %8035 = vrot.lane.b32.xlu0 %v7967, 32
      %v8036 = vpop.permute.xlu0 %8035
      %8037 = vrot.lane.b32.xlu0 %v7968, 32
      %v8038 = vpop.permute.xlu0 %8037
      %8039 = vrot.lane.b32.xlu0 %v7969, 32
      %v8040 = vpop.permute.xlu0 %8039
      %8041 = vrot.lane.b32.xlu0 %v7970, 32
      %v8042 = vpop.permute.xlu0 %8041
      %8043 = vrot.lane.b32.xlu0 %v7971, 32
      %v8044 = vpop.permute.xlu0 %8043
      %8045 = vrot.lane.b32.xlu0 %v7972, 32
      %v8046 = vpop.permute.xlu0 %8045
      %8047 = vrot.lane.b32.xlu0 %v7973, 32
      %v8048 = vpop.permute.xlu0 %8047
      %8049 = vrot.lane.b32.xlu0 %v7974, 32
      %v8050 = vpop.permute.xlu0 %8049
      %8051 = vrot.lane.b32.xlu0 %v7975, 32
      %v8052 = vpop.permute.xlu0 %8051
      %8053 = vrot.lane.b32.xlu0 %v7976, 32
      %v8054 = vpop.permute.xlu0 %8053
      %8055 = vrot.lane.b32.xlu0 %v7977, 32
      %v8056 = vpop.permute.xlu0 %8055
      %8057 = vrot.lane.b32.xlu0 %v7978, 32
      %v8058 = vpop.permute.xlu0 %8057
      %8059 = vrot.lane.b32.xlu0 %v7979, 32
      %v8060 = vpop.permute.xlu0 %8059
      %8061 = vrot.lane.b32.xlu0 %v7980, 32
      %v8062 = vpop.permute.xlu0 %8061
      %8063 = vrot.lane.b32.xlu0 %v7981, 32
      %v8064 = vpop.permute.xlu0 %8063
      %8065 = vrot.lane.b32.xlu0 %v7982, 32
      %v8066 = vpop.permute.xlu0 %8065
      %8067 = vrot.lane.b32.xlu0 %v7983, 32
      %v8068 = vpop.permute.xlu0 %8067
      %8069 = vrot.lane.b32.xlu0 %v7984, 32
      %v8070 = vpop.permute.xlu0 %8069
      %8071 = vrot.lane.b32.xlu0 %v7985, 32
      %v8072 = vpop.permute.xlu0 %8071
      %8073 = vrot.lane.b32.xlu0 %v7986, 32
      %v8074 = vpop.permute.xlu0 %8073
      %8075 = vrot.lane.b32.xlu0 %v7987, 32
      %v8076 = vpop.permute.xlu0 %8075
      %8077 = vrot.lane.b32.xlu0 %v7988, 32
      %v8078 = vpop.permute.xlu0 %8077
      %8079 = vrot.lane.b32.xlu0 %v7989, 32
      %v8080 = vpop.permute.xlu0 %8079
      %8081 = vrot.lane.b32.xlu0 %v7990, 32
      %v8082 = vpop.permute.xlu0 %8081
      %8083 = vrot.lane.b32.xlu0 %v7991, 32
      %v8084 = vpop.permute.xlu0 %8083
      %8085 = vrot.lane.b32.xlu0 %v7992, 32
      %v8086 = vpop.permute.xlu0 %8085
      %8087 = vrot.lane.b32.xlu0 %v7993, 32
      %v8088 = vpop.permute.xlu0 %8087
      %8089 = vrot.lane.b32.xlu0 %v7994, 32
      %v8090 = vpop.permute.xlu0 %8089
      %vm8123 = vcmask 523520
      %8124 = vst.msk [vmem:[%s297] sm:$0xff] %vm8123, %v8028
      %8125 = vst.msk [vmem:[%s297 + $0x8] sm:$0xff] %vm8123, %v8030
      %8126 = vst.msk [vmem:[%s297 + $0x10] sm:$0xff] %vm8123, %v8032
      %8127 = vst.msk [vmem:[%s297 + $0x18] sm:$0xff] %vm8123, %v8034
      %8128 = vst.msk [vmem:[%s297 + $0x20] sm:$0xff] %vm8123, %v8036
      %8129 = vst.msk [vmem:[%s297 + $0x28] sm:$0xff] %vm8123, %v8038
      %8130 = vst.msk [vmem:[%s297 + $0x30] sm:$0xff] %vm8123, %v8040
      %8131 = vst.msk [vmem:[%s297 + $0x38] sm:$0xff] %vm8123, %v8042
      %8132 = vst.msk [vmem:[%s297 + $0x40] sm:$0xff] %vm8123, %v8044
      %8133 = vst.msk [vmem:[%s297 + $0x48] sm:$0xff] %vm8123, %v8046
      %8134 = vst.msk [vmem:[%s297 + $0x50] sm:$0xff] %vm8123, %v8048
      %8135 = vst.msk [vmem:[%s297 + $0x58] sm:$0xff] %vm8123, %v8050
      %8136 = vst.msk [vmem:[%s297 + $0x60] sm:$0xff] %vm8123, %v8052
      %8137 = vst.msk [vmem:[%s297 + $0x68] sm:$0xff] %vm8123, %v8054
      %8138 = vst.msk [vmem:[%s297 + $0x70] sm:$0xff] %vm8123, %v8056
      %8139 = vst.msk [vmem:[%s297 + $0x78] sm:$0xff] %vm8123, %v8058
      %8140 = vst.msk [vmem:[%s297 + $0x80] sm:$0xff] %vm8123, %v8060
      %8141 = vst.msk [vmem:[%s297 + $0x88] sm:$0xff] %vm8123, %v8062
      %8142 = vst.msk [vmem:[%s297 + $0x90] sm:$0xff] %vm8123, %v8064
      %8143 = vst.msk [vmem:[%s297 + $0x98] sm:$0xff] %vm8123, %v8066
      %8144 = vst.msk [vmem:[%s297 + $0xa0] sm:$0xff] %vm8123, %v8068
      %8145 = vst.msk [vmem:[%s297 + $0xa8] sm:$0xff] %vm8123, %v8070
      %8146 = vst.msk [vmem:[%s297 + $0xb0] sm:$0xff] %vm8123, %v8072
      %8147 = vst.msk [vmem:[%s297 + $0xb8] sm:$0xff] %vm8123, %v8074
      %8148 = vst.msk [vmem:[%s297 + $0xc0] sm:$0xff] %vm8123, %v8076
      %8149 = vst.msk [vmem:[%s297 + $0xc8] sm:$0xff] %vm8123, %v8078
      %8150 = vst.msk [vmem:[%s297 + $0xd0] sm:$0xff] %vm8123, %v8080
      %8151 = vst.msk [vmem:[%s297 + $0xd8] sm:$0xff] %vm8123, %v8082
      %8152 = vst.msk [vmem:[%s297 + $0xe0] sm:$0xff] %vm8123, %v8084
      %8153 = vst.msk [vmem:[%s297 + $0xe8] sm:$0xff] %vm8123, %v8086
      %8154 = vst.msk [vmem:[%s297 + $0xf0] sm:$0xff] %vm8123, %v8088
      %8155 = vst.msk [vmem:[%s297 + $0xf8] sm:$0xff] %vm8123, %v8090
      %8188 = vrot.lane.b32.xlu0 %v7899, 96
      %v8189 = vpop.permute.xlu0 %8188
      %8190 = vrot.lane.b32.xlu0 %v7900, 96
      %v8191 = vpop.permute.xlu0 %8190
      %8192 = vrot.lane.b32.xlu0 %v7901, 96
      %v8193 = vpop.permute.xlu0 %8192
      %8194 = vrot.lane.b32.xlu0 %v7902, 96
      %v8195 = vpop.permute.xlu0 %8194
      %8196 = vrot.lane.b32.xlu0 %v7903, 96
      %v8197 = vpop.permute.xlu0 %8196
      %8198 = vrot.lane.b32.xlu0 %v7904, 96
      %v8199 = vpop.permute.xlu0 %8198
      %8200 = vrot.lane.b32.xlu0 %v7905, 96
      %v8201 = vpop.permute.xlu0 %8200
      %8202 = vrot.lane.b32.xlu0 %v7906, 96
      %v8203 = vpop.permute.xlu0 %8202
      %8204 = vrot.lane.b32.xlu0 %v7907, 96
      %v8205 = vpop.permute.xlu0 %8204
      %8206 = vrot.lane.b32.xlu0 %v7908, 96
      %v8207 = vpop.permute.xlu0 %8206
      %8208 = vrot.lane.b32.xlu0 %v7909, 96
      %v8209 = vpop.permute.xlu0 %8208
      %8210 = vrot.lane.b32.xlu0 %v7910, 96
      %v8211 = vpop.permute.xlu0 %8210
      %8212 = vrot.lane.b32.xlu0 %v7911, 96
      %v8213 = vpop.permute.xlu0 %8212
      %8214 = vrot.lane.b32.xlu0 %v7912, 96
      %v8215 = vpop.permute.xlu0 %8214
      %8216 = vrot.lane.b32.xlu0 %v7913, 96
      %v8217 = vpop.permute.xlu0 %8216
      %8218 = vrot.lane.b32.xlu0 %v7914, 96
      %v8219 = vpop.permute.xlu0 %8218
      %8220 = vrot.lane.b32.xlu0 %v7915, 96
      %v8221 = vpop.permute.xlu0 %8220
      %8222 = vrot.lane.b32.xlu0 %v7916, 96
      %v8223 = vpop.permute.xlu0 %8222
      %8224 = vrot.lane.b32.xlu0 %v7917, 96
      %v8225 = vpop.permute.xlu0 %8224
      %8226 = vrot.lane.b32.xlu0 %v7918, 96
      %v8227 = vpop.permute.xlu0 %8226
      %8228 = vrot.lane.b32.xlu0 %v7919, 96
      %v8229 = vpop.permute.xlu0 %8228
      %8230 = vrot.lane.b32.xlu0 %v7920, 96
      %v8231 = vpop.permute.xlu0 %8230
      %8232 = vrot.lane.b32.xlu0 %v7921, 96
      %v8233 = vpop.permute.xlu0 %8232
      %8234 = vrot.lane.b32.xlu0 %v7922, 96
      %v8235 = vpop.permute.xlu0 %8234
      %8236 = vrot.lane.b32.xlu0 %v7923, 96
      %v8237 = vpop.permute.xlu0 %8236
      %8238 = vrot.lane.b32.xlu0 %v7924, 96
      %v8239 = vpop.permute.xlu0 %8238
      %8240 = vrot.lane.b32.xlu0 %v7925, 96
      %v8241 = vpop.permute.xlu0 %8240
      %8242 = vrot.lane.b32.xlu0 %v7926, 96
      %v8243 = vpop.permute.xlu0 %8242
      %8244 = vrot.lane.b32.xlu0 %v7927, 96
      %v8245 = vpop.permute.xlu0 %8244
      %8246 = vrot.lane.b32.xlu0 %v7928, 96
      %v8247 = vpop.permute.xlu0 %8246
      %8248 = vrot.lane.b32.xlu0 %v7929, 96
      %v8249 = vpop.permute.xlu0 %8248
      %8250 = vrot.lane.b32.xlu0 %v7930, 96
      %v8251 = vpop.permute.xlu0 %8250
      %vm8284 = vcmask 1048320
      %8285 = vst.msk [vmem:[%s297] sm:$0xff] %vm8284, %v8189
      %8286 = vst.msk [vmem:[%s297 + $0x8] sm:$0xff] %vm8284, %v8191
      %8287 = vst.msk [vmem:[%s297 + $0x10] sm:$0xff] %vm8284, %v8193
      %8288 = vst.msk [vmem:[%s297 + $0x18] sm:$0xff] %vm8284, %v8195
      %8289 = vst.msk [vmem:[%s297 + $0x20] sm:$0xff] %vm8284, %v8197
      %8290 = vst.msk [vmem:[%s297 + $0x28] sm:$0xff] %vm8284, %v8199
      %8291 = vst.msk [vmem:[%s297 + $0x30] sm:$0xff] %vm8284, %v8201
      %8292 = vst.msk [vmem:[%s297 + $0x38] sm:$0xff] %vm8284, %v8203
      %8293 = vst.msk [vmem:[%s297 + $0x40] sm:$0xff] %vm8284, %v8205
      %8294 = vst.msk [vmem:[%s297 + $0x48] sm:$0xff] %vm8284, %v8207
      %8295 = vst.msk [vmem:[%s297 + $0x50] sm:$0xff] %vm8284, %v8209
      %8296 = vst.msk [vmem:[%s297 + $0x58] sm:$0xff] %vm8284, %v8211
      %8297 = vst.msk [vmem:[%s297 + $0x60] sm:$0xff] %vm8284, %v8213
      %8298 = vst.msk [vmem:[%s297 + $0x68] sm:$0xff] %vm8284, %v8215
      %8299 = vst.msk [vmem:[%s297 + $0x70] sm:$0xff] %vm8284, %v8217
      %8300 = vst.msk [vmem:[%s297 + $0x78] sm:$0xff] %vm8284, %v8219
      %8301 = vst.msk [vmem:[%s297 + $0x80] sm:$0xff] %vm8284, %v8221
      %8302 = vst.msk [vmem:[%s297 + $0x88] sm:$0xff] %vm8284, %v8223
      %8303 = vst.msk [vmem:[%s297 + $0x90] sm:$0xff] %vm8284, %v8225
      %8304 = vst.msk [vmem:[%s297 + $0x98] sm:$0xff] %vm8284, %v8227
      %8305 = vst.msk [vmem:[%s297 + $0xa0] sm:$0xff] %vm8284, %v8229
      %8306 = vst.msk [vmem:[%s297 + $0xa8] sm:$0xff] %vm8284, %v8231
      %8307 = vst.msk [vmem:[%s297 + $0xb0] sm:$0xff] %vm8284, %v8233
      %8308 = vst.msk [vmem:[%s297 + $0xb8] sm:$0xff] %vm8284, %v8235
      %8309 = vst.msk [vmem:[%s297 + $0xc0] sm:$0xff] %vm8284, %v8237
      %8310 = vst.msk [vmem:[%s297 + $0xc8] sm:$0xff] %vm8284, %v8239
      %8311 = vst.msk [vmem:[%s297 + $0xd0] sm:$0xff] %vm8284, %v8241
      %8312 = vst.msk [vmem:[%s297 + $0xd8] sm:$0xff] %vm8284, %v8243
      %8313 = vst.msk [vmem:[%s297 + $0xe0] sm:$0xff] %vm8284, %v8245
      %8314 = vst.msk [vmem:[%s297 + $0xe8] sm:$0xff] %vm8284, %v8247
      %8315 = vst.msk [vmem:[%s297 + $0xf0] sm:$0xff] %vm8284, %v8249
      %8316 = vst.msk [vmem:[%s297 + $0xf8] sm:$0xff] %vm8284, %v8251
      %s8317 = smul.u32 32, %s17
      %p8318 = scmp.lt.s32.totalorder %s8317, 63
      %s8319 = scalar_select %p8318, %s8317, 63
      %s8320 = smul.addr %s8319, 8
      %s8321 = scalar_lea.vmem %s6, %s8320
      // Predicated region
      $region45: #{lstm_combiner_forward.1} parent=43 // pred_check
        %p8322 = pneg %p176
      $region46: #{lstm_combiner_forward.1} parent=43 // pred_check_branch
        %8324 = sbr.rel (%p8322) target = $region48
      $region47: #{lstm_combiner_forward.1} parent=43 // pred_region
        %s8325 = smul.u32 32, %s17
      $region48: #{lstm_combiner_forward.1} parent=43 // pred_fallthru
        _
    $region44: #{lstm_combiner_forward.1} parent=5 // pred_fallthru
      _
    %p8326 = scmp.le.s32.totalorder 2, %s12
    // Predicated region
    $region49: #{lstm_combiner_forward.1} parent=5 // pred_check
      %p8327 = pneg %p8326
    $region50: #{lstm_combiner_forward.1} parent=5 // pred_check_branch
      %8329 = sbr.rel (%p8327) target = $region52
    $region51: #{lstm_combiner_forward.1} parent=5 // pred_region
      %s8330 = ssub.s32 %s12, 2
      // Predicated region
      $region53: #{lstm_combiner_forward.1} parent=51 // pred_check
        %p8331 = pneg %p182
      $region54: #{lstm_combiner_forward.1} parent=51 // pred_check_branch
        %8333 = sbr.rel (%p8331) target = $region56
      $region55: #{lstm_combiner_forward.1} parent=51 // pred_region
        %s8334 = smul.u32 32, %s18
        %p8335 = scmp.lt.s32.totalorder %s8334, 63
        %s8336 = scalar_select %p8335, %s8334, 63
        %s8337 = smul.addr %s8336, 8
        %s8338 = scalar_lea.vmem %s6, %s8337
      $region56: #{lstm_combiner_forward.1} parent=51 // pred_fallthru
        _
    $region52: #{lstm_combiner_forward.1} parent=5 // pred_fallthru
      _
  $region6: #{lstm_combiner_forward.1} parent=0 // loop_footer
    %s16 = sadd.s32 1, %s12
  $region7: #{lstm_combiner_forward.1} parent=0 // loop_footer_branch
    %11 = sbr.rel target = $region3
  $region8: #{lstm_combiner_forward.1} parent=0 // loop_exit
    _

</llo_original>
